<compile_context>
chip_gen: v7x
topology: tpu7x:2x2x1
jax: 0.10.0
libtpu: 0.0.40
codegen_flags: <defaults>
</compile_context>

<pallas_src>
import functools

import jax
import jax.numpy as jnp
from jax.experimental import pallas as pl
from jax.experimental.pallas import tpu as pltpu

LANE = 128


def _round_up(x, m):
    return (x + m - 1) // m * m


# ----------------------------- Pallas kernels -------------------------------

def conv_block_kernel(x_ref, w_ref, b_ref, w1_ref, w2_ref, o_ref, pool_ref, *, H, W):
    """Fused ConvBlock for one batch element (channels padded to 128 lanes).

    x_ref  : (1, H+2, W+2, Cin_p)  halo-padded NHWC input tile (f32)
    w_ref  : (9, Cin_p, Cout_p)    conv weights, k = ky*3+kx       (bf16)
    b_ref  : (1, Cout_p)           conv bias                        (f32)
    w1_ref : (Cout_p, Cr_p)        SE squeeze weights (no bias)     (f32)
    w2_ref : (Cr_p, Cout_p)        SE excite  weights (no bias)     (f32)
    o_ref  : (1, Hp*Wp, Cout_p)    block output (f32)
    pool_ref: VMEM scratch (Hp*W, Cout_p) f32 for the W-direction pool.
    """
    Hp, Wp = H // 2, W // 2
    Cin = x_ref.shape[-1]
    Cout = o_ref.shape[-1]

    # --- conv3x3(pad=1): in-kernel im2col as 9 accumulated MXU matmuls --------
    acc = jnp.zeros((H * W, Cout), jnp.float32)
    for ky in range(3):
        for kx in range(3):
            xs = x_ref[0, ky:ky + H, kx:kx + W, :]            # (H, W, Cin_p)
            xs = xs.reshape(H * W, Cin).astype(jnp.bfloat16)  # lane-dense LHS
            acc = acc + jnp.dot(xs, w_ref[ky * 3 + kx],
                                preferred_element_type=jnp.float32)
    conv = acc + b_ref[...]                                    # (H*W, Cout_p)

    # --- 2x2 max-pool ---------------------------------------------------------
    # H direction: split the leading dim (layout-preserving) and reduce.
    ph = jnp.max(conv.reshape(Hp, 2, W, Cout), axis=1)         # (Hp, W, Cout_p)
    # W direction: write to scratch, read even/odd columns with stride-2 loads.
    pool_ref[...] = ph.reshape(Hp * W, Cout)
    even = pool_ref[pl.ds(0, Hp * Wp, stride=2), :]
    odd = pool_ref[pl.ds(1, Hp * Wp, stride=2), :]
    pooled = jnp.maximum(even, odd)                            # (Hp*Wp, Cout_p)

    # --- SE: GAP -> FC -> ReLU -> FC -> sigmoid -> scale, then final ReLU -----
    gap = jnp.mean(pooled, axis=0, keepdims=True)              # (1, Cout_p)
    z = jnp.maximum(
        jnp.dot(gap, w1_ref[...], preferred_element_type=jnp.float32), 0.0)
    s = jax.nn.sigmoid(
        jnp.dot(z, w2_ref[...], preferred_element_type=jnp.float32))
    o_ref[0] = jnp.maximum(pooled * s, 0.0).astype(o_ref.dtype)


def fc_kernel(x_ref, w_ref, o_ref):
    """Final classifier: o = x @ w (fc_bias=False); bf16 MXU, f32 accumulate."""
    o_ref[...] = jnp.dot(x_ref[...].astype(jnp.bfloat16), w_ref[...],
                         preferred_element_type=jnp.float32)


# ------------------------------ Pallas wrappers ------------------------------

def conv_block(x, blk):
    """One ConvBlock on padded-channel NHWC input x: (N, H, W, Cin_p) -> (N, H/2, W/2, Cout_p)."""
    n, h, w, cp_in = x.shape
    assert h % 2 == 0 and w % 2 == 0, "2x2 max-pool requires even spatial dims"
    cp_out = blk["conv_w"].shape[-1]
    crp = blk["se_w1"].shape[-1]
    hp, wp = h // 2, w // 2

    # 3x3 halo pad (tiny, layout-only XLA op); im2col itself happens in-kernel.
    xpad = jnp.pad(x, ((0, 0), (1, 1), (1, 1), (0, 0)))

    kernel = functools.partial(conv_block_kernel, H=h, W=w)
    out = pl.pallas_call(
        kernel,
        out_shape=jax.ShapeDtypeStruct((n, hp * wp, cp_out), jnp.float32),
        grid=(n,),
        in_specs=[
            pl.BlockSpec((1, h + 2, w + 2, cp_in), lambda i: (i, 0, 0, 0)),
            pl.BlockSpec((9, cp_in, cp_out), lambda i: (0, 0, 0)),
            pl.BlockSpec((1, cp_out), lambda i: (0, 0)),
            pl.BlockSpec((cp_out, crp), lambda i: (0, 0)),
            pl.BlockSpec((crp, cp_out), lambda i: (0, 0)),
        ],
        out_specs=pl.BlockSpec((1, hp * wp, cp_out), lambda i: (i, 0, 0)),
        scratch_shapes=[pltpu.VMEM((hp * w, cp_out), jnp.float32)],
        compiler_params=pltpu.CompilerParams(
            dimension_semantics=("parallel",)),
    )(xpad, blk["conv_w"], blk["conv_b"], blk["se_w1"], blk["se_w2"])
    return out.reshape(n, hp, wp, cp_out)


def cnn_forward(x_nchw, params):
    """Full CNN forward: conv core -> flatten -> FC (bias-free)."""
    n, cin = x_nchw.shape[0], x_nchw.shape[1]
    cp_in0 = params["blocks"][0]["conv_w"].shape[1]

    x = jnp.transpose(x_nchw, (0, 2, 3, 1)).astype(jnp.float32)      # NCHW -> NHWC
    x = jnp.pad(x, ((0, 0), (0, 0), (0, 0), (0, cp_in0 - cin)))      # channels -> 128 lanes

    for blk in params["blocks"]:
        x = conv_block(x, blk)

    # Natural NHWC(+padded C) flatten; the NCHW-flatten permutation and the
    # channel/class padding are folded into fc_w at init time.
    feat = x.reshape(n, -1)
    k = feat.shape[1]
    ncp = params["fc_w"].shape[1]

    logits = pl.pallas_call(
        fc_kernel,
        out_shape=jax.ShapeDtypeStruct((n, ncp), jnp.float32),
        grid=(1,),
        in_specs=[pl.BlockSpec((n, k), lambda i: (0, 0)),
                  pl.BlockSpec((k, ncp), lambda i: (0, 0))],
        out_specs=pl.BlockSpec((n, ncp), lambda i: (0, 0)),
        compiler_params=pltpu.CompilerParams(
            dimension_semantics=("arbitrary",)),
    )(feat, params["fc_w"])
    return logits[:, :params["num_classes"]]


# ------------------------------ Parameter init -------------------------------

def init_params(key, in_channels, filters, reduction, num_classes, input_size):
    n_layers = len(filters)
    reductions = [reduction] * n_layers if isinstance(reduction, int) else list(reduction)
    keys = jax.random.split(key, 4 * n_layers + 1)
    blocks = []
    cin = in_channels
    ki = 0
    for li, cout in enumerate(filters):
        cr = max(cout // reductions[li], 1)
        cp_in, cp_out, crp = _round_up(cin, LANE), _round_up(cout, LANE), _round_up(cr, LANE)
        fan_in = 9 * cin

        w_hwio = jax.random.normal(keys[ki], (3, 3, cin, cout), jnp.float32) / jnp.sqrt(fan_in)
        conv_w = jnp.pad(w_hwio.reshape(9, cin, cout),
                         ((0, 0), (0, cp_in - cin), (0, cp_out - cout))).astype(jnp.bfloat16)
        conv_b = 0.01 * jax.random.normal(keys[ki + 1], (cout,), jnp.float32)
        conv_b = jnp.pad(conv_b, (0, cp_out - cout)).reshape(1, cp_out)
        se_w1 = jax.random.normal(keys[ki + 2], (cout, cr), jnp.float32) / jnp.sqrt(cout)
        se_w1 = jnp.pad(se_w1, ((0, cp_out - cout), (0, crp - cr)))
        se_w2 = jax.random.normal(keys[ki + 3], (cr, cout), jnp.float32) / jnp.sqrt(cr)
        se_w2 = jnp.pad(se_w2, ((0, crp - cr), (0, cp_out - cout)))

        blocks.append({"conv_w": conv_w, "conv_b": conv_b,
                       "se_w1": se_w1, "se_w2": se_w2})
        ki += 4
        cin = cout

    h_out = input_size[0] // (2 ** n_layers)
    w_out = input_size[1] // (2 ** n_layers)
    c_last = filters[-1]
    cp_last = _round_up(c_last, LANE)
    ncp = _round_up(num_classes, LANE)
    fc_in = c_last * h_out * w_out

    fc = jax.random.normal(keys[ki], (fc_in, num_classes), jnp.float32) / jnp.sqrt(fc_in)
    # Fold PyTorch's NCHW flatten (rows ordered (c, h, w)) + channel/class padding
    # into the FC weight so the kernel-side flatten can stay NHWC and lane-dense.
    fc4 = jnp.transpose(fc.reshape(c_last, h_out, w_out, num_classes), (1, 2, 0, 3))
    fc4 = jnp.pad(fc4, ((0, 0), (0, 0), (0, cp_last - c_last), (0, 0)))
    fc_w = jnp.pad(fc4.reshape(h_out * w_out * cp_last, num_classes),
                   ((0, 0), (0, ncp - num_classes))).astype(jnp.bfloat16)

    return {"blocks": blocks, "fc_w": fc_w, "num_classes": num_classes}


# ----------------------------------- Main ------------------------------------

if __name__ == "__main__":
    # Small, shape-consistent config: CNN(num_classes=5, in_channels=1,
    #   filters=(8, 16), reduction=4, dropout=0.25, pool='flatten',
    #   input_size=(16, 16), fc_bias=False)
    num_classes = 5
    in_channels = 1
    filters = (8, 16)
    reduction = 4
    input_size = (16, 16)
    batch = 2

    params = init_params(jax.random.PRNGKey(1), in_channels, filters,
                         reduction, num_classes, input_size)

    x = jax.random.normal(jax.random.PRNGKey(0),
                          (batch, in_channels, input_size[0], input_size[1]),
                          jnp.float32)

    fwd = jax.jit(functools.partial(cnn_forward, params=params))
    logits = fwd(x)
    jax.block_until_ready(logits)
    assert logits.shape == (batch, num_classes)
    print("KERNEL_OK")
</pallas_src>

<mosaic_0001>
module attributes {stable_mosaic.version = 11 : i64} {
  func.func @conv_block_kernel(%arg0: i32, %arg1: memref<1x18x18x128xf32, #tpu.memory_space<vmem>>, %arg2: memref<9x128x128xbf16, #tpu.memory_space<vmem>>, %arg3: memref<1x128xf32, #tpu.memory_space<vmem>>, %arg4: memref<128x128xf32, #tpu.memory_space<vmem>>, %arg5: memref<128x128xf32, #tpu.memory_space<vmem>>, %arg6: memref<1x64x128xf32, #tpu.memory_space<vmem>>, %arg7: memref<128x128xf32, #tpu.memory_space<vmem>>) attributes {dimension_semantics = [#tpu.dimension_semantics<parallel>], iteration_bounds = array<i64: 2>, scalar_prefetch = 0 : i64, scratch_operands = 1 : i64, tpu.core_type = #tpu.core_type<tc>, window_params = [{transform_indices = @transform_0, window_bounds = array<i64: 1, 18, 18, 128>}, {pipeline_mode = #tpu.pipeline_mode<synchronous>, transform_indices = @transform_1, window_bounds = array<i64: 9, 128, 128>}, {pipeline_mode = #tpu.pipeline_mode<synchronous>, transform_indices = @transform_2, window_bounds = array<i64: 1, 128>}, {pipeline_mode = #tpu.pipeline_mode<synchronous>, transform_indices = @transform_3, window_bounds = array<i64: 128, 128>}, {pipeline_mode = #tpu.pipeline_mode<synchronous>, transform_indices = @transform_4, window_bounds = array<i64: 128, 128>}, {transform_indices = @transform_5, window_bounds = array<i64: 1, 64, 128>}]} {
    %cst = arith.constant 0.000000e+00 : f32
    %0 = vector.broadcast %cst : f32 to vector<256x128xf32>
    %c0 = arith.constant 0 : index
    %c0_0 = arith.constant 0 : index
    %c0_1 = arith.constant 0 : index
    %c0_2 = arith.constant 0 : index
    %1 = vector.load %arg1[%c0, %c0_0, %c0_1, %c0_2] : memref<1x18x18x128xf32, #tpu.memory_space<vmem>>, vector<1x16x16x128xf32>
    %2 = vector.shape_cast %1 : vector<1x16x16x128xf32> to vector<16x16x128xf32>
    %3 = vector.shape_cast %2 : vector<16x16x128xf32> to vector<256x128xf32>
    %4 = arith.truncf %3 : vector<256x128xf32> to vector<256x128xbf16>
    %c0_3 = arith.constant 0 : index
    %c0_4 = arith.constant 0 : index
    %c0_5 = arith.constant 0 : index
    %5 = vector.load %arg2[%c0_3, %c0_4, %c0_5] : memref<9x128x128xbf16, #tpu.memory_space<vmem>>, vector<1x128x128xbf16>
    %6 = vector.shape_cast %5 : vector<1x128x128xbf16> to vector<128x128xbf16>
    %cst_6 = arith.constant dense<0.000000e+00> : vector<256x128xf32>
    %7 = tpu.matmul %4, %6, %cst_6 {dimension_numbers = #tpu.dot_dimension_numbers<[1], [0], [0], [1], [0, 0, 1, 1], [], []>} : vector<256x128xbf16>, vector<128x128xbf16>, vector<256x128xf32> -> vector<256x128xf32>
    %8 = arith.addf %0, %7 : vector<256x128xf32>
    %c0_7 = arith.constant 0 : index
    %c0_8 = arith.constant 0 : index
    %c1 = arith.constant 1 : index
    %c0_9 = arith.constant 0 : index
    %9 = vector.load %arg1[%c0_7, %c0_8, %c1, %c0_9] : memref<1x18x18x128xf32, #tpu.memory_space<vmem>>, vector<1x16x16x128xf32>
    %10 = vector.shape_cast %9 : vector<1x16x16x128xf32> to vector<16x16x128xf32>
    %11 = vector.shape_cast %10 : vector<16x16x128xf32> to vector<256x128xf32>
    %12 = arith.truncf %11 : vector<256x128xf32> to vector<256x128xbf16>
    %c1_10 = arith.constant 1 : index
    %c0_11 = arith.constant 0 : index
    %c0_12 = arith.constant 0 : index
    %13 = vector.load %arg2[%c1_10, %c0_11, %c0_12] : memref<9x128x128xbf16, #tpu.memory_space<vmem>>, vector<1x128x128xbf16>
    %14 = vector.shape_cast %13 : vector<1x128x128xbf16> to vector<128x128xbf16>
    %cst_13 = arith.constant dense<0.000000e+00> : vector<256x128xf32>
    %15 = tpu.matmul %12, %14, %cst_13 {dimension_numbers = #tpu.dot_dimension_numbers<[1], [0], [0], [1], [0, 0, 1, 1], [], []>} : vector<256x128xbf16>, vector<128x128xbf16>, vector<256x128xf32> -> vector<256x128xf32>
    %16 = arith.addf %8, %15 : vector<256x128xf32>
    %c0_14 = arith.constant 0 : index
    %c0_15 = arith.constant 0 : index
    %c2 = arith.constant 2 : index
    %c0_16 = arith.constant 0 : index
    %17 = vector.load %arg1[%c0_14, %c0_15, %c2, %c0_16] : memref<1x18x18x128xf32, #tpu.memory_space<vmem>>, vector<1x16x16x128xf32>
    %18 = vector.shape_cast %17 : vector<1x16x16x128xf32> to vector<16x16x128xf32>
    %19 = vector.shape_cast %18 : vector<16x16x128xf32> to vector<256x128xf32>
    %20 = arith.truncf %19 : vector<256x128xf32> to vector<256x128xbf16>
    %c2_17 = arith.constant 2 : index
    %c0_18 = arith.constant 0 : index
    %c0_19 = arith.constant 0 : index
    %21 = vector.load %arg2[%c2_17, %c0_18, %c0_19] : memref<9x128x128xbf16, #tpu.memory_space<vmem>>, vector<1x128x128xbf16>
    %22 = vector.shape_cast %21 : vector<1x128x128xbf16> to vector<128x128xbf16>
    %cst_20 = arith.constant dense<0.000000e+00> : vector<256x128xf32>
    %23 = tpu.matmul %20, %22, %cst_20 {dimension_numbers = #tpu.dot_dimension_numbers<[1], [0], [0], [1], [0, 0, 1, 1], [], []>} : vector<256x128xbf16>, vector<128x128xbf16>, vector<256x128xf32> -> vector<256x128xf32>
    %24 = arith.addf %16, %23 : vector<256x128xf32>
    %c0_21 = arith.constant 0 : index
    %c1_22 = arith.constant 1 : index
    %c0_23 = arith.constant 0 : index
    %c0_24 = arith.constant 0 : index
    %25 = vector.load %arg1[%c0_21, %c1_22, %c0_23, %c0_24] : memref<1x18x18x128xf32, #tpu.memory_space<vmem>>, vector<1x16x16x128xf32>
    %26 = vector.shape_cast %25 : vector<1x16x16x128xf32> to vector<16x16x128xf32>
    %27 = vector.shape_cast %26 : vector<16x16x128xf32> to vector<256x128xf32>
    %28 = arith.truncf %27 : vector<256x128xf32> to vector<256x128xbf16>
    %c3 = arith.constant 3 : index
    %c0_25 = arith.constant 0 : index
    %c0_26 = arith.constant 0 : index
    %29 = vector.load %arg2[%c3, %c0_25, %c0_26] : memref<9x128x128xbf16, #tpu.memory_space<vmem>>, vector<1x128x128xbf16>
    %30 = vector.shape_cast %29 : vector<1x128x128xbf16> to vector<128x128xbf16>
    %cst_27 = arith.constant dense<0.000000e+00> : vector<256x128xf32>
    %31 = tpu.matmul %28, %30, %cst_27 {dimension_numbers = #tpu.dot_dimension_numbers<[1], [0], [0], [1], [0, 0, 1, 1], [], []>} : vector<256x128xbf16>, vector<128x128xbf16>, vector<256x128xf32> -> vector<256x128xf32>
    %32 = arith.addf %24, %31 : vector<256x128xf32>
    %c0_28 = arith.constant 0 : index
    %c1_29 = arith.constant 1 : index
    %c1_30 = arith.constant 1 : index
    %c0_31 = arith.constant 0 : index
    %33 = vector.load %arg1[%c0_28, %c1_29, %c1_30, %c0_31] : memref<1x18x18x128xf32, #tpu.memory_space<vmem>>, vector<1x16x16x128xf32>
    %34 = vector.shape_cast %33 : vector<1x16x16x128xf32> to vector<16x16x128xf32>
    %35 = vector.shape_cast %34 : vector<16x16x128xf32> to vector<256x128xf32>
    %36 = arith.truncf %35 : vector<256x128xf32> to vector<256x128xbf16>
    %c4 = arith.constant 4 : index
    %c0_32 = arith.constant 0 : index
    %c0_33 = arith.constant 0 : index
    %37 = vector.load %arg2[%c4, %c0_32, %c0_33] : memref<9x128x128xbf16, #tpu.memory_space<vmem>>, vector<1x128x128xbf16>
    %38 = vector.shape_cast %37 : vector<1x128x128xbf16> to vector<128x128xbf16>
    %cst_34 = arith.constant dense<0.000000e+00> : vector<256x128xf32>
    %39 = tpu.matmul %36, %38, %cst_34 {dimension_numbers = #tpu.dot_dimension_numbers<[1], [0], [0], [1], [0, 0, 1, 1], [], []>} : vector<256x128xbf16>, vector<128x128xbf16>, vector<256x128xf32> -> vector<256x128xf32>
    %40 = arith.addf %32, %39 : vector<256x128xf32>
    %c0_35 = arith.constant 0 : index
    %c1_36 = arith.constant 1 : index
    %c2_37 = arith.constant 2 : index
    %c0_38 = arith.constant 0 : index
    %41 = vector.load %arg1[%c0_35, %c1_36, %c2_37, %c0_38] : memref<1x18x18x128xf32, #tpu.memory_space<vmem>>, vector<1x16x16x128xf32>
    %42 = vector.shape_cast %41 : vector<1x16x16x128xf32> to vector<16x16x128xf32>
    %43 = vector.shape_cast %42 : vector<16x16x128xf32> to vector<256x128xf32>
    %44 = arith.truncf %43 : vector<256x128xf32> to vector<256x128xbf16>
    %c5 = arith.constant 5 : index
    %c0_39 = arith.constant 0 : index
    %c0_40 = arith.constant 0 : index
    %45 = vector.load %arg2[%c5, %c0_39, %c0_40] : memref<9x128x128xbf16, #tpu.memory_space<vmem>>, vector<1x128x128xbf16>
    %46 = vector.shape_cast %45 : vector<1x128x128xbf16> to vector<128x128xbf16>
    %cst_41 = arith.constant dense<0.000000e+00> : vector<256x128xf32>
    %47 = tpu.matmul %44, %46, %cst_41 {dimension_numbers = #tpu.dot_dimension_numbers<[1], [0], [0], [1], [0, 0, 1, 1], [], []>} : vector<256x128xbf16>, vector<128x128xbf16>, vector<256x128xf32> -> vector<256x128xf32>
    %48 = arith.addf %40, %47 : vector<256x128xf32>
    %c0_42 = arith.constant 0 : index
    %c2_43 = arith.constant 2 : index
    %c0_44 = arith.constant 0 : index
    %c0_45 = arith.constant 0 : index
    %49 = vector.load %arg1[%c0_42, %c2_43, %c0_44, %c0_45] : memref<1x18x18x128xf32, #tpu.memory_space<vmem>>, vector<1x16x16x128xf32>
    %50 = vector.shape_cast %49 : vector<1x16x16x128xf32> to vector<16x16x128xf32>
    %51 = vector.shape_cast %50 : vector<16x16x128xf32> to vector<256x128xf32>
    %52 = arith.truncf %51 : vector<256x128xf32> to vector<256x128xbf16>
    %c6 = arith.constant 6 : index
    %c0_46 = arith.constant 0 : index
    %c0_47 = arith.constant 0 : index
    %53 = vector.load %arg2[%c6, %c0_46, %c0_47] : memref<9x128x128xbf16, #tpu.memory_space<vmem>>, vector<1x128x128xbf16>
    %54 = vector.shape_cast %53 : vector<1x128x128xbf16> to vector<128x128xbf16>
    %cst_48 = arith.constant dense<0.000000e+00> : vector<256x128xf32>
    %55 = tpu.matmul %52, %54, %cst_48 {dimension_numbers = #tpu.dot_dimension_numbers<[1], [0], [0], [1], [0, 0, 1, 1], [], []>} : vector<256x128xbf16>, vector<128x128xbf16>, vector<256x128xf32> -> vector<256x128xf32>
    %56 = arith.addf %48, %55 : vector<256x128xf32>
    %c0_49 = arith.constant 0 : index
    %c2_50 = arith.constant 2 : index
    %c1_51 = arith.constant 1 : index
    %c0_52 = arith.constant 0 : index
    %57 = vector.load %arg1[%c0_49, %c2_50, %c1_51, %c0_52] : memref<1x18x18x128xf32, #tpu.memory_space<vmem>>, vector<1x16x16x128xf32>
    %58 = vector.shape_cast %57 : vector<1x16x16x128xf32> to vector<16x16x128xf32>
    %59 = vector.shape_cast %58 : vector<16x16x128xf32> to vector<256x128xf32>
    %60 = arith.truncf %59 : vector<256x128xf32> to vector<256x128xbf16>
    %c7 = arith.constant 7 : index
    %c0_53 = arith.constant 0 : index
    %c0_54 = arith.constant 0 : index
    %61 = vector.load %arg2[%c7, %c0_53, %c0_54] : memref<9x128x128xbf16, #tpu.memory_space<vmem>>, vector<1x128x128xbf16>
    %62 = vector.shape_cast %61 : vector<1x128x128xbf16> to vector<128x128xbf16>
    %cst_55 = arith.constant dense<0.000000e+00> : vector<256x128xf32>
    %63 = tpu.matmul %60, %62, %cst_55 {dimension_numbers = #tpu.dot_dimension_numbers<[1], [0], [0], [1], [0, 0, 1, 1], [], []>} : vector<256x128xbf16>, vector<128x128xbf16>, vector<256x128xf32> -> vector<256x128xf32>
    %64 = arith.addf %56, %63 : vector<256x128xf32>
    %c0_56 = arith.constant 0 : index
    %c2_57 = arith.constant 2 : index
    %c2_58 = arith.constant 2 : index
    %c0_59 = arith.constant 0 : index
    %65 = vector.load %arg1[%c0_56, %c2_57, %c2_58, %c0_59] : memref<1x18x18x128xf32, #tpu.memory_space<vmem>>, vector<1x16x16x128xf32>
    %66 = vector.shape_cast %65 : vector<1x16x16x128xf32> to vector<16x16x128xf32>
    %67 = vector.shape_cast %66 : vector<16x16x128xf32> to vector<256x128xf32>
    %68 = arith.truncf %67 : vector<256x128xf32> to vector<256x128xbf16>
    %c8 = arith.constant 8 : index
    %c0_60 = arith.constant 0 : index
    %c0_61 = arith.constant 0 : index
    %69 = vector.load %arg2[%c8, %c0_60, %c0_61] : memref<9x128x128xbf16, #tpu.memory_space<vmem>>, vector<1x128x128xbf16>
    %70 = vector.shape_cast %69 : vector<1x128x128xbf16> to vector<128x128xbf16>
    %cst_62 = arith.constant dense<0.000000e+00> : vector<256x128xf32>
    %71 = tpu.matmul %68, %70, %cst_62 {dimension_numbers = #tpu.dot_dimension_numbers<[1], [0], [0], [1], [0, 0, 1, 1], [], []>} : vector<256x128xbf16>, vector<128x128xbf16>, vector<256x128xf32> -> vector<256x128xf32>
    %72 = arith.addf %64, %71 : vector<256x128xf32>
    %c0_63 = arith.constant 0 : index
    %c0_64 = arith.constant 0 : index
    %73 = vector.load %arg3[%c0_63, %c0_64] : memref<1x128xf32, #tpu.memory_space<vmem>>, vector<1x128xf32>
    %74 = vector.broadcast %73 : vector<1x128xf32> to vector<256x128xf32>
    %75 = arith.addf %72, %74 : vector<256x128xf32>
    %76 = vector.shape_cast %75 : vector<256x128xf32> to vector<8x2x16x128xf32>
    %cst_65 = arith.constant dense<0xFF800000> : vector<8x16x128xf32>
    %77 = vector.multi_reduction <maximumf>, %76, %cst_65 [1] : vector<8x2x16x128xf32> to vector<8x16x128xf32>
    %78 = vector.shape_cast %77 : vector<8x16x128xf32> to vector<128x128xf32>
    %c0_66 = arith.constant 0 : index
    %c0_67 = arith.constant 0 : index
    %79 = vector.load %arg7[%c0_66, %c0_67] : memref<128x128xf32, #tpu.memory_space<vmem>>, vector<128x128xf32>
    tpu.vector_store %arg7[%c0_66, %c0_67], %78 {strides = array<i32>} : memref<128x128xf32, #tpu.memory_space<vmem>>, vector<128x128xf32>,
    %c0_68 = arith.constant 0 : index
    %c0_69 = arith.constant 0 : index
    %80 = tpu.strided_load %arg7[%c0_68, %c0_69] {strides = array<i32: 2, 1>} : memref<128x128xf32, #tpu.memory_space<vmem>>, vector<64x128xf32>
    %c1_70 = arith.constant 1 : index
    %c0_71 = arith.constant 0 : index
    %81 = tpu.strided_load %arg7[%c1_70, %c0_71] {strides = array<i32: 2, 1>} : memref<128x128xf32, #tpu.memory_space<vmem>>, vector<64x128xf32>
    %82 = arith.maximumf %80, %81 : vector<64x128xf32>
    %cst_72 = arith.constant dense<0.000000e+00> : vector<128xf32>
    %83 = vector.multi_reduction <add>, %82, %cst_72 [0] : vector<64x128xf32> to vector<128xf32>
    %84 = vector.shape_cast %83 : vector<128xf32> to vector<1x128xf32>
    %cst_73 = arith.constant 6.400000e+01 : f32
    %85 = vector.broadcast %cst_73 : f32 to vector<1x128xf32>
    %86 = arith.divf %84, %85 : vector<1x128xf32>
    %c0_74 = arith.constant 0 : index
    %c0_75 = arith.constant 0 : index
    %87 = vector.load %arg4[%c0_74, %c0_75] : memref<128x128xf32, #tpu.memory_space<vmem>>, vector<128x128xf32>
    %cst_76 = arith.constant dense<0.000000e+00> : vector<1x128xf32>
    %88 = tpu.matmul %86, %87, %cst_76 {dimension_numbers = #tpu.dot_dimension_numbers<[1], [0], [0], [1], [0, 0, 1, 1], [], []>} : vector<1x128xf32>, vector<128x128xf32>, vector<1x128xf32> -> vector<1x128xf32>
    %cst_77 = arith.constant 0.000000e+00 : f32
    %89 = vector.broadcast %cst_77 : f32 to vector<1x128xf32>
    %90 = arith.maximumf %88, %89 : vector<1x128xf32>
    %c0_78 = arith.constant 0 : index
    %c0_79 = arith.constant 0 : index
    %91 = vector.load %arg5[%c0_78, %c0_79] : memref<128x128xf32, #tpu.memory_space<vmem>>, vector<128x128xf32>
    %cst_80 = arith.constant dense<0.000000e+00> : vector<1x128xf32>
    %92 = tpu.matmul %90, %91, %cst_80 {dimension_numbers = #tpu.dot_dimension_numbers<[1], [0], [0], [1], [0, 0, 1, 1], [], []>} : vector<1x128xf32>, vector<128x128xf32>, vector<1x128xf32> -> vector<1x128xf32>
    %93 = arith.negf %92 : vector<1x128xf32>
    %94 = math.exp %93 : vector<1x128xf32>
    %cst_81 = arith.constant 1.000000e+00 : f32
    %95 = vector.broadcast %cst_81 : f32 to vector<1x128xf32>
    %96 = arith.addf %95, %94 : vector<1x128xf32>
    %97 = arith.divf %95, %96 : vector<1x128xf32>
    %98 = vector.broadcast %97 : vector<1x128xf32> to vector<64x128xf32>
    %99 = arith.mulf %82, %98 : vector<64x128xf32>
    %cst_82 = arith.constant 0.000000e+00 : f32
    %100 = vector.broadcast %cst_82 : f32 to vector<64x128xf32>
    %101 = arith.maximumf %99, %100 : vector<64x128xf32>
    %c0_83 = arith.constant 0 : index
    %c0_84 = arith.constant 0 : index
    %c0_85 = arith.constant 0 : index
    %102 = vector.load %arg6[%c0_83, %c0_84, %c0_85] : memref<1x64x128xf32, #tpu.memory_space<vmem>>, vector<1x64x128xf32>
    %103 = vector.shape_cast %102 : vector<1x64x128xf32> to vector<64x128xf32>
    %104 = vector.shape_cast %101 : vector<64x128xf32> to vector<1x64x128xf32>
    tpu.vector_store %arg6[%c0_83, %c0_84, %c0_85], %104 {strides = array<i32>} : memref<1x64x128xf32, #tpu.memory_space<vmem>>, vector<1x64x128xf32>,
    return
  }
  func.func @transform_0(%arg0: i32) -> (i32, i32, i32, i32) {
    %c0_i32 = arith.constant 0 : i32
    %c0_i32_0 = arith.constant 0 : i32
    %c0_i32_1 = arith.constant 0 : i32
    %c0_i32_2 = arith.constant 0 : i32
    return %arg0, %c0_i32, %c0_i32_0, %c0_i32_1 : i32, i32, i32, i32
  }
  func.func @transform_1(%arg0: i32) -> (i32, i32, i32) {
    %c0_i32 = arith.constant 0 : i32
    %c0_i32_0 = arith.constant 0 : i32
    %c0_i32_1 = arith.constant 0 : i32
    %c0_i32_2 = arith.constant 0 : i32
    return %c0_i32, %c0_i32_0, %c0_i32_1 : i32, i32, i32
  }
  func.func @transform_2(%arg0: i32) -> (i32, i32) {
    %c0_i32 = arith.constant 0 : i32
    %c0_i32_0 = arith.constant 0 : i32
    %c0_i32_1 = arith.constant 0 : i32
    return %c0_i32, %c0_i32_0 : i32, i32
  }
  func.func @transform_3(%arg0: i32) -> (i32, i32) {
    %c0_i32 = arith.constant 0 : i32
    %c0_i32_0 = arith.constant 0 : i32
    %c0_i32_1 = arith.constant 0 : i32
    return %c0_i32, %c0_i32_0 : i32, i32
  }
  func.func @transform_4(%arg0: i32) -> (i32, i32) {
    %c0_i32 = arith.constant 0 : i32
    %c0_i32_0 = arith.constant 0 : i32
    %c0_i32_1 = arith.constant 0 : i32
    return %c0_i32, %c0_i32_0 : i32, i32
  }
  func.func @transform_5(%arg0: i32) -> (i32, i32, i32) {
    %c0_i32 = arith.constant 0 : i32
    %c0_i32_0 = arith.constant 0 : i32
    %c0_i32_1 = arith.constant 0 : i32
    return %arg0, %c0_i32, %c0_i32_0 : i32, i32, i32
  }
}

module attributes {stable_mosaic.version = 11 : i64} {
  func.func @conv_block_kernel(%arg0: i32, %arg1: memref<1x10x10x128xf32, #tpu.memory_space<vmem>>, %arg2: memref<9x128x128xbf16, #tpu.memory_space<vmem>>, %arg3: memref<1x128xf32, #tpu.memory_space<vmem>>, %arg4: memref<128x128xf32, #tpu.memory_space<vmem>>, %arg5: memref<128x128xf32, #tpu.memory_space<vmem>>, %arg6: memref<1x16x128xf32, #tpu.memory_space<vmem>>, %arg7: memref<32x128xf32, #tpu.memory_space<vmem>>) attributes {dimension_semantics = [#tpu.dimension_semantics<parallel>], iteration_bounds = array<i64: 2>, scalar_prefetch = 0 : i64, scratch_operands = 1 : i64, tpu.core_type = #tpu.core_type<tc>, window_params = [{transform_indices = @transform_0, window_bounds = array<i64: 1, 10, 10, 128>}, {pipeline_mode = #tpu.pipeline_mode<synchronous>, transform_indices = @transform_1, window_bounds = array<i64: 9, 128, 128>}, {pipeline_mode = #tpu.pipeline_mode<synchronous>, transform_indices = @transform_2, window_bounds = array<i64: 1, 128>}, {pipeline_mode = #tpu.pipeline_mode<synchronous>, transform_indices = @transform_3, window_bounds = array<i64: 128, 128>}, {pipeline_mode = #tpu.pipeline_mode<synchronous>, transform_indices = @transform_4, window_bounds = array<i64: 128, 128>}, {transform_indices = @transform_5, window_bounds = array<i64: 1, 16, 128>}]} {
    %cst = arith.constant 0.000000e+00 : f32
    %0 = vector.broadcast %cst : f32 to vector<64x128xf32>
    %c0 = arith.constant 0 : index
    %c0_0 = arith.constant 0 : index
    %c0_1 = arith.constant 0 : index
    %c0_2 = arith.constant 0 : index
    %1 = vector.load %arg1[%c0, %c0_0, %c0_1, %c0_2] : memref<1x10x10x128xf32, #tpu.memory_space<vmem>>, vector<1x8x8x128xf32>
    %2 = vector.shape_cast %1 : vector<1x8x8x128xf32> to vector<8x8x128xf32>
    %3 = vector.shape_cast %2 : vector<8x8x128xf32> to vector<64x128xf32>
    %4 = arith.truncf %3 : vector<64x128xf32> to vector<64x128xbf16>
    %c0_3 = arith.constant 0 : index
    %c0_4 = arith.constant 0 : index
    %c0_5 = arith.constant 0 : index
    %5 = vector.load %arg2[%c0_3, %c0_4, %c0_5] : memref<9x128x128xbf16, #tpu.memory_space<vmem>>, vector<1x128x128xbf16>
    %6 = vector.shape_cast %5 : vector<1x128x128xbf16> to vector<128x128xbf16>
    %cst_6 = arith.constant dense<0.000000e+00> : vector<64x128xf32>
    %7 = tpu.matmul %4, %6, %cst_6 {dimension_numbers = #tpu.dot_dimension_numbers<[1], [0], [0], [1], [0, 0, 1, 1], [], []>} : vector<64x128xbf16>, vector<128x128xbf16>, vector<64x128xf32> -> vector<64x128xf32>
    %8 = arith.addf %0, %7 : vector<64x128xf32>
    %c0_7 = arith.constant 0 : index
    %c0_8 = arith.constant 0 : index
    %c1 = arith.constant 1 : index
    %c0_9 = arith.constant 0 : index
    %9 = vector.load %arg1[%c0_7, %c0_8, %c1, %c0_9] : memref<1x10x10x128xf32, #tpu.memory_space<vmem>>, vector<1x8x8x128xf32>
    %10 = vector.shape_cast %9 : vector<1x8x8x128xf32> to vector<8x8x128xf32>
    %11 = vector.shape_cast %10 : vector<8x8x128xf32> to vector<64x128xf32>
    %12 = arith.truncf %11 : vector<64x128xf32> to vector<64x128xbf16>
    %c1_10 = arith.constant 1 : index
    %c0_11 = arith.constant 0 : index
    %c0_12 = arith.constant 0 : index
    %13 = vector.load %arg2[%c1_10, %c0_11, %c0_12] : memref<9x128x128xbf16, #tpu.memory_space<vmem>>, vector<1x128x128xbf16>
    %14 = vector.shape_cast %13 : vector<1x128x128xbf16> to vector<128x128xbf16>
    %cst_13 = arith.constant dense<0.000000e+00> : vector<64x128xf32>
    %15 = tpu.matmul %12, %14, %cst_13 {dimension_numbers = #tpu.dot_dimension_numbers<[1], [0], [0], [1], [0, 0, 1, 1], [], []>} : vector<64x128xbf16>, vector<128x128xbf16>, vector<64x128xf32> -> vector<64x128xf32>
    %16 = arith.addf %8, %15 : vector<64x128xf32>
    %c0_14 = arith.constant 0 : index
    %c0_15 = arith.constant 0 : index
    %c2 = arith.constant 2 : index
    %c0_16 = arith.constant 0 : index
    %17 = vector.load %arg1[%c0_14, %c0_15, %c2, %c0_16] : memref<1x10x10x128xf32, #tpu.memory_space<vmem>>, vector<1x8x8x128xf32>
    %18 = vector.shape_cast %17 : vector<1x8x8x128xf32> to vector<8x8x128xf32>
    %19 = vector.shape_cast %18 : vector<8x8x128xf32> to vector<64x128xf32>
    %20 = arith.truncf %19 : vector<64x128xf32> to vector<64x128xbf16>
    %c2_17 = arith.constant 2 : index
    %c0_18 = arith.constant 0 : index
    %c0_19 = arith.constant 0 : index
    %21 = vector.load %arg2[%c2_17, %c0_18, %c0_19] : memref<9x128x128xbf16, #tpu.memory_space<vmem>>, vector<1x128x128xbf16>
    %22 = vector.shape_cast %21 : vector<1x128x128xbf16> to vector<128x128xbf16>
    %cst_20 = arith.constant dense<0.000000e+00> : vector<64x128xf32>
    %23 = tpu.matmul %20, %22, %cst_20 {dimension_numbers = #tpu.dot_dimension_numbers<[1], [0], [0], [1], [0, 0, 1, 1], [], []>} : vector<64x128xbf16>, vector<128x128xbf16>, vector<64x128xf32> -> vector<64x128xf32>
    %24 = arith.addf %16, %23 : vector<64x128xf32>
    %c0_21 = arith.constant 0 : index
    %c1_22 = arith.constant 1 : index
    %c0_23 = arith.constant 0 : index
    %c0_24 = arith.constant 0 : index
    %25 = vector.load %arg1[%c0_21, %c1_22, %c0_23, %c0_24] : memref<1x10x10x128xf32, #tpu.memory_space<vmem>>, vector<1x8x8x128xf32>
    %26 = vector.shape_cast %25 : vector<1x8x8x128xf32> to vector<8x8x128xf32>
    %27 = vector.shape_cast %26 : vector<8x8x128xf32> to vector<64x128xf32>
    %28 = arith.truncf %27 : vector<64x128xf32> to vector<64x128xbf16>
    %c3 = arith.constant 3 : index
    %c0_25 = arith.constant 0 : index
    %c0_26 = arith.constant 0 : index
    %29 = vector.load %arg2[%c3, %c0_25, %c0_26] : memref<9x128x128xbf16, #tpu.memory_space<vmem>>, vector<1x128x128xbf16>
    %30 = vector.shape_cast %29 : vector<1x128x128xbf16> to vector<128x128xbf16>
    %cst_27 = arith.constant dense<0.000000e+00> : vector<64x128xf32>
    %31 = tpu.matmul %28, %30, %cst_27 {dimension_numbers = #tpu.dot_dimension_numbers<[1], [0], [0], [1], [0, 0, 1, 1], [], []>} : vector<64x128xbf16>, vector<128x128xbf16>, vector<64x128xf32> -> vector<64x128xf32>
    %32 = arith.addf %24, %31 : vector<64x128xf32>
    %c0_28 = arith.constant 0 : index
    %c1_29 = arith.constant 1 : index
    %c1_30 = arith.constant 1 : index
    %c0_31 = arith.constant 0 : index
    %33 = vector.load %arg1[%c0_28, %c1_29, %c1_30, %c0_31] : memref<1x10x10x128xf32, #tpu.memory_space<vmem>>, vector<1x8x8x128xf32>
    %34 = vector.shape_cast %33 : vector<1x8x8x128xf32> to vector<8x8x128xf32>
    %35 = vector.shape_cast %34 : vector<8x8x128xf32> to vector<64x128xf32>
    %36 = arith.truncf %35 : vector<64x128xf32> to vector<64x128xbf16>
    %c4 = arith.constant 4 : index
    %c0_32 = arith.constant 0 : index
    %c0_33 = arith.constant 0 : index
    %37 = vector.load %arg2[%c4, %c0_32, %c0_33] : memref<9x128x128xbf16, #tpu.memory_space<vmem>>, vector<1x128x128xbf16>
    %38 = vector.shape_cast %37 : vector<1x128x128xbf16> to vector<128x128xbf16>
    %cst_34 = arith.constant dense<0.000000e+00> : vector<64x128xf32>
    %39 = tpu.matmul %36, %38, %cst_34 {dimension_numbers = #tpu.dot_dimension_numbers<[1], [0], [0], [1], [0, 0, 1, 1], [], []>} : vector<64x128xbf16>, vector<128x128xbf16>, vector<64x128xf32> -> vector<64x128xf32>
    %40 = arith.addf %32, %39 : vector<64x128xf32>
    %c0_35 = arith.constant 0 : index
    %c1_36 = arith.constant 1 : index
    %c2_37 = arith.constant 2 : index
    %c0_38 = arith.constant 0 : index
    %41 = vector.load %arg1[%c0_35, %c1_36, %c2_37, %c0_38] : memref<1x10x10x128xf32, #tpu.memory_space<vmem>>, vector<1x8x8x128xf32>
    %42 = vector.shape_cast %41 : vector<1x8x8x128xf32> to vector<8x8x128xf32>
    %43 = vector.shape_cast %42 : vector<8x8x128xf32> to vector<64x128xf32>
    %44 = arith.truncf %43 : vector<64x128xf32> to vector<64x128xbf16>
    %c5 = arith.constant 5 : index
    %c0_39 = arith.constant 0 : index
    %c0_40 = arith.constant 0 : index
    %45 = vector.load %arg2[%c5, %c0_39, %c0_40] : memref<9x128x128xbf16, #tpu.memory_space<vmem>>, vector<1x128x128xbf16>
    %46 = vector.shape_cast %45 : vector<1x128x128xbf16> to vector<128x128xbf16>
    %cst_41 = arith.constant dense<0.000000e+00> : vector<64x128xf32>
    %47 = tpu.matmul %44, %46, %cst_41 {dimension_numbers = #tpu.dot_dimension_numbers<[1], [0], [0], [1], [0, 0, 1, 1], [], []>} : vector<64x128xbf16>, vector<128x128xbf16>, vector<64x128xf32> -> vector<64x128xf32>
    %48 = arith.addf %40, %47 : vector<64x128xf32>
    %c0_42 = arith.constant 0 : index
    %c2_43 = arith.constant 2 : index
    %c0_44 = arith.constant 0 : index
    %c0_45 = arith.constant 0 : index
    %49 = vector.load %arg1[%c0_42, %c2_43, %c0_44, %c0_45] : memref<1x10x10x128xf32, #tpu.memory_space<vmem>>, vector<1x8x8x128xf32>
    %50 = vector.shape_cast %49 : vector<1x8x8x128xf32> to vector<8x8x128xf32>
    %51 = vector.shape_cast %50 : vector<8x8x128xf32> to vector<64x128xf32>
    %52 = arith.truncf %51 : vector<64x128xf32> to vector<64x128xbf16>
    %c6 = arith.constant 6 : index
    %c0_46 = arith.constant 0 : index
    %c0_47 = arith.constant 0 : index
    %53 = vector.load %arg2[%c6, %c0_46, %c0_47] : memref<9x128x128xbf16, #tpu.memory_space<vmem>>, vector<1x128x128xbf16>
    %54 = vector.shape_cast %53 : vector<1x128x128xbf16> to vector<128x128xbf16>
    %cst_48 = arith.constant dense<0.000000e+00> : vector<64x128xf32>
    %55 = tpu.matmul %52, %54, %cst_48 {dimension_numbers = #tpu.dot_dimension_numbers<[1], [0], [0], [1], [0, 0, 1, 1], [], []>} : vector<64x128xbf16>, vector<128x128xbf16>, vector<64x128xf32> -> vector<64x128xf32>
    %56 = arith.addf %48, %55 : vector<64x128xf32>
    %c0_49 = arith.constant 0 : index
    %c2_50 = arith.constant 2 : index
    %c1_51 = arith.constant 1 : index
    %c0_52 = arith.constant 0 : index
    %57 = vector.load %arg1[%c0_49, %c2_50, %c1_51, %c0_52] : memref<1x10x10x128xf32, #tpu.memory_space<vmem>>, vector<1x8x8x128xf32>
    %58 = vector.shape_cast %57 : vector<1x8x8x128xf32> to vector<8x8x128xf32>
    %59 = vector.shape_cast %58 : vector<8x8x128xf32> to vector<64x128xf32>
    %60 = arith.truncf %59 : vector<64x128xf32> to vector<64x128xbf16>
    %c7 = arith.constant 7 : index
    %c0_53 = arith.constant 0 : index
    %c0_54 = arith.constant 0 : index
    %61 = vector.load %arg2[%c7, %c0_53, %c0_54] : memref<9x128x128xbf16, #tpu.memory_space<vmem>>, vector<1x128x128xbf16>
    %62 = vector.shape_cast %61 : vector<1x128x128xbf16> to vector<128x128xbf16>
    %cst_55 = arith.constant dense<0.000000e+00> : vector<64x128xf32>
    %63 = tpu.matmul %60, %62, %cst_55 {dimension_numbers = #tpu.dot_dimension_numbers<[1], [0], [0], [1], [0, 0, 1, 1], [], []>} : vector<64x128xbf16>, vector<128x128xbf16>, vector<64x128xf32> -> vector<64x128xf32>
    %64 = arith.addf %56, %63 : vector<64x128xf32>
    %c0_56 = arith.constant 0 : index
    %c2_57 = arith.constant 2 : index
    %c2_58 = arith.constant 2 : index
    %c0_59 = arith.constant 0 : index
    %65 = vector.load %arg1[%c0_56, %c2_57, %c2_58, %c0_59] : memref<1x10x10x128xf32, #tpu.memory_space<vmem>>, vector<1x8x8x128xf32>
    %66 = vector.shape_cast %65 : vector<1x8x8x128xf32> to vector<8x8x128xf32>
    %67 = vector.shape_cast %66 : vector<8x8x128xf32> to vector<64x128xf32>
    %68 = arith.truncf %67 : vector<64x128xf32> to vector<64x128xbf16>
    %c8 = arith.constant 8 : index
    %c0_60 = arith.constant 0 : index
    %c0_61 = arith.constant 0 : index
    %69 = vector.load %arg2[%c8, %c0_60, %c0_61] : memref<9x128x128xbf16, #tpu.memory_space<vmem>>, vector<1x128x128xbf16>
    %70 = vector.shape_cast %69 : vector<1x128x128xbf16> to vector<128x128xbf16>
    %cst_62 = arith.constant dense<0.000000e+00> : vector<64x128xf32>
    %71 = tpu.matmul %68, %70, %cst_62 {dimension_numbers = #tpu.dot_dimension_numbers<[1], [0], [0], [1], [0, 0, 1, 1], [], []>} : vector<64x128xbf16>, vector<128x128xbf16>, vector<64x128xf32> -> vector<64x128xf32>
    %72 = arith.addf %64, %71 : vector<64x128xf32>
    %c0_63 = arith.constant 0 : index
    %c0_64 = arith.constant 0 : index
    %73 = vector.load %arg3[%c0_63, %c0_64] : memref<1x128xf32, #tpu.memory_space<vmem>>, vector<1x128xf32>
    %74 = vector.broadcast %73 : vector<1x128xf32> to vector<64x128xf32>
    %75 = arith.addf %72, %74 : vector<64x128xf32>
    %76 = vector.shape_cast %75 : vector<64x128xf32> to vector<4x2x8x128xf32>
    %cst_65 = arith.constant dense<0xFF800000> : vector<4x8x128xf32>
    %77 = vector.multi_reduction <maximumf>, %76, %cst_65 [1] : vector<4x2x8x128xf32> to vector<4x8x128xf32>
    %78 = vector.shape_cast %77 : vector<4x8x128xf32> to vector<32x128xf32>
    %c0_66 = arith.constant 0 : index
    %c0_67 = arith.constant 0 : index
    %79 = vector.load %arg7[%c0_66, %c0_67] : memref<32x128xf32, #tpu.memory_space<vmem>>, vector<32x128xf32>
    tpu.vector_store %arg7[%c0_66, %c0_67], %78 {strides = array<i32>} : memref<32x128xf32, #tpu.memory_space<vmem>>, vector<32x128xf32>,
    %c0_68 = arith.constant 0 : index
    %c0_69 = arith.constant 0 : index
    %80 = tpu.strided_load %arg7[%c0_68, %c0_69] {strides = array<i32: 2, 1>} : memref<32x128xf32, #tpu.memory_space<vmem>>, vector<16x128xf32>
    %c1_70 = arith.constant 1 : index
    %c0_71 = arith.constant 0 : index
    %81 = tpu.strided_load %arg7[%c1_70, %c0_71] {strides = array<i32: 2, 1>} : memref<32x128xf32, #tpu.memory_space<vmem>>, vector<16x128xf32>
    %82 = arith.maximumf %80, %81 : vector<16x128xf32>
    %cst_72 = arith.constant dense<0.000000e+00> : vector<128xf32>
    %83 = vector.multi_reduction <add>, %82, %cst_72 [0] : vector<16x128xf32> to vector<128xf32>
    %84 = vector.shape_cast %83 : vector<128xf32> to vector<1x128xf32>
    %cst_73 = arith.constant 1.600000e+01 : f32
    %85 = vector.broadcast %cst_73 : f32 to vector<1x128xf32>
    %86 = arith.divf %84, %85 : vector<1x128xf32>
    %c0_74 = arith.constant 0 : index
    %c0_75 = arith.constant 0 : index
    %87 = vector.load %arg4[%c0_74, %c0_75] : memref<128x128xf32, #tpu.memory_space<vmem>>, vector<128x128xf32>
    %cst_76 = arith.constant dense<0.000000e+00> : vector<1x128xf32>
    %88 = tpu.matmul %86, %87, %cst_76 {dimension_numbers = #tpu.dot_dimension_numbers<[1], [0], [0], [1], [0, 0, 1, 1], [], []>} : vector<1x128xf32>, vector<128x128xf32>, vector<1x128xf32> -> vector<1x128xf32>
    %cst_77 = arith.constant 0.000000e+00 : f32
    %89 = vector.broadcast %cst_77 : f32 to vector<1x128xf32>
    %90 = arith.maximumf %88, %89 : vector<1x128xf32>
    %c0_78 = arith.constant 0 : index
    %c0_79 = arith.constant 0 : index
    %91 = vector.load %arg5[%c0_78, %c0_79] : memref<128x128xf32, #tpu.memory_space<vmem>>, vector<128x128xf32>
    %cst_80 = arith.constant dense<0.000000e+00> : vector<1x128xf32>
    %92 = tpu.matmul %90, %91, %cst_80 {dimension_numbers = #tpu.dot_dimension_numbers<[1], [0], [0], [1], [0, 0, 1, 1], [], []>} : vector<1x128xf32>, vector<128x128xf32>, vector<1x128xf32> -> vector<1x128xf32>
    %93 = arith.negf %92 : vector<1x128xf32>
    %94 = math.exp %93 : vector<1x128xf32>
    %cst_81 = arith.constant 1.000000e+00 : f32
    %95 = vector.broadcast %cst_81 : f32 to vector<1x128xf32>
    %96 = arith.addf %95, %94 : vector<1x128xf32>
    %97 = arith.divf %95, %96 : vector<1x128xf32>
    %98 = vector.broadcast %97 : vector<1x128xf32> to vector<16x128xf32>
    %99 = arith.mulf %82, %98 : vector<16x128xf32>
    %cst_82 = arith.constant 0.000000e+00 : f32
    %100 = vector.broadcast %cst_82 : f32 to vector<16x128xf32>
    %101 = arith.maximumf %99, %100 : vector<16x128xf32>
    %c0_83 = arith.constant 0 : index
    %c0_84 = arith.constant 0 : index
    %c0_85 = arith.constant 0 : index
    %102 = vector.load %arg6[%c0_83, %c0_84, %c0_85] : memref<1x16x128xf32, #tpu.memory_space<vmem>>, vector<1x16x128xf32>
    %103 = vector.shape_cast %102 : vector<1x16x128xf32> to vector<16x128xf32>
    %104 = vector.shape_cast %101 : vector<16x128xf32> to vector<1x16x128xf32>
    tpu.vector_store %arg6[%c0_83, %c0_84, %c0_85], %104 {strides = array<i32>} : memref<1x16x128xf32, #tpu.memory_space<vmem>>, vector<1x16x128xf32>,
    return
  }
  func.func @transform_0(%arg0: i32) -> (i32, i32, i32, i32) {
    %c0_i32 = arith.constant 0 : i32
    %c0_i32_0 = arith.constant 0 : i32
    %c0_i32_1 = arith.constant 0 : i32
    %c0_i32_2 = arith.constant 0 : i32
    return %arg0, %c0_i32, %c0_i32_0, %c0_i32_1 : i32, i32, i32, i32
  }
  func.func @transform_1(%arg0: i32) -> (i32, i32, i32) {
    %c0_i32 = arith.constant 0 : i32
    %c0_i32_0 = arith.constant 0 : i32
    %c0_i32_1 = arith.constant 0 : i32
    %c0_i32_2 = arith.constant 0 : i32
    return %c0_i32, %c0_i32_0, %c0_i32_1 : i32, i32, i32
  }
  func.func @transform_2(%arg0: i32) -> (i32, i32) {
    %c0_i32 = arith.constant 0 : i32
    %c0_i32_0 = arith.constant 0 : i32
    %c0_i32_1 = arith.constant 0 : i32
    return %c0_i32, %c0_i32_0 : i32, i32
  }
  func.func @transform_3(%arg0: i32) -> (i32, i32) {
    %c0_i32 = arith.constant 0 : i32
    %c0_i32_0 = arith.constant 0 : i32
    %c0_i32_1 = arith.constant 0 : i32
    return %c0_i32, %c0_i32_0 : i32, i32
  }
  func.func @transform_4(%arg0: i32) -> (i32, i32) {
    %c0_i32 = arith.constant 0 : i32
    %c0_i32_0 = arith.constant 0 : i32
    %c0_i32_1 = arith.constant 0 : i32
    return %c0_i32, %c0_i32_0 : i32, i32
  }
  func.func @transform_5(%arg0: i32) -> (i32, i32, i32) {
    %c0_i32 = arith.constant 0 : i32
    %c0_i32_0 = arith.constant 0 : i32
    %c0_i32_1 = arith.constant 0 : i32
    return %arg0, %c0_i32, %c0_i32_0 : i32, i32, i32
  }
}

module attributes {stable_mosaic.version = 11 : i64} {
  func.func @fc_kernel(%arg0: i32, %arg1: memref<2x2048xf32, #tpu.memory_space<vmem>>, %arg2: memref<2048x128xbf16, #tpu.memory_space<vmem>>, %arg3: memref<2x128xf32, #tpu.memory_space<vmem>>) attributes {dimension_semantics = [#tpu.dimension_semantics<arbitrary>], iteration_bounds = array<i64: 1>, scalar_prefetch = 0 : i64, scratch_operands = 0 : i64, tpu.core_type = #tpu.core_type<tc>, window_params = [{pipeline_mode = #tpu.pipeline_mode<synchronous>, transform_indices = @transform_0, window_bounds = array<i64: 2, 2048>}, {pipeline_mode = #tpu.pipeline_mode<synchronous>, transform_indices = @transform_1, window_bounds = array<i64: 2048, 128>}, {pipeline_mode = #tpu.pipeline_mode<synchronous>, transform_indices = @transform_2, window_bounds = array<i64: 2, 128>}]} {
    %c0 = arith.constant 0 : index
    %c0_0 = arith.constant 0 : index
    %0 = vector.load %arg1[%c0, %c0_0] : memref<2x2048xf32, #tpu.memory_space<vmem>>, vector<2x2048xf32>
    %1 = arith.truncf %0 : vector<2x2048xf32> to vector<2x2048xbf16>
    %c0_1 = arith.constant 0 : index
    %c0_2 = arith.constant 0 : index
    %2 = vector.load %arg2[%c0_1, %c0_2] : memref<2048x128xbf16, #tpu.memory_space<vmem>>, vector<2048x128xbf16>
    %cst = arith.constant dense<0.000000e+00> : vector<2x128xf32>
    %3 = tpu.matmul %1, %2, %cst {dimension_numbers = #tpu.dot_dimension_numbers<[1], [0], [0], [1], [0, 0, 1, 1], [], []>} : vector<2x2048xbf16>, vector<2048x128xbf16>, vector<2x128xf32> -> vector<2x128xf32>
    %c0_3 = arith.constant 0 : index
    %c0_4 = arith.constant 0 : index
    %4 = vector.load %arg3[%c0_3, %c0_4] : memref<2x128xf32, #tpu.memory_space<vmem>>, vector<2x128xf32>
    tpu.vector_store %arg3[%c0_3, %c0_4], %3 {strides = array<i32>} : memref<2x128xf32, #tpu.memory_space<vmem>>, vector<2x128xf32>,
    return
  }
  func.func @transform_0(%arg0: i32) -> (i32, i32) {
    %c0_i32 = arith.constant 0 : i32
    %c0_i32_0 = arith.constant 0 : i32
    %c0_i32_1 = arith.constant 0 : i32
    return %c0_i32, %c0_i32_0 : i32, i32
  }
  func.func @transform_1(%arg0: i32) -> (i32, i32) {
    %c0_i32 = arith.constant 0 : i32
    %c0_i32_0 = arith.constant 0 : i32
    %c0_i32_1 = arith.constant 0 : i32
    return %c0_i32, %c0_i32_0 : i32, i32
  }
  func.func @transform_2(%arg0: i32) -> (i32, i32) {
    %c0_i32 = arith.constant 0 : i32
    %c0_i32_0 = arith.constant 0 : i32
    %c0_i32_1 = arith.constant 0 : i32
    return %c0_i32, %c0_i32_0 : i32, i32
  }
}

</mosaic_0001>

<llo_original>
// kernel: cnn_forward.4
$region0: #{cnn_forward.4}
  #allocation0 [shape = 'u32[]', space=smem, size = 0x4, offset = 0x4, fixed_abs, tag = 'smem constant byte address 0x4 - core index']
  #allocation1 [shape = 'u32[144,128]{1,0:T(1,128)}', space=vmem, size = 0x12000, scoped, tag = 'internal scratch']
  #allocation2 [shape = 'f32[32,128]{1,0:T(8,128)}', space=vmem, size = 0x4000, scoped, tag = 'scratch operand']
  %s0 = inlined_call_operand.vmem [shape: f32[2,10,10,128], index: 0, kind: input, shape index: {}]
  %s1 = inlined_call_operand.vmem [shape: bf16[9,128,128], index: 1, kind: input, shape index: {}]
  %s2 = inlined_call_operand.vmem [shape: f32[1,128], index: 2, kind: input, shape index: {}]
  %s3 = inlined_call_operand.vmem [shape: f32[128,128], index: 3, kind: input, shape index: {}]
  %s4 = inlined_call_operand.vmem [shape: f32[128,128], index: 4, kind: input, shape index: {}]
  %s5 = inlined_call_operand.vmem [shape: f32[2,16,128], index: 5, kind: output, shape index: {}]
  %s6 = sld [smem:[#allocation0]]
  $region53: #{cnn_forward.4} parent=0
    _
  %s8 = ssub.s32 1, %s6
  %s9 = scalar_select 0, %s8, %s6
  loop: start=0, step=1, limit=4
  $region2: #{cnn_forward.4} parent=0 // loop_pre_header
    _
  $region3: #{cnn_forward.4} parent=0 // loop_header
    %s11 = sphi 0, %s15
    %p12 = scmp.ge.s32.totalorder %s11, 4
    %s21 = sphi 0, %s23
    %s24 = sphi 0, %s21
    %s25 = sphi 0, %s24
    %s41 = sphi 0, %s25
    %s45 = sphi 0, %s45
    %s47 = sphi 0, %s45
    %s48 = sphi 0, %s47
    %s62 = sphi 0, %s48
    %s66 = sphi 0, %s66
    %s68 = sphi 0, %s66
    %s69 = sphi 0, %s68
    %s83 = sphi 0, %s69
    %s87 = sphi 0, %s87
    %s89 = sphi 0, %s87
    %s90 = sphi 0, %s89
    %s104 = sphi 0, %s90
    %s108 = sphi 0, %s108
    %s110 = sphi 0, %s108
    %s111 = sphi 0, %s110
    %s125 = sphi 0, %s111
    %s131 = sphi 0, %s133
    %s134 = sphi 0, %s131
    %s135 = sphi 0, %s134
    %s151 = sphi 0, %s135
  $region4: #{cnn_forward.4} parent=0 // loop_header_branch
    %14 = sbr.rel (%p12) target = $region8
  $region5: #{cnn_forward.4} parent=0 // loop_body
    %s16 = ssub.s32 %s11, 1
    %s17 = ssub.s32 %s11, 2
    %s18 = sadd.s32 %s11, 1
    %s19 = ssub.s32 %s11, %s18
    %p20 = scmp.eq.s32.totalorder %s19, 0
    %s22 = sadd.s32 %s21, 1
    %s23 = scalar_select %p20, %s21, %s22
    %p26 = pneg %p20
    %p27 = scmp.eq.s32.totalorder %s11, 1
    %p28 = por %p26, %p27
    %p29 = scmp.ne.s32.totalorder %s21, %s24
    %p30 = scmp.eq.s32.totalorder %s11, 0
    %p31 = por %p29, %p30
    %p32 = scmp.ne.s32.totalorder %s21, %s24
    %p33 = scmp.eq.s32.totalorder %s16, 1
    %p34 = por %p32, %p33
    %p35 = scmp.ne.s32.totalorder %s24, %s25
    %p36 = scmp.eq.s32.totalorder %s16, 0
    %p37 = por %p35, %p36
    %p38 = scmp.ne.s32.totalorder %s24, %s25
    %p39 = scmp.eq.s32.totalorder %s17, 1
    %p40 = por %p38, %p39
    %p42 = scmp.ne.s32.totalorder %s25, %s41
    %p43 = scmp.eq.s32.totalorder %s17, 0
    %p44 = por %p42, %p43
    %s46 = sadd.s32 %s45, 1
    %p49 = scmp.eq.s32.totalorder %s11, 1
    %p50 = scmp.ne.s32.totalorder %s45, %s47
    %p51 = scmp.eq.s32.totalorder %s11, 0
    %p52 = por %p50, %p51
    %p53 = scmp.ne.s32.totalorder %s45, %s47
    %p54 = scmp.eq.s32.totalorder %s16, 1
    %p55 = por %p53, %p54
    %p56 = scmp.ne.s32.totalorder %s47, %s48
    %p57 = scmp.eq.s32.totalorder %s16, 0
    %p58 = por %p56, %p57
    %p59 = scmp.ne.s32.totalorder %s47, %s48
    %p60 = scmp.eq.s32.totalorder %s17, 1
    %p61 = por %p59, %p60
    %p63 = scmp.ne.s32.totalorder %s48, %s62
    %p64 = scmp.eq.s32.totalorder %s17, 0
    %p65 = por %p63, %p64
    %s67 = sadd.s32 %s66, 1
    %p70 = scmp.eq.s32.totalorder %s11, 1
    %p71 = scmp.ne.s32.totalorder %s66, %s68
    %p72 = scmp.eq.s32.totalorder %s11, 0
    %p73 = por %p71, %p72
    %p74 = scmp.ne.s32.totalorder %s66, %s68
    %p75 = scmp.eq.s32.totalorder %s16, 1
    %p76 = por %p74, %p75
    %p77 = scmp.ne.s32.totalorder %s68, %s69
    %p78 = scmp.eq.s32.totalorder %s16, 0
    %p79 = por %p77, %p78
    %p80 = scmp.ne.s32.totalorder %s68, %s69
    %p81 = scmp.eq.s32.totalorder %s17, 1
    %p82 = por %p80, %p81
    %p84 = scmp.ne.s32.totalorder %s69, %s83
    %p85 = scmp.eq.s32.totalorder %s17, 0
    %p86 = por %p84, %p85
    %s88 = sadd.s32 %s87, 1
    %p91 = scmp.eq.s32.totalorder %s11, 1
    %p92 = scmp.ne.s32.totalorder %s87, %s89
    %p93 = scmp.eq.s32.totalorder %s11, 0
    %p94 = por %p92, %p93
    %p95 = scmp.ne.s32.totalorder %s87, %s89
    %p96 = scmp.eq.s32.totalorder %s16, 1
    %p97 = por %p95, %p96
    %p98 = scmp.ne.s32.totalorder %s89, %s90
    %p99 = scmp.eq.s32.totalorder %s16, 0
    %p100 = por %p98, %p99
    %p101 = scmp.ne.s32.totalorder %s89, %s90
    %p102 = scmp.eq.s32.totalorder %s17, 1
    %p103 = por %p101, %p102
    %p105 = scmp.ne.s32.totalorder %s90, %s104
    %p106 = scmp.eq.s32.totalorder %s17, 0
    %p107 = por %p105, %p106
    %s109 = sadd.s32 %s108, 1
    %p112 = scmp.eq.s32.totalorder %s11, 1
    %p113 = scmp.ne.s32.totalorder %s108, %s110
    %p114 = scmp.eq.s32.totalorder %s11, 0
    %p115 = por %p113, %p114
    %p116 = scmp.ne.s32.totalorder %s108, %s110
    %p117 = scmp.eq.s32.totalorder %s16, 1
    %p118 = por %p116, %p117
    %p119 = scmp.ne.s32.totalorder %s110, %s111
    %p120 = scmp.eq.s32.totalorder %s16, 0
    %p121 = por %p119, %p120
    %p122 = scmp.ne.s32.totalorder %s110, %s111
    %p123 = scmp.eq.s32.totalorder %s17, 1
    %p124 = por %p122, %p123
    %p126 = scmp.ne.s32.totalorder %s111, %s125
    %p127 = scmp.eq.s32.totalorder %s17, 0
    %p128 = por %p126, %p127
    %s129 = ssub.s32 %s11, %s18
    %p130 = scmp.eq.s32.totalorder %s129, 0
    %s132 = sadd.s32 %s131, 1
    %s133 = scalar_select %p130, %s131, %s132
    %p136 = pneg %p130
    %p137 = scmp.eq.s32.totalorder %s11, 1
    %p138 = por %p136, %p137
    %p139 = scmp.ne.s32.totalorder %s131, %s134
    %p140 = scmp.eq.s32.totalorder %s11, 0
    %p141 = por %p139, %p140
    %p142 = scmp.ne.s32.totalorder %s131, %s134
    %p143 = scmp.eq.s32.totalorder %s16, 1
    %p144 = por %p142, %p143
    %p145 = scmp.ne.s32.totalorder %s134, %s135
    %p146 = scmp.eq.s32.totalorder %s16, 0
    %p147 = por %p145, %p146
    %p148 = scmp.ne.s32.totalorder %s134, %s135
    %p149 = scmp.eq.s32.totalorder %s17, 1
    %p150 = por %p148, %p149
    %p152 = scmp.ne.s32.totalorder %s135, %s151
    %p153 = scmp.eq.s32.totalorder %s17, 0
    %p154 = por %p152, %p153
    %p155 = scmp.le.s32.totalorder 1, %s11
    %p156 = scmp.lt.s32.totalorder %s11, 3
    %p157 = pnand %p155, %p156
    %p158 = pneg %p157
    // Predicated region
    $region9: #{cnn_forward.4} parent=5 // pred_check
      _
    $region10: #{cnn_forward.4} parent=5 // pred_check_branch
      %160 = sbr.rel (%p157) target = $region12
    $region11: #{cnn_forward.4} parent=5 // pred_region
      %s161 = ssub.s32 %s11, 1
      // Predicated region
      $region13: #{cnn_forward.4} parent=11 // pred_check
        %p162 = pneg %p58
      $region14: #{cnn_forward.4} parent=11 // pred_check_branch
        %164 = sbr.rel (%p162) target = $region16
      $region15: #{cnn_forward.4} parent=11 // pred_region
        _
      $region16: #{cnn_forward.4} parent=11 // pred_fallthru
        _
      // Predicated region
      $region17: #{cnn_forward.4} parent=11 // pred_check
        %p165 = pneg %p79
      $region18: #{cnn_forward.4} parent=11 // pred_check_branch
        %167 = sbr.rel (%p165) target = $region20
      $region19: #{cnn_forward.4} parent=11 // pred_region
        _
      $region20: #{cnn_forward.4} parent=11 // pred_fallthru
        _
      // Predicated region
      $region21: #{cnn_forward.4} parent=11 // pred_check
        %p168 = pneg %p100
      $region22: #{cnn_forward.4} parent=11 // pred_check_branch
        %170 = sbr.rel (%p168) target = $region24
      $region23: #{cnn_forward.4} parent=11 // pred_region
        _
      $region24: #{cnn_forward.4} parent=11 // pred_fallthru
        _
      // Predicated region
      $region25: #{cnn_forward.4} parent=11 // pred_check
        %p171 = pneg %p121
      $region26: #{cnn_forward.4} parent=11 // pred_check_branch
        %173 = sbr.rel (%p171) target = $region28
      $region27: #{cnn_forward.4} parent=11 // pred_region
        _
      $region28: #{cnn_forward.4} parent=11 // pred_fallthru
        _
    $region12: #{cnn_forward.4} parent=5 // pred_fallthru
      _
    %p174 = scmp.lt.s32.totalorder %s11, 2
    // Predicated region
    $region29: #{cnn_forward.4} parent=5 // pred_check
      %p175 = pneg %p174
    $region30: #{cnn_forward.4} parent=5 // pred_check_branch
      %177 = sbr.rel (%p175) target = $region32
    $region31: #{cnn_forward.4} parent=5 // pred_region
      // Predicated region
      $region33: #{cnn_forward.4} parent=31 // pred_check
        %p178 = pneg %p31
      $region34: #{cnn_forward.4} parent=31 // pred_check_branch
        %180 = sbr.rel (%p178) target = $region36
      $region35: #{cnn_forward.4} parent=31 // pred_region
        %p181 = scmp.lt.s32.totalorder %s11, 1
        %s182 = scalar_select %p181, %s11, 1
        %s183 = smul.addr %s182, 20
        %s184 = smul.addr %s183, 8
        %s185 = scalar_lea.vmem %s0, %s184
      $region36: #{cnn_forward.4} parent=31 // pred_fallthru
        _
    $region32: #{cnn_forward.4} parent=5 // pred_fallthru
      _
    %p186 = scmp.le.s32.totalorder 1, %s11
    %p187 = scmp.lt.s32.totalorder %s11, 3
    %p188 = pnand %p186, %p187
    %p189 = pneg %p188
    // Predicated region
    $region37: #{cnn_forward.4} parent=5 // pred_check
      _
    $region38: #{cnn_forward.4} parent=5 // pred_check_branch
      %191 = sbr.rel (%p188) target = $region40
    $region39: #{cnn_forward.4} parent=5 // pred_region
      %s192 = ssub.s32 %s11, 1
      %p193 = scmp.lt.s32.totalorder %s16, 1
      %s194 = scalar_select %p193, %s16, 1
      %s195 = smul.addr %s194, 20
      %s196 = smul.addr %s195, 8
      %s197 = scalar_lea.vmem %s0, %s196
      %p198 = pneg %p37
      %p199 = pneg %p34
      %p200 = pneg %p58
      %p201 = pneg %p55
      %p202 = pneg %p79
      %p203 = pneg %p76
      %p204 = pneg %p100
      %p205 = pneg %p97
      %p206 = pneg %p121
      %p207 = pneg %p118
      %p208 = pneg %p147
      %p209 = pneg %p144
      %p210 = scmp.lt.s32.totalorder %s16, 1
      %s211 = scalar_select %p210, %s16, 1
      %s212 = smul.addr %s211, 2
      %s213 = smul.addr %s212, 8
      %s214 = scalar_lea.vmem %s5, %s213
      %p215 = scmp.lt.s32.totalorder %s16, 1
      %s216 = scalar_select %p215, %s16, 1
      %s217 = smul.addr %s216, 20
      %s218 = smul.addr %s217, 8
      %s219 = scalar_lea.vmem %s0, %s218
      %p220 = scmp.lt.s32.totalorder %s16, 1
      %s221 = scalar_select %p220, %s16, 1
      %s222 = smul.addr %s221, 2
      %s223 = smul.addr %s222, 8
      %s224 = scalar_lea.vmem %s5, %s223
      %v226 = vld [vmem:[%s219] sm:$0xff]
      %v227 = vld [vmem:[%s219 + $0x10] sm:$0xff]
      %v228 = vld [vmem:[%s219 + $0x20] sm:$0xff]
      %v229 = vld [vmem:[%s219 + $0x30] sm:$0xff]
      %v230 = vld [vmem:[%s219 + $0x40] sm:$0xff]
      %v231 = vld [vmem:[%s219 + $0x50] sm:$0xff]
      %v232 = vld [vmem:[%s219 + $0x60] sm:$0xff]
      %v233 = vld [vmem:[%s219 + $0x70] sm:$0xff]
      %v234 = vpack.c.bf16 %v227, %v226
      %v235 = vpack.c.bf16 %v229, %v228
      %v236 = vpack.c.bf16 %v231, %v230
      %v237 = vpack.c.bf16 %v233, %v232
      %v238 = vld [vmem:[%s1] sm:$0xf]
      %v239 = vld [vmem:[%s1 + $0x4] sm:$0xf]
      %v240 = vld [vmem:[%s1 + $0x8] sm:$0xf]
      %v241 = vld [vmem:[%s1 + $0xc] sm:$0xf]
      %v242 = vld [vmem:[%s1 + $0x10] sm:$0xf]
      %v243 = vld [vmem:[%s1 + $0x14] sm:$0xf]
      %v244 = vld [vmem:[%s1 + $0x18] sm:$0xf]
      %v245 = vld [vmem:[%s1 + $0x1c] sm:$0xf]
      %v246 = vld [vmem:[%s1 + $0x20] sm:$0xf]
      %v247 = vld [vmem:[%s1 + $0x24] sm:$0xf]
      %v248 = vld [vmem:[%s1 + $0x28] sm:$0xf]
      %v249 = vld [vmem:[%s1 + $0x2c] sm:$0xf]
      %v250 = vld [vmem:[%s1 + $0x30] sm:$0xf]
      %v251 = vld [vmem:[%s1 + $0x34] sm:$0xf]
      %v252 = vld [vmem:[%s1 + $0x38] sm:$0xf]
      %v253 = vld [vmem:[%s1 + $0x3c] sm:$0xf]
      %v254 = vld [vmem:[%s219 + $0x1] sm:$0xff]
      %v255 = vld [vmem:[%s219 + $0x11] sm:$0xff]
      %v256 = vld [vmem:[%s219 + $0x21] sm:$0xff]
      %v257 = vld [vmem:[%s219 + $0x31] sm:$0xff]
      %v258 = vld [vmem:[%s219 + $0x41] sm:$0xff]
      %v259 = vld [vmem:[%s219 + $0x51] sm:$0xff]
      %v260 = vld [vmem:[%s219 + $0x61] sm:$0xff]
      %v261 = vld [vmem:[%s219 + $0x71] sm:$0xff]
      %v262 = vpack.c.bf16 %v255, %v254
      %v263 = vpack.c.bf16 %v257, %v256
      %v264 = vpack.c.bf16 %v259, %v258
      %v265 = vpack.c.bf16 %v261, %v260
      %s266 = scalar_lea.vmem %s1, 64
      %v267 = vld [vmem:[%s266] sm:$0xf]
      %v268 = vld [vmem:[%s266 + $0x4] sm:$0xf]
      %v269 = vld [vmem:[%s266 + $0x8] sm:$0xf]
      %v270 = vld [vmem:[%s266 + $0xc] sm:$0xf]
      %v271 = vld [vmem:[%s266 + $0x10] sm:$0xf]
      %v272 = vld [vmem:[%s266 + $0x14] sm:$0xf]
      %v273 = vld [vmem:[%s266 + $0x18] sm:$0xf]
      %v274 = vld [vmem:[%s266 + $0x1c] sm:$0xf]
      %v275 = vld [vmem:[%s266 + $0x20] sm:$0xf]
      %v276 = vld [vmem:[%s266 + $0x24] sm:$0xf]
      %v277 = vld [vmem:[%s266 + $0x28] sm:$0xf]
      %v278 = vld [vmem:[%s266 + $0x2c] sm:$0xf]
      %v279 = vld [vmem:[%s266 + $0x30] sm:$0xf]
      %v280 = vld [vmem:[%s266 + $0x34] sm:$0xf]
      %v281 = vld [vmem:[%s266 + $0x38] sm:$0xf]
      %v282 = vld [vmem:[%s266 + $0x3c] sm:$0xf]
      %v299 = vunpack.c.l.b16 %v267
      %v300 = vunpack.c.l.b16 %v268
      %v301 = vunpack.c.l.b16 %v269
      %v302 = vunpack.c.l.b16 %v270
      %v303 = vunpack.c.l.b16 %v271
      %v304 = vunpack.c.l.b16 %v272
      %v305 = vunpack.c.l.b16 %v273
      %v306 = vunpack.c.l.b16 %v274
      %v307 = vunpack.c.l.b16 %v275
      %v308 = vunpack.c.l.b16 %v276
      %v309 = vunpack.c.l.b16 %v277
      %v310 = vunpack.c.l.b16 %v278
      %v311 = vunpack.c.l.b16 %v279
      %v312 = vunpack.c.l.b16 %v280
      %v313 = vunpack.c.l.b16 %v281
      %v314 = vunpack.c.l.b16 %v282
      %v315 = vpack.c.b16 %v300, %v299
      %v316 = vpack.c.b16 %v302, %v301
      %v317 = vpack.c.b16 %v304, %v303
      %v318 = vpack.c.b16 %v306, %v305
      %v319 = vpack.c.b16 %v308, %v307
      %v320 = vpack.c.b16 %v310, %v309
      %v321 = vpack.c.b16 %v312, %v311
      %v322 = vpack.c.b16 %v314, %v313
      %331 = vmatprep.subr.bf16.mxu0 0
      %332 = vmatpush1.bf16.msra.mxu0 %v315
      %333 = vmatprep.subr.bf16.mxu0 0
      %334 = vmatpush1.bf16.msra.mxu0 %v316
      %335 = vmatprep.subr.bf16.mxu0 0
      %336 = vmatpush1.bf16.msra.mxu0 %v317
      %337 = vmatprep.subr.bf16.mxu0 0
      %338 = vmatpush1.bf16.msra.mxu0 %v318
      %339 = vmatprep.subr.bf16.mxu0 0
      %340 = vmatpush1.bf16.msra.mxu0 %v319
      %341 = vmatprep.subr.bf16.mxu0 0
      %342 = vmatpush1.bf16.msra.mxu0 %v320
      %343 = vmatprep.subr.bf16.mxu0 0
      %344 = vmatpush1.bf16.msra.mxu0 %v321
      %345 = vmatprep.subr.bf16.mxu0 0
      %346 = vmatpush1.bf16.msra.mxu0 %v322
      %347 = vmatprep.subr.bf16.mxu0 0
      %348 = vmatpush1.bf16.msra.mxu0 0
      %349 = vmatprep.subr.bf16.mxu0 0
      %350 = vmatpush1.bf16.msra.mxu0 0
      %351 = vmatprep.subr.bf16.mxu0 0
      %352 = vmatpush1.bf16.msra.mxu0 0
      %353 = vmatprep.subr.bf16.mxu0 0
      %354 = vmatpush1.bf16.msra.mxu0 0
      %355 = vmatprep.subr.bf16.mxu0 0
      %356 = vmatpush1.bf16.msra.mxu0 0
      %357 = vmatprep.subr.bf16.mxu0 0
      %358 = vmatpush1.bf16.msra.mxu0 0
      %359 = vmatprep.subr.bf16.mxu0 0
      %360 = vmatpush1.bf16.msra.mxu0 0
      %361 = vmatprep.subr.bf16.mxu0 0
      %362 = vmatpush1.bf16.msra.mxu0 0
      %363 = vmatprep.mubr.bf16.mxu0 0
      %364 = vmatmul.mubr.bf16.gmra.mrb[0].mxu0 %v262
      %v365 = vpop.f32.mrb[0].mxu0
      %v366 = vadd.f32 0.0, %v365
      %v367 = vpop.f32.mrb[0].mxu0
      %v368 = vpop.f32.mrb[0].mxu0
      %v369 = vadd.f32 0.0, %v368
      %v370 = vpop.f32.mrb[0].mxu0
      %371 = vmatprep.mubr.bf16.mxu0 0
      %372 = vmatmul.mubr.bf16.gmra.mrb[0].mxu0 %v263
      %v373 = vpop.f32.mrb[0].mxu0
      %v374 = vadd.f32 0.0, %v373
      %v375 = vpop.f32.mrb[0].mxu0
      %v376 = vpop.f32.mrb[0].mxu0
      %v377 = vadd.f32 0.0, %v376
      %v378 = vpop.f32.mrb[0].mxu0
      %379 = vmatprep.mubr.bf16.mxu0 0
      %380 = vmatmul.mubr.bf16.gmra.mrb[0].mxu0 %v264
      %v381 = vpop.f32.mrb[0].mxu0
      %v382 = vadd.f32 0.0, %v381
      %v383 = vpop.f32.mrb[0].mxu0
      %v384 = vpop.f32.mrb[0].mxu0
      %v385 = vadd.f32 0.0, %v384
      %v386 = vpop.f32.mrb[0].mxu0
      %387 = vmatprep.mubr.bf16.mxu0 0
      %388 = vmatmul.mubr.bf16.gmra.mrb[0].mxu0 %v265
      %v389 = vpop.f32.mrb[0].mxu0
      %v390 = vadd.f32 0.0, %v389
      %v391 = vpop.f32.mrb[0].mxu0
      %v392 = vpop.f32.mrb[0].mxu0
      %v393 = vadd.f32 0.0, %v392
      %v394 = vpop.f32.mrb[0].mxu0
      %395 = vdwg.mxu0
      %v412 = vunpack.c.l.b16 %v238
      %v413 = vunpack.c.l.b16 %v239
      %v414 = vunpack.c.l.b16 %v240
      %v415 = vunpack.c.l.b16 %v241
      %v416 = vunpack.c.l.b16 %v242
      %v417 = vunpack.c.l.b16 %v243
      %v418 = vunpack.c.l.b16 %v244
      %v419 = vunpack.c.l.b16 %v245
      %v420 = vunpack.c.l.b16 %v246
      %v421 = vunpack.c.l.b16 %v247
      %v422 = vunpack.c.l.b16 %v248
      %v423 = vunpack.c.l.b16 %v249
      %v424 = vunpack.c.l.b16 %v250
      %v425 = vunpack.c.l.b16 %v251
      %v426 = vunpack.c.l.b16 %v252
      %v427 = vunpack.c.l.b16 %v253
      %v428 = vpack.c.b16 %v413, %v412
      %v429 = vpack.c.b16 %v415, %v414
      %v430 = vpack.c.b16 %v417, %v416
      %v431 = vpack.c.b16 %v419, %v418
      %v432 = vpack.c.b16 %v421, %v420
      %v433 = vpack.c.b16 %v423, %v422
      %v434 = vpack.c.b16 %v425, %v424
      %v435 = vpack.c.b16 %v427, %v426
      %444 = vmatprep.subr.bf16.mxu0 0
      %445 = vmatpush1.bf16.msra.mxu0 %v428
      %446 = vmatprep.subr.bf16.mxu0 0
      %447 = vmatpush1.bf16.msra.mxu0 %v429
      %448 = vmatprep.subr.bf16.mxu0 0
      %449 = vmatpush1.bf16.msra.mxu0 %v430
      %450 = vmatprep.subr.bf16.mxu0 0
      %451 = vmatpush1.bf16.msra.mxu0 %v431
      %452 = vmatprep.subr.bf16.mxu0 0
      %453 = vmatpush1.bf16.msra.mxu0 %v432
      %454 = vmatprep.subr.bf16.mxu0 0
      %455 = vmatpush1.bf16.msra.mxu0 %v433
      %456 = vmatprep.subr.bf16.mxu0 0
      %457 = vmatpush1.bf16.msra.mxu0 %v434
      %458 = vmatprep.subr.bf16.mxu0 0
      %459 = vmatpush1.bf16.msra.mxu0 %v435
      %460 = vmatprep.subr.bf16.mxu0 0
      %461 = vmatpush1.bf16.msra.mxu0 0
      %462 = vmatprep.subr.bf16.mxu0 0
      %463 = vmatpush1.bf16.msra.mxu0 0
      %464 = vmatprep.subr.bf16.mxu0 0
      %465 = vmatpush1.bf16.msra.mxu0 0
      %466 = vmatprep.subr.bf16.mxu0 0
      %467 = vmatpush1.bf16.msra.mxu0 0
      %468 = vmatprep.subr.bf16.mxu0 0
      %469 = vmatpush1.bf16.msra.mxu0 0
      %470 = vmatprep.subr.bf16.mxu0 0
      %471 = vmatpush1.bf16.msra.mxu0 0
      %472 = vmatprep.subr.bf16.mxu0 0
      %473 = vmatpush1.bf16.msra.mxu0 0
      %474 = vmatprep.subr.bf16.mxu0 0
      %475 = vmatpush1.bf16.msra.mxu0 0
      %476 = vmatprep.mubr.bf16.mxu0 0
      %477 = vmatmul.mubr.bf16.gmra.mrb[0].mxu0 %v234
      %v478 = vpop.f32.mrb[0].mxu0
      %v479 = vadd.f32 %v366, %v478
      %v480 = vpop.f32.mrb[0].mxu0
      %v481 = vpop.f32.mrb[0].mxu0
      %v482 = vadd.f32 %v369, %v481
      %v483 = vpop.f32.mrb[0].mxu0
      %484 = vmatprep.mubr.bf16.mxu0 0
      %485 = vmatmul.mubr.bf16.gmra.mrb[0].mxu0 %v235
      %v486 = vpop.f32.mrb[0].mxu0
      %v487 = vadd.f32 %v374, %v486
      %v488 = vpop.f32.mrb[0].mxu0
      %v489 = vpop.f32.mrb[0].mxu0
      %v490 = vadd.f32 %v377, %v489
      %v491 = vpop.f32.mrb[0].mxu0
      %492 = vmatprep.mubr.bf16.mxu0 0
      %493 = vmatmul.mubr.bf16.gmra.mrb[0].mxu0 %v236
      %v494 = vpop.f32.mrb[0].mxu0
      %v495 = vadd.f32 %v382, %v494
      %v496 = vpop.f32.mrb[0].mxu0
      %v497 = vpop.f32.mrb[0].mxu0
      %v498 = vadd.f32 %v385, %v497
      %v499 = vpop.f32.mrb[0].mxu0
      %500 = vmatprep.mubr.bf16.mxu0 0
      %501 = vmatmul.mubr.bf16.gmra.mrb[0].mxu0 %v237
      %v502 = vpop.f32.mrb[0].mxu0
      %v503 = vadd.f32 %v390, %v502
      %v504 = vpop.f32.mrb[0].mxu0
      %v505 = vpop.f32.mrb[0].mxu0
      %v506 = vadd.f32 %v393, %v505
      %v507 = vpop.f32.mrb[0].mxu0
      %508 = vdwg.mxu0
      %v509 = vld [vmem:[%s219 + $0x2] sm:$0xff]
      %v510 = vld [vmem:[%s219 + $0x12] sm:$0xff]
      %v511 = vld [vmem:[%s219 + $0x22] sm:$0xff]
      %v512 = vld [vmem:[%s219 + $0x32] sm:$0xff]
      %v513 = vld [vmem:[%s219 + $0x42] sm:$0xff]
      %v514 = vld [vmem:[%s219 + $0x52] sm:$0xff]
      %v515 = vld [vmem:[%s219 + $0x62] sm:$0xff]
      %v516 = vld [vmem:[%s219 + $0x72] sm:$0xff]
      %v517 = vpack.c.bf16 %v510, %v509
      %v518 = vpack.c.bf16 %v512, %v511
      %v519 = vpack.c.bf16 %v514, %v513
      %v520 = vpack.c.bf16 %v516, %v515
      %s521 = scalar_lea.vmem %s1, 128
      %v522 = vld [vmem:[%s521] sm:$0xf]
      %v523 = vld [vmem:[%s521 + $0x4] sm:$0xf]
      %v524 = vld [vmem:[%s521 + $0x8] sm:$0xf]
      %v525 = vld [vmem:[%s521 + $0xc] sm:$0xf]
      %v526 = vld [vmem:[%s521 + $0x10] sm:$0xf]
      %v527 = vld [vmem:[%s521 + $0x14] sm:$0xf]
      %v528 = vld [vmem:[%s521 + $0x18] sm:$0xf]
      %v529 = vld [vmem:[%s521 + $0x1c] sm:$0xf]
      %v530 = vld [vmem:[%s521 + $0x20] sm:$0xf]
      %v531 = vld [vmem:[%s521 + $0x24] sm:$0xf]
      %v532 = vld [vmem:[%s521 + $0x28] sm:$0xf]
      %v533 = vld [vmem:[%s521 + $0x2c] sm:$0xf]
      %v534 = vld [vmem:[%s521 + $0x30] sm:$0xf]
      %v535 = vld [vmem:[%s521 + $0x34] sm:$0xf]
      %v536 = vld [vmem:[%s521 + $0x38] sm:$0xf]
      %v537 = vld [vmem:[%s521 + $0x3c] sm:$0xf]
      %v554 = vunpack.c.l.b16 %v522
      %v555 = vunpack.c.l.b16 %v523
      %v556 = vunpack.c.l.b16 %v524
      %v557 = vunpack.c.l.b16 %v525
      %v558 = vunpack.c.l.b16 %v526
      %v559 = vunpack.c.l.b16 %v527
      %v560 = vunpack.c.l.b16 %v528
      %v561 = vunpack.c.l.b16 %v529
      %v562 = vunpack.c.l.b16 %v530
      %v563 = vunpack.c.l.b16 %v531
      %v564 = vunpack.c.l.b16 %v532
      %v565 = vunpack.c.l.b16 %v533
      %v566 = vunpack.c.l.b16 %v534
      %v567 = vunpack.c.l.b16 %v535
      %v568 = vunpack.c.l.b16 %v536
      %v569 = vunpack.c.l.b16 %v537
      %v570 = vpack.c.b16 %v555, %v554
      %v571 = vpack.c.b16 %v557, %v556
      %v572 = vpack.c.b16 %v559, %v558
      %v573 = vpack.c.b16 %v561, %v560
      %v574 = vpack.c.b16 %v563, %v562
      %v575 = vpack.c.b16 %v565, %v564
      %v576 = vpack.c.b16 %v567, %v566
      %v577 = vpack.c.b16 %v569, %v568
      %586 = vmatprep.subr.bf16.mxu0 0
      %587 = vmatpush1.bf16.msra.mxu0 %v570
      %588 = vmatprep.subr.bf16.mxu0 0
      %589 = vmatpush1.bf16.msra.mxu0 %v571
      %590 = vmatprep.subr.bf16.mxu0 0
      %591 = vmatpush1.bf16.msra.mxu0 %v572
      %592 = vmatprep.subr.bf16.mxu0 0
      %593 = vmatpush1.bf16.msra.mxu0 %v573
      %594 = vmatprep.subr.bf16.mxu0 0
      %595 = vmatpush1.bf16.msra.mxu0 %v574
      %596 = vmatprep.subr.bf16.mxu0 0
      %597 = vmatpush1.bf16.msra.mxu0 %v575
      %598 = vmatprep.subr.bf16.mxu0 0
      %599 = vmatpush1.bf16.msra.mxu0 %v576
      %600 = vmatprep.subr.bf16.mxu0 0
      %601 = vmatpush1.bf16.msra.mxu0 %v577
      %602 = vmatprep.subr.bf16.mxu0 0
      %603 = vmatpush1.bf16.msra.mxu0 0
      %604 = vmatprep.subr.bf16.mxu0 0
      %605 = vmatpush1.bf16.msra.mxu0 0
      %606 = vmatprep.subr.bf16.mxu0 0
      %607 = vmatpush1.bf16.msra.mxu0 0
      %608 = vmatprep.subr.bf16.mxu0 0
      %609 = vmatpush1.bf16.msra.mxu0 0
      %610 = vmatprep.subr.bf16.mxu0 0
      %611 = vmatpush1.bf16.msra.mxu0 0
      %612 = vmatprep.subr.bf16.mxu0 0
      %613 = vmatpush1.bf16.msra.mxu0 0
      %614 = vmatprep.subr.bf16.mxu0 0
      %615 = vmatpush1.bf16.msra.mxu0 0
      %616 = vmatprep.subr.bf16.mxu0 0
      %617 = vmatpush1.bf16.msra.mxu0 0
      %618 = vmatprep.mubr.bf16.mxu0 0
      %619 = vmatmul.mubr.bf16.gmra.mrb[0].mxu0 %v517
      %v620 = vpop.f32.mrb[0].mxu0
      %v621 = vadd.f32 0.0, %v620
      %v622 = vpop.f32.mrb[0].mxu0
      %v623 = vpop.f32.mrb[0].mxu0
      %v624 = vadd.f32 0.0, %v623
      %v625 = vpop.f32.mrb[0].mxu0
      %626 = vmatprep.mubr.bf16.mxu0 0
      %627 = vmatmul.mubr.bf16.gmra.mrb[0].mxu0 %v518
      %v628 = vpop.f32.mrb[0].mxu0
      %v629 = vadd.f32 0.0, %v628
      %v630 = vpop.f32.mrb[0].mxu0
      %v631 = vpop.f32.mrb[0].mxu0
      %v632 = vadd.f32 0.0, %v631
      %v633 = vpop.f32.mrb[0].mxu0
      %634 = vmatprep.mubr.bf16.mxu0 0
      %635 = vmatmul.mubr.bf16.gmra.mrb[0].mxu0 %v519
      %v636 = vpop.f32.mrb[0].mxu0
      %v637 = vadd.f32 0.0, %v636
      %v638 = vpop.f32.mrb[0].mxu0
      %v639 = vpop.f32.mrb[0].mxu0
      %v640 = vadd.f32 0.0, %v639
      %v641 = vpop.f32.mrb[0].mxu0
      %642 = vmatprep.mubr.bf16.mxu0 0
      %643 = vmatmul.mubr.bf16.gmra.mrb[0].mxu0 %v520
      %v644 = vpop.f32.mrb[0].mxu0
      %v645 = vadd.f32 0.0, %v644
      %v646 = vpop.f32.mrb[0].mxu0
      %v647 = vpop.f32.mrb[0].mxu0
      %v648 = vadd.f32 0.0, %v647
      %v649 = vpop.f32.mrb[0].mxu0
      %650 = vdwg.mxu0
      %v651 = vadd.f32 %v479, %v621
      %v652 = vadd.f32 %v482, %v624
      %v653 = vadd.f32 %v487, %v629
      %v654 = vadd.f32 %v490, %v632
      %v655 = vadd.f32 %v495, %v637
      %v656 = vadd.f32 %v498, %v640
      %v657 = vadd.f32 %v503, %v645
      %v658 = vadd.f32 %v506, %v648
      %s659 = scalar_lea.vmem %s219, 16
      %v660 = vld [vmem:[%s659] sm:$0xff]
      %v661 = vld [vmem:[%s659 + $0x10] sm:$0xff]
      %v662 = vld [vmem:[%s659 + $0x20] sm:$0xff]
      %v663 = vld [vmem:[%s659 + $0x30] sm:$0xff]
      %v664 = vld [vmem:[%s659 + $0x40] sm:$0xff]
      %v665 = vld [vmem:[%s659 + $0x50] sm:$0xff]
      %v666 = vld [vmem:[%s659 + $0x60] sm:$0xff]
      %v667 = vld [vmem:[%s659 + $0x70] sm:$0xff]
      %v668 = vpack.c.bf16 %v661, %v660
      %v669 = vpack.c.bf16 %v663, %v662
      %v670 = vpack.c.bf16 %v665, %v664
      %v671 = vpack.c.bf16 %v667, %v666
      %s672 = scalar_lea.vmem %s1, 192
      %v673 = vld [vmem:[%s672] sm:$0xf]
      %v674 = vld [vmem:[%s672 + $0x4] sm:$0xf]
      %v675 = vld [vmem:[%s672 + $0x8] sm:$0xf]
      %v676 = vld [vmem:[%s672 + $0xc] sm:$0xf]
      %v677 = vld [vmem:[%s672 + $0x10] sm:$0xf]
      %v678 = vld [vmem:[%s672 + $0x14] sm:$0xf]
      %v679 = vld [vmem:[%s672 + $0x18] sm:$0xf]
      %v680 = vld [vmem:[%s672 + $0x1c] sm:$0xf]
      %v681 = vld [vmem:[%s672 + $0x20] sm:$0xf]
      %v682 = vld [vmem:[%s672 + $0x24] sm:$0xf]
      %v683 = vld [vmem:[%s672 + $0x28] sm:$0xf]
      %v684 = vld [vmem:[%s672 + $0x2c] sm:$0xf]
      %v685 = vld [vmem:[%s672 + $0x30] sm:$0xf]
      %v686 = vld [vmem:[%s672 + $0x34] sm:$0xf]
      %v687 = vld [vmem:[%s672 + $0x38] sm:$0xf]
      %v688 = vld [vmem:[%s672 + $0x3c] sm:$0xf]
      %v705 = vunpack.c.l.b16 %v673
      %v706 = vunpack.c.l.b16 %v674
      %v707 = vunpack.c.l.b16 %v675
      %v708 = vunpack.c.l.b16 %v676
      %v709 = vunpack.c.l.b16 %v677
      %v710 = vunpack.c.l.b16 %v678
      %v711 = vunpack.c.l.b16 %v679
      %v712 = vunpack.c.l.b16 %v680
      %v713 = vunpack.c.l.b16 %v681
      %v714 = vunpack.c.l.b16 %v682
      %v715 = vunpack.c.l.b16 %v683
      %v716 = vunpack.c.l.b16 %v684
      %v717 = vunpack.c.l.b16 %v685
      %v718 = vunpack.c.l.b16 %v686
      %v719 = vunpack.c.l.b16 %v687
      %v720 = vunpack.c.l.b16 %v688
      %v721 = vpack.c.b16 %v706, %v705
      %v722 = vpack.c.b16 %v708, %v707
      %v723 = vpack.c.b16 %v710, %v709
      %v724 = vpack.c.b16 %v712, %v711
      %v725 = vpack.c.b16 %v714, %v713
      %v726 = vpack.c.b16 %v716, %v715
      %v727 = vpack.c.b16 %v718, %v717
      %v728 = vpack.c.b16 %v720, %v719
      %737 = vmatprep.subr.bf16.mxu0 0
      %738 = vmatpush1.bf16.msra.mxu0 %v721
      %739 = vmatprep.subr.bf16.mxu0 0
      %740 = vmatpush1.bf16.msra.mxu0 %v722
      %741 = vmatprep.subr.bf16.mxu0 0
      %742 = vmatpush1.bf16.msra.mxu0 %v723
      %743 = vmatprep.subr.bf16.mxu0 0
      %744 = vmatpush1.bf16.msra.mxu0 %v724
      %745 = vmatprep.subr.bf16.mxu0 0
      %746 = vmatpush1.bf16.msra.mxu0 %v725
      %747 = vmatprep.subr.bf16.mxu0 0
      %748 = vmatpush1.bf16.msra.mxu0 %v726
      %749 = vmatprep.subr.bf16.mxu0 0
      %750 = vmatpush1.bf16.msra.mxu0 %v727
      %751 = vmatprep.subr.bf16.mxu0 0
      %752 = vmatpush1.bf16.msra.mxu0 %v728
      %753 = vmatprep.subr.bf16.mxu0 0
      %754 = vmatpush1.bf16.msra.mxu0 0
      %755 = vmatprep.subr.bf16.mxu0 0
      %756 = vmatpush1.bf16.msra.mxu0 0
      %757 = vmatprep.subr.bf16.mxu0 0
      %758 = vmatpush1.bf16.msra.mxu0 0
      %759 = vmatprep.subr.bf16.mxu0 0
      %760 = vmatpush1.bf16.msra.mxu0 0
      %761 = vmatprep.subr.bf16.mxu0 0
      %762 = vmatpush1.bf16.msra.mxu0 0
      %763 = vmatprep.subr.bf16.mxu0 0
      %764 = vmatpush1.bf16.msra.mxu0 0
      %765 = vmatprep.subr.bf16.mxu0 0
      %766 = vmatpush1.bf16.msra.mxu0 0
      %767 = vmatprep.subr.bf16.mxu0 0
      %768 = vmatpush1.bf16.msra.mxu0 0
      %769 = vmatprep.mubr.bf16.mxu0 0
      %770 = vmatmul.mubr.bf16.gmra.mrb[0].mxu0 %v668
      %v771 = vpop.f32.mrb[0].mxu0
      %v772 = vadd.f32 0.0, %v771
      %v773 = vpop.f32.mrb[0].mxu0
      %v774 = vpop.f32.mrb[0].mxu0
      %v775 = vadd.f32 0.0, %v774
      %v776 = vpop.f32.mrb[0].mxu0
      %777 = vmatprep.mubr.bf16.mxu0 0
      %778 = vmatmul.mubr.bf16.gmra.mrb[0].mxu0 %v669
      %v779 = vpop.f32.mrb[0].mxu0
      %v780 = vadd.f32 0.0, %v779
      %v781 = vpop.f32.mrb[0].mxu0
      %v782 = vpop.f32.mrb[0].mxu0
      %v783 = vadd.f32 0.0, %v782
      %v784 = vpop.f32.mrb[0].mxu0
      %785 = vmatprep.mubr.bf16.mxu0 0
      %786 = vmatmul.mubr.bf16.gmra.mrb[0].mxu0 %v670
      %v787 = vpop.f32.mrb[0].mxu0
      %v788 = vadd.f32 0.0, %v787
      %v789 = vpop.f32.mrb[0].mxu0
      %v790 = vpop.f32.mrb[0].mxu0
      %v791 = vadd.f32 0.0, %v790
      %v792 = vpop.f32.mrb[0].mxu0
      %793 = vmatprep.mubr.bf16.mxu0 0
      %794 = vmatmul.mubr.bf16.gmra.mrb[0].mxu0 %v671
      %v795 = vpop.f32.mrb[0].mxu0
      %v796 = vadd.f32 0.0, %v795
      %v797 = vpop.f32.mrb[0].mxu0
      %v798 = vpop.f32.mrb[0].mxu0
      %v799 = vadd.f32 0.0, %v798
      %v800 = vpop.f32.mrb[0].mxu0
      %801 = vdwg.mxu0
      %v802 = vadd.f32 %v651, %v772
      %v803 = vadd.f32 %v652, %v775
      %v804 = vadd.f32 %v653, %v780
      %v805 = vadd.f32 %v654, %v783
      %v806 = vadd.f32 %v655, %v788
      %v807 = vadd.f32 %v656, %v791
      %v808 = vadd.f32 %v657, %v796
      %v809 = vadd.f32 %v658, %v799
      %v810 = vld [vmem:[%s659 + $0x1] sm:$0xff]
      %v811 = vld [vmem:[%s659 + $0x11] sm:$0xff]
      %v812 = vld [vmem:[%s659 + $0x21] sm:$0xff]
      %v813 = vld [vmem:[%s659 + $0x31] sm:$0xff]
      %v814 = vld [vmem:[%s659 + $0x41] sm:$0xff]
      %v815 = vld [vmem:[%s659 + $0x51] sm:$0xff]
      %v816 = vld [vmem:[%s659 + $0x61] sm:$0xff]
      %v817 = vld [vmem:[%s659 + $0x71] sm:$0xff]
      %v818 = vpack.c.bf16 %v811, %v810
      %v819 = vpack.c.bf16 %v813, %v812
      %v820 = vpack.c.bf16 %v815, %v814
      %v821 = vpack.c.bf16 %v817, %v816
      %s822 = scalar_lea.vmem %s1, 256
      %v823 = vld [vmem:[%s822] sm:$0xf]
      %v824 = vld [vmem:[%s822 + $0x4] sm:$0xf]
      %v825 = vld [vmem:[%s822 + $0x8] sm:$0xf]
      %v826 = vld [vmem:[%s822 + $0xc] sm:$0xf]
      %v827 = vld [vmem:[%s822 + $0x10] sm:$0xf]
      %v828 = vld [vmem:[%s822 + $0x14] sm:$0xf]
      %v829 = vld [vmem:[%s822 + $0x18] sm:$0xf]
      %v830 = vld [vmem:[%s822 + $0x1c] sm:$0xf]
      %v831 = vld [vmem:[%s822 + $0x20] sm:$0xf]
      %v832 = vld [vmem:[%s822 + $0x24] sm:$0xf]
      %v833 = vld [vmem:[%s822 + $0x28] sm:$0xf]
      %v834 = vld [vmem:[%s822 + $0x2c] sm:$0xf]
      %v835 = vld [vmem:[%s822 + $0x30] sm:$0xf]
      %v836 = vld [vmem:[%s822 + $0x34] sm:$0xf]
      %v837 = vld [vmem:[%s822 + $0x38] sm:$0xf]
      %v838 = vld [vmem:[%s822 + $0x3c] sm:$0xf]
      %v855 = vunpack.c.l.b16 %v823
      %v856 = vunpack.c.l.b16 %v824
      %v857 = vunpack.c.l.b16 %v825
      %v858 = vunpack.c.l.b16 %v826
      %v859 = vunpack.c.l.b16 %v827
      %v860 = vunpack.c.l.b16 %v828
      %v861 = vunpack.c.l.b16 %v829
      %v862 = vunpack.c.l.b16 %v830
      %v863 = vunpack.c.l.b16 %v831
      %v864 = vunpack.c.l.b16 %v832
      %v865 = vunpack.c.l.b16 %v833
      %v866 = vunpack.c.l.b16 %v834
      %v867 = vunpack.c.l.b16 %v835
      %v868 = vunpack.c.l.b16 %v836
      %v869 = vunpack.c.l.b16 %v837
      %v870 = vunpack.c.l.b16 %v838
      %v871 = vpack.c.b16 %v856, %v855
      %v872 = vpack.c.b16 %v858, %v857
      %v873 = vpack.c.b16 %v860, %v859
      %v874 = vpack.c.b16 %v862, %v861
      %v875 = vpack.c.b16 %v864, %v863
      %v876 = vpack.c.b16 %v866, %v865
      %v877 = vpack.c.b16 %v868, %v867
      %v878 = vpack.c.b16 %v870, %v869
      %887 = vmatprep.subr.bf16.mxu0 0
      %888 = vmatpush1.bf16.msra.mxu0 %v871
      %889 = vmatprep.subr.bf16.mxu0 0
      %890 = vmatpush1.bf16.msra.mxu0 %v872
      %891 = vmatprep.subr.bf16.mxu0 0
      %892 = vmatpush1.bf16.msra.mxu0 %v873
      %893 = vmatprep.subr.bf16.mxu0 0
      %894 = vmatpush1.bf16.msra.mxu0 %v874
      %895 = vmatprep.subr.bf16.mxu0 0
      %896 = vmatpush1.bf16.msra.mxu0 %v875
      %897 = vmatprep.subr.bf16.mxu0 0
      %898 = vmatpush1.bf16.msra.mxu0 %v876
      %899 = vmatprep.subr.bf16.mxu0 0
      %900 = vmatpush1.bf16.msra.mxu0 %v877
      %901 = vmatprep.subr.bf16.mxu0 0
      %902 = vmatpush1.bf16.msra.mxu0 %v878
      %903 = vmatprep.subr.bf16.mxu0 0
      %904 = vmatpush1.bf16.msra.mxu0 0
      %905 = vmatprep.subr.bf16.mxu0 0
      %906 = vmatpush1.bf16.msra.mxu0 0
      %907 = vmatprep.subr.bf16.mxu0 0
      %908 = vmatpush1.bf16.msra.mxu0 0
      %909 = vmatprep.subr.bf16.mxu0 0
      %910 = vmatpush1.bf16.msra.mxu0 0
      %911 = vmatprep.subr.bf16.mxu0 0
      %912 = vmatpush1.bf16.msra.mxu0 0
      %913 = vmatprep.subr.bf16.mxu0 0
      %914 = vmatpush1.bf16.msra.mxu0 0
      %915 = vmatprep.subr.bf16.mxu0 0
      %916 = vmatpush1.bf16.msra.mxu0 0
      %917 = vmatprep.subr.bf16.mxu0 0
      %918 = vmatpush1.bf16.msra.mxu0 0
      %919 = vmatprep.mubr.bf16.mxu0 0
      %920 = vmatmul.mubr.bf16.gmra.mrb[0].mxu0 %v818
      %v921 = vpop.f32.mrb[0].mxu0
      %v922 = vadd.f32 0.0, %v921
      %v923 = vpop.f32.mrb[0].mxu0
      %v924 = vpop.f32.mrb[0].mxu0
      %v925 = vadd.f32 0.0, %v924
      %v926 = vpop.f32.mrb[0].mxu0
      %927 = vmatprep.mubr.bf16.mxu0 0
      %928 = vmatmul.mubr.bf16.gmra.mrb[0].mxu0 %v819
      %v929 = vpop.f32.mrb[0].mxu0
      %v930 = vadd.f32 0.0, %v929
      %v931 = vpop.f32.mrb[0].mxu0
      %v932 = vpop.f32.mrb[0].mxu0
      %v933 = vadd.f32 0.0, %v932
      %v934 = vpop.f32.mrb[0].mxu0
      %935 = vmatprep.mubr.bf16.mxu0 0
      %936 = vmatmul.mubr.bf16.gmra.mrb[0].mxu0 %v820
      %v937 = vpop.f32.mrb[0].mxu0
      %v938 = vadd.f32 0.0, %v937
      %v939 = vpop.f32.mrb[0].mxu0
      %v940 = vpop.f32.mrb[0].mxu0
      %v941 = vadd.f32 0.0, %v940
      %v942 = vpop.f32.mrb[0].mxu0
      %943 = vmatprep.mubr.bf16.mxu0 0
      %944 = vmatmul.mubr.bf16.gmra.mrb[0].mxu0 %v821
      %v945 = vpop.f32.mrb[0].mxu0
      %v946 = vadd.f32 0.0, %v945
      %v947 = vpop.f32.mrb[0].mxu0
      %v948 = vpop.f32.mrb[0].mxu0
      %v949 = vadd.f32 0.0, %v948
      %v950 = vpop.f32.mrb[0].mxu0
      %951 = vdwg.mxu0
      %v952 = vadd.f32 %v802, %v922
      %v953 = vadd.f32 %v803, %v925
      %v954 = vadd.f32 %v804, %v930
      %v955 = vadd.f32 %v805, %v933
      %v956 = vadd.f32 %v806, %v938
      %v957 = vadd.f32 %v807, %v941
      %v958 = vadd.f32 %v808, %v946
      %v959 = vadd.f32 %v809, %v949
      %v960 = vld [vmem:[%s659 + $0x2] sm:$0xff]
      %v961 = vld [vmem:[%s659 + $0x12] sm:$0xff]
      %v962 = vld [vmem:[%s659 + $0x22] sm:$0xff]
      %v963 = vld [vmem:[%s659 + $0x32] sm:$0xff]
      %v964 = vld [vmem:[%s659 + $0x42] sm:$0xff]
      %v965 = vld [vmem:[%s659 + $0x52] sm:$0xff]
      %v966 = vld [vmem:[%s659 + $0x62] sm:$0xff]
      %v967 = vld [vmem:[%s659 + $0x72] sm:$0xff]
      %v968 = vpack.c.bf16 %v961, %v960
      %v969 = vpack.c.bf16 %v963, %v962
      %v970 = vpack.c.bf16 %v965, %v964
      %v971 = vpack.c.bf16 %v967, %v966
      %s972 = scalar_lea.vmem %s1, 320
      %v973 = vld [vmem:[%s972] sm:$0xf]
      %v974 = vld [vmem:[%s972 + $0x4] sm:$0xf]
      %v975 = vld [vmem:[%s972 + $0x8] sm:$0xf]
      %v976 = vld [vmem:[%s972 + $0xc] sm:$0xf]
      %v977 = vld [vmem:[%s972 + $0x10] sm:$0xf]
      %v978 = vld [vmem:[%s972 + $0x14] sm:$0xf]
      %v979 = vld [vmem:[%s972 + $0x18] sm:$0xf]
      %v980 = vld [vmem:[%s972 + $0x1c] sm:$0xf]
      %v981 = vld [vmem:[%s972 + $0x20] sm:$0xf]
      %v982 = vld [vmem:[%s972 + $0x24] sm:$0xf]
      %v983 = vld [vmem:[%s972 + $0x28] sm:$0xf]
      %v984 = vld [vmem:[%s972 + $0x2c] sm:$0xf]
      %v985 = vld [vmem:[%s972 + $0x30] sm:$0xf]
      %v986 = vld [vmem:[%s972 + $0x34] sm:$0xf]
      %v987 = vld [vmem:[%s972 + $0x38] sm:$0xf]
      %v988 = vld [vmem:[%s972 + $0x3c] sm:$0xf]
      %v1005 = vunpack.c.l.b16 %v973
      %v1006 = vunpack.c.l.b16 %v974
      %v1007 = vunpack.c.l.b16 %v975
      %v1008 = vunpack.c.l.b16 %v976
      %v1009 = vunpack.c.l.b16 %v977
      %v1010 = vunpack.c.l.b16 %v978
      %v1011 = vunpack.c.l.b16 %v979
      %v1012 = vunpack.c.l.b16 %v980
      %v1013 = vunpack.c.l.b16 %v981
      %v1014 = vunpack.c.l.b16 %v982
      %v1015 = vunpack.c.l.b16 %v983
      %v1016 = vunpack.c.l.b16 %v984
      %v1017 = vunpack.c.l.b16 %v985
      %v1018 = vunpack.c.l.b16 %v986
      %v1019 = vunpack.c.l.b16 %v987
      %v1020 = vunpack.c.l.b16 %v988
      %v1021 = vpack.c.b16 %v1006, %v1005
      %v1022 = vpack.c.b16 %v1008, %v1007
      %v1023 = vpack.c.b16 %v1010, %v1009
      %v1024 = vpack.c.b16 %v1012, %v1011
      %v1025 = vpack.c.b16 %v1014, %v1013
      %v1026 = vpack.c.b16 %v1016, %v1015
      %v1027 = vpack.c.b16 %v1018, %v1017
      %v1028 = vpack.c.b16 %v1020, %v1019
      %1037 = vmatprep.subr.bf16.mxu0 0
      %1038 = vmatpush1.bf16.msra.mxu0 %v1021
      %1039 = vmatprep.subr.bf16.mxu0 0
      %1040 = vmatpush1.bf16.msra.mxu0 %v1022
      %1041 = vmatprep.subr.bf16.mxu0 0
      %1042 = vmatpush1.bf16.msra.mxu0 %v1023
      %1043 = vmatprep.subr.bf16.mxu0 0
      %1044 = vmatpush1.bf16.msra.mxu0 %v1024
      %1045 = vmatprep.subr.bf16.mxu0 0
      %1046 = vmatpush1.bf16.msra.mxu0 %v1025
      %1047 = vmatprep.subr.bf16.mxu0 0
      %1048 = vmatpush1.bf16.msra.mxu0 %v1026
      %1049 = vmatprep.subr.bf16.mxu0 0
      %1050 = vmatpush1.bf16.msra.mxu0 %v1027
      %1051 = vmatprep.subr.bf16.mxu0 0
      %1052 = vmatpush1.bf16.msra.mxu0 %v1028
      %1053 = vmatprep.subr.bf16.mxu0 0
      %1054 = vmatpush1.bf16.msra.mxu0 0
      %1055 = vmatprep.subr.bf16.mxu0 0
      %1056 = vmatpush1.bf16.msra.mxu0 0
      %1057 = vmatprep.subr.bf16.mxu0 0
      %1058 = vmatpush1.bf16.msra.mxu0 0
      %1059 = vmatprep.subr.bf16.mxu0 0
      %1060 = vmatpush1.bf16.msra.mxu0 0
      %1061 = vmatprep.subr.bf16.mxu0 0
      %1062 = vmatpush1.bf16.msra.mxu0 0
      %1063 = vmatprep.subr.bf16.mxu0 0
      %1064 = vmatpush1.bf16.msra.mxu0 0
      %1065 = vmatprep.subr.bf16.mxu0 0
      %1066 = vmatpush1.bf16.msra.mxu0 0
      %1067 = vmatprep.subr.bf16.mxu0 0
      %1068 = vmatpush1.bf16.msra.mxu0 0
      %1069 = vmatprep.mubr.bf16.mxu0 0
      %1070 = vmatmul.mubr.bf16.gmra.mrb[0].mxu0 %v968
      %v1071 = vpop.f32.mrb[0].mxu0
      %v1072 = vadd.f32 0.0, %v1071
      %v1073 = vpop.f32.mrb[0].mxu0
      %v1074 = vpop.f32.mrb[0].mxu0
      %v1075 = vadd.f32 0.0, %v1074
      %v1076 = vpop.f32.mrb[0].mxu0
      %1077 = vmatprep.mubr.bf16.mxu0 0
      %1078 = vmatmul.mubr.bf16.gmra.mrb[0].mxu0 %v969
      %v1079 = vpop.f32.mrb[0].mxu0
      %v1080 = vadd.f32 0.0, %v1079
      %v1081 = vpop.f32.mrb[0].mxu0
      %v1082 = vpop.f32.mrb[0].mxu0
      %v1083 = vadd.f32 0.0, %v1082
      %v1084 = vpop.f32.mrb[0].mxu0
      %1085 = vmatprep.mubr.bf16.mxu0 0
      %1086 = vmatmul.mubr.bf16.gmra.mrb[0].mxu0 %v970
      %v1087 = vpop.f32.mrb[0].mxu0
      %v1088 = vadd.f32 0.0, %v1087
      %v1089 = vpop.f32.mrb[0].mxu0
      %v1090 = vpop.f32.mrb[0].mxu0
      %v1091 = vadd.f32 0.0, %v1090
      %v1092 = vpop.f32.mrb[0].mxu0
      %1093 = vmatprep.mubr.bf16.mxu0 0
      %1094 = vmatmul.mubr.bf16.gmra.mrb[0].mxu0 %v971
      %v1095 = vpop.f32.mrb[0].mxu0
      %v1096 = vadd.f32 0.0, %v1095
      %v1097 = vpop.f32.mrb[0].mxu0
      %v1098 = vpop.f32.mrb[0].mxu0
      %v1099 = vadd.f32 0.0, %v1098
      %v1100 = vpop.f32.mrb[0].mxu0
      %1101 = vdwg.mxu0
      %v1102 = vadd.f32 %v952, %v1072
      %v1103 = vadd.f32 %v953, %v1075
      %v1104 = vadd.f32 %v954, %v1080
      %v1105 = vadd.f32 %v955, %v1083
      %v1106 = vadd.f32 %v956, %v1088
      %v1107 = vadd.f32 %v957, %v1091
      %v1108 = vadd.f32 %v958, %v1096
      %v1109 = vadd.f32 %v959, %v1099
      %s1110 = scalar_lea.vmem %s219, 32
      %v1111 = vld [vmem:[%s1110] sm:$0xff]
      %v1112 = vld [vmem:[%s1110 + $0x10] sm:$0xff]
      %v1113 = vld [vmem:[%s1110 + $0x20] sm:$0xff]
      %v1114 = vld [vmem:[%s1110 + $0x30] sm:$0xff]
      %v1115 = vld [vmem:[%s1110 + $0x40] sm:$0xff]
      %v1116 = vld [vmem:[%s1110 + $0x50] sm:$0xff]
      %v1117 = vld [vmem:[%s1110 + $0x60] sm:$0xff]
      %v1118 = vld [vmem:[%s1110 + $0x70] sm:$0xff]
      %v1119 = vpack.c.bf16 %v1112, %v1111
      %v1120 = vpack.c.bf16 %v1114, %v1113
      %v1121 = vpack.c.bf16 %v1116, %v1115
      %v1122 = vpack.c.bf16 %v1118, %v1117
      %s1123 = scalar_lea.vmem %s1, 384
      %v1124 = vld [vmem:[%s1123] sm:$0xf]
      %v1125 = vld [vmem:[%s1123 + $0x4] sm:$0xf]
      %v1126 = vld [vmem:[%s1123 + $0x8] sm:$0xf]
      %v1127 = vld [vmem:[%s1123 + $0xc] sm:$0xf]
      %v1128 = vld [vmem:[%s1123 + $0x10] sm:$0xf]
      %v1129 = vld [vmem:[%s1123 + $0x14] sm:$0xf]
      %v1130 = vld [vmem:[%s1123 + $0x18] sm:$0xf]
      %v1131 = vld [vmem:[%s1123 + $0x1c] sm:$0xf]
      %v1132 = vld [vmem:[%s1123 + $0x20] sm:$0xf]
      %v1133 = vld [vmem:[%s1123 + $0x24] sm:$0xf]
      %v1134 = vld [vmem:[%s1123 + $0x28] sm:$0xf]
      %v1135 = vld [vmem:[%s1123 + $0x2c] sm:$0xf]
      %v1136 = vld [vmem:[%s1123 + $0x30] sm:$0xf]
      %v1137 = vld [vmem:[%s1123 + $0x34] sm:$0xf]
      %v1138 = vld [vmem:[%s1123 + $0x38] sm:$0xf]
      %v1139 = vld [vmem:[%s1123 + $0x3c] sm:$0xf]
      %v1156 = vunpack.c.l.b16 %v1124
      %v1157 = vunpack.c.l.b16 %v1125
      %v1158 = vunpack.c.l.b16 %v1126
      %v1159 = vunpack.c.l.b16 %v1127
      %v1160 = vunpack.c.l.b16 %v1128
      %v1161 = vunpack.c.l.b16 %v1129
      %v1162 = vunpack.c.l.b16 %v1130
      %v1163 = vunpack.c.l.b16 %v1131
      %v1164 = vunpack.c.l.b16 %v1132
      %v1165 = vunpack.c.l.b16 %v1133
      %v1166 = vunpack.c.l.b16 %v1134
      %v1167 = vunpack.c.l.b16 %v1135
      %v1168 = vunpack.c.l.b16 %v1136
      %v1169 = vunpack.c.l.b16 %v1137
      %v1170 = vunpack.c.l.b16 %v1138
      %v1171 = vunpack.c.l.b16 %v1139
      %v1172 = vpack.c.b16 %v1157, %v1156
      %v1173 = vpack.c.b16 %v1159, %v1158
      %v1174 = vpack.c.b16 %v1161, %v1160
      %v1175 = vpack.c.b16 %v1163, %v1162
      %v1176 = vpack.c.b16 %v1165, %v1164
      %v1177 = vpack.c.b16 %v1167, %v1166
      %v1178 = vpack.c.b16 %v1169, %v1168
      %v1179 = vpack.c.b16 %v1171, %v1170
      %1188 = vmatprep.subr.bf16.mxu0 0
      %1189 = vmatpush1.bf16.msra.mxu0 %v1172
      %1190 = vmatprep.subr.bf16.mxu0 0
      %1191 = vmatpush1.bf16.msra.mxu0 %v1173
      %1192 = vmatprep.subr.bf16.mxu0 0
      %1193 = vmatpush1.bf16.msra.mxu0 %v1174
      %1194 = vmatprep.subr.bf16.mxu0 0
      %1195 = vmatpush1.bf16.msra.mxu0 %v1175
      %1196 = vmatprep.subr.bf16.mxu0 0
      %1197 = vmatpush1.bf16.msra.mxu0 %v1176
      %1198 = vmatprep.subr.bf16.mxu0 0
      %1199 = vmatpush1.bf16.msra.mxu0 %v1177
      %1200 = vmatprep.subr.bf16.mxu0 0
      %1201 = vmatpush1.bf16.msra.mxu0 %v1178
      %1202 = vmatprep.subr.bf16.mxu0 0
      %1203 = vmatpush1.bf16.msra.mxu0 %v1179
      %1204 = vmatprep.subr.bf16.mxu0 0
      %1205 = vmatpush1.bf16.msra.mxu0 0
      %1206 = vmatprep.subr.bf16.mxu0 0
      %1207 = vmatpush1.bf16.msra.mxu0 0
      %1208 = vmatprep.subr.bf16.mxu0 0
      %1209 = vmatpush1.bf16.msra.mxu0 0
      %1210 = vmatprep.subr.bf16.mxu0 0
      %1211 = vmatpush1.bf16.msra.mxu0 0
      %1212 = vmatprep.subr.bf16.mxu0 0
      %1213 = vmatpush1.bf16.msra.mxu0 0
      %1214 = vmatprep.subr.bf16.mxu0 0
      %1215 = vmatpush1.bf16.msra.mxu0 0
      %1216 = vmatprep.subr.bf16.mxu0 0
      %1217 = vmatpush1.bf16.msra.mxu0 0
      %1218 = vmatprep.subr.bf16.mxu0 0
      %1219 = vmatpush1.bf16.msra.mxu0 0
      %1220 = vmatprep.mubr.bf16.mxu0 0
      %1221 = vmatmul.mubr.bf16.gmra.mrb[0].mxu0 %v1119
      %v1222 = vpop.f32.mrb[0].mxu0
      %v1223 = vadd.f32 0.0, %v1222
      %v1224 = vpop.f32.mrb[0].mxu0
      %v1225 = vpop.f32.mrb[0].mxu0
      %v1226 = vadd.f32 0.0, %v1225
      %v1227 = vpop.f32.mrb[0].mxu0
      %1228 = vmatprep.mubr.bf16.mxu0 0
      %1229 = vmatmul.mubr.bf16.gmra.mrb[0].mxu0 %v1120
      %v1230 = vpop.f32.mrb[0].mxu0
      %v1231 = vadd.f32 0.0, %v1230
      %v1232 = vpop.f32.mrb[0].mxu0
      %v1233 = vpop.f32.mrb[0].mxu0
      %v1234 = vadd.f32 0.0, %v1233
      %v1235 = vpop.f32.mrb[0].mxu0
      %1236 = vmatprep.mubr.bf16.mxu0 0
      %1237 = vmatmul.mubr.bf16.gmra.mrb[0].mxu0 %v1121
      %v1238 = vpop.f32.mrb[0].mxu0
      %v1239 = vadd.f32 0.0, %v1238
      %v1240 = vpop.f32.mrb[0].mxu0
      %v1241 = vpop.f32.mrb[0].mxu0
      %v1242 = vadd.f32 0.0, %v1241
      %v1243 = vpop.f32.mrb[0].mxu0
      %1244 = vmatprep.mubr.bf16.mxu0 0
      %1245 = vmatmul.mubr.bf16.gmra.mrb[0].mxu0 %v1122
      %v1246 = vpop.f32.mrb[0].mxu0
      %v1247 = vadd.f32 0.0, %v1246
      %v1248 = vpop.f32.mrb[0].mxu0
      %v1249 = vpop.f32.mrb[0].mxu0
      %v1250 = vadd.f32 0.0, %v1249
      %v1251 = vpop.f32.mrb[0].mxu0
      %1252 = vdwg.mxu0
      %v1253 = vadd.f32 %v1102, %v1223
      %v1254 = vadd.f32 %v1103, %v1226
      %v1255 = vadd.f32 %v1104, %v1231
      %v1256 = vadd.f32 %v1105, %v1234
      %v1257 = vadd.f32 %v1106, %v1239
      %v1258 = vadd.f32 %v1107, %v1242
      %v1259 = vadd.f32 %v1108, %v1247
      %v1260 = vadd.f32 %v1109, %v1250
      %v1261 = vld [vmem:[%s1110 + $0x1] sm:$0xff]
      %v1262 = vld [vmem:[%s1110 + $0x11] sm:$0xff]
      %v1263 = vld [vmem:[%s1110 + $0x21] sm:$0xff]
      %v1264 = vld [vmem:[%s1110 + $0x31] sm:$0xff]
      %v1265 = vld [vmem:[%s1110 + $0x41] sm:$0xff]
      %v1266 = vld [vmem:[%s1110 + $0x51] sm:$0xff]
      %v1267 = vld [vmem:[%s1110 + $0x61] sm:$0xff]
      %v1268 = vld [vmem:[%s1110 + $0x71] sm:$0xff]
      %v1269 = vpack.c.bf16 %v1262, %v1261
      %v1270 = vpack.c.bf16 %v1264, %v1263
      %v1271 = vpack.c.bf16 %v1266, %v1265
      %v1272 = vpack.c.bf16 %v1268, %v1267
      %s1273 = scalar_lea.vmem %s1, 448
      %v1274 = vld [vmem:[%s1273] sm:$0xf]
      %v1275 = vld [vmem:[%s1273 + $0x4] sm:$0xf]
      %v1276 = vld [vmem:[%s1273 + $0x8] sm:$0xf]
      %v1277 = vld [vmem:[%s1273 + $0xc] sm:$0xf]
      %v1278 = vld [vmem:[%s1273 + $0x10] sm:$0xf]
      %v1279 = vld [vmem:[%s1273 + $0x14] sm:$0xf]
      %v1280 = vld [vmem:[%s1273 + $0x18] sm:$0xf]
      %v1281 = vld [vmem:[%s1273 + $0x1c] sm:$0xf]
      %v1282 = vld [vmem:[%s1273 + $0x20] sm:$0xf]
      %v1283 = vld [vmem:[%s1273 + $0x24] sm:$0xf]
      %v1284 = vld [vmem:[%s1273 + $0x28] sm:$0xf]
      %v1285 = vld [vmem:[%s1273 + $0x2c] sm:$0xf]
      %v1286 = vld [vmem:[%s1273 + $0x30] sm:$0xf]
      %v1287 = vld [vmem:[%s1273 + $0x34] sm:$0xf]
      %v1288 = vld [vmem:[%s1273 + $0x38] sm:$0xf]
      %v1289 = vld [vmem:[%s1273 + $0x3c] sm:$0xf]
      %v1306 = vunpack.c.l.b16 %v1274
      %v1307 = vunpack.c.l.b16 %v1275
      %v1308 = vunpack.c.l.b16 %v1276
      %v1309 = vunpack.c.l.b16 %v1277
      %v1310 = vunpack.c.l.b16 %v1278
      %v1311 = vunpack.c.l.b16 %v1279
      %v1312 = vunpack.c.l.b16 %v1280
      %v1313 = vunpack.c.l.b16 %v1281
      %v1314 = vunpack.c.l.b16 %v1282
      %v1315 = vunpack.c.l.b16 %v1283
      %v1316 = vunpack.c.l.b16 %v1284
      %v1317 = vunpack.c.l.b16 %v1285
      %v1318 = vunpack.c.l.b16 %v1286
      %v1319 = vunpack.c.l.b16 %v1287
      %v1320 = vunpack.c.l.b16 %v1288
      %v1321 = vunpack.c.l.b16 %v1289
      %v1322 = vpack.c.b16 %v1307, %v1306
      %v1323 = vpack.c.b16 %v1309, %v1308
      %v1324 = vpack.c.b16 %v1311, %v1310
      %v1325 = vpack.c.b16 %v1313, %v1312
      %v1326 = vpack.c.b16 %v1315, %v1314
      %v1327 = vpack.c.b16 %v1317, %v1316
      %v1328 = vpack.c.b16 %v1319, %v1318
      %v1329 = vpack.c.b16 %v1321, %v1320
      %1338 = vmatprep.subr.bf16.mxu0 0
      %1339 = vmatpush1.bf16.msra.mxu0 %v1322
      %1340 = vmatprep.subr.bf16.mxu0 0
      %1341 = vmatpush1.bf16.msra.mxu0 %v1323
      %1342 = vmatprep.subr.bf16.mxu0 0
      %1343 = vmatpush1.bf16.msra.mxu0 %v1324
      %1344 = vmatprep.subr.bf16.mxu0 0
      %1345 = vmatpush1.bf16.msra.mxu0 %v1325
      %1346 = vmatprep.subr.bf16.mxu0 0
      %1347 = vmatpush1.bf16.msra.mxu0 %v1326
      %1348 = vmatprep.subr.bf16.mxu0 0
      %1349 = vmatpush1.bf16.msra.mxu0 %v1327
      %1350 = vmatprep.subr.bf16.mxu0 0
      %1351 = vmatpush1.bf16.msra.mxu0 %v1328
      %1352 = vmatprep.subr.bf16.mxu0 0
      %1353 = vmatpush1.bf16.msra.mxu0 %v1329
      %1354 = vmatprep.subr.bf16.mxu0 0
      %1355 = vmatpush1.bf16.msra.mxu0 0
      %1356 = vmatprep.subr.bf16.mxu0 0
      %1357 = vmatpush1.bf16.msra.mxu0 0
      %1358 = vmatprep.subr.bf16.mxu0 0
      %1359 = vmatpush1.bf16.msra.mxu0 0
      %1360 = vmatprep.subr.bf16.mxu0 0
      %1361 = vmatpush1.bf16.msra.mxu0 0
      %1362 = vmatprep.subr.bf16.mxu0 0
      %1363 = vmatpush1.bf16.msra.mxu0 0
      %1364 = vmatprep.subr.bf16.mxu0 0
      %1365 = vmatpush1.bf16.msra.mxu0 0
      %1366 = vmatprep.subr.bf16.mxu0 0
      %1367 = vmatpush1.bf16.msra.mxu0 0
      %1368 = vmatprep.subr.bf16.mxu0 0
      %1369 = vmatpush1.bf16.msra.mxu0 0
      %1370 = vmatprep.mubr.bf16.mxu0 0
      %1371 = vmatmul.mubr.bf16.gmra.mrb[0].mxu0 %v1269
      %v1372 = vpop.f32.mrb[0].mxu0
      %v1373 = vadd.f32 0.0, %v1372
      %v1374 = vpop.f32.mrb[0].mxu0
      %v1375 = vpop.f32.mrb[0].mxu0
      %v1376 = vadd.f32 0.0, %v1375
      %v1377 = vpop.f32.mrb[0].mxu0
      %1378 = vmatprep.mubr.bf16.mxu0 0
      %1379 = vmatmul.mubr.bf16.gmra.mrb[0].mxu0 %v1270
      %v1380 = vpop.f32.mrb[0].mxu0
      %v1381 = vadd.f32 0.0, %v1380
      %v1382 = vpop.f32.mrb[0].mxu0
      %v1383 = vpop.f32.mrb[0].mxu0
      %v1384 = vadd.f32 0.0, %v1383
      %v1385 = vpop.f32.mrb[0].mxu0
      %1386 = vmatprep.mubr.bf16.mxu0 0
      %1387 = vmatmul.mubr.bf16.gmra.mrb[0].mxu0 %v1271
      %v1388 = vpop.f32.mrb[0].mxu0
      %v1389 = vadd.f32 0.0, %v1388
      %v1390 = vpop.f32.mrb[0].mxu0
      %v1391 = vpop.f32.mrb[0].mxu0
      %v1392 = vadd.f32 0.0, %v1391
      %v1393 = vpop.f32.mrb[0].mxu0
      %1394 = vmatprep.mubr.bf16.mxu0 0
      %1395 = vmatmul.mubr.bf16.gmra.mrb[0].mxu0 %v1272
      %v1396 = vpop.f32.mrb[0].mxu0
      %v1397 = vadd.f32 0.0, %v1396
      %v1398 = vpop.f32.mrb[0].mxu0
      %v1399 = vpop.f32.mrb[0].mxu0
      %v1400 = vadd.f32 0.0, %v1399
      %v1401 = vpop.f32.mrb[0].mxu0
      %1402 = vdwg.mxu0
      %v1403 = vadd.f32 %v1253, %v1373
      %v1404 = vadd.f32 %v1254, %v1376
      %v1405 = vadd.f32 %v1255, %v1381
      %v1406 = vadd.f32 %v1256, %v1384
      %v1407 = vadd.f32 %v1257, %v1389
      %v1408 = vadd.f32 %v1258, %v1392
      %v1409 = vadd.f32 %v1259, %v1397
      %v1410 = vadd.f32 %v1260, %v1400
      %v1411 = vld [vmem:[%s1110 + $0x2] sm:$0xff]
      %v1412 = vld [vmem:[%s1110 + $0x12] sm:$0xff]
      %v1413 = vld [vmem:[%s1110 + $0x22] sm:$0xff]
      %v1414 = vld [vmem:[%s1110 + $0x32] sm:$0xff]
      %v1415 = vld [vmem:[%s1110 + $0x42] sm:$0xff]
      %v1416 = vld [vmem:[%s1110 + $0x52] sm:$0xff]
      %v1417 = vld [vmem:[%s1110 + $0x62] sm:$0xff]
      %v1418 = vld [vmem:[%s1110 + $0x72] sm:$0xff]
      %v1419 = vpack.c.bf16 %v1412, %v1411
      %v1420 = vpack.c.bf16 %v1414, %v1413
      %v1421 = vpack.c.bf16 %v1416, %v1415
      %v1422 = vpack.c.bf16 %v1418, %v1417
      %s1423 = scalar_lea.vmem %s1, 512
      %v1424 = vld [vmem:[%s1423] sm:$0xf]
      %v1425 = vld [vmem:[%s1423 + $0x4] sm:$0xf]
      %v1426 = vld [vmem:[%s1423 + $0x8] sm:$0xf]
      %v1427 = vld [vmem:[%s1423 + $0xc] sm:$0xf]
      %v1428 = vld [vmem:[%s1423 + $0x10] sm:$0xf]
      %v1429 = vld [vmem:[%s1423 + $0x14] sm:$0xf]
      %v1430 = vld [vmem:[%s1423 + $0x18] sm:$0xf]
      %v1431 = vld [vmem:[%s1423 + $0x1c] sm:$0xf]
      %v1432 = vld [vmem:[%s1423 + $0x20] sm:$0xf]
      %v1433 = vld [vmem:[%s1423 + $0x24] sm:$0xf]
      %v1434 = vld [vmem:[%s1423 + $0x28] sm:$0xf]
      %v1435 = vld [vmem:[%s1423 + $0x2c] sm:$0xf]
      %v1436 = vld [vmem:[%s1423 + $0x30] sm:$0xf]
      %v1437 = vld [vmem:[%s1423 + $0x34] sm:$0xf]
      %v1438 = vld [vmem:[%s1423 + $0x38] sm:$0xf]
      %v1439 = vld [vmem:[%s1423 + $0x3c] sm:$0xf]
      %v1456 = vunpack.c.l.b16 %v1424
      %v1457 = vunpack.c.l.b16 %v1425
      %v1458 = vunpack.c.l.b16 %v1426
      %v1459 = vunpack.c.l.b16 %v1427
      %v1460 = vunpack.c.l.b16 %v1428
      %v1461 = vunpack.c.l.b16 %v1429
      %v1462 = vunpack.c.l.b16 %v1430
      %v1463 = vunpack.c.l.b16 %v1431
      %v1464 = vunpack.c.l.b16 %v1432
      %v1465 = vunpack.c.l.b16 %v1433
      %v1466 = vunpack.c.l.b16 %v1434
      %v1467 = vunpack.c.l.b16 %v1435
      %v1468 = vunpack.c.l.b16 %v1436
      %v1469 = vunpack.c.l.b16 %v1437
      %v1470 = vunpack.c.l.b16 %v1438
      %v1471 = vunpack.c.l.b16 %v1439
      %v1472 = vpack.c.b16 %v1457, %v1456
      %v1473 = vpack.c.b16 %v1459, %v1458
      %v1474 = vpack.c.b16 %v1461, %v1460
      %v1475 = vpack.c.b16 %v1463, %v1462
      %v1476 = vpack.c.b16 %v1465, %v1464
      %v1477 = vpack.c.b16 %v1467, %v1466
      %v1478 = vpack.c.b16 %v1469, %v1468
      %v1479 = vpack.c.b16 %v1471, %v1470
      %1488 = vmatprep.subr.bf16.mxu0 0
      %1489 = vmatpush1.bf16.msra.mxu0 %v1472
      %1490 = vmatprep.subr.bf16.mxu0 0
      %1491 = vmatpush1.bf16.msra.mxu0 %v1473
      %1492 = vmatprep.subr.bf16.mxu0 0
      %1493 = vmatpush1.bf16.msra.mxu0 %v1474
      %1494 = vmatprep.subr.bf16.mxu0 0
      %1495 = vmatpush1.bf16.msra.mxu0 %v1475
      %1496 = vmatprep.subr.bf16.mxu0 0
      %1497 = vmatpush1.bf16.msra.mxu0 %v1476
      %1498 = vmatprep.subr.bf16.mxu0 0
      %1499 = vmatpush1.bf16.msra.mxu0 %v1477
      %1500 = vmatprep.subr.bf16.mxu0 0
      %1501 = vmatpush1.bf16.msra.mxu0 %v1478
      %1502 = vmatprep.subr.bf16.mxu0 0
      %1503 = vmatpush1.bf16.msra.mxu0 %v1479
      %1504 = vmatprep.subr.bf16.mxu0 0
      %1505 = vmatpush1.bf16.msra.mxu0 0
      %1506 = vmatprep.subr.bf16.mxu0 0
      %1507 = vmatpush1.bf16.msra.mxu0 0
      %1508 = vmatprep.subr.bf16.mxu0 0
      %1509 = vmatpush1.bf16.msra.mxu0 0
      %1510 = vmatprep.subr.bf16.mxu0 0
      %1511 = vmatpush1.bf16.msra.mxu0 0
      %1512 = vmatprep.subr.bf16.mxu0 0
      %1513 = vmatpush1.bf16.msra.mxu0 0
      %1514 = vmatprep.subr.bf16.mxu0 0
      %1515 = vmatpush1.bf16.msra.mxu0 0
      %1516 = vmatprep.subr.bf16.mxu0 0
      %1517 = vmatpush1.bf16.msra.mxu0 0
      %1518 = vmatprep.subr.bf16.mxu0 0
      %1519 = vmatpush1.bf16.msra.mxu0 0
      %1520 = vmatprep.mubr.bf16.mxu0 0
      %1521 = vmatmul.mubr.bf16.gmra.mrb[0].mxu0 %v1419
      %v1522 = vpop.f32.mrb[0].mxu0
      %v1523 = vadd.f32 0.0, %v1522
      %v1524 = vpop.f32.mrb[0].mxu0
      %v1525 = vpop.f32.mrb[0].mxu0
      %v1526 = vadd.f32 0.0, %v1525
      %v1527 = vpop.f32.mrb[0].mxu0
      %1528 = vmatprep.mubr.bf16.mxu0 0
      %1529 = vmatmul.mubr.bf16.gmra.mrb[0].mxu0 %v1420
      %v1530 = vpop.f32.mrb[0].mxu0
      %v1531 = vadd.f32 0.0, %v1530
      %v1532 = vpop.f32.mrb[0].mxu0
      %v1533 = vpop.f32.mrb[0].mxu0
      %v1534 = vadd.f32 0.0, %v1533
      %v1535 = vpop.f32.mrb[0].mxu0
      %1536 = vmatprep.mubr.bf16.mxu0 0
      %1537 = vmatmul.mubr.bf16.gmra.mrb[0].mxu0 %v1421
      %v1538 = vpop.f32.mrb[0].mxu0
      %v1539 = vadd.f32 0.0, %v1538
      %v1540 = vpop.f32.mrb[0].mxu0
      %v1541 = vpop.f32.mrb[0].mxu0
      %v1542 = vadd.f32 0.0, %v1541
      %v1543 = vpop.f32.mrb[0].mxu0
      %1544 = vmatprep.mubr.bf16.mxu0 0
      %1545 = vmatmul.mubr.bf16.gmra.mrb[0].mxu0 %v1422
      %v1546 = vpop.f32.mrb[0].mxu0
      %v1547 = vadd.f32 0.0, %v1546
      %v1548 = vpop.f32.mrb[0].mxu0
      %v1549 = vpop.f32.mrb[0].mxu0
      %v1550 = vadd.f32 0.0, %v1549
      %v1551 = vpop.f32.mrb[0].mxu0
      %1552 = vdwg.mxu0
      %v1553 = vadd.f32 %v1403, %v1523
      %v1554 = vadd.f32 %v1404, %v1526
      %v1555 = vadd.f32 %v1405, %v1531
      %v1556 = vadd.f32 %v1406, %v1534
      %v1557 = vadd.f32 %v1407, %v1539
      %v1558 = vadd.f32 %v1408, %v1542
      %v1559 = vadd.f32 %v1409, %v1547
      %v1560 = vadd.f32 %v1410, %v1550
      %v1561 = vld [vmem:[%s2] sm:$0x1]
      %v1563 = vlaneseq
      %v1564 = vshrl.u32 %v1563, 7
      %v1565 = vsub.s32 0, %v1564
      %v1566 = vrot.slane %v1561, %v1565
      %v1568 = vadd.f32 %v1553, %v1566
      %v1569 = vadd.f32 %v1554, %v1566
      %v1570 = vadd.f32 %v1555, %v1566
      %v1571 = vadd.f32 %v1556, %v1566
      %v1572 = vadd.f32 %v1557, %v1566
      %v1573 = vadd.f32 %v1558, %v1566
      %v1574 = vadd.f32 %v1559, %v1566
      %v1575 = vadd.f32 %v1560, %v1566
      %v1576 = vmax.f32 %v1568, %v1569
      %v1577 = vmax.f32 %v1570, %v1571
      %v1578 = vmax.f32 %v1572, %v1573
      %v1579 = vmax.f32 %v1574, %v1575
      %1580 = vst [vmem:[#allocation2] sm:$0xff] %v1576
      %1581 = vst [vmem:[#allocation2 + $0x8] sm:$0xff] %v1577
      %1582 = vst [vmem:[#allocation2 + $0x10] sm:$0xff] %v1578
      %1583 = vst [vmem:[#allocation2 + $0x18] sm:$0xff] %v1579
      %v1584 = vld [vmem:[#allocation2] ss:$2 sm:$0xff]
      %s1585 = scalar_lea.vmem [#allocation2], 16
      %v1586 = vld [vmem:[%s1585] ss:$2 sm:$0xff]
      %s1587 = scalar_lea.vmem [#allocation2], 1
      %v1588 = vld [vmem:[%s1587] ss:$2 sm:$0xff]
      %s1589 = scalar_lea.vmem [#allocation2], 17
      %v1590 = vld [vmem:[%s1589] ss:$2 sm:$0xff]
      %v1591 = vmax.f32 %v1584, %v1588
      %v1592 = vmax.f32 %v1586, %v1590
      %v1593 = vadd.f32 %v1591, %v1592
      %v1594 = vrot.slane %v1593, 4
      %v1595 = vadd.f32 %v1593, %v1594
      %v1596 = vrot.slane %v1595, 2
      %v1597 = vadd.f32 %v1595, %v1596
      %v1598 = vrot.slane %v1597, 1
      %v1599 = vadd.f32 %v1597, %v1598
      %v1600 = vrcp.pop 16.0
      %v1601 = vmul.f32 %v1599, %v1600
      %v1602 = vld [vmem:[%s3] sm:$0xff]
      %v1603 = vld [vmem:[%s3 + $0x8] sm:$0xff]
      %v1604 = vld [vmem:[%s3 + $0x10] sm:$0xff]
      %v1605 = vld [vmem:[%s3 + $0x18] sm:$0xff]
      %v1606 = vld [vmem:[%s3 + $0x20] sm:$0xff]
      %v1607 = vld [vmem:[%s3 + $0x28] sm:$0xff]
      %v1608 = vld [vmem:[%s3 + $0x30] sm:$0xff]
      %v1609 = vld [vmem:[%s3 + $0x38] sm:$0xff]
      %v1610 = vld [vmem:[%s3 + $0x40] sm:$0xff]
      %v1611 = vld [vmem:[%s3 + $0x48] sm:$0xff]
      %v1612 = vld [vmem:[%s3 + $0x50] sm:$0xff]
      %v1613 = vld [vmem:[%s3 + $0x58] sm:$0xff]
      %v1614 = vld [vmem:[%s3 + $0x60] sm:$0xff]
      %v1615 = vld [vmem:[%s3 + $0x68] sm:$0xff]
      %v1616 = vld [vmem:[%s3 + $0x70] sm:$0xff]
      %v1617 = vld [vmem:[%s3 + $0x78] sm:$0xff]
      %1618 = vmatprep.subr.mxu0 0.0
      %1619 = vmatpush1.msra.mxu0 %v1602
      %1620 = vmatprep.subr.mxu0 0.0
      %1621 = vmatpush1.msra.mxu0 %v1603
      %1622 = vmatprep.subr.mxu0 0.0
      %1623 = vmatpush1.msra.mxu0 %v1604
      %1624 = vmatprep.subr.mxu0 0.0
      %1625 = vmatpush1.msra.mxu0 %v1605
      %1626 = vmatprep.subr.mxu0 0.0
      %1627 = vmatpush1.msra.mxu0 %v1606
      %1628 = vmatprep.subr.mxu0 0.0
      %1629 = vmatpush1.msra.mxu0 %v1607
      %1630 = vmatprep.subr.mxu0 0.0
      %1631 = vmatpush1.msra.mxu0 %v1608
      %1632 = vmatprep.subr.mxu0 0.0
      %1633 = vmatpush1.msra.mxu0 %v1609
      %1634 = vmatprep.subr.mxu0 0.0
      %1635 = vmatpush1.msra.mxu0 %v1610
      %1636 = vmatprep.subr.mxu0 0.0
      %1637 = vmatpush1.msra.mxu0 %v1611
      %1638 = vmatprep.subr.mxu0 0.0
      %1639 = vmatpush1.msra.mxu0 %v1612
      %1640 = vmatprep.subr.mxu0 0.0
      %1641 = vmatpush1.msra.mxu0 %v1613
      %1642 = vmatprep.subr.mxu0 0.0
      %1643 = vmatpush1.msra.mxu0 %v1614
      %1644 = vmatprep.subr.mxu0 0.0
      %1645 = vmatpush1.msra.mxu0 %v1615
      %1646 = vmatprep.subr.mxu0 0.0
      %1647 = vmatpush1.msra.mxu0 %v1616
      %1648 = vmatprep.subr.mxu0 0.0
      %1649 = vmatpush1.msra.mxu0 %v1617
      %1650 = vmatprep.subr.mxu0 0.0
      %1651 = vmatpush1.msra.mxu0 0.0
      %1652 = vmatprep.subr.mxu0 0.0
      %1653 = vmatpush1.msra.mxu0 0.0
      %1654 = vmatprep.subr.mxu0 0.0
      %1655 = vmatpush1.msra.mxu0 0.0
      %1656 = vmatprep.subr.mxu0 0.0
      %1657 = vmatpush1.msra.mxu0 0.0
      %1658 = vmatprep.subr.mxu0 0.0
      %1659 = vmatpush1.msra.mxu0 0.0
      %1660 = vmatprep.subr.mxu0 0.0
      %1661 = vmatpush1.msra.mxu0 0.0
      %1662 = vmatprep.subr.mxu0 0.0
      %1663 = vmatpush1.msra.mxu0 0.0
      %1664 = vmatprep.subr.mxu0 0.0
      %1665 = vmatpush1.msra.mxu0 0.0
      %1666 = vmatprep.subr.mxu0 0.0
      %1667 = vmatpush1.msra.mxu0 0.0
      %1668 = vmatprep.subr.mxu0 0.0
      %1669 = vmatpush1.msra.mxu0 0.0
      %1670 = vmatprep.subr.mxu0 0.0
      %1671 = vmatpush1.msra.mxu0 0.0
      %1672 = vmatprep.subr.mxu0 0.0
      %1673 = vmatpush1.msra.mxu0 0.0
      %1674 = vmatprep.subr.mxu0 0.0
      %1675 = vmatpush1.msra.mxu0 0.0
      %1676 = vmatprep.subr.mxu0 0.0
      %1677 = vmatpush1.msra.mxu0 0.0
      %1678 = vmatprep.subr.mxu0 0.0
      %1679 = vmatpush1.msra.mxu0 0.0
      %1680 = vmatprep.subr.mxu0 0.0
      %1681 = vmatpush1.msra.mxu0 0.0
      %1682 = vmatprep.mubr.f32.mxu0 0.0
      %1683 = vmatmul.mubr.f32.gmra.mrb[0].mxu0 %v1601
      %v1684 = vpop.f32.mrb[0].mxu0
      %v1685 = vadd.f32 0.0, %v1684
      %v1686 = vpop.f32.mrb[0].mxu0
      %1687 = vdwg.mxu0
      %v1688 = vmax.f32 %v1685, 0.0
      %v1689 = vld [vmem:[%s4] sm:$0xff]
      %v1690 = vld [vmem:[%s4 + $0x8] sm:$0xff]
      %v1691 = vld [vmem:[%s4 + $0x10] sm:$0xff]
      %v1692 = vld [vmem:[%s4 + $0x18] sm:$0xff]
      %v1693 = vld [vmem:[%s4 + $0x20] sm:$0xff]
      %v1694 = vld [vmem:[%s4 + $0x28] sm:$0xff]
      %v1695 = vld [vmem:[%s4 + $0x30] sm:$0xff]
      %v1696 = vld [vmem:[%s4 + $0x38] sm:$0xff]
      %v1697 = vld [vmem:[%s4 + $0x40] sm:$0xff]
      %v1698 = vld [vmem:[%s4 + $0x48] sm:$0xff]
      %v1699 = vld [vmem:[%s4 + $0x50] sm:$0xff]
      %v1700 = vld [vmem:[%s4 + $0x58] sm:$0xff]
      %v1701 = vld [vmem:[%s4 + $0x60] sm:$0xff]
      %v1702 = vld [vmem:[%s4 + $0x68] sm:$0xff]
      %v1703 = vld [vmem:[%s4 + $0x70] sm:$0xff]
      %v1704 = vld [vmem:[%s4 + $0x78] sm:$0xff]
      %1705 = vmatprep.subr.mxu0 0.0
      %1706 = vmatpush1.msra.mxu0 %v1689
      %1707 = vmatprep.subr.mxu0 0.0
      %1708 = vmatpush1.msra.mxu0 %v1690
      %1709 = vmatprep.subr.mxu0 0.0
      %1710 = vmatpush1.msra.mxu0 %v1691
      %1711 = vmatprep.subr.mxu0 0.0
      %1712 = vmatpush1.msra.mxu0 %v1692
      %1713 = vmatprep.subr.mxu0 0.0
      %1714 = vmatpush1.msra.mxu0 %v1693
      %1715 = vmatprep.subr.mxu0 0.0
      %1716 = vmatpush1.msra.mxu0 %v1694
      %1717 = vmatprep.subr.mxu0 0.0
      %1718 = vmatpush1.msra.mxu0 %v1695
      %1719 = vmatprep.subr.mxu0 0.0
      %1720 = vmatpush1.msra.mxu0 %v1696
      %1721 = vmatprep.subr.mxu0 0.0
      %1722 = vmatpush1.msra.mxu0 %v1697
      %1723 = vmatprep.subr.mxu0 0.0
      %1724 = vmatpush1.msra.mxu0 %v1698
      %1725 = vmatprep.subr.mxu0 0.0
      %1726 = vmatpush1.msra.mxu0 %v1699
      %1727 = vmatprep.subr.mxu0 0.0
      %1728 = vmatpush1.msra.mxu0 %v1700
      %1729 = vmatprep.subr.mxu0 0.0
      %1730 = vmatpush1.msra.mxu0 %v1701
      %1731 = vmatprep.subr.mxu0 0.0
      %1732 = vmatpush1.msra.mxu0 %v1702
      %1733 = vmatprep.subr.mxu0 0.0
      %1734 = vmatpush1.msra.mxu0 %v1703
      %1735 = vmatprep.subr.mxu0 0.0
      %1736 = vmatpush1.msra.mxu0 %v1704
      %1737 = vmatprep.subr.mxu0 0.0
      %1738 = vmatpush1.msra.mxu0 0.0
      %1739 = vmatprep.subr.mxu0 0.0
      %1740 = vmatpush1.msra.mxu0 0.0
      %1741 = vmatprep.subr.mxu0 0.0
      %1742 = vmatpush1.msra.mxu0 0.0
      %1743 = vmatprep.subr.mxu0 0.0
      %1744 = vmatpush1.msra.mxu0 0.0
      %1745 = vmatprep.subr.mxu0 0.0
      %1746 = vmatpush1.msra.mxu0 0.0
      %1747 = vmatprep.subr.mxu0 0.0
      %1748 = vmatpush1.msra.mxu0 0.0
      %1749 = vmatprep.subr.mxu0 0.0
      %1750 = vmatpush1.msra.mxu0 0.0
      %1751 = vmatprep.subr.mxu0 0.0
      %1752 = vmatpush1.msra.mxu0 0.0
      %1753 = vmatprep.subr.mxu0 0.0
      %1754 = vmatpush1.msra.mxu0 0.0
      %1755 = vmatprep.subr.mxu0 0.0
      %1756 = vmatpush1.msra.mxu0 0.0
      %1757 = vmatprep.subr.mxu0 0.0
      %1758 = vmatpush1.msra.mxu0 0.0
      %1759 = vmatprep.subr.mxu0 0.0
      %1760 = vmatpush1.msra.mxu0 0.0
      %1761 = vmatprep.subr.mxu0 0.0
      %1762 = vmatpush1.msra.mxu0 0.0
      %1763 = vmatprep.subr.mxu0 0.0
      %1764 = vmatpush1.msra.mxu0 0.0
      %1765 = vmatprep.subr.mxu0 0.0
      %1766 = vmatpush1.msra.mxu0 0.0
      %1767 = vmatprep.subr.mxu0 0.0
      %1768 = vmatpush1.msra.mxu0 0.0
      %1769 = vmatprep.mubr.f32.mxu0 0.0
      %1770 = vmatmul.mubr.f32.gmra.mrb[0].mxu0 %v1688
      %v1771 = vpop.f32.mrb[0].mxu0
      %v1772 = vadd.f32 0.0, %v1771
      %v1773 = vpop.f32.mrb[0].mxu0
      %1774 = vdwg.mxu0
      %v1775 = vxor.u32 %v1772, 2147483648
      %v1776 = vmul.f32 %v1775, 1.442695
      %v1777 = vpow.pop %v1776
      %v1778 = vadd.f32 %v1777, 1.0
      %v1779 = vrcp.pop %v1778
      %v1780 = vmul.f32 1.0, %v1779
      %v1781 = vlaneseq
      %v1782 = vshrl.u32 %v1781, 7
      %v1783 = vsub.s32 0, %v1782
      %v1784 = vrot.slane %v1780, %v1783
      %v1785 = vmul.f32 %v1591, %v1784
      %v1786 = vmul.f32 %v1592, %v1784
      %v1787 = vmax.f32 %v1785, 0.0
      %v1788 = vmax.f32 %v1786, 0.0
      %1789 = vst [vmem:[%s224] sm:$0xff] %v1787
      %1790 = vst [vmem:[%s224 + $0x8] sm:$0xff] %v1788
      %p1791 = scmp.lt.s32.totalorder %s16, 1
      %s1792 = scalar_select %p1791, %s16, 1
      %s1793 = smul.addr %s1792, 2
      %s1794 = smul.addr %s1793, 8
      %s1795 = scalar_lea.vmem %s5, %s1794
      // Predicated region
      $region41: #{cnn_forward.4} parent=39 // pred_check
        %p1796 = pneg %p144
      $region42: #{cnn_forward.4} parent=39 // pred_check_branch
        %1798 = sbr.rel (%p1796) target = $region44
      $region43: #{cnn_forward.4} parent=39 // pred_region
        _
      $region44: #{cnn_forward.4} parent=39 // pred_fallthru
        _
    $region40: #{cnn_forward.4} parent=5 // pred_fallthru
      _
    %p1799 = scmp.le.s32.totalorder 2, %s11
    // Predicated region
    $region45: #{cnn_forward.4} parent=5 // pred_check
      %p1800 = pneg %p1799
    $region46: #{cnn_forward.4} parent=5 // pred_check_branch
      %1802 = sbr.rel (%p1800) target = $region48
    $region47: #{cnn_forward.4} parent=5 // pred_region
      %s1803 = ssub.s32 %s11, 2
      // Predicated region
      $region49: #{cnn_forward.4} parent=47 // pred_check
        %p1804 = pneg %p150
      $region50: #{cnn_forward.4} parent=47 // pred_check_branch
        %1806 = sbr.rel (%p1804) target = $region52
      $region51: #{cnn_forward.4} parent=47 // pred_region
        %p1807 = scmp.lt.s32.totalorder %s17, 1
        %s1808 = scalar_select %p1807, %s17, 1
        %s1809 = smul.addr %s1808, 2
        %s1810 = smul.addr %s1809, 8
        %s1811 = scalar_lea.vmem %s5, %s1810
      $region52: #{cnn_forward.4} parent=47 // pred_fallthru
        _
    $region48: #{cnn_forward.4} parent=5 // pred_fallthru
      _
  $region6: #{cnn_forward.4} parent=0 // loop_footer
    %s15 = sadd.s32 1, %s11
  $region7: #{cnn_forward.4} parent=0 // loop_footer_branch
    %10 = sbr.rel target = $region3
  $region8: #{cnn_forward.4} parent=0 // loop_exit
    _

// kernel: cnn_forward.5
$region0: #{cnn_forward.5}
  #allocation0 [shape = 'u32[]', space=smem, size = 0x4, offset = 0x4, fixed_abs, tag = 'smem constant byte address 0x4 - core index']
  #allocation1 [shape = 'u32[144,128]{1,0:T(1,128)}', space=vmem, size = 0x12000, scoped, tag = 'internal scratch']
  %s0 = inlined_call_operand.vmem [shape: f32[2,2048], index: 0, kind: input, shape index: {}]
  %s1 = inlined_call_operand.vmem [shape: bf16[2048,128], index: 1, kind: input, shape index: {}]
  %s2 = inlined_call_operand.hbm [shape: f32[2,128], index: 2, kind: output, shape index: {}]
  %s3 = sld [smem:[#allocation0]]
  $region18: #{cnn_forward.5} parent=0
    _
  %s5 = ssub.s32 1, %s3
  %s6 = scalar_select 0, %s5, %s3
  $region1: #{cnn_forward.5} parent=0
    #allocation2 [shape = 'u8[1024]{0}', space=vmem, size = 0x400, scoped, tag = 'output window, operand 0, single buffered']
    #allocation3 [shape = 's32[1]{0}', space=sflag, size = 0x4, scoped, tag = 'scoped memory for cnn_forward.5']
    %7 = vsyncpa [#allocation3], 0
    // Predicated region
    $region2: #{cnn_forward.5} parent=1 // pred_check
      _
    $region3: #{cnn_forward.5} parent=1 // pred_check_branch
      %9 = sbr.rel (0) target = $region5
    $region4: #{cnn_forward.5} parent=1 // pred_region
      _
    $region5: #{cnn_forward.5} parent=1 // pred_fallthru
      _
    // Predicated region
    $region6: #{cnn_forward.5} parent=1 // pred_check
      _
    $region7: #{cnn_forward.5} parent=1 // pred_check_branch
      %11 = sbr.rel (0) target = $region9
    $region8: #{cnn_forward.5} parent=1 // pred_region
      _
    $region9: #{cnn_forward.5} parent=1 // pred_fallthru
      _
    %v13 = vld [vmem:[%s0] sm:$0xff]
    %v14 = vld [vmem:[%s0 + $0x8] sm:$0xff]
    %v15 = vld [vmem:[%s0 + $0x10] sm:$0xff]
    %v16 = vld [vmem:[%s0 + $0x18] sm:$0xff]
    %v21 = vcombine.high %v13, %v13
    %v23 = vunpack.c.l.s4 1983009808
    %v24 = vunpack.c.0.s8 %v23
    %v25 = vlaneseq
    %v26 = vshrl.u32 %v25, 7
    %v27 = vsub.s32 %v24, %v26
    %v28 = vrot.slane %v13, %v27
    %v30 = vunpack.c.l.s4 1983009808
    %v31 = vunpack.c.0.s8 %v30
    %v32 = vlaneseq
    %v33 = vshrl.u32 %v32, 7
    %v34 = vsub.s32 %v31, %v33
    %v35 = vrot.slane %v21, %v34
    %v36 = vcombine.high %v28, %v28
    %v37 = vcombine.high %v35, %v35
    %v38 = vcombine.high %v14, %v14
    %v40 = vunpack.c.l.s4 1983009808
    %v41 = vunpack.c.0.s8 %v40
    %v42 = vlaneseq
    %v43 = vshrl.u32 %v42, 7
    %v44 = vsub.s32 %v41, %v43
    %v45 = vrot.slane %v14, %v44
    %v47 = vunpack.c.l.s4 1983009808
    %v48 = vunpack.c.0.s8 %v47
    %v49 = vlaneseq
    %v50 = vshrl.u32 %v49, 7
    %v51 = vsub.s32 %v48, %v50
    %v52 = vrot.slane %v38, %v51
    %v53 = vcombine.high %v45, %v45
    %v54 = vcombine.high %v52, %v52
    %v55 = vcombine.high %v15, %v15
    %v57 = vunpack.c.l.s4 1983009808
    %v58 = vunpack.c.0.s8 %v57
    %v59 = vlaneseq
    %v60 = vshrl.u32 %v59, 7
    %v61 = vsub.s32 %v58, %v60
    %v62 = vrot.slane %v15, %v61
    %v64 = vunpack.c.l.s4 1983009808
    %v65 = vunpack.c.0.s8 %v64
    %v66 = vlaneseq
    %v67 = vshrl.u32 %v66, 7
    %v68 = vsub.s32 %v65, %v67
    %v69 = vrot.slane %v55, %v68
    %v70 = vcombine.high %v62, %v62
    %v71 = vcombine.high %v69, %v69
    %v72 = vcombine.high %v16, %v16
    %v74 = vunpack.c.l.s4 1983009808
    %v75 = vunpack.c.0.s8 %v74
    %v76 = vlaneseq
    %v77 = vshrl.u32 %v76, 7
    %v78 = vsub.s32 %v75, %v77
    %v79 = vrot.slane %v16, %v78
    %v81 = vunpack.c.l.s4 1983009808
    %v82 = vunpack.c.0.s8 %v81
    %v83 = vlaneseq
    %v84 = vshrl.u32 %v83, 7
    %v85 = vsub.s32 %v82, %v84
    %v86 = vrot.slane %v72, %v85
    %v87 = vcombine.high %v79, %v79
    %v88 = vcombine.high %v86, %v86
    %v105 = vpack.c.bf16 %v28, %v28
    %v106 = vpack.c.bf16 %v36, %v36
    %v107 = vpack.c.bf16 %v35, %v35
    %v108 = vpack.c.bf16 %v37, %v37
    %v109 = vpack.c.bf16 %v45, %v45
    %v110 = vpack.c.bf16 %v53, %v53
    %v111 = vpack.c.bf16 %v52, %v52
    %v112 = vpack.c.bf16 %v54, %v54
    %v113 = vpack.c.bf16 %v62, %v62
    %v114 = vpack.c.bf16 %v70, %v70
    %v115 = vpack.c.bf16 %v69, %v69
    %v116 = vpack.c.bf16 %v71, %v71
    %v117 = vpack.c.bf16 %v79, %v79
    %v118 = vpack.c.bf16 %v87, %v87
    %v119 = vpack.c.bf16 %v86, %v86
    %v120 = vpack.c.bf16 %v88, %v88
    %v121 = vld [vmem:[%s1] sm:$0xf]
    %v122 = vld [vmem:[%s1 + $0x4] sm:$0xf]
    %v123 = vld [vmem:[%s1 + $0x8] sm:$0xf]
    %v124 = vld [vmem:[%s1 + $0xc] sm:$0xf]
    %v125 = vld [vmem:[%s1 + $0x10] sm:$0xf]
    %v126 = vld [vmem:[%s1 + $0x14] sm:$0xf]
    %v127 = vld [vmem:[%s1 + $0x18] sm:$0xf]
    %v128 = vld [vmem:[%s1 + $0x1c] sm:$0xf]
    %v129 = vld [vmem:[%s1 + $0x20] sm:$0xf]
    %v130 = vld [vmem:[%s1 + $0x24] sm:$0xf]
    %v131 = vld [vmem:[%s1 + $0x28] sm:$0xf]
    %v132 = vld [vmem:[%s1 + $0x2c] sm:$0xf]
    %v133 = vld [vmem:[%s1 + $0x30] sm:$0xf]
    %v134 = vld [vmem:[%s1 + $0x34] sm:$0xf]
    %v135 = vld [vmem:[%s1 + $0x38] sm:$0xf]
    %v136 = vld [vmem:[%s1 + $0x3c] sm:$0xf]
    %v137 = vld [vmem:[%s1 + $0x40] sm:$0xf]
    %v138 = vld [vmem:[%s1 + $0x44] sm:$0xf]
    %v139 = vld [vmem:[%s1 + $0x48] sm:$0xf]
    %v140 = vld [vmem:[%s1 + $0x4c] sm:$0xf]
    %v141 = vld [vmem:[%s1 + $0x50] sm:$0xf]
    %v142 = vld [vmem:[%s1 + $0x54] sm:$0xf]
    %v143 = vld [vmem:[%s1 + $0x58] sm:$0xf]
    %v144 = vld [vmem:[%s1 + $0x5c] sm:$0xf]
    %v145 = vld [vmem:[%s1 + $0x60] sm:$0xf]
    %v146 = vld [vmem:[%s1 + $0x64] sm:$0xf]
    %v147 = vld [vmem:[%s1 + $0x68] sm:$0xf]
    %v148 = vld [vmem:[%s1 + $0x6c] sm:$0xf]
    %v149 = vld [vmem:[%s1 + $0x70] sm:$0xf]
    %v150 = vld [vmem:[%s1 + $0x74] sm:$0xf]
    %v151 = vld [vmem:[%s1 + $0x78] sm:$0xf]
    %v152 = vld [vmem:[%s1 + $0x7c] sm:$0xf]
    %v153 = vld [vmem:[%s1 + $0x80] sm:$0xf]
    %v154 = vld [vmem:[%s1 + $0x84] sm:$0xf]
    %v155 = vld [vmem:[%s1 + $0x88] sm:$0xf]
    %v156 = vld [vmem:[%s1 + $0x8c] sm:$0xf]
    %v157 = vld [vmem:[%s1 + $0x90] sm:$0xf]
    %v158 = vld [vmem:[%s1 + $0x94] sm:$0xf]
    %v159 = vld [vmem:[%s1 + $0x98] sm:$0xf]
    %v160 = vld [vmem:[%s1 + $0x9c] sm:$0xf]
    %v161 = vld [vmem:[%s1 + $0xa0] sm:$0xf]
    %v162 = vld [vmem:[%s1 + $0xa4] sm:$0xf]
    %v163 = vld [vmem:[%s1 + $0xa8] sm:$0xf]
    %v164 = vld [vmem:[%s1 + $0xac] sm:$0xf]
    %v165 = vld [vmem:[%s1 + $0xb0] sm:$0xf]
    %v166 = vld [vmem:[%s1 + $0xb4] sm:$0xf]
    %v167 = vld [vmem:[%s1 + $0xb8] sm:$0xf]
    %v168 = vld [vmem:[%s1 + $0xbc] sm:$0xf]
    %v169 = vld [vmem:[%s1 + $0xc0] sm:$0xf]
    %v170 = vld [vmem:[%s1 + $0xc4] sm:$0xf]
    %v171 = vld [vmem:[%s1 + $0xc8] sm:$0xf]
    %v172 = vld [vmem:[%s1 + $0xcc] sm:$0xf]
    %v173 = vld [vmem:[%s1 + $0xd0] sm:$0xf]
    %v174 = vld [vmem:[%s1 + $0xd4] sm:$0xf]
    %v175 = vld [vmem:[%s1 + $0xd8] sm:$0xf]
    %v176 = vld [vmem:[%s1 + $0xdc] sm:$0xf]
    %v177 = vld [vmem:[%s1 + $0xe0] sm:$0xf]
    %v178 = vld [vmem:[%s1 + $0xe4] sm:$0xf]
    %v179 = vld [vmem:[%s1 + $0xe8] sm:$0xf]
    %v180 = vld [vmem:[%s1 + $0xec] sm:$0xf]
    %v181 = vld [vmem:[%s1 + $0xf0] sm:$0xf]
    %v182 = vld [vmem:[%s1 + $0xf4] sm:$0xf]
    %v183 = vld [vmem:[%s1 + $0xf8] sm:$0xf]
    %v184 = vld [vmem:[%s1 + $0xfc] sm:$0xf]
    %v185 = vld [vmem:[%s1 + $0x100] sm:$0xf]
    %v186 = vld [vmem:[%s1 + $0x104] sm:$0xf]
    %v187 = vld [vmem:[%s1 + $0x108] sm:$0xf]
    %v188 = vld [vmem:[%s1 + $0x10c] sm:$0xf]
    %v189 = vld [vmem:[%s1 + $0x110] sm:$0xf]
    %v190 = vld [vmem:[%s1 + $0x114] sm:$0xf]
    %v191 = vld [vmem:[%s1 + $0x118] sm:$0xf]
    %v192 = vld [vmem:[%s1 + $0x11c] sm:$0xf]
    %v193 = vld [vmem:[%s1 + $0x120] sm:$0xf]
    %v194 = vld [vmem:[%s1 + $0x124] sm:$0xf]
    %v195 = vld [vmem:[%s1 + $0x128] sm:$0xf]
    %v196 = vld [vmem:[%s1 + $0x12c] sm:$0xf]
    %v197 = vld [vmem:[%s1 + $0x130] sm:$0xf]
    %v198 = vld [vmem:[%s1 + $0x134] sm:$0xf]
    %v199 = vld [vmem:[%s1 + $0x138] sm:$0xf]
    %v200 = vld [vmem:[%s1 + $0x13c] sm:$0xf]
    %v201 = vld [vmem:[%s1 + $0x140] sm:$0xf]
    %v202 = vld [vmem:[%s1 + $0x144] sm:$0xf]
    %v203 = vld [vmem:[%s1 + $0x148] sm:$0xf]
    %v204 = vld [vmem:[%s1 + $0x14c] sm:$0xf]
    %v205 = vld [vmem:[%s1 + $0x150] sm:$0xf]
    %v206 = vld [vmem:[%s1 + $0x154] sm:$0xf]
    %v207 = vld [vmem:[%s1 + $0x158] sm:$0xf]
    %v208 = vld [vmem:[%s1 + $0x15c] sm:$0xf]
    %v209 = vld [vmem:[%s1 + $0x160] sm:$0xf]
    %v210 = vld [vmem:[%s1 + $0x164] sm:$0xf]
    %v211 = vld [vmem:[%s1 + $0x168] sm:$0xf]
    %v212 = vld [vmem:[%s1 + $0x16c] sm:$0xf]
    %v213 = vld [vmem:[%s1 + $0x170] sm:$0xf]
    %v214 = vld [vmem:[%s1 + $0x174] sm:$0xf]
    %v215 = vld [vmem:[%s1 + $0x178] sm:$0xf]
    %v216 = vld [vmem:[%s1 + $0x17c] sm:$0xf]
    %v217 = vld [vmem:[%s1 + $0x180] sm:$0xf]
    %v218 = vld [vmem:[%s1 + $0x184] sm:$0xf]
    %v219 = vld [vmem:[%s1 + $0x188] sm:$0xf]
    %v220 = vld [vmem:[%s1 + $0x18c] sm:$0xf]
    %v221 = vld [vmem:[%s1 + $0x190] sm:$0xf]
    %v222 = vld [vmem:[%s1 + $0x194] sm:$0xf]
    %v223 = vld [vmem:[%s1 + $0x198] sm:$0xf]
    %v224 = vld [vmem:[%s1 + $0x19c] sm:$0xf]
    %v225 = vld [vmem:[%s1 + $0x1a0] sm:$0xf]
    %v226 = vld [vmem:[%s1 + $0x1a4] sm:$0xf]
    %v227 = vld [vmem:[%s1 + $0x1a8] sm:$0xf]
    %v228 = vld [vmem:[%s1 + $0x1ac] sm:$0xf]
    %v229 = vld [vmem:[%s1 + $0x1b0] sm:$0xf]
    %v230 = vld [vmem:[%s1 + $0x1b4] sm:$0xf]
    %v231 = vld [vmem:[%s1 + $0x1b8] sm:$0xf]
    %v232 = vld [vmem:[%s1 + $0x1bc] sm:$0xf]
    %v233 = vld [vmem:[%s1 + $0x1c0] sm:$0xf]
    %v234 = vld [vmem:[%s1 + $0x1c4] sm:$0xf]
    %v235 = vld [vmem:[%s1 + $0x1c8] sm:$0xf]
    %v236 = vld [vmem:[%s1 + $0x1cc] sm:$0xf]
    %v237 = vld [vmem:[%s1 + $0x1d0] sm:$0xf]
    %v238 = vld [vmem:[%s1 + $0x1d4] sm:$0xf]
    %v239 = vld [vmem:[%s1 + $0x1d8] sm:$0xf]
    %v240 = vld [vmem:[%s1 + $0x1dc] sm:$0xf]
    %v241 = vld [vmem:[%s1 + $0x1e0] sm:$0xf]
    %v242 = vld [vmem:[%s1 + $0x1e4] sm:$0xf]
    %v243 = vld [vmem:[%s1 + $0x1e8] sm:$0xf]
    %v244 = vld [vmem:[%s1 + $0x1ec] sm:$0xf]
    %v245 = vld [vmem:[%s1 + $0x1f0] sm:$0xf]
    %v246 = vld [vmem:[%s1 + $0x1f4] sm:$0xf]
    %v247 = vld [vmem:[%s1 + $0x1f8] sm:$0xf]
    %v248 = vld [vmem:[%s1 + $0x1fc] sm:$0xf]
    %v249 = vld [vmem:[%s1 + $0x200] sm:$0xf]
    %v250 = vld [vmem:[%s1 + $0x204] sm:$0xf]
    %v251 = vld [vmem:[%s1 + $0x208] sm:$0xf]
    %v252 = vld [vmem:[%s1 + $0x20c] sm:$0xf]
    %v253 = vld [vmem:[%s1 + $0x210] sm:$0xf]
    %v254 = vld [vmem:[%s1 + $0x214] sm:$0xf]
    %v255 = vld [vmem:[%s1 + $0x218] sm:$0xf]
    %v256 = vld [vmem:[%s1 + $0x21c] sm:$0xf]
    %v257 = vld [vmem:[%s1 + $0x220] sm:$0xf]
    %v258 = vld [vmem:[%s1 + $0x224] sm:$0xf]
    %v259 = vld [vmem:[%s1 + $0x228] sm:$0xf]
    %v260 = vld [vmem:[%s1 + $0x22c] sm:$0xf]
    %v261 = vld [vmem:[%s1 + $0x230] sm:$0xf]
    %v262 = vld [vmem:[%s1 + $0x234] sm:$0xf]
    %v263 = vld [vmem:[%s1 + $0x238] sm:$0xf]
    %v264 = vld [vmem:[%s1 + $0x23c] sm:$0xf]
    %v265 = vld [vmem:[%s1 + $0x240] sm:$0xf]
    %v266 = vld [vmem:[%s1 + $0x244] sm:$0xf]
    %v267 = vld [vmem:[%s1 + $0x248] sm:$0xf]
    %v268 = vld [vmem:[%s1 + $0x24c] sm:$0xf]
    %v269 = vld [vmem:[%s1 + $0x250] sm:$0xf]
    %v270 = vld [vmem:[%s1 + $0x254] sm:$0xf]
    %v271 = vld [vmem:[%s1 + $0x258] sm:$0xf]
    %v272 = vld [vmem:[%s1 + $0x25c] sm:$0xf]
    %v273 = vld [vmem:[%s1 + $0x260] sm:$0xf]
    %v274 = vld [vmem:[%s1 + $0x264] sm:$0xf]
    %v275 = vld [vmem:[%s1 + $0x268] sm:$0xf]
    %v276 = vld [vmem:[%s1 + $0x26c] sm:$0xf]
    %v277 = vld [vmem:[%s1 + $0x270] sm:$0xf]
    %v278 = vld [vmem:[%s1 + $0x274] sm:$0xf]
    %v279 = vld [vmem:[%s1 + $0x278] sm:$0xf]
    %v280 = vld [vmem:[%s1 + $0x27c] sm:$0xf]
    %v281 = vld [vmem:[%s1 + $0x280] sm:$0xf]
    %v282 = vld [vmem:[%s1 + $0x284] sm:$0xf]
    %v283 = vld [vmem:[%s1 + $0x288] sm:$0xf]
    %v284 = vld [vmem:[%s1 + $0x28c] sm:$0xf]
    %v285 = vld [vmem:[%s1 + $0x290] sm:$0xf]
    %v286 = vld [vmem:[%s1 + $0x294] sm:$0xf]
    %v287 = vld [vmem:[%s1 + $0x298] sm:$0xf]
    %v288 = vld [vmem:[%s1 + $0x29c] sm:$0xf]
    %v289 = vld [vmem:[%s1 + $0x2a0] sm:$0xf]
    %v290 = vld [vmem:[%s1 + $0x2a4] sm:$0xf]
    %v291 = vld [vmem:[%s1 + $0x2a8] sm:$0xf]
    %v292 = vld [vmem:[%s1 + $0x2ac] sm:$0xf]
    %v293 = vld [vmem:[%s1 + $0x2b0] sm:$0xf]
    %v294 = vld [vmem:[%s1 + $0x2b4] sm:$0xf]
    %v295 = vld [vmem:[%s1 + $0x2b8] sm:$0xf]
    %v296 = vld [vmem:[%s1 + $0x2bc] sm:$0xf]
    %v297 = vld [vmem:[%s1 + $0x2c0] sm:$0xf]
    %v298 = vld [vmem:[%s1 + $0x2c4] sm:$0xf]
    %v299 = vld [vmem:[%s1 + $0x2c8] sm:$0xf]
    %v300 = vld [vmem:[%s1 + $0x2cc] sm:$0xf]
    %v301 = vld [vmem:[%s1 + $0x2d0] sm:$0xf]
    %v302 = vld [vmem:[%s1 + $0x2d4] sm:$0xf]
    %v303 = vld [vmem:[%s1 + $0x2d8] sm:$0xf]
    %v304 = vld [vmem:[%s1 + $0x2dc] sm:$0xf]
    %v305 = vld [vmem:[%s1 + $0x2e0] sm:$0xf]
    %v306 = vld [vmem:[%s1 + $0x2e4] sm:$0xf]
    %v307 = vld [vmem:[%s1 + $0x2e8] sm:$0xf]
    %v308 = vld [vmem:[%s1 + $0x2ec] sm:$0xf]
    %v309 = vld [vmem:[%s1 + $0x2f0] sm:$0xf]
    %v310 = vld [vmem:[%s1 + $0x2f4] sm:$0xf]
    %v311 = vld [vmem:[%s1 + $0x2f8] sm:$0xf]
    %v312 = vld [vmem:[%s1 + $0x2fc] sm:$0xf]
    %v313 = vld [vmem:[%s1 + $0x300] sm:$0xf]
    %v314 = vld [vmem:[%s1 + $0x304] sm:$0xf]
    %v315 = vld [vmem:[%s1 + $0x308] sm:$0xf]
    %v316 = vld [vmem:[%s1 + $0x30c] sm:$0xf]
    %v317 = vld [vmem:[%s1 + $0x310] sm:$0xf]
    %v318 = vld [vmem:[%s1 + $0x314] sm:$0xf]
    %v319 = vld [vmem:[%s1 + $0x318] sm:$0xf]
    %v320 = vld [vmem:[%s1 + $0x31c] sm:$0xf]
    %v321 = vld [vmem:[%s1 + $0x320] sm:$0xf]
    %v322 = vld [vmem:[%s1 + $0x324] sm:$0xf]
    %v323 = vld [vmem:[%s1 + $0x328] sm:$0xf]
    %v324 = vld [vmem:[%s1 + $0x32c] sm:$0xf]
    %v325 = vld [vmem:[%s1 + $0x330] sm:$0xf]
    %v326 = vld [vmem:[%s1 + $0x334] sm:$0xf]
    %v327 = vld [vmem:[%s1 + $0x338] sm:$0xf]
    %v328 = vld [vmem:[%s1 + $0x33c] sm:$0xf]
    %v329 = vld [vmem:[%s1 + $0x340] sm:$0xf]
    %v330 = vld [vmem:[%s1 + $0x344] sm:$0xf]
    %v331 = vld [vmem:[%s1 + $0x348] sm:$0xf]
    %v332 = vld [vmem:[%s1 + $0x34c] sm:$0xf]
    %v333 = vld [vmem:[%s1 + $0x350] sm:$0xf]
    %v334 = vld [vmem:[%s1 + $0x354] sm:$0xf]
    %v335 = vld [vmem:[%s1 + $0x358] sm:$0xf]
    %v336 = vld [vmem:[%s1 + $0x35c] sm:$0xf]
    %v337 = vld [vmem:[%s1 + $0x360] sm:$0xf]
    %v338 = vld [vmem:[%s1 + $0x364] sm:$0xf]
    %v339 = vld [vmem:[%s1 + $0x368] sm:$0xf]
    %v340 = vld [vmem:[%s1 + $0x36c] sm:$0xf]
    %v341 = vld [vmem:[%s1 + $0x370] sm:$0xf]
    %v342 = vld [vmem:[%s1 + $0x374] sm:$0xf]
    %v343 = vld [vmem:[%s1 + $0x378] sm:$0xf]
    %v344 = vld [vmem:[%s1 + $0x37c] sm:$0xf]
    %v345 = vld [vmem:[%s1 + $0x380] sm:$0xf]
    %v346 = vld [vmem:[%s1 + $0x384] sm:$0xf]
    %v347 = vld [vmem:[%s1 + $0x388] sm:$0xf]
    %v348 = vld [vmem:[%s1 + $0x38c] sm:$0xf]
    %v349 = vld [vmem:[%s1 + $0x390] sm:$0xf]
    %v350 = vld [vmem:[%s1 + $0x394] sm:$0xf]
    %v351 = vld [vmem:[%s1 + $0x398] sm:$0xf]
    %v352 = vld [vmem:[%s1 + $0x39c] sm:$0xf]
    %v353 = vld [vmem:[%s1 + $0x3a0] sm:$0xf]
    %v354 = vld [vmem:[%s1 + $0x3a4] sm:$0xf]
    %v355 = vld [vmem:[%s1 + $0x3a8] sm:$0xf]
    %v356 = vld [vmem:[%s1 + $0x3ac] sm:$0xf]
    %v357 = vld [vmem:[%s1 + $0x3b0] sm:$0xf]
    %v358 = vld [vmem:[%s1 + $0x3b4] sm:$0xf]
    %v359 = vld [vmem:[%s1 + $0x3b8] sm:$0xf]
    %v360 = vld [vmem:[%s1 + $0x3bc] sm:$0xf]
    %v361 = vld [vmem:[%s1 + $0x3c0] sm:$0xf]
    %v362 = vld [vmem:[%s1 + $0x3c4] sm:$0xf]
    %v363 = vld [vmem:[%s1 + $0x3c8] sm:$0xf]
    %v364 = vld [vmem:[%s1 + $0x3cc] sm:$0xf]
    %v365 = vld [vmem:[%s1 + $0x3d0] sm:$0xf]
    %v366 = vld [vmem:[%s1 + $0x3d4] sm:$0xf]
    %v367 = vld [vmem:[%s1 + $0x3d8] sm:$0xf]
    %v368 = vld [vmem:[%s1 + $0x3dc] sm:$0xf]
    %v369 = vld [vmem:[%s1 + $0x3e0] sm:$0xf]
    %v370 = vld [vmem:[%s1 + $0x3e4] sm:$0xf]
    %v371 = vld [vmem:[%s1 + $0x3e8] sm:$0xf]
    %v372 = vld [vmem:[%s1 + $0x3ec] sm:$0xf]
    %v373 = vld [vmem:[%s1 + $0x3f0] sm:$0xf]
    %v374 = vld [vmem:[%s1 + $0x3f4] sm:$0xf]
    %v375 = vld [vmem:[%s1 + $0x3f8] sm:$0xf]
    %v376 = vld [vmem:[%s1 + $0x3fc] sm:$0xf]
    %v633 = vunpack.c.l.b16 %v121
    %v634 = vunpack.c.l.b16 %v122
    %v635 = vunpack.c.l.b16 %v123
    %v636 = vunpack.c.l.b16 %v124
    %v637 = vunpack.c.l.b16 %v125
    %v638 = vunpack.c.l.b16 %v126
    %v639 = vunpack.c.l.b16 %v127
    %v640 = vunpack.c.l.b16 %v128
    %v641 = vunpack.c.l.b16 %v129
    %v642 = vunpack.c.l.b16 %v130
    %v643 = vunpack.c.l.b16 %v131
    %v644 = vunpack.c.l.b16 %v132
    %v645 = vunpack.c.l.b16 %v133
    %v646 = vunpack.c.l.b16 %v134
    %v647 = vunpack.c.l.b16 %v135
    %v648 = vunpack.c.l.b16 %v136
    %v649 = vunpack.c.l.b16 %v137
    %v650 = vunpack.c.l.b16 %v138
    %v651 = vunpack.c.l.b16 %v139
    %v652 = vunpack.c.l.b16 %v140
    %v653 = vunpack.c.l.b16 %v141
    %v654 = vunpack.c.l.b16 %v142
    %v655 = vunpack.c.l.b16 %v143
    %v656 = vunpack.c.l.b16 %v144
    %v657 = vunpack.c.l.b16 %v145
    %v658 = vunpack.c.l.b16 %v146
    %v659 = vunpack.c.l.b16 %v147
    %v660 = vunpack.c.l.b16 %v148
    %v661 = vunpack.c.l.b16 %v149
    %v662 = vunpack.c.l.b16 %v150
    %v663 = vunpack.c.l.b16 %v151
    %v664 = vunpack.c.l.b16 %v152
    %v665 = vunpack.c.l.b16 %v153
    %v666 = vunpack.c.l.b16 %v154
    %v667 = vunpack.c.l.b16 %v155
    %v668 = vunpack.c.l.b16 %v156
    %v669 = vunpack.c.l.b16 %v157
    %v670 = vunpack.c.l.b16 %v158
    %v671 = vunpack.c.l.b16 %v159
    %v672 = vunpack.c.l.b16 %v160
    %v673 = vunpack.c.l.b16 %v161
    %v674 = vunpack.c.l.b16 %v162
    %v675 = vunpack.c.l.b16 %v163
    %v676 = vunpack.c.l.b16 %v164
    %v677 = vunpack.c.l.b16 %v165
    %v678 = vunpack.c.l.b16 %v166
    %v679 = vunpack.c.l.b16 %v167
    %v680 = vunpack.c.l.b16 %v168
    %v681 = vunpack.c.l.b16 %v169
    %v682 = vunpack.c.l.b16 %v170
    %v683 = vunpack.c.l.b16 %v171
    %v684 = vunpack.c.l.b16 %v172
    %v685 = vunpack.c.l.b16 %v173
    %v686 = vunpack.c.l.b16 %v174
    %v687 = vunpack.c.l.b16 %v175
    %v688 = vunpack.c.l.b16 %v176
    %v689 = vunpack.c.l.b16 %v177
    %v690 = vunpack.c.l.b16 %v178
    %v691 = vunpack.c.l.b16 %v179
    %v692 = vunpack.c.l.b16 %v180
    %v693 = vunpack.c.l.b16 %v181
    %v694 = vunpack.c.l.b16 %v182
    %v695 = vunpack.c.l.b16 %v183
    %v696 = vunpack.c.l.b16 %v184
    %v697 = vunpack.c.l.b16 %v185
    %v698 = vunpack.c.l.b16 %v186
    %v699 = vunpack.c.l.b16 %v187
    %v700 = vunpack.c.l.b16 %v188
    %v701 = vunpack.c.l.b16 %v189
    %v702 = vunpack.c.l.b16 %v190
    %v703 = vunpack.c.l.b16 %v191
    %v704 = vunpack.c.l.b16 %v192
    %v705 = vunpack.c.l.b16 %v193
    %v706 = vunpack.c.l.b16 %v194
    %v707 = vunpack.c.l.b16 %v195
    %v708 = vunpack.c.l.b16 %v196
    %v709 = vunpack.c.l.b16 %v197
    %v710 = vunpack.c.l.b16 %v198
    %v711 = vunpack.c.l.b16 %v199
    %v712 = vunpack.c.l.b16 %v200
    %v713 = vunpack.c.l.b16 %v201
    %v714 = vunpack.c.l.b16 %v202
    %v715 = vunpack.c.l.b16 %v203
    %v716 = vunpack.c.l.b16 %v204
    %v717 = vunpack.c.l.b16 %v205
    %v718 = vunpack.c.l.b16 %v206
    %v719 = vunpack.c.l.b16 %v207
    %v720 = vunpack.c.l.b16 %v208
    %v721 = vunpack.c.l.b16 %v209
    %v722 = vunpack.c.l.b16 %v210
    %v723 = vunpack.c.l.b16 %v211
    %v724 = vunpack.c.l.b16 %v212
    %v725 = vunpack.c.l.b16 %v213
    %v726 = vunpack.c.l.b16 %v214
    %v727 = vunpack.c.l.b16 %v215
    %v728 = vunpack.c.l.b16 %v216
    %v729 = vunpack.c.l.b16 %v217
    %v730 = vunpack.c.l.b16 %v218
    %v731 = vunpack.c.l.b16 %v219
    %v732 = vunpack.c.l.b16 %v220
    %v733 = vunpack.c.l.b16 %v221
    %v734 = vunpack.c.l.b16 %v222
    %v735 = vunpack.c.l.b16 %v223
    %v736 = vunpack.c.l.b16 %v224
    %v737 = vunpack.c.l.b16 %v225
    %v738 = vunpack.c.l.b16 %v226
    %v739 = vunpack.c.l.b16 %v227
    %v740 = vunpack.c.l.b16 %v228
    %v741 = vunpack.c.l.b16 %v229
    %v742 = vunpack.c.l.b16 %v230
    %v743 = vunpack.c.l.b16 %v231
    %v744 = vunpack.c.l.b16 %v232
    %v745 = vunpack.c.l.b16 %v233
    %v746 = vunpack.c.l.b16 %v234
    %v747 = vunpack.c.l.b16 %v235
    %v748 = vunpack.c.l.b16 %v236
    %v749 = vunpack.c.l.b16 %v237
    %v750 = vunpack.c.l.b16 %v238
    %v751 = vunpack.c.l.b16 %v239
    %v752 = vunpack.c.l.b16 %v240
    %v753 = vunpack.c.l.b16 %v241
    %v754 = vunpack.c.l.b16 %v242
    %v755 = vunpack.c.l.b16 %v243
    %v756 = vunpack.c.l.b16 %v244
    %v757 = vunpack.c.l.b16 %v245
    %v758 = vunpack.c.l.b16 %v246
    %v759 = vunpack.c.l.b16 %v247
    %v760 = vunpack.c.l.b16 %v248
    %v761 = vunpack.c.l.b16 %v249
    %v762 = vunpack.c.l.b16 %v250
    %v763 = vunpack.c.l.b16 %v251
    %v764 = vunpack.c.l.b16 %v252
    %v765 = vunpack.c.l.b16 %v253
    %v766 = vunpack.c.l.b16 %v254
    %v767 = vunpack.c.l.b16 %v255
    %v768 = vunpack.c.l.b16 %v256
    %v769 = vunpack.c.l.b16 %v257
    %v770 = vunpack.c.l.b16 %v258
    %v771 = vunpack.c.l.b16 %v259
    %v772 = vunpack.c.l.b16 %v260
    %v773 = vunpack.c.l.b16 %v261
    %v774 = vunpack.c.l.b16 %v262
    %v775 = vunpack.c.l.b16 %v263
    %v776 = vunpack.c.l.b16 %v264
    %v777 = vunpack.c.l.b16 %v265
    %v778 = vunpack.c.l.b16 %v266
    %v779 = vunpack.c.l.b16 %v267
    %v780 = vunpack.c.l.b16 %v268
    %v781 = vunpack.c.l.b16 %v269
    %v782 = vunpack.c.l.b16 %v270
    %v783 = vunpack.c.l.b16 %v271
    %v784 = vunpack.c.l.b16 %v272
    %v785 = vunpack.c.l.b16 %v273
    %v786 = vunpack.c.l.b16 %v274
    %v787 = vunpack.c.l.b16 %v275
    %v788 = vunpack.c.l.b16 %v276
    %v789 = vunpack.c.l.b16 %v277
    %v790 = vunpack.c.l.b16 %v278
    %v791 = vunpack.c.l.b16 %v279
    %v792 = vunpack.c.l.b16 %v280
    %v793 = vunpack.c.l.b16 %v281
    %v794 = vunpack.c.l.b16 %v282
    %v795 = vunpack.c.l.b16 %v283
    %v796 = vunpack.c.l.b16 %v284
    %v797 = vunpack.c.l.b16 %v285
    %v798 = vunpack.c.l.b16 %v286
    %v799 = vunpack.c.l.b16 %v287
    %v800 = vunpack.c.l.b16 %v288
    %v801 = vunpack.c.l.b16 %v289
    %v802 = vunpack.c.l.b16 %v290
    %v803 = vunpack.c.l.b16 %v291
    %v804 = vunpack.c.l.b16 %v292
    %v805 = vunpack.c.l.b16 %v293
    %v806 = vunpack.c.l.b16 %v294
    %v807 = vunpack.c.l.b16 %v295
    %v808 = vunpack.c.l.b16 %v296
    %v809 = vunpack.c.l.b16 %v297
    %v810 = vunpack.c.l.b16 %v298
    %v811 = vunpack.c.l.b16 %v299
    %v812 = vunpack.c.l.b16 %v300
    %v813 = vunpack.c.l.b16 %v301
    %v814 = vunpack.c.l.b16 %v302
    %v815 = vunpack.c.l.b16 %v303
    %v816 = vunpack.c.l.b16 %v304
    %v817 = vunpack.c.l.b16 %v305
    %v818 = vunpack.c.l.b16 %v306
    %v819 = vunpack.c.l.b16 %v307
    %v820 = vunpack.c.l.b16 %v308
    %v821 = vunpack.c.l.b16 %v309
    %v822 = vunpack.c.l.b16 %v310
    %v823 = vunpack.c.l.b16 %v311
    %v824 = vunpack.c.l.b16 %v312
    %v825 = vunpack.c.l.b16 %v313
    %v826 = vunpack.c.l.b16 %v314
    %v827 = vunpack.c.l.b16 %v315
    %v828 = vunpack.c.l.b16 %v316
    %v829 = vunpack.c.l.b16 %v317
    %v830 = vunpack.c.l.b16 %v318
    %v831 = vunpack.c.l.b16 %v319
    %v832 = vunpack.c.l.b16 %v320
    %v833 = vunpack.c.l.b16 %v321
    %v834 = vunpack.c.l.b16 %v322
    %v835 = vunpack.c.l.b16 %v323
    %v836 = vunpack.c.l.b16 %v324
    %v837 = vunpack.c.l.b16 %v325
    %v838 = vunpack.c.l.b16 %v326
    %v839 = vunpack.c.l.b16 %v327
    %v840 = vunpack.c.l.b16 %v328
    %v841 = vunpack.c.l.b16 %v329
    %v842 = vunpack.c.l.b16 %v330
    %v843 = vunpack.c.l.b16 %v331
    %v844 = vunpack.c.l.b16 %v332
    %v845 = vunpack.c.l.b16 %v333
    %v846 = vunpack.c.l.b16 %v334
    %v847 = vunpack.c.l.b16 %v335
    %v848 = vunpack.c.l.b16 %v336
    %v849 = vunpack.c.l.b16 %v337
    %v850 = vunpack.c.l.b16 %v338
    %v851 = vunpack.c.l.b16 %v339
    %v852 = vunpack.c.l.b16 %v340
    %v853 = vunpack.c.l.b16 %v341
    %v854 = vunpack.c.l.b16 %v342
    %v855 = vunpack.c.l.b16 %v343
    %v856 = vunpack.c.l.b16 %v344
    %v857 = vunpack.c.l.b16 %v345
    %v858 = vunpack.c.l.b16 %v346
    %v859 = vunpack.c.l.b16 %v347
    %v860 = vunpack.c.l.b16 %v348
    %v861 = vunpack.c.l.b16 %v349
    %v862 = vunpack.c.l.b16 %v350
    %v863 = vunpack.c.l.b16 %v351
    %v864 = vunpack.c.l.b16 %v352
    %v865 = vunpack.c.l.b16 %v353
    %v866 = vunpack.c.l.b16 %v354
    %v867 = vunpack.c.l.b16 %v355
    %v868 = vunpack.c.l.b16 %v356
    %v869 = vunpack.c.l.b16 %v357
    %v870 = vunpack.c.l.b16 %v358
    %v871 = vunpack.c.l.b16 %v359
    %v872 = vunpack.c.l.b16 %v360
    %v873 = vunpack.c.l.b16 %v361
    %v874 = vunpack.c.l.b16 %v362
    %v875 = vunpack.c.l.b16 %v363
    %v876 = vunpack.c.l.b16 %v364
    %v877 = vunpack.c.l.b16 %v365
    %v878 = vunpack.c.l.b16 %v366
    %v879 = vunpack.c.l.b16 %v367
    %v880 = vunpack.c.l.b16 %v368
    %v881 = vunpack.c.l.b16 %v369
    %v882 = vunpack.c.l.b16 %v370
    %v883 = vunpack.c.l.b16 %v371
    %v884 = vunpack.c.l.b16 %v372
    %v885 = vunpack.c.l.b16 %v373
    %v886 = vunpack.c.l.b16 %v374
    %v887 = vunpack.c.l.b16 %v375
    %v888 = vunpack.c.l.b16 %v376
    %v889 = vpack.c.b16 %v634, %v633
    %v890 = vpack.c.b16 %v636, %v635
    %v891 = vpack.c.b16 %v638, %v637
    %v892 = vpack.c.b16 %v640, %v639
    %v893 = vpack.c.b16 %v642, %v641
    %v894 = vpack.c.b16 %v644, %v643
    %v895 = vpack.c.b16 %v646, %v645
    %v896 = vpack.c.b16 %v648, %v647
    %v897 = vpack.c.b16 %v650, %v649
    %v898 = vpack.c.b16 %v652, %v651
    %v899 = vpack.c.b16 %v654, %v653
    %v900 = vpack.c.b16 %v656, %v655
    %v901 = vpack.c.b16 %v658, %v657
    %v902 = vpack.c.b16 %v660, %v659
    %v903 = vpack.c.b16 %v662, %v661
    %v904 = vpack.c.b16 %v664, %v663
    %v905 = vpack.c.b16 %v666, %v665
    %v906 = vpack.c.b16 %v668, %v667
    %v907 = vpack.c.b16 %v670, %v669
    %v908 = vpack.c.b16 %v672, %v671
    %v909 = vpack.c.b16 %v674, %v673
    %v910 = vpack.c.b16 %v676, %v675
    %v911 = vpack.c.b16 %v678, %v677
    %v912 = vpack.c.b16 %v680, %v679
    %v913 = vpack.c.b16 %v682, %v681
    %v914 = vpack.c.b16 %v684, %v683
    %v915 = vpack.c.b16 %v686, %v685
    %v916 = vpack.c.b16 %v688, %v687
    %v917 = vpack.c.b16 %v690, %v689
    %v918 = vpack.c.b16 %v692, %v691
    %v919 = vpack.c.b16 %v694, %v693
    %v920 = vpack.c.b16 %v696, %v695
    %v921 = vpack.c.b16 %v698, %v697
    %v922 = vpack.c.b16 %v700, %v699
    %v923 = vpack.c.b16 %v702, %v701
    %v924 = vpack.c.b16 %v704, %v703
    %v925 = vpack.c.b16 %v706, %v705
    %v926 = vpack.c.b16 %v708, %v707
    %v927 = vpack.c.b16 %v710, %v709
    %v928 = vpack.c.b16 %v712, %v711
    %v929 = vpack.c.b16 %v714, %v713
    %v930 = vpack.c.b16 %v716, %v715
    %v931 = vpack.c.b16 %v718, %v717
    %v932 = vpack.c.b16 %v720, %v719
    %v933 = vpack.c.b16 %v722, %v721
    %v934 = vpack.c.b16 %v724, %v723
    %v935 = vpack.c.b16 %v726, %v725
    %v936 = vpack.c.b16 %v728, %v727
    %v937 = vpack.c.b16 %v730, %v729
    %v938 = vpack.c.b16 %v732, %v731
    %v939 = vpack.c.b16 %v734, %v733
    %v940 = vpack.c.b16 %v736, %v735
    %v941 = vpack.c.b16 %v738, %v737
    %v942 = vpack.c.b16 %v740, %v739
    %v943 = vpack.c.b16 %v742, %v741
    %v944 = vpack.c.b16 %v744, %v743
    %v945 = vpack.c.b16 %v746, %v745
    %v946 = vpack.c.b16 %v748, %v747
    %v947 = vpack.c.b16 %v750, %v749
    %v948 = vpack.c.b16 %v752, %v751
    %v949 = vpack.c.b16 %v754, %v753
    %v950 = vpack.c.b16 %v756, %v755
    %v951 = vpack.c.b16 %v758, %v757
    %v952 = vpack.c.b16 %v760, %v759
    %v953 = vpack.c.b16 %v762, %v761
    %v954 = vpack.c.b16 %v764, %v763
    %v955 = vpack.c.b16 %v766, %v765
    %v956 = vpack.c.b16 %v768, %v767
    %v957 = vpack.c.b16 %v770, %v769
    %v958 = vpack.c.b16 %v772, %v771
    %v959 = vpack.c.b16 %v774, %v773
    %v960 = vpack.c.b16 %v776, %v775
    %v961 = vpack.c.b16 %v778, %v777
    %v962 = vpack.c.b16 %v780, %v779
    %v963 = vpack.c.b16 %v782, %v781
    %v964 = vpack.c.b16 %v784, %v783
    %v965 = vpack.c.b16 %v786, %v785
    %v966 = vpack.c.b16 %v788, %v787
    %v967 = vpack.c.b16 %v790, %v789
    %v968 = vpack.c.b16 %v792, %v791
    %v969 = vpack.c.b16 %v794, %v793
    %v970 = vpack.c.b16 %v796, %v795
    %v971 = vpack.c.b16 %v798, %v797
    %v972 = vpack.c.b16 %v800, %v799
    %v973 = vpack.c.b16 %v802, %v801
    %v974 = vpack.c.b16 %v804, %v803
    %v975 = vpack.c.b16 %v806, %v805
    %v976 = vpack.c.b16 %v808, %v807
    %v977 = vpack.c.b16 %v810, %v809
    %v978 = vpack.c.b16 %v812, %v811
    %v979 = vpack.c.b16 %v814, %v813
    %v980 = vpack.c.b16 %v816, %v815
    %v981 = vpack.c.b16 %v818, %v817
    %v982 = vpack.c.b16 %v820, %v819
    %v983 = vpack.c.b16 %v822, %v821
    %v984 = vpack.c.b16 %v824, %v823
    %v985 = vpack.c.b16 %v826, %v825
    %v986 = vpack.c.b16 %v828, %v827
    %v987 = vpack.c.b16 %v830, %v829
    %v988 = vpack.c.b16 %v832, %v831
    %v989 = vpack.c.b16 %v834, %v833
    %v990 = vpack.c.b16 %v836, %v835
    %v991 = vpack.c.b16 %v838, %v837
    %v992 = vpack.c.b16 %v840, %v839
    %v993 = vpack.c.b16 %v842, %v841
    %v994 = vpack.c.b16 %v844, %v843
    %v995 = vpack.c.b16 %v846, %v845
    %v996 = vpack.c.b16 %v848, %v847
    %v997 = vpack.c.b16 %v850, %v849
    %v998 = vpack.c.b16 %v852, %v851
    %v999 = vpack.c.b16 %v854, %v853
    %v1000 = vpack.c.b16 %v856, %v855
    %v1001 = vpack.c.b16 %v858, %v857
    %v1002 = vpack.c.b16 %v860, %v859
    %v1003 = vpack.c.b16 %v862, %v861
    %v1004 = vpack.c.b16 %v864, %v863
    %v1005 = vpack.c.b16 %v866, %v865
    %v1006 = vpack.c.b16 %v868, %v867
    %v1007 = vpack.c.b16 %v870, %v869
    %v1008 = vpack.c.b16 %v872, %v871
    %v1009 = vpack.c.b16 %v874, %v873
    %v1010 = vpack.c.b16 %v876, %v875
    %v1011 = vpack.c.b16 %v878, %v877
    %v1012 = vpack.c.b16 %v880, %v879
    %v1013 = vpack.c.b16 %v882, %v881
    %v1014 = vpack.c.b16 %v884, %v883
    %v1015 = vpack.c.b16 %v886, %v885
    %v1016 = vpack.c.b16 %v888, %v887
    %1145 = vmatprep.subr.bf16.mxu0 0
    %1146 = vmatpush1.bf16.msra.mxu0 %v889
    %1147 = vmatprep.subr.bf16.mxu0 0
    %1148 = vmatpush1.bf16.msra.mxu0 %v890
    %1149 = vmatprep.subr.bf16.mxu0 0
    %1150 = vmatpush1.bf16.msra.mxu0 %v891
    %1151 = vmatprep.subr.bf16.mxu0 0
    %1152 = vmatpush1.bf16.msra.mxu0 %v892
    %1153 = vmatprep.subr.bf16.mxu0 0
    %1154 = vmatpush1.bf16.msra.mxu0 %v893
    %1155 = vmatprep.subr.bf16.mxu0 0
    %1156 = vmatpush1.bf16.msra.mxu0 %v894
    %1157 = vmatprep.subr.bf16.mxu0 0
    %1158 = vmatpush1.bf16.msra.mxu0 %v895
    %1159 = vmatprep.subr.bf16.mxu0 0
    %1160 = vmatpush1.bf16.msra.mxu0 %v896
    %1161 = vmatprep.subr.bf16.mxu0 0
    %1162 = vmatpush1.bf16.msra.mxu0 %v897
    %1163 = vmatprep.subr.bf16.mxu0 0
    %1164 = vmatpush1.bf16.msra.mxu0 %v898
    %1165 = vmatprep.subr.bf16.mxu0 0
    %1166 = vmatpush1.bf16.msra.mxu0 %v899
    %1167 = vmatprep.subr.bf16.mxu0 0
    %1168 = vmatpush1.bf16.msra.mxu0 %v900
    %1169 = vmatprep.subr.bf16.mxu0 0
    %1170 = vmatpush1.bf16.msra.mxu0 %v901
    %1171 = vmatprep.subr.bf16.mxu0 0
    %1172 = vmatpush1.bf16.msra.mxu0 %v902
    %1173 = vmatprep.subr.bf16.mxu0 0
    %1174 = vmatpush1.bf16.msra.mxu0 %v903
    %1175 = vmatprep.subr.bf16.mxu0 0
    %1176 = vmatpush1.bf16.msra.mxu0 %v904
    %1177 = vmatprep.mubr.bf16.mxu0 %v106
    %1178 = vmatmul.mubr.bf16.gmra.mrb[0].mxu0 %v105
    %v1179 = vpop.f32.mrb[0].mxu0
    %v1180 = vadd.f32 0.0, %v1179
    %v1181 = vpop.f32.mrb[0].mxu0
    %v1182 = vpop.f32.mrb[0].mxu0
    %v1183 = vpop.f32.mrb[0].mxu0
    %1184 = vdwg.mxu0
    %1185 = vmatprep.subr.bf16.mxu0 0
    %1186 = vmatpush1.bf16.msra.mxu0 %v905
    %1187 = vmatprep.subr.bf16.mxu0 0
    %1188 = vmatpush1.bf16.msra.mxu0 %v906
    %1189 = vmatprep.subr.bf16.mxu0 0
    %1190 = vmatpush1.bf16.msra.mxu0 %v907
    %1191 = vmatprep.subr.bf16.mxu0 0
    %1192 = vmatpush1.bf16.msra.mxu0 %v908
    %1193 = vmatprep.subr.bf16.mxu0 0
    %1194 = vmatpush1.bf16.msra.mxu0 %v909
    %1195 = vmatprep.subr.bf16.mxu0 0
    %1196 = vmatpush1.bf16.msra.mxu0 %v910
    %1197 = vmatprep.subr.bf16.mxu0 0
    %1198 = vmatpush1.bf16.msra.mxu0 %v911
    %1199 = vmatprep.subr.bf16.mxu0 0
    %1200 = vmatpush1.bf16.msra.mxu0 %v912
    %1201 = vmatprep.subr.bf16.mxu0 0
    %1202 = vmatpush1.bf16.msra.mxu0 %v913
    %1203 = vmatprep.subr.bf16.mxu0 0
    %1204 = vmatpush1.bf16.msra.mxu0 %v914
    %1205 = vmatprep.subr.bf16.mxu0 0
    %1206 = vmatpush1.bf16.msra.mxu0 %v915
    %1207 = vmatprep.subr.bf16.mxu0 0
    %1208 = vmatpush1.bf16.msra.mxu0 %v916
    %1209 = vmatprep.subr.bf16.mxu0 0
    %1210 = vmatpush1.bf16.msra.mxu0 %v917
    %1211 = vmatprep.subr.bf16.mxu0 0
    %1212 = vmatpush1.bf16.msra.mxu0 %v918
    %1213 = vmatprep.subr.bf16.mxu0 0
    %1214 = vmatpush1.bf16.msra.mxu0 %v919
    %1215 = vmatprep.subr.bf16.mxu0 0
    %1216 = vmatpush1.bf16.msra.mxu0 %v920
    %1217 = vmatprep.mubr.bf16.mxu0 %v108
    %1218 = vmatmul.mubr.bf16.gmra.mrb[0].mxu0 %v107
    %v1219 = vpop.f32.mrb[0].mxu0
    %v1220 = vadd.f32 %v1180, %v1219
    %v1221 = vpop.f32.mrb[0].mxu0
    %v1222 = vpop.f32.mrb[0].mxu0
    %v1223 = vpop.f32.mrb[0].mxu0
    %1224 = vdwg.mxu0
    %1225 = vmatprep.subr.bf16.mxu0 0
    %1226 = vmatpush1.bf16.msra.mxu0 %v921
    %1227 = vmatprep.subr.bf16.mxu0 0
    %1228 = vmatpush1.bf16.msra.mxu0 %v922
    %1229 = vmatprep.subr.bf16.mxu0 0
    %1230 = vmatpush1.bf16.msra.mxu0 %v923
    %1231 = vmatprep.subr.bf16.mxu0 0
    %1232 = vmatpush1.bf16.msra.mxu0 %v924
    %1233 = vmatprep.subr.bf16.mxu0 0
    %1234 = vmatpush1.bf16.msra.mxu0 %v925
    %1235 = vmatprep.subr.bf16.mxu0 0
    %1236 = vmatpush1.bf16.msra.mxu0 %v926
    %1237 = vmatprep.subr.bf16.mxu0 0
    %1238 = vmatpush1.bf16.msra.mxu0 %v927
    %1239 = vmatprep.subr.bf16.mxu0 0
    %1240 = vmatpush1.bf16.msra.mxu0 %v928
    %1241 = vmatprep.subr.bf16.mxu0 0
    %1242 = vmatpush1.bf16.msra.mxu0 %v929
    %1243 = vmatprep.subr.bf16.mxu0 0
    %1244 = vmatpush1.bf16.msra.mxu0 %v930
    %1245 = vmatprep.subr.bf16.mxu0 0
    %1246 = vmatpush1.bf16.msra.mxu0 %v931
    %1247 = vmatprep.subr.bf16.mxu0 0
    %1248 = vmatpush1.bf16.msra.mxu0 %v932
    %1249 = vmatprep.subr.bf16.mxu0 0
    %1250 = vmatpush1.bf16.msra.mxu0 %v933
    %1251 = vmatprep.subr.bf16.mxu0 0
    %1252 = vmatpush1.bf16.msra.mxu0 %v934
    %1253 = vmatprep.subr.bf16.mxu0 0
    %1254 = vmatpush1.bf16.msra.mxu0 %v935
    %1255 = vmatprep.subr.bf16.mxu0 0
    %1256 = vmatpush1.bf16.msra.mxu0 %v936
    %1257 = vmatprep.mubr.bf16.mxu0 %v110
    %1258 = vmatmul.mubr.bf16.gmra.mrb[0].mxu0 %v109
    %v1259 = vpop.f32.mrb[0].mxu0
    %v1260 = vadd.f32 %v1220, %v1259
    %v1261 = vpop.f32.mrb[0].mxu0
    %v1262 = vpop.f32.mrb[0].mxu0
    %v1263 = vpop.f32.mrb[0].mxu0
    %1264 = vdwg.mxu0
    %1265 = vmatprep.subr.bf16.mxu0 0
    %1266 = vmatpush1.bf16.msra.mxu0 %v937
    %1267 = vmatprep.subr.bf16.mxu0 0
    %1268 = vmatpush1.bf16.msra.mxu0 %v938
    %1269 = vmatprep.subr.bf16.mxu0 0
    %1270 = vmatpush1.bf16.msra.mxu0 %v939
    %1271 = vmatprep.subr.bf16.mxu0 0
    %1272 = vmatpush1.bf16.msra.mxu0 %v940
    %1273 = vmatprep.subr.bf16.mxu0 0
    %1274 = vmatpush1.bf16.msra.mxu0 %v941
    %1275 = vmatprep.subr.bf16.mxu0 0
    %1276 = vmatpush1.bf16.msra.mxu0 %v942
    %1277 = vmatprep.subr.bf16.mxu0 0
    %1278 = vmatpush1.bf16.msra.mxu0 %v943
    %1279 = vmatprep.subr.bf16.mxu0 0
    %1280 = vmatpush1.bf16.msra.mxu0 %v944
    %1281 = vmatprep.subr.bf16.mxu0 0
    %1282 = vmatpush1.bf16.msra.mxu0 %v945
    %1283 = vmatprep.subr.bf16.mxu0 0
    %1284 = vmatpush1.bf16.msra.mxu0 %v946
    %1285 = vmatprep.subr.bf16.mxu0 0
    %1286 = vmatpush1.bf16.msra.mxu0 %v947
    %1287 = vmatprep.subr.bf16.mxu0 0
    %1288 = vmatpush1.bf16.msra.mxu0 %v948
    %1289 = vmatprep.subr.bf16.mxu0 0
    %1290 = vmatpush1.bf16.msra.mxu0 %v949
    %1291 = vmatprep.subr.bf16.mxu0 0
    %1292 = vmatpush1.bf16.msra.mxu0 %v950
    %1293 = vmatprep.subr.bf16.mxu0 0
    %1294 = vmatpush1.bf16.msra.mxu0 %v951
    %1295 = vmatprep.subr.bf16.mxu0 0
    %1296 = vmatpush1.bf16.msra.mxu0 %v952
    %1297 = vmatprep.mubr.bf16.mxu0 %v112
    %1298 = vmatmul.mubr.bf16.gmra.mrb[0].mxu0 %v111
    %v1299 = vpop.f32.mrb[0].mxu0
    %v1300 = vadd.f32 %v1260, %v1299
    %v1301 = vpop.f32.mrb[0].mxu0
    %v1302 = vpop.f32.mrb[0].mxu0
    %v1303 = vpop.f32.mrb[0].mxu0
    %1304 = vdwg.mxu0
    %1305 = vmatprep.subr.bf16.mxu0 0
    %1306 = vmatpush1.bf16.msra.mxu0 %v953
    %1307 = vmatprep.subr.bf16.mxu0 0
    %1308 = vmatpush1.bf16.msra.mxu0 %v954
    %1309 = vmatprep.subr.bf16.mxu0 0
    %1310 = vmatpush1.bf16.msra.mxu0 %v955
    %1311 = vmatprep.subr.bf16.mxu0 0
    %1312 = vmatpush1.bf16.msra.mxu0 %v956
    %1313 = vmatprep.subr.bf16.mxu0 0
    %1314 = vmatpush1.bf16.msra.mxu0 %v957
    %1315 = vmatprep.subr.bf16.mxu0 0
    %1316 = vmatpush1.bf16.msra.mxu0 %v958
    %1317 = vmatprep.subr.bf16.mxu0 0
    %1318 = vmatpush1.bf16.msra.mxu0 %v959
    %1319 = vmatprep.subr.bf16.mxu0 0
    %1320 = vmatpush1.bf16.msra.mxu0 %v960
    %1321 = vmatprep.subr.bf16.mxu0 0
    %1322 = vmatpush1.bf16.msra.mxu0 %v961
    %1323 = vmatprep.subr.bf16.mxu0 0
    %1324 = vmatpush1.bf16.msra.mxu0 %v962
    %1325 = vmatprep.subr.bf16.mxu0 0
    %1326 = vmatpush1.bf16.msra.mxu0 %v963
    %1327 = vmatprep.subr.bf16.mxu0 0
    %1328 = vmatpush1.bf16.msra.mxu0 %v964
    %1329 = vmatprep.subr.bf16.mxu0 0
    %1330 = vmatpush1.bf16.msra.mxu0 %v965
    %1331 = vmatprep.subr.bf16.mxu0 0
    %1332 = vmatpush1.bf16.msra.mxu0 %v966
    %1333 = vmatprep.subr.bf16.mxu0 0
    %1334 = vmatpush1.bf16.msra.mxu0 %v967
    %1335 = vmatprep.subr.bf16.mxu0 0
    %1336 = vmatpush1.bf16.msra.mxu0 %v968
    %1337 = vmatprep.mubr.bf16.mxu0 %v114
    %1338 = vmatmul.mubr.bf16.gmra.mrb[0].mxu0 %v113
    %v1339 = vpop.f32.mrb[0].mxu0
    %v1340 = vadd.f32 %v1300, %v1339
    %v1341 = vpop.f32.mrb[0].mxu0
    %v1342 = vpop.f32.mrb[0].mxu0
    %v1343 = vpop.f32.mrb[0].mxu0
    %1344 = vdwg.mxu0
    %1345 = vmatprep.subr.bf16.mxu0 0
    %1346 = vmatpush1.bf16.msra.mxu0 %v969
    %1347 = vmatprep.subr.bf16.mxu0 0
    %1348 = vmatpush1.bf16.msra.mxu0 %v970
    %1349 = vmatprep.subr.bf16.mxu0 0
    %1350 = vmatpush1.bf16.msra.mxu0 %v971
    %1351 = vmatprep.subr.bf16.mxu0 0
    %1352 = vmatpush1.bf16.msra.mxu0 %v972
    %1353 = vmatprep.subr.bf16.mxu0 0
    %1354 = vmatpush1.bf16.msra.mxu0 %v973
    %1355 = vmatprep.subr.bf16.mxu0 0
    %1356 = vmatpush1.bf16.msra.mxu0 %v974
    %1357 = vmatprep.subr.bf16.mxu0 0
    %1358 = vmatpush1.bf16.msra.mxu0 %v975
    %1359 = vmatprep.subr.bf16.mxu0 0
    %1360 = vmatpush1.bf16.msra.mxu0 %v976
    %1361 = vmatprep.subr.bf16.mxu0 0
    %1362 = vmatpush1.bf16.msra.mxu0 %v977
    %1363 = vmatprep.subr.bf16.mxu0 0
    %1364 = vmatpush1.bf16.msra.mxu0 %v978
    %1365 = vmatprep.subr.bf16.mxu0 0
    %1366 = vmatpush1.bf16.msra.mxu0 %v979
    %1367 = vmatprep.subr.bf16.mxu0 0
    %1368 = vmatpush1.bf16.msra.mxu0 %v980
    %1369 = vmatprep.subr.bf16.mxu0 0
    %1370 = vmatpush1.bf16.msra.mxu0 %v981
    %1371 = vmatprep.subr.bf16.mxu0 0
    %1372 = vmatpush1.bf16.msra.mxu0 %v982
    %1373 = vmatprep.subr.bf16.mxu0 0
    %1374 = vmatpush1.bf16.msra.mxu0 %v983
    %1375 = vmatprep.subr.bf16.mxu0 0
    %1376 = vmatpush1.bf16.msra.mxu0 %v984
    %1377 = vmatprep.mubr.bf16.mxu0 %v116
    %1378 = vmatmul.mubr.bf16.gmra.mrb[0].mxu0 %v115
    %v1379 = vpop.f32.mrb[0].mxu0
    %v1380 = vadd.f32 %v1340, %v1379
    %v1381 = vpop.f32.mrb[0].mxu0
    %v1382 = vpop.f32.mrb[0].mxu0
    %v1383 = vpop.f32.mrb[0].mxu0
    %1384 = vdwg.mxu0
    %1385 = vmatprep.subr.bf16.mxu0 0
    %1386 = vmatpush1.bf16.msra.mxu0 %v985
    %1387 = vmatprep.subr.bf16.mxu0 0
    %1388 = vmatpush1.bf16.msra.mxu0 %v986
    %1389 = vmatprep.subr.bf16.mxu0 0
    %1390 = vmatpush1.bf16.msra.mxu0 %v987
    %1391 = vmatprep.subr.bf16.mxu0 0
    %1392 = vmatpush1.bf16.msra.mxu0 %v988
    %1393 = vmatprep.subr.bf16.mxu0 0
    %1394 = vmatpush1.bf16.msra.mxu0 %v989
    %1395 = vmatprep.subr.bf16.mxu0 0
    %1396 = vmatpush1.bf16.msra.mxu0 %v990
    %1397 = vmatprep.subr.bf16.mxu0 0
    %1398 = vmatpush1.bf16.msra.mxu0 %v991
    %1399 = vmatprep.subr.bf16.mxu0 0
    %1400 = vmatpush1.bf16.msra.mxu0 %v992
    %1401 = vmatprep.subr.bf16.mxu0 0
    %1402 = vmatpush1.bf16.msra.mxu0 %v993
    %1403 = vmatprep.subr.bf16.mxu0 0
    %1404 = vmatpush1.bf16.msra.mxu0 %v994
    %1405 = vmatprep.subr.bf16.mxu0 0
    %1406 = vmatpush1.bf16.msra.mxu0 %v995
    %1407 = vmatprep.subr.bf16.mxu0 0
    %1408 = vmatpush1.bf16.msra.mxu0 %v996
    %1409 = vmatprep.subr.bf16.mxu0 0
    %1410 = vmatpush1.bf16.msra.mxu0 %v997
    %1411 = vmatprep.subr.bf16.mxu0 0
    %1412 = vmatpush1.bf16.msra.mxu0 %v998
    %1413 = vmatprep.subr.bf16.mxu0 0
    %1414 = vmatpush1.bf16.msra.mxu0 %v999
    %1415 = vmatprep.subr.bf16.mxu0 0
    %1416 = vmatpush1.bf16.msra.mxu0 %v1000
    %1417 = vmatprep.mubr.bf16.mxu0 %v118
    %1418 = vmatmul.mubr.bf16.gmra.mrb[0].mxu0 %v117
    %v1419 = vpop.f32.mrb[0].mxu0
    %v1420 = vadd.f32 %v1380, %v1419
    %v1421 = vpop.f32.mrb[0].mxu0
    %v1422 = vpop.f32.mrb[0].mxu0
    %v1423 = vpop.f32.mrb[0].mxu0
    %1424 = vdwg.mxu0
    %1425 = vmatprep.subr.bf16.mxu0 0
    %1426 = vmatpush1.bf16.msra.mxu0 %v1001
    %1427 = vmatprep.subr.bf16.mxu0 0
    %1428 = vmatpush1.bf16.msra.mxu0 %v1002
    %1429 = vmatprep.subr.bf16.mxu0 0
    %1430 = vmatpush1.bf16.msra.mxu0 %v1003
    %1431 = vmatprep.subr.bf16.mxu0 0
    %1432 = vmatpush1.bf16.msra.mxu0 %v1004
    %1433 = vmatprep.subr.bf16.mxu0 0
    %1434 = vmatpush1.bf16.msra.mxu0 %v1005
    %1435 = vmatprep.subr.bf16.mxu0 0
    %1436 = vmatpush1.bf16.msra.mxu0 %v1006
    %1437 = vmatprep.subr.bf16.mxu0 0
    %1438 = vmatpush1.bf16.msra.mxu0 %v1007
    %1439 = vmatprep.subr.bf16.mxu0 0
    %1440 = vmatpush1.bf16.msra.mxu0 %v1008
    %1441 = vmatprep.subr.bf16.mxu0 0
    %1442 = vmatpush1.bf16.msra.mxu0 %v1009
    %1443 = vmatprep.subr.bf16.mxu0 0
    %1444 = vmatpush1.bf16.msra.mxu0 %v1010
    %1445 = vmatprep.subr.bf16.mxu0 0
    %1446 = vmatpush1.bf16.msra.mxu0 %v1011
    %1447 = vmatprep.subr.bf16.mxu0 0
    %1448 = vmatpush1.bf16.msra.mxu0 %v1012
    %1449 = vmatprep.subr.bf16.mxu0 0
    %1450 = vmatpush1.bf16.msra.mxu0 %v1013
    %1451 = vmatprep.subr.bf16.mxu0 0
    %1452 = vmatpush1.bf16.msra.mxu0 %v1014
    %1453 = vmatprep.subr.bf16.mxu0 0
    %1454 = vmatpush1.bf16.msra.mxu0 %v1015
    %1455 = vmatprep.subr.bf16.mxu0 0
    %1456 = vmatpush1.bf16.msra.mxu0 %v1016
    %1457 = vmatprep.mubr.bf16.mxu0 %v120
    %1458 = vmatmul.mubr.bf16.gmra.mrb[0].mxu0 %v119
    %v1459 = vpop.f32.mrb[0].mxu0
    %v1460 = vadd.f32 %v1420, %v1459
    %v1461 = vpop.f32.mrb[0].mxu0
    %v1462 = vpop.f32.mrb[0].mxu0
    %v1463 = vpop.f32.mrb[0].mxu0
    %1464 = vdwg.mxu0
    %1465 = vst [vmem:[#allocation2] sm:$0x3] %v1460
    // Predicated region
    $region10: #{cnn_forward.5} parent=1 // pred_check
      _
    $region11: #{cnn_forward.5} parent=1 // pred_check_branch
      %1467 = sbr.rel (0) target = $region13
    $region12: #{cnn_forward.5} parent=1 // pred_region
      %s1469 = ssub.s32 32, 32
      %1470 = vsyncadd [#allocation3], %s1469
      %s1472 = sshll.u32 [#allocation2], 4
      %s1473 = int_to_ptr.vmem [resolvable:$true] %s1472
      %1475 = dma.vmem_to_hbm [thread:$0]  %s1473, 32, %s2, [#allocation3]
    $region13: #{cnn_forward.5} parent=1 // pred_fallthru
      _
    // Predicated region
    $region14: #{cnn_forward.5} parent=1 // pred_check
      _
    $region15: #{cnn_forward.5} parent=1 // pred_check_branch
      %1477 = sbr.rel (0) target = $region17
    $region16: #{cnn_forward.5} parent=1 // pred_region
      %1478 = dma.done [#allocation3], 32
    $region17: #{cnn_forward.5} parent=1 // pred_fallthru
      _
    %1479 = vsyncpa [#allocation3], 1

// kernel: cnn_forward.3
$region0: #{cnn_forward.3}
  #allocation0 [shape = 'u32[]', space=smem, size = 0x4, offset = 0x4, fixed_abs, tag = 'smem constant byte address 0x4 - core index']
  #allocation1 [shape = 'u32[144,128]{1,0:T(1,128)}', space=vmem, size = 0x12000, scoped, tag = 'internal scratch']
  #allocation2 [shape = 'f32[128,128]{1,0:T(8,128)}', space=vmem, size = 0x10000, scoped, tag = 'scratch operand']
  %s0 = inlined_call_operand.vmem [shape: f32[2,18,18,128], index: 0, kind: input, shape index: {}]
  %s1 = inlined_call_operand.vmem [shape: bf16[9,128,128], index: 1, kind: input, shape index: {}]
  %s2 = inlined_call_operand.vmem [shape: f32[1,128], index: 2, kind: input, shape index: {}]
  %s3 = inlined_call_operand.vmem [shape: f32[128,128], index: 3, kind: input, shape index: {}]
  %s4 = inlined_call_operand.vmem [shape: f32[128,128], index: 4, kind: input, shape index: {}]
  %s5 = inlined_call_operand.vmem [shape: f32[2,64,128], index: 5, kind: output, shape index: {}]
  %s6 = sld [smem:[#allocation0]]
  $region53: #{cnn_forward.3} parent=0
    _
  %s8 = ssub.s32 1, %s6
  %s9 = scalar_select 0, %s8, %s6
  loop: start=0, step=1, limit=4
  $region2: #{cnn_forward.3} parent=0 // loop_pre_header
    _
  $region3: #{cnn_forward.3} parent=0 // loop_header
    %s11 = sphi 0, %s15
    %p12 = scmp.ge.s32.totalorder %s11, 4
    %s21 = sphi 0, %s23
    %s24 = sphi 0, %s21
    %s25 = sphi 0, %s24
    %s41 = sphi 0, %s25
    %s45 = sphi 0, %s45
    %s47 = sphi 0, %s45
    %s48 = sphi 0, %s47
    %s62 = sphi 0, %s48
    %s66 = sphi 0, %s66
    %s68 = sphi 0, %s66
    %s69 = sphi 0, %s68
    %s83 = sphi 0, %s69
    %s87 = sphi 0, %s87
    %s89 = sphi 0, %s87
    %s90 = sphi 0, %s89
    %s104 = sphi 0, %s90
    %s108 = sphi 0, %s108
    %s110 = sphi 0, %s108
    %s111 = sphi 0, %s110
    %s125 = sphi 0, %s111
    %s131 = sphi 0, %s133
    %s134 = sphi 0, %s131
    %s135 = sphi 0, %s134
    %s151 = sphi 0, %s135
  $region4: #{cnn_forward.3} parent=0 // loop_header_branch
    %14 = sbr.rel (%p12) target = $region8
  $region5: #{cnn_forward.3} parent=0 // loop_body
    %s16 = ssub.s32 %s11, 1
    %s17 = ssub.s32 %s11, 2
    %s18 = sadd.s32 %s11, 1
    %s19 = ssub.s32 %s11, %s18
    %p20 = scmp.eq.s32.totalorder %s19, 0
    %s22 = sadd.s32 %s21, 1
    %s23 = scalar_select %p20, %s21, %s22
    %p26 = pneg %p20
    %p27 = scmp.eq.s32.totalorder %s11, 1
    %p28 = por %p26, %p27
    %p29 = scmp.ne.s32.totalorder %s21, %s24
    %p30 = scmp.eq.s32.totalorder %s11, 0
    %p31 = por %p29, %p30
    %p32 = scmp.ne.s32.totalorder %s21, %s24
    %p33 = scmp.eq.s32.totalorder %s16, 1
    %p34 = por %p32, %p33
    %p35 = scmp.ne.s32.totalorder %s24, %s25
    %p36 = scmp.eq.s32.totalorder %s16, 0
    %p37 = por %p35, %p36
    %p38 = scmp.ne.s32.totalorder %s24, %s25
    %p39 = scmp.eq.s32.totalorder %s17, 1
    %p40 = por %p38, %p39
    %p42 = scmp.ne.s32.totalorder %s25, %s41
    %p43 = scmp.eq.s32.totalorder %s17, 0
    %p44 = por %p42, %p43
    %s46 = sadd.s32 %s45, 1
    %p49 = scmp.eq.s32.totalorder %s11, 1
    %p50 = scmp.ne.s32.totalorder %s45, %s47
    %p51 = scmp.eq.s32.totalorder %s11, 0
    %p52 = por %p50, %p51
    %p53 = scmp.ne.s32.totalorder %s45, %s47
    %p54 = scmp.eq.s32.totalorder %s16, 1
    %p55 = por %p53, %p54
    %p56 = scmp.ne.s32.totalorder %s47, %s48
    %p57 = scmp.eq.s32.totalorder %s16, 0
    %p58 = por %p56, %p57
    %p59 = scmp.ne.s32.totalorder %s47, %s48
    %p60 = scmp.eq.s32.totalorder %s17, 1
    %p61 = por %p59, %p60
    %p63 = scmp.ne.s32.totalorder %s48, %s62
    %p64 = scmp.eq.s32.totalorder %s17, 0
    %p65 = por %p63, %p64
    %s67 = sadd.s32 %s66, 1
    %p70 = scmp.eq.s32.totalorder %s11, 1
    %p71 = scmp.ne.s32.totalorder %s66, %s68
    %p72 = scmp.eq.s32.totalorder %s11, 0
    %p73 = por %p71, %p72
    %p74 = scmp.ne.s32.totalorder %s66, %s68
    %p75 = scmp.eq.s32.totalorder %s16, 1
    %p76 = por %p74, %p75
    %p77 = scmp.ne.s32.totalorder %s68, %s69
    %p78 = scmp.eq.s32.totalorder %s16, 0
    %p79 = por %p77, %p78
    %p80 = scmp.ne.s32.totalorder %s68, %s69
    %p81 = scmp.eq.s32.totalorder %s17, 1
    %p82 = por %p80, %p81
    %p84 = scmp.ne.s32.totalorder %s69, %s83
    %p85 = scmp.eq.s32.totalorder %s17, 0
    %p86 = por %p84, %p85
    %s88 = sadd.s32 %s87, 1
    %p91 = scmp.eq.s32.totalorder %s11, 1
    %p92 = scmp.ne.s32.totalorder %s87, %s89
    %p93 = scmp.eq.s32.totalorder %s11, 0
    %p94 = por %p92, %p93
    %p95 = scmp.ne.s32.totalorder %s87, %s89
    %p96 = scmp.eq.s32.totalorder %s16, 1
    %p97 = por %p95, %p96
    %p98 = scmp.ne.s32.totalorder %s89, %s90
    %p99 = scmp.eq.s32.totalorder %s16, 0
    %p100 = por %p98, %p99
    %p101 = scmp.ne.s32.totalorder %s89, %s90
    %p102 = scmp.eq.s32.totalorder %s17, 1
    %p103 = por %p101, %p102
    %p105 = scmp.ne.s32.totalorder %s90, %s104
    %p106 = scmp.eq.s32.totalorder %s17, 0
    %p107 = por %p105, %p106
    %s109 = sadd.s32 %s108, 1
    %p112 = scmp.eq.s32.totalorder %s11, 1
    %p113 = scmp.ne.s32.totalorder %s108, %s110
    %p114 = scmp.eq.s32.totalorder %s11, 0
    %p115 = por %p113, %p114
    %p116 = scmp.ne.s32.totalorder %s108, %s110
    %p117 = scmp.eq.s32.totalorder %s16, 1
    %p118 = por %p116, %p117
    %p119 = scmp.ne.s32.totalorder %s110, %s111
    %p120 = scmp.eq.s32.totalorder %s16, 0
    %p121 = por %p119, %p120
    %p122 = scmp.ne.s32.totalorder %s110, %s111
    %p123 = scmp.eq.s32.totalorder %s17, 1
    %p124 = por %p122, %p123
    %p126 = scmp.ne.s32.totalorder %s111, %s125
    %p127 = scmp.eq.s32.totalorder %s17, 0
    %p128 = por %p126, %p127
    %s129 = ssub.s32 %s11, %s18
    %p130 = scmp.eq.s32.totalorder %s129, 0
    %s132 = sadd.s32 %s131, 1
    %s133 = scalar_select %p130, %s131, %s132
    %p136 = pneg %p130
    %p137 = scmp.eq.s32.totalorder %s11, 1
    %p138 = por %p136, %p137
    %p139 = scmp.ne.s32.totalorder %s131, %s134
    %p140 = scmp.eq.s32.totalorder %s11, 0
    %p141 = por %p139, %p140
    %p142 = scmp.ne.s32.totalorder %s131, %s134
    %p143 = scmp.eq.s32.totalorder %s16, 1
    %p144 = por %p142, %p143
    %p145 = scmp.ne.s32.totalorder %s134, %s135
    %p146 = scmp.eq.s32.totalorder %s16, 0
    %p147 = por %p145, %p146
    %p148 = scmp.ne.s32.totalorder %s134, %s135
    %p149 = scmp.eq.s32.totalorder %s17, 1
    %p150 = por %p148, %p149
    %p152 = scmp.ne.s32.totalorder %s135, %s151
    %p153 = scmp.eq.s32.totalorder %s17, 0
    %p154 = por %p152, %p153
    %p155 = scmp.le.s32.totalorder 1, %s11
    %p156 = scmp.lt.s32.totalorder %s11, 3
    %p157 = pnand %p155, %p156
    %p158 = pneg %p157
    // Predicated region
    $region9: #{cnn_forward.3} parent=5 // pred_check
      _
    $region10: #{cnn_forward.3} parent=5 // pred_check_branch
      %160 = sbr.rel (%p157) target = $region12
    $region11: #{cnn_forward.3} parent=5 // pred_region
      %s161 = ssub.s32 %s11, 1
      // Predicated region
      $region13: #{cnn_forward.3} parent=11 // pred_check
        %p162 = pneg %p58
      $region14: #{cnn_forward.3} parent=11 // pred_check_branch
        %164 = sbr.rel (%p162) target = $region16
      $region15: #{cnn_forward.3} parent=11 // pred_region
        _
      $region16: #{cnn_forward.3} parent=11 // pred_fallthru
        _
      // Predicated region
      $region17: #{cnn_forward.3} parent=11 // pred_check
        %p165 = pneg %p79
      $region18: #{cnn_forward.3} parent=11 // pred_check_branch
        %167 = sbr.rel (%p165) target = $region20
      $region19: #{cnn_forward.3} parent=11 // pred_region
        _
      $region20: #{cnn_forward.3} parent=11 // pred_fallthru
        _
      // Predicated region
      $region21: #{cnn_forward.3} parent=11 // pred_check
        %p168 = pneg %p100
      $region22: #{cnn_forward.3} parent=11 // pred_check_branch
        %170 = sbr.rel (%p168) target = $region24
      $region23: #{cnn_forward.3} parent=11 // pred_region
        _
      $region24: #{cnn_forward.3} parent=11 // pred_fallthru
        _
      // Predicated region
      $region25: #{cnn_forward.3} parent=11 // pred_check
        %p171 = pneg %p121
      $region26: #{cnn_forward.3} parent=11 // pred_check_branch
        %173 = sbr.rel (%p171) target = $region28
      $region27: #{cnn_forward.3} parent=11 // pred_region
        _
      $region28: #{cnn_forward.3} parent=11 // pred_fallthru
        _
    $region12: #{cnn_forward.3} parent=5 // pred_fallthru
      _
    %p174 = scmp.lt.s32.totalorder %s11, 2
    // Predicated region
    $region29: #{cnn_forward.3} parent=5 // pred_check
      %p175 = pneg %p174
    $region30: #{cnn_forward.3} parent=5 // pred_check_branch
      %177 = sbr.rel (%p175) target = $region32
    $region31: #{cnn_forward.3} parent=5 // pred_region
      // Predicated region
      $region33: #{cnn_forward.3} parent=31 // pred_check
        %p178 = pneg %p31
      $region34: #{cnn_forward.3} parent=31 // pred_check_branch
        %180 = sbr.rel (%p178) target = $region36
      $region35: #{cnn_forward.3} parent=31 // pred_region
        %p181 = scmp.lt.s32.totalorder %s11, 1
        %s182 = scalar_select %p181, %s11, 1
        %s183 = smul.addr %s182, 54
        %s184 = smul.addr %s183, 8
        %s185 = scalar_lea.vmem %s0, %s184
      $region36: #{cnn_forward.3} parent=31 // pred_fallthru
        _
    $region32: #{cnn_forward.3} parent=5 // pred_fallthru
      _
    %p186 = scmp.le.s32.totalorder 1, %s11
    %p187 = scmp.lt.s32.totalorder %s11, 3
    %p188 = pnand %p186, %p187
    %p189 = pneg %p188
    // Predicated region
    $region37: #{cnn_forward.3} parent=5 // pred_check
      _
    $region38: #{cnn_forward.3} parent=5 // pred_check_branch
      %191 = sbr.rel (%p188) target = $region40
    $region39: #{cnn_forward.3} parent=5 // pred_region
      %s192 = ssub.s32 %s11, 1
      %p193 = scmp.lt.s32.totalorder %s16, 1
      %s194 = scalar_select %p193, %s16, 1
      %s195 = smul.addr %s194, 54
      %s196 = smul.addr %s195, 8
      %s197 = scalar_lea.vmem %s0, %s196
      %p198 = pneg %p37
      %p199 = pneg %p34
      %p200 = pneg %p58
      %p201 = pneg %p55
      %p202 = pneg %p79
      %p203 = pneg %p76
      %p204 = pneg %p100
      %p205 = pneg %p97
      %p206 = pneg %p121
      %p207 = pneg %p118
      %p208 = pneg %p147
      %p209 = pneg %p144
      %p210 = scmp.lt.s32.totalorder %s16, 1
      %s211 = scalar_select %p210, %s16, 1
      %s212 = smul.addr %s211, 8
      %s213 = smul.addr %s212, 8
      %s214 = scalar_lea.vmem %s5, %s213
      %p215 = scmp.lt.s32.totalorder %s16, 1
      %s216 = scalar_select %p215, %s16, 1
      %s217 = smul.addr %s216, 54
      %s218 = smul.addr %s217, 8
      %s219 = scalar_lea.vmem %s0, %s218
      %p220 = scmp.lt.s32.totalorder %s16, 1
      %s221 = scalar_select %p220, %s16, 1
      %s222 = smul.addr %s221, 8
      %s223 = smul.addr %s222, 8
      %s224 = scalar_lea.vmem %s5, %s223
      %v226 = vld [vmem:[%s219] sm:$0xff]
      %v227 = vld [vmem:[%s219 + $0x8] sm:$0xff]
      %v228 = vld [vmem:[%s219 + $0x18] sm:$0xff]
      %v229 = vld [vmem:[%s219 + $0x20] sm:$0xff]
      %v230 = vld [vmem:[%s219 + $0x30] sm:$0xff]
      %v231 = vld [vmem:[%s219 + $0x38] sm:$0xff]
      %v232 = vld [vmem:[%s219 + $0x48] sm:$0xff]
      %v233 = vld [vmem:[%s219 + $0x50] sm:$0xff]
      %v234 = vld [vmem:[%s219 + $0x60] sm:$0xff]
      %v235 = vld [vmem:[%s219 + $0x68] sm:$0xff]
      %v236 = vld [vmem:[%s219 + $0x78] sm:$0xff]
      %v237 = vld [vmem:[%s219 + $0x80] sm:$0xff]
      %v238 = vld [vmem:[%s219 + $0x90] sm:$0xff]
      %v239 = vld [vmem:[%s219 + $0x98] sm:$0xff]
      %v240 = vld [vmem:[%s219 + $0xa8] sm:$0xff]
      %v241 = vld [vmem:[%s219 + $0xb0] sm:$0xff]
      %v242 = vld [vmem:[%s219 + $0xc0] sm:$0xff]
      %v243 = vld [vmem:[%s219 + $0xc8] sm:$0xff]
      %v244 = vld [vmem:[%s219 + $0xd8] sm:$0xff]
      %v245 = vld [vmem:[%s219 + $0xe0] sm:$0xff]
      %v246 = vld [vmem:[%s219 + $0xf0] sm:$0xff]
      %v247 = vld [vmem:[%s219 + $0xf8] sm:$0xff]
      %v248 = vld [vmem:[%s219 + $0x108] sm:$0xff]
      %v249 = vld [vmem:[%s219 + $0x110] sm:$0xff]
      %v250 = vld [vmem:[%s219 + $0x120] sm:$0xff]
      %v251 = vld [vmem:[%s219 + $0x128] sm:$0xff]
      %v252 = vld [vmem:[%s219 + $0x138] sm:$0xff]
      %v253 = vld [vmem:[%s219 + $0x140] sm:$0xff]
      %v254 = vld [vmem:[%s219 + $0x150] sm:$0xff]
      %v255 = vld [vmem:[%s219 + $0x158] sm:$0xff]
      %v256 = vld [vmem:[%s219 + $0x168] sm:$0xff]
      %v257 = vld [vmem:[%s219 + $0x170] sm:$0xff]
      %v258 = vpack.c.bf16 %v227, %v226
      %v259 = vpack.c.bf16 %v229, %v228
      %v260 = vpack.c.bf16 %v231, %v230
      %v261 = vpack.c.bf16 %v233, %v232
      %v262 = vpack.c.bf16 %v235, %v234
      %v263 = vpack.c.bf16 %v237, %v236
      %v264 = vpack.c.bf16 %v239, %v238
      %v265 = vpack.c.bf16 %v241, %v240
      %v266 = vpack.c.bf16 %v243, %v242
      %v267 = vpack.c.bf16 %v245, %v244
      %v268 = vpack.c.bf16 %v247, %v246
      %v269 = vpack.c.bf16 %v249, %v248
      %v270 = vpack.c.bf16 %v251, %v250
      %v271 = vpack.c.bf16 %v253, %v252
      %v272 = vpack.c.bf16 %v255, %v254
      %v273 = vpack.c.bf16 %v257, %v256
      %v274 = vld [vmem:[%s1] sm:$0xf]
      %v275 = vld [vmem:[%s1 + $0x4] sm:$0xf]
      %v276 = vld [vmem:[%s1 + $0x8] sm:$0xf]
      %v277 = vld [vmem:[%s1 + $0xc] sm:$0xf]
      %v278 = vld [vmem:[%s1 + $0x10] sm:$0xf]
      %v279 = vld [vmem:[%s1 + $0x14] sm:$0xf]
      %v280 = vld [vmem:[%s1 + $0x18] sm:$0xf]
      %v281 = vld [vmem:[%s1 + $0x1c] sm:$0xf]
      %v282 = vld [vmem:[%s1 + $0x20] sm:$0xf]
      %v283 = vld [vmem:[%s1 + $0x24] sm:$0xf]
      %v284 = vld [vmem:[%s1 + $0x28] sm:$0xf]
      %v285 = vld [vmem:[%s1 + $0x2c] sm:$0xf]
      %v286 = vld [vmem:[%s1 + $0x30] sm:$0xf]
      %v287 = vld [vmem:[%s1 + $0x34] sm:$0xf]
      %v288 = vld [vmem:[%s1 + $0x38] sm:$0xf]
      %v289 = vld [vmem:[%s1 + $0x3c] sm:$0xf]
      %v290 = vld [vmem:[%s219 + $0x1] sm:$0xff]
      %v291 = vld [vmem:[%s219 + $0x9] sm:$0xff]
      %v292 = vld [vmem:[%s219 + $0x19] sm:$0xff]
      %v293 = vld [vmem:[%s219 + $0x21] sm:$0xff]
      %v294 = vld [vmem:[%s219 + $0x31] sm:$0xff]
      %v295 = vld [vmem:[%s219 + $0x39] sm:$0xff]
      %v296 = vld [vmem:[%s219 + $0x49] sm:$0xff]
      %v297 = vld [vmem:[%s219 + $0x51] sm:$0xff]
      %v298 = vld [vmem:[%s219 + $0x61] sm:$0xff]
      %v299 = vld [vmem:[%s219 + $0x69] sm:$0xff]
      %v300 = vld [vmem:[%s219 + $0x79] sm:$0xff]
      %v301 = vld [vmem:[%s219 + $0x81] sm:$0xff]
      %v302 = vld [vmem:[%s219 + $0x91] sm:$0xff]
      %v303 = vld [vmem:[%s219 + $0x99] sm:$0xff]
      %v304 = vld [vmem:[%s219 + $0xa9] sm:$0xff]
      %v305 = vld [vmem:[%s219 + $0xb1] sm:$0xff]
      %v306 = vld [vmem:[%s219 + $0xc1] sm:$0xff]
      %v307 = vld [vmem:[%s219 + $0xc9] sm:$0xff]
      %v308 = vld [vmem:[%s219 + $0xd9] sm:$0xff]
      %v309 = vld [vmem:[%s219 + $0xe1] sm:$0xff]
      %v310 = vld [vmem:[%s219 + $0xf1] sm:$0xff]
      %v311 = vld [vmem:[%s219 + $0xf9] sm:$0xff]
      %v312 = vld [vmem:[%s219 + $0x109] sm:$0xff]
      %v313 = vld [vmem:[%s219 + $0x111] sm:$0xff]
      %v314 = vld [vmem:[%s219 + $0x121] sm:$0xff]
      %v315 = vld [vmem:[%s219 + $0x129] sm:$0xff]
      %v316 = vld [vmem:[%s219 + $0x139] sm:$0xff]
      %v317 = vld [vmem:[%s219 + $0x141] sm:$0xff]
      %v318 = vld [vmem:[%s219 + $0x151] sm:$0xff]
      %v319 = vld [vmem:[%s219 + $0x159] sm:$0xff]
      %v320 = vld [vmem:[%s219 + $0x169] sm:$0xff]
      %v321 = vld [vmem:[%s219 + $0x171] sm:$0xff]
      %v322 = vpack.c.bf16 %v291, %v290
      %v323 = vpack.c.bf16 %v293, %v292
      %v324 = vpack.c.bf16 %v295, %v294
      %v325 = vpack.c.bf16 %v297, %v296
      %v326 = vpack.c.bf16 %v299, %v298
      %v327 = vpack.c.bf16 %v301, %v300
      %v328 = vpack.c.bf16 %v303, %v302
      %v329 = vpack.c.bf16 %v305, %v304
      %v330 = vpack.c.bf16 %v307, %v306
      %v331 = vpack.c.bf16 %v309, %v308
      %v332 = vpack.c.bf16 %v311, %v310
      %v333 = vpack.c.bf16 %v313, %v312
      %v334 = vpack.c.bf16 %v315, %v314
      %v335 = vpack.c.bf16 %v317, %v316
      %v336 = vpack.c.bf16 %v319, %v318
      %v337 = vpack.c.bf16 %v321, %v320
      %s338 = scalar_lea.vmem %s1, 64
      %v339 = vld [vmem:[%s338] sm:$0xf]
      %v340 = vld [vmem:[%s338 + $0x4] sm:$0xf]
      %v341 = vld [vmem:[%s338 + $0x8] sm:$0xf]
      %v342 = vld [vmem:[%s338 + $0xc] sm:$0xf]
      %v343 = vld [vmem:[%s338 + $0x10] sm:$0xf]
      %v344 = vld [vmem:[%s338 + $0x14] sm:$0xf]
      %v345 = vld [vmem:[%s338 + $0x18] sm:$0xf]
      %v346 = vld [vmem:[%s338 + $0x1c] sm:$0xf]
      %v347 = vld [vmem:[%s338 + $0x20] sm:$0xf]
      %v348 = vld [vmem:[%s338 + $0x24] sm:$0xf]
      %v349 = vld [vmem:[%s338 + $0x28] sm:$0xf]
      %v350 = vld [vmem:[%s338 + $0x2c] sm:$0xf]
      %v351 = vld [vmem:[%s338 + $0x30] sm:$0xf]
      %v352 = vld [vmem:[%s338 + $0x34] sm:$0xf]
      %v353 = vld [vmem:[%s338 + $0x38] sm:$0xf]
      %v354 = vld [vmem:[%s338 + $0x3c] sm:$0xf]
      %v371 = vunpack.c.l.b16 %v339
      %v372 = vunpack.c.l.b16 %v340
      %v373 = vunpack.c.l.b16 %v341
      %v374 = vunpack.c.l.b16 %v342
      %v375 = vunpack.c.l.b16 %v343
      %v376 = vunpack.c.l.b16 %v344
      %v377 = vunpack.c.l.b16 %v345
      %v378 = vunpack.c.l.b16 %v346
      %v379 = vunpack.c.l.b16 %v347
      %v380 = vunpack.c.l.b16 %v348
      %v381 = vunpack.c.l.b16 %v349
      %v382 = vunpack.c.l.b16 %v350
      %v383 = vunpack.c.l.b16 %v351
      %v384 = vunpack.c.l.b16 %v352
      %v385 = vunpack.c.l.b16 %v353
      %v386 = vunpack.c.l.b16 %v354
      %v387 = vpack.c.b16 %v372, %v371
      %v388 = vpack.c.b16 %v374, %v373
      %v389 = vpack.c.b16 %v376, %v375
      %v390 = vpack.c.b16 %v378, %v377
      %v391 = vpack.c.b16 %v380, %v379
      %v392 = vpack.c.b16 %v382, %v381
      %v393 = vpack.c.b16 %v384, %v383
      %v394 = vpack.c.b16 %v386, %v385
      %403 = vmatprep.subr.bf16.mxu0 0
      %404 = vmatpush1.bf16.msra.mxu0 %v387
      %405 = vmatprep.subr.bf16.mxu0 0
      %406 = vmatpush1.bf16.msra.mxu0 %v388
      %407 = vmatprep.subr.bf16.mxu0 0
      %408 = vmatpush1.bf16.msra.mxu0 %v389
      %409 = vmatprep.subr.bf16.mxu0 0
      %410 = vmatpush1.bf16.msra.mxu0 %v390
      %411 = vmatprep.subr.bf16.mxu0 0
      %412 = vmatpush1.bf16.msra.mxu0 %v391
      %413 = vmatprep.subr.bf16.mxu0 0
      %414 = vmatpush1.bf16.msra.mxu0 %v392
      %415 = vmatprep.subr.bf16.mxu0 0
      %416 = vmatpush1.bf16.msra.mxu0 %v393
      %417 = vmatprep.subr.bf16.mxu0 0
      %418 = vmatpush1.bf16.msra.mxu0 %v394
      %419 = vmatprep.subr.bf16.mxu0 0
      %420 = vmatpush1.bf16.msra.mxu0 0
      %421 = vmatprep.subr.bf16.mxu0 0
      %422 = vmatpush1.bf16.msra.mxu0 0
      %423 = vmatprep.subr.bf16.mxu0 0
      %424 = vmatpush1.bf16.msra.mxu0 0
      %425 = vmatprep.subr.bf16.mxu0 0
      %426 = vmatpush1.bf16.msra.mxu0 0
      %427 = vmatprep.subr.bf16.mxu0 0
      %428 = vmatpush1.bf16.msra.mxu0 0
      %429 = vmatprep.subr.bf16.mxu0 0
      %430 = vmatpush1.bf16.msra.mxu0 0
      %431 = vmatprep.subr.bf16.mxu0 0
      %432 = vmatpush1.bf16.msra.mxu0 0
      %433 = vmatprep.subr.bf16.mxu0 0
      %434 = vmatpush1.bf16.msra.mxu0 0
      %435 = vmatprep.mubr.bf16.mxu0 0
      %436 = vmatmul.mubr.bf16.gmra.mrb[0].mxu0 %v322
      %v437 = vpop.f32.mrb[0].mxu0
      %v438 = vadd.f32 0.0, %v437
      %v439 = vpop.f32.mrb[0].mxu0
      %v440 = vpop.f32.mrb[0].mxu0
      %v441 = vadd.f32 0.0, %v440
      %v442 = vpop.f32.mrb[0].mxu0
      %443 = vmatprep.mubr.bf16.mxu0 0
      %444 = vmatmul.mubr.bf16.gmra.mrb[0].mxu0 %v323
      %v445 = vpop.f32.mrb[0].mxu0
      %v446 = vadd.f32 0.0, %v445
      %v447 = vpop.f32.mrb[0].mxu0
      %v448 = vpop.f32.mrb[0].mxu0
      %v449 = vadd.f32 0.0, %v448
      %v450 = vpop.f32.mrb[0].mxu0
      %451 = vmatprep.mubr.bf16.mxu0 0
      %452 = vmatmul.mubr.bf16.gmra.mrb[0].mxu0 %v324
      %v453 = vpop.f32.mrb[0].mxu0
      %v454 = vadd.f32 0.0, %v453
      %v455 = vpop.f32.mrb[0].mxu0
      %v456 = vpop.f32.mrb[0].mxu0
      %v457 = vadd.f32 0.0, %v456
      %v458 = vpop.f32.mrb[0].mxu0
      %459 = vmatprep.mubr.bf16.mxu0 0
      %460 = vmatmul.mubr.bf16.gmra.mrb[0].mxu0 %v325
      %v461 = vpop.f32.mrb[0].mxu0
      %v462 = vadd.f32 0.0, %v461
      %v463 = vpop.f32.mrb[0].mxu0
      %v464 = vpop.f32.mrb[0].mxu0
      %v465 = vadd.f32 0.0, %v464
      %v466 = vpop.f32.mrb[0].mxu0
      %467 = vmatprep.mubr.bf16.mxu0 0
      %468 = vmatmul.mubr.bf16.gmra.mrb[0].mxu0 %v326
      %v469 = vpop.f32.mrb[0].mxu0
      %v470 = vadd.f32 0.0, %v469
      %v471 = vpop.f32.mrb[0].mxu0
      %v472 = vpop.f32.mrb[0].mxu0
      %v473 = vadd.f32 0.0, %v472
      %v474 = vpop.f32.mrb[0].mxu0
      %475 = vmatprep.mubr.bf16.mxu0 0
      %476 = vmatmul.mubr.bf16.gmra.mrb[0].mxu0 %v327
      %v477 = vpop.f32.mrb[0].mxu0
      %v478 = vadd.f32 0.0, %v477
      %v479 = vpop.f32.mrb[0].mxu0
      %v480 = vpop.f32.mrb[0].mxu0
      %v481 = vadd.f32 0.0, %v480
      %v482 = vpop.f32.mrb[0].mxu0
      %483 = vmatprep.mubr.bf16.mxu0 0
      %484 = vmatmul.mubr.bf16.gmra.mrb[0].mxu0 %v328
      %v485 = vpop.f32.mrb[0].mxu0
      %v486 = vadd.f32 0.0, %v485
      %v487 = vpop.f32.mrb[0].mxu0
      %v488 = vpop.f32.mrb[0].mxu0
      %v489 = vadd.f32 0.0, %v488
      %v490 = vpop.f32.mrb[0].mxu0
      %491 = vmatprep.mubr.bf16.mxu0 0
      %492 = vmatmul.mubr.bf16.gmra.mrb[0].mxu0 %v329
      %v493 = vpop.f32.mrb[0].mxu0
      %v494 = vadd.f32 0.0, %v493
      %v495 = vpop.f32.mrb[0].mxu0
      %v496 = vpop.f32.mrb[0].mxu0
      %v497 = vadd.f32 0.0, %v496
      %v498 = vpop.f32.mrb[0].mxu0
      %499 = vmatprep.mubr.bf16.mxu0 0
      %500 = vmatmul.mubr.bf16.gmra.mrb[0].mxu0 %v330
      %v501 = vpop.f32.mrb[0].mxu0
      %v502 = vadd.f32 0.0, %v501
      %v503 = vpop.f32.mrb[0].mxu0
      %v504 = vpop.f32.mrb[0].mxu0
      %v505 = vadd.f32 0.0, %v504
      %v506 = vpop.f32.mrb[0].mxu0
      %507 = vmatprep.mubr.bf16.mxu0 0
      %508 = vmatmul.mubr.bf16.gmra.mrb[0].mxu0 %v331
      %v509 = vpop.f32.mrb[0].mxu0
      %v510 = vadd.f32 0.0, %v509
      %v511 = vpop.f32.mrb[0].mxu0
      %v512 = vpop.f32.mrb[0].mxu0
      %v513 = vadd.f32 0.0, %v512
      %v514 = vpop.f32.mrb[0].mxu0
      %515 = vmatprep.mubr.bf16.mxu0 0
      %516 = vmatmul.mubr.bf16.gmra.mrb[0].mxu0 %v332
      %v517 = vpop.f32.mrb[0].mxu0
      %v518 = vadd.f32 0.0, %v517
      %v519 = vpop.f32.mrb[0].mxu0
      %v520 = vpop.f32.mrb[0].mxu0
      %v521 = vadd.f32 0.0, %v520
      %v522 = vpop.f32.mrb[0].mxu0
      %523 = vmatprep.mubr.bf16.mxu0 0
      %524 = vmatmul.mubr.bf16.gmra.mrb[0].mxu0 %v333
      %v525 = vpop.f32.mrb[0].mxu0
      %v526 = vadd.f32 0.0, %v525
      %v527 = vpop.f32.mrb[0].mxu0
      %v528 = vpop.f32.mrb[0].mxu0
      %v529 = vadd.f32 0.0, %v528
      %v530 = vpop.f32.mrb[0].mxu0
      %531 = vmatprep.mubr.bf16.mxu0 0
      %532 = vmatmul.mubr.bf16.gmra.mrb[0].mxu0 %v334
      %v533 = vpop.f32.mrb[0].mxu0
      %v534 = vadd.f32 0.0, %v533
      %v535 = vpop.f32.mrb[0].mxu0
      %v536 = vpop.f32.mrb[0].mxu0
      %v537 = vadd.f32 0.0, %v536
      %v538 = vpop.f32.mrb[0].mxu0
      %539 = vmatprep.mubr.bf16.mxu0 0
      %540 = vmatmul.mubr.bf16.gmra.mrb[0].mxu0 %v335
      %v541 = vpop.f32.mrb[0].mxu0
      %v542 = vadd.f32 0.0, %v541
      %v543 = vpop.f32.mrb[0].mxu0
      %v544 = vpop.f32.mrb[0].mxu0
      %v545 = vadd.f32 0.0, %v544
      %v546 = vpop.f32.mrb[0].mxu0
      %547 = vmatprep.mubr.bf16.mxu0 0
      %548 = vmatmul.mubr.bf16.gmra.mrb[0].mxu0 %v336
      %v549 = vpop.f32.mrb[0].mxu0
      %v550 = vadd.f32 0.0, %v549
      %v551 = vpop.f32.mrb[0].mxu0
      %v552 = vpop.f32.mrb[0].mxu0
      %v553 = vadd.f32 0.0, %v552
      %v554 = vpop.f32.mrb[0].mxu0
      %555 = vmatprep.mubr.bf16.mxu0 0
      %556 = vmatmul.mubr.bf16.gmra.mrb[0].mxu0 %v337
      %v557 = vpop.f32.mrb[0].mxu0
      %v558 = vadd.f32 0.0, %v557
      %v559 = vpop.f32.mrb[0].mxu0
      %v560 = vpop.f32.mrb[0].mxu0
      %v561 = vadd.f32 0.0, %v560
      %v562 = vpop.f32.mrb[0].mxu0
      %563 = vdwg.mxu0
      %v580 = vunpack.c.l.b16 %v274
      %v581 = vunpack.c.l.b16 %v275
      %v582 = vunpack.c.l.b16 %v276
      %v583 = vunpack.c.l.b16 %v277
      %v584 = vunpack.c.l.b16 %v278
      %v585 = vunpack.c.l.b16 %v279
      %v586 = vunpack.c.l.b16 %v280
      %v587 = vunpack.c.l.b16 %v281
      %v588 = vunpack.c.l.b16 %v282
      %v589 = vunpack.c.l.b16 %v283
      %v590 = vunpack.c.l.b16 %v284
      %v591 = vunpack.c.l.b16 %v285
      %v592 = vunpack.c.l.b16 %v286
      %v593 = vunpack.c.l.b16 %v287
      %v594 = vunpack.c.l.b16 %v288
      %v595 = vunpack.c.l.b16 %v289
      %v596 = vpack.c.b16 %v581, %v580
      %v597 = vpack.c.b16 %v583, %v582
      %v598 = vpack.c.b16 %v585, %v584
      %v599 = vpack.c.b16 %v587, %v586
      %v600 = vpack.c.b16 %v589, %v588
      %v601 = vpack.c.b16 %v591, %v590
      %v602 = vpack.c.b16 %v593, %v592
      %v603 = vpack.c.b16 %v595, %v594
      %612 = vmatprep.subr.bf16.mxu0 0
      %613 = vmatpush1.bf16.msra.mxu0 %v596
      %614 = vmatprep.subr.bf16.mxu0 0
      %615 = vmatpush1.bf16.msra.mxu0 %v597
      %616 = vmatprep.subr.bf16.mxu0 0
      %617 = vmatpush1.bf16.msra.mxu0 %v598
      %618 = vmatprep.subr.bf16.mxu0 0
      %619 = vmatpush1.bf16.msra.mxu0 %v599
      %620 = vmatprep.subr.bf16.mxu0 0
      %621 = vmatpush1.bf16.msra.mxu0 %v600
      %622 = vmatprep.subr.bf16.mxu0 0
      %623 = vmatpush1.bf16.msra.mxu0 %v601
      %624 = vmatprep.subr.bf16.mxu0 0
      %625 = vmatpush1.bf16.msra.mxu0 %v602
      %626 = vmatprep.subr.bf16.mxu0 0
      %627 = vmatpush1.bf16.msra.mxu0 %v603
      %628 = vmatprep.subr.bf16.mxu0 0
      %629 = vmatpush1.bf16.msra.mxu0 0
      %630 = vmatprep.subr.bf16.mxu0 0
      %631 = vmatpush1.bf16.msra.mxu0 0
      %632 = vmatprep.subr.bf16.mxu0 0
      %633 = vmatpush1.bf16.msra.mxu0 0
      %634 = vmatprep.subr.bf16.mxu0 0
      %635 = vmatpush1.bf16.msra.mxu0 0
      %636 = vmatprep.subr.bf16.mxu0 0
      %637 = vmatpush1.bf16.msra.mxu0 0
      %638 = vmatprep.subr.bf16.mxu0 0
      %639 = vmatpush1.bf16.msra.mxu0 0
      %640 = vmatprep.subr.bf16.mxu0 0
      %641 = vmatpush1.bf16.msra.mxu0 0
      %642 = vmatprep.subr.bf16.mxu0 0
      %643 = vmatpush1.bf16.msra.mxu0 0
      %644 = vmatprep.mubr.bf16.mxu0 0
      %645 = vmatmul.mubr.bf16.gmra.mrb[0].mxu0 %v258
      %v646 = vpop.f32.mrb[0].mxu0
      %v647 = vadd.f32 %v438, %v646
      %v648 = vpop.f32.mrb[0].mxu0
      %v649 = vpop.f32.mrb[0].mxu0
      %v650 = vadd.f32 %v441, %v649
      %v651 = vpop.f32.mrb[0].mxu0
      %652 = vmatprep.mubr.bf16.mxu0 0
      %653 = vmatmul.mubr.bf16.gmra.mrb[0].mxu0 %v259
      %v654 = vpop.f32.mrb[0].mxu0
      %v655 = vadd.f32 %v446, %v654
      %v656 = vpop.f32.mrb[0].mxu0
      %v657 = vpop.f32.mrb[0].mxu0
      %v658 = vadd.f32 %v449, %v657
      %v659 = vpop.f32.mrb[0].mxu0
      %660 = vmatprep.mubr.bf16.mxu0 0
      %661 = vmatmul.mubr.bf16.gmra.mrb[0].mxu0 %v260
      %v662 = vpop.f32.mrb[0].mxu0
      %v663 = vadd.f32 %v454, %v662
      %v664 = vpop.f32.mrb[0].mxu0
      %v665 = vpop.f32.mrb[0].mxu0
      %v666 = vadd.f32 %v457, %v665
      %v667 = vpop.f32.mrb[0].mxu0
      %668 = vmatprep.mubr.bf16.mxu0 0
      %669 = vmatmul.mubr.bf16.gmra.mrb[0].mxu0 %v261
      %v670 = vpop.f32.mrb[0].mxu0
      %v671 = vadd.f32 %v462, %v670
      %v672 = vpop.f32.mrb[0].mxu0
      %v673 = vpop.f32.mrb[0].mxu0
      %v674 = vadd.f32 %v465, %v673
      %v675 = vpop.f32.mrb[0].mxu0
      %676 = vmatprep.mubr.bf16.mxu0 0
      %677 = vmatmul.mubr.bf16.gmra.mrb[0].mxu0 %v262
      %v678 = vpop.f32.mrb[0].mxu0
      %v679 = vadd.f32 %v470, %v678
      %v680 = vpop.f32.mrb[0].mxu0
      %v681 = vpop.f32.mrb[0].mxu0
      %v682 = vadd.f32 %v473, %v681
      %v683 = vpop.f32.mrb[0].mxu0
      %684 = vmatprep.mubr.bf16.mxu0 0
      %685 = vmatmul.mubr.bf16.gmra.mrb[0].mxu0 %v263
      %v686 = vpop.f32.mrb[0].mxu0
      %v687 = vadd.f32 %v478, %v686
      %v688 = vpop.f32.mrb[0].mxu0
      %v689 = vpop.f32.mrb[0].mxu0
      %v690 = vadd.f32 %v481, %v689
      %v691 = vpop.f32.mrb[0].mxu0
      %692 = vmatprep.mubr.bf16.mxu0 0
      %693 = vmatmul.mubr.bf16.gmra.mrb[0].mxu0 %v264
      %v694 = vpop.f32.mrb[0].mxu0
      %v695 = vadd.f32 %v486, %v694
      %v696 = vpop.f32.mrb[0].mxu0
      %v697 = vpop.f32.mrb[0].mxu0
      %v698 = vadd.f32 %v489, %v697
      %v699 = vpop.f32.mrb[0].mxu0
      %700 = vmatprep.mubr.bf16.mxu0 0
      %701 = vmatmul.mubr.bf16.gmra.mrb[0].mxu0 %v265
      %v702 = vpop.f32.mrb[0].mxu0
      %v703 = vadd.f32 %v494, %v702
      %v704 = vpop.f32.mrb[0].mxu0
      %v705 = vpop.f32.mrb[0].mxu0
      %v706 = vadd.f32 %v497, %v705
      %v707 = vpop.f32.mrb[0].mxu0
      %708 = vmatprep.mubr.bf16.mxu0 0
      %709 = vmatmul.mubr.bf16.gmra.mrb[0].mxu0 %v266
      %v710 = vpop.f32.mrb[0].mxu0
      %v711 = vadd.f32 %v502, %v710
      %v712 = vpop.f32.mrb[0].mxu0
      %v713 = vpop.f32.mrb[0].mxu0
      %v714 = vadd.f32 %v505, %v713
      %v715 = vpop.f32.mrb[0].mxu0
      %716 = vmatprep.mubr.bf16.mxu0 0
      %717 = vmatmul.mubr.bf16.gmra.mrb[0].mxu0 %v267
      %v718 = vpop.f32.mrb[0].mxu0
      %v719 = vadd.f32 %v510, %v718
      %v720 = vpop.f32.mrb[0].mxu0
      %v721 = vpop.f32.mrb[0].mxu0
      %v722 = vadd.f32 %v513, %v721
      %v723 = vpop.f32.mrb[0].mxu0
      %724 = vmatprep.mubr.bf16.mxu0 0
      %725 = vmatmul.mubr.bf16.gmra.mrb[0].mxu0 %v268
      %v726 = vpop.f32.mrb[0].mxu0
      %v727 = vadd.f32 %v518, %v726
      %v728 = vpop.f32.mrb[0].mxu0
      %v729 = vpop.f32.mrb[0].mxu0
      %v730 = vadd.f32 %v521, %v729
      %v731 = vpop.f32.mrb[0].mxu0
      %732 = vmatprep.mubr.bf16.mxu0 0
      %733 = vmatmul.mubr.bf16.gmra.mrb[0].mxu0 %v269
      %v734 = vpop.f32.mrb[0].mxu0
      %v735 = vadd.f32 %v526, %v734
      %v736 = vpop.f32.mrb[0].mxu0
      %v737 = vpop.f32.mrb[0].mxu0
      %v738 = vadd.f32 %v529, %v737
      %v739 = vpop.f32.mrb[0].mxu0
      %740 = vmatprep.mubr.bf16.mxu0 0
      %741 = vmatmul.mubr.bf16.gmra.mrb[0].mxu0 %v270
      %v742 = vpop.f32.mrb[0].mxu0
      %v743 = vadd.f32 %v534, %v742
      %v744 = vpop.f32.mrb[0].mxu0
      %v745 = vpop.f32.mrb[0].mxu0
      %v746 = vadd.f32 %v537, %v745
      %v747 = vpop.f32.mrb[0].mxu0
      %748 = vmatprep.mubr.bf16.mxu0 0
      %749 = vmatmul.mubr.bf16.gmra.mrb[0].mxu0 %v271
      %v750 = vpop.f32.mrb[0].mxu0
      %v751 = vadd.f32 %v542, %v750
      %v752 = vpop.f32.mrb[0].mxu0
      %v753 = vpop.f32.mrb[0].mxu0
      %v754 = vadd.f32 %v545, %v753
      %v755 = vpop.f32.mrb[0].mxu0
      %756 = vmatprep.mubr.bf16.mxu0 0
      %757 = vmatmul.mubr.bf16.gmra.mrb[0].mxu0 %v272
      %v758 = vpop.f32.mrb[0].mxu0
      %v759 = vadd.f32 %v550, %v758
      %v760 = vpop.f32.mrb[0].mxu0
      %v761 = vpop.f32.mrb[0].mxu0
      %v762 = vadd.f32 %v553, %v761
      %v763 = vpop.f32.mrb[0].mxu0
      %764 = vmatprep.mubr.bf16.mxu0 0
      %765 = vmatmul.mubr.bf16.gmra.mrb[0].mxu0 %v273
      %v766 = vpop.f32.mrb[0].mxu0
      %v767 = vadd.f32 %v558, %v766
      %v768 = vpop.f32.mrb[0].mxu0
      %v769 = vpop.f32.mrb[0].mxu0
      %v770 = vadd.f32 %v561, %v769
      %v771 = vpop.f32.mrb[0].mxu0
      %772 = vdwg.mxu0
      %v773 = vld [vmem:[%s219 + $0x2] sm:$0xff]
      %v774 = vld [vmem:[%s219 + $0xa] sm:$0xff]
      %v775 = vld [vmem:[%s219 + $0x1a] sm:$0xff]
      %v776 = vld [vmem:[%s219 + $0x22] sm:$0xff]
      %v777 = vld [vmem:[%s219 + $0x32] sm:$0xff]
      %v778 = vld [vmem:[%s219 + $0x3a] sm:$0xff]
      %v779 = vld [vmem:[%s219 + $0x4a] sm:$0xff]
      %v780 = vld [vmem:[%s219 + $0x52] sm:$0xff]
      %v781 = vld [vmem:[%s219 + $0x62] sm:$0xff]
      %v782 = vld [vmem:[%s219 + $0x6a] sm:$0xff]
      %v783 = vld [vmem:[%s219 + $0x7a] sm:$0xff]
      %v784 = vld [vmem:[%s219 + $0x82] sm:$0xff]
      %v785 = vld [vmem:[%s219 + $0x92] sm:$0xff]
      %v786 = vld [vmem:[%s219 + $0x9a] sm:$0xff]
      %v787 = vld [vmem:[%s219 + $0xaa] sm:$0xff]
      %v788 = vld [vmem:[%s219 + $0xb2] sm:$0xff]
      %v789 = vld [vmem:[%s219 + $0xc2] sm:$0xff]
      %v790 = vld [vmem:[%s219 + $0xca] sm:$0xff]
      %v791 = vld [vmem:[%s219 + $0xda] sm:$0xff]
      %v792 = vld [vmem:[%s219 + $0xe2] sm:$0xff]
      %v793 = vld [vmem:[%s219 + $0xf2] sm:$0xff]
      %v794 = vld [vmem:[%s219 + $0xfa] sm:$0xff]
      %v795 = vld [vmem:[%s219 + $0x10a] sm:$0xff]
      %v796 = vld [vmem:[%s219 + $0x112] sm:$0xff]
      %v797 = vld [vmem:[%s219 + $0x122] sm:$0xff]
      %v798 = vld [vmem:[%s219 + $0x12a] sm:$0xff]
      %v799 = vld [vmem:[%s219 + $0x13a] sm:$0xff]
      %v800 = vld [vmem:[%s219 + $0x142] sm:$0xff]
      %v801 = vld [vmem:[%s219 + $0x152] sm:$0xff]
      %v802 = vld [vmem:[%s219 + $0x15a] sm:$0xff]
      %v803 = vld [vmem:[%s219 + $0x16a] sm:$0xff]
      %v804 = vld [vmem:[%s219 + $0x172] sm:$0xff]
      %v805 = vpack.c.bf16 %v774, %v773
      %v806 = vpack.c.bf16 %v776, %v775
      %v807 = vpack.c.bf16 %v778, %v777
      %v808 = vpack.c.bf16 %v780, %v779
      %v809 = vpack.c.bf16 %v782, %v781
      %v810 = vpack.c.bf16 %v784, %v783
      %v811 = vpack.c.bf16 %v786, %v785
      %v812 = vpack.c.bf16 %v788, %v787
      %v813 = vpack.c.bf16 %v790, %v789
      %v814 = vpack.c.bf16 %v792, %v791
      %v815 = vpack.c.bf16 %v794, %v793
      %v816 = vpack.c.bf16 %v796, %v795
      %v817 = vpack.c.bf16 %v798, %v797
      %v818 = vpack.c.bf16 %v800, %v799
      %v819 = vpack.c.bf16 %v802, %v801
      %v820 = vpack.c.bf16 %v804, %v803
      %s821 = scalar_lea.vmem %s1, 128
      %v822 = vld [vmem:[%s821] sm:$0xf]
      %v823 = vld [vmem:[%s821 + $0x4] sm:$0xf]
      %v824 = vld [vmem:[%s821 + $0x8] sm:$0xf]
      %v825 = vld [vmem:[%s821 + $0xc] sm:$0xf]
      %v826 = vld [vmem:[%s821 + $0x10] sm:$0xf]
      %v827 = vld [vmem:[%s821 + $0x14] sm:$0xf]
      %v828 = vld [vmem:[%s821 + $0x18] sm:$0xf]
      %v829 = vld [vmem:[%s821 + $0x1c] sm:$0xf]
      %v830 = vld [vmem:[%s821 + $0x20] sm:$0xf]
      %v831 = vld [vmem:[%s821 + $0x24] sm:$0xf]
      %v832 = vld [vmem:[%s821 + $0x28] sm:$0xf]
      %v833 = vld [vmem:[%s821 + $0x2c] sm:$0xf]
      %v834 = vld [vmem:[%s821 + $0x30] sm:$0xf]
      %v835 = vld [vmem:[%s821 + $0x34] sm:$0xf]
      %v836 = vld [vmem:[%s821 + $0x38] sm:$0xf]
      %v837 = vld [vmem:[%s821 + $0x3c] sm:$0xf]
      %v854 = vunpack.c.l.b16 %v822
      %v855 = vunpack.c.l.b16 %v823
      %v856 = vunpack.c.l.b16 %v824
      %v857 = vunpack.c.l.b16 %v825
      %v858 = vunpack.c.l.b16 %v826
      %v859 = vunpack.c.l.b16 %v827
      %v860 = vunpack.c.l.b16 %v828
      %v861 = vunpack.c.l.b16 %v829
      %v862 = vunpack.c.l.b16 %v830
      %v863 = vunpack.c.l.b16 %v831
      %v864 = vunpack.c.l.b16 %v832
      %v865 = vunpack.c.l.b16 %v833
      %v866 = vunpack.c.l.b16 %v834
      %v867 = vunpack.c.l.b16 %v835
      %v868 = vunpack.c.l.b16 %v836
      %v869 = vunpack.c.l.b16 %v837
      %v870 = vpack.c.b16 %v855, %v854
      %v871 = vpack.c.b16 %v857, %v856
      %v872 = vpack.c.b16 %v859, %v858
      %v873 = vpack.c.b16 %v861, %v860
      %v874 = vpack.c.b16 %v863, %v862
      %v875 = vpack.c.b16 %v865, %v864
      %v876 = vpack.c.b16 %v867, %v866
      %v877 = vpack.c.b16 %v869, %v868
      %886 = vmatprep.subr.bf16.mxu0 0
      %887 = vmatpush1.bf16.msra.mxu0 %v870
      %888 = vmatprep.subr.bf16.mxu0 0
      %889 = vmatpush1.bf16.msra.mxu0 %v871
      %890 = vmatprep.subr.bf16.mxu0 0
      %891 = vmatpush1.bf16.msra.mxu0 %v872
      %892 = vmatprep.subr.bf16.mxu0 0
      %893 = vmatpush1.bf16.msra.mxu0 %v873
      %894 = vmatprep.subr.bf16.mxu0 0
      %895 = vmatpush1.bf16.msra.mxu0 %v874
      %896 = vmatprep.subr.bf16.mxu0 0
      %897 = vmatpush1.bf16.msra.mxu0 %v875
      %898 = vmatprep.subr.bf16.mxu0 0
      %899 = vmatpush1.bf16.msra.mxu0 %v876
      %900 = vmatprep.subr.bf16.mxu0 0
      %901 = vmatpush1.bf16.msra.mxu0 %v877
      %902 = vmatprep.subr.bf16.mxu0 0
      %903 = vmatpush1.bf16.msra.mxu0 0
      %904 = vmatprep.subr.bf16.mxu0 0
      %905 = vmatpush1.bf16.msra.mxu0 0
      %906 = vmatprep.subr.bf16.mxu0 0
      %907 = vmatpush1.bf16.msra.mxu0 0
      %908 = vmatprep.subr.bf16.mxu0 0
      %909 = vmatpush1.bf16.msra.mxu0 0
      %910 = vmatprep.subr.bf16.mxu0 0
      %911 = vmatpush1.bf16.msra.mxu0 0
      %912 = vmatprep.subr.bf16.mxu0 0
      %913 = vmatpush1.bf16.msra.mxu0 0
      %914 = vmatprep.subr.bf16.mxu0 0
      %915 = vmatpush1.bf16.msra.mxu0 0
      %916 = vmatprep.subr.bf16.mxu0 0
      %917 = vmatpush1.bf16.msra.mxu0 0
      %918 = vmatprep.mubr.bf16.mxu0 0
      %919 = vmatmul.mubr.bf16.gmra.mrb[0].mxu0 %v805
      %v920 = vpop.f32.mrb[0].mxu0
      %v921 = vadd.f32 0.0, %v920
      %v922 = vpop.f32.mrb[0].mxu0
      %v923 = vpop.f32.mrb[0].mxu0
      %v924 = vadd.f32 0.0, %v923
      %v925 = vpop.f32.mrb[0].mxu0
      %926 = vmatprep.mubr.bf16.mxu0 0
      %927 = vmatmul.mubr.bf16.gmra.mrb[0].mxu0 %v806
      %v928 = vpop.f32.mrb[0].mxu0
      %v929 = vadd.f32 0.0, %v928
      %v930 = vpop.f32.mrb[0].mxu0
      %v931 = vpop.f32.mrb[0].mxu0
      %v932 = vadd.f32 0.0, %v931
      %v933 = vpop.f32.mrb[0].mxu0
      %934 = vmatprep.mubr.bf16.mxu0 0
      %935 = vmatmul.mubr.bf16.gmra.mrb[0].mxu0 %v807
      %v936 = vpop.f32.mrb[0].mxu0
      %v937 = vadd.f32 0.0, %v936
      %v938 = vpop.f32.mrb[0].mxu0
      %v939 = vpop.f32.mrb[0].mxu0
      %v940 = vadd.f32 0.0, %v939
      %v941 = vpop.f32.mrb[0].mxu0
      %942 = vmatprep.mubr.bf16.mxu0 0
      %943 = vmatmul.mubr.bf16.gmra.mrb[0].mxu0 %v808
      %v944 = vpop.f32.mrb[0].mxu0
      %v945 = vadd.f32 0.0, %v944
      %v946 = vpop.f32.mrb[0].mxu0
      %v947 = vpop.f32.mrb[0].mxu0
      %v948 = vadd.f32 0.0, %v947
      %v949 = vpop.f32.mrb[0].mxu0
      %950 = vmatprep.mubr.bf16.mxu0 0
      %951 = vmatmul.mubr.bf16.gmra.mrb[0].mxu0 %v809
      %v952 = vpop.f32.mrb[0].mxu0
      %v953 = vadd.f32 0.0, %v952
      %v954 = vpop.f32.mrb[0].mxu0
      %v955 = vpop.f32.mrb[0].mxu0
      %v956 = vadd.f32 0.0, %v955
      %v957 = vpop.f32.mrb[0].mxu0
      %958 = vmatprep.mubr.bf16.mxu0 0
      %959 = vmatmul.mubr.bf16.gmra.mrb[0].mxu0 %v810
      %v960 = vpop.f32.mrb[0].mxu0
      %v961 = vadd.f32 0.0, %v960
      %v962 = vpop.f32.mrb[0].mxu0
      %v963 = vpop.f32.mrb[0].mxu0
      %v964 = vadd.f32 0.0, %v963
      %v965 = vpop.f32.mrb[0].mxu0
      %966 = vmatprep.mubr.bf16.mxu0 0
      %967 = vmatmul.mubr.bf16.gmra.mrb[0].mxu0 %v811
      %v968 = vpop.f32.mrb[0].mxu0
      %v969 = vadd.f32 0.0, %v968
      %v970 = vpop.f32.mrb[0].mxu0
      %v971 = vpop.f32.mrb[0].mxu0
      %v972 = vadd.f32 0.0, %v971
      %v973 = vpop.f32.mrb[0].mxu0
      %974 = vmatprep.mubr.bf16.mxu0 0
      %975 = vmatmul.mubr.bf16.gmra.mrb[0].mxu0 %v812
      %v976 = vpop.f32.mrb[0].mxu0
      %v977 = vadd.f32 0.0, %v976
      %v978 = vpop.f32.mrb[0].mxu0
      %v979 = vpop.f32.mrb[0].mxu0
      %v980 = vadd.f32 0.0, %v979
      %v981 = vpop.f32.mrb[0].mxu0
      %982 = vmatprep.mubr.bf16.mxu0 0
      %983 = vmatmul.mubr.bf16.gmra.mrb[0].mxu0 %v813
      %v984 = vpop.f32.mrb[0].mxu0
      %v985 = vadd.f32 0.0, %v984
      %v986 = vpop.f32.mrb[0].mxu0
      %v987 = vpop.f32.mrb[0].mxu0
      %v988 = vadd.f32 0.0, %v987
      %v989 = vpop.f32.mrb[0].mxu0
      %990 = vmatprep.mubr.bf16.mxu0 0
      %991 = vmatmul.mubr.bf16.gmra.mrb[0].mxu0 %v814
      %v992 = vpop.f32.mrb[0].mxu0
      %v993 = vadd.f32 0.0, %v992
      %v994 = vpop.f32.mrb[0].mxu0
      %v995 = vpop.f32.mrb[0].mxu0
      %v996 = vadd.f32 0.0, %v995
      %v997 = vpop.f32.mrb[0].mxu0
      %998 = vmatprep.mubr.bf16.mxu0 0
      %999 = vmatmul.mubr.bf16.gmra.mrb[0].mxu0 %v815
      %v1000 = vpop.f32.mrb[0].mxu0
      %v1001 = vadd.f32 0.0, %v1000
      %v1002 = vpop.f32.mrb[0].mxu0
      %v1003 = vpop.f32.mrb[0].mxu0
      %v1004 = vadd.f32 0.0, %v1003
      %v1005 = vpop.f32.mrb[0].mxu0
      %1006 = vmatprep.mubr.bf16.mxu0 0
      %1007 = vmatmul.mubr.bf16.gmra.mrb[0].mxu0 %v816
      %v1008 = vpop.f32.mrb[0].mxu0
      %v1009 = vadd.f32 0.0, %v1008
      %v1010 = vpop.f32.mrb[0].mxu0
      %v1011 = vpop.f32.mrb[0].mxu0
      %v1012 = vadd.f32 0.0, %v1011
      %v1013 = vpop.f32.mrb[0].mxu0
      %1014 = vmatprep.mubr.bf16.mxu0 0
      %1015 = vmatmul.mubr.bf16.gmra.mrb[0].mxu0 %v817
      %v1016 = vpop.f32.mrb[0].mxu0
      %v1017 = vadd.f32 0.0, %v1016
      %v1018 = vpop.f32.mrb[0].mxu0
      %v1019 = vpop.f32.mrb[0].mxu0
      %v1020 = vadd.f32 0.0, %v1019
      %v1021 = vpop.f32.mrb[0].mxu0
      %1022 = vmatprep.mubr.bf16.mxu0 0
      %1023 = vmatmul.mubr.bf16.gmra.mrb[0].mxu0 %v818
      %v1024 = vpop.f32.mrb[0].mxu0
      %v1025 = vadd.f32 0.0, %v1024
      %v1026 = vpop.f32.mrb[0].mxu0
      %v1027 = vpop.f32.mrb[0].mxu0
      %v1028 = vadd.f32 0.0, %v1027
      %v1029 = vpop.f32.mrb[0].mxu0
      %1030 = vmatprep.mubr.bf16.mxu0 0
      %1031 = vmatmul.mubr.bf16.gmra.mrb[0].mxu0 %v819
      %v1032 = vpop.f32.mrb[0].mxu0
      %v1033 = vadd.f32 0.0, %v1032
      %v1034 = vpop.f32.mrb[0].mxu0
      %v1035 = vpop.f32.mrb[0].mxu0
      %v1036 = vadd.f32 0.0, %v1035
      %v1037 = vpop.f32.mrb[0].mxu0
      %1038 = vmatprep.mubr.bf16.mxu0 0
      %1039 = vmatmul.mubr.bf16.gmra.mrb[0].mxu0 %v820
      %v1040 = vpop.f32.mrb[0].mxu0
      %v1041 = vadd.f32 0.0, %v1040
      %v1042 = vpop.f32.mrb[0].mxu0
      %v1043 = vpop.f32.mrb[0].mxu0
      %v1044 = vadd.f32 0.0, %v1043
      %v1045 = vpop.f32.mrb[0].mxu0
      %1046 = vdwg.mxu0
      %v1047 = vadd.f32 %v647, %v921
      %v1048 = vadd.f32 %v650, %v924
      %v1049 = vadd.f32 %v655, %v929
      %v1050 = vadd.f32 %v658, %v932
      %v1051 = vadd.f32 %v663, %v937
      %v1052 = vadd.f32 %v666, %v940
      %v1053 = vadd.f32 %v671, %v945
      %v1054 = vadd.f32 %v674, %v948
      %v1055 = vadd.f32 %v679, %v953
      %v1056 = vadd.f32 %v682, %v956
      %v1057 = vadd.f32 %v687, %v961
      %v1058 = vadd.f32 %v690, %v964
      %v1059 = vadd.f32 %v695, %v969
      %v1060 = vadd.f32 %v698, %v972
      %v1061 = vadd.f32 %v703, %v977
      %v1062 = vadd.f32 %v706, %v980
      %v1063 = vadd.f32 %v711, %v985
      %v1064 = vadd.f32 %v714, %v988
      %v1065 = vadd.f32 %v719, %v993
      %v1066 = vadd.f32 %v722, %v996
      %v1067 = vadd.f32 %v727, %v1001
      %v1068 = vadd.f32 %v730, %v1004
      %v1069 = vadd.f32 %v735, %v1009
      %v1070 = vadd.f32 %v738, %v1012
      %v1071 = vadd.f32 %v743, %v1017
      %v1072 = vadd.f32 %v746, %v1020
      %v1073 = vadd.f32 %v751, %v1025
      %v1074 = vadd.f32 %v754, %v1028
      %v1075 = vadd.f32 %v759, %v1033
      %v1076 = vadd.f32 %v762, %v1036
      %v1077 = vadd.f32 %v767, %v1041
      %v1078 = vadd.f32 %v770, %v1044
      %s1079 = scalar_lea.vmem %s219, 24
      %v1080 = vld [vmem:[%s1079] sm:$0xff]
      %v1081 = vld [vmem:[%s1079 + $0x8] sm:$0xff]
      %v1082 = vld [vmem:[%s1079 + $0x18] sm:$0xff]
      %v1083 = vld [vmem:[%s1079 + $0x20] sm:$0xff]
      %v1084 = vld [vmem:[%s1079 + $0x30] sm:$0xff]
      %v1085 = vld [vmem:[%s1079 + $0x38] sm:$0xff]
      %v1086 = vld [vmem:[%s1079 + $0x48] sm:$0xff]
      %v1087 = vld [vmem:[%s1079 + $0x50] sm:$0xff]
      %v1088 = vld [vmem:[%s1079 + $0x60] sm:$0xff]
      %v1089 = vld [vmem:[%s1079 + $0x68] sm:$0xff]
      %v1090 = vld [vmem:[%s1079 + $0x78] sm:$0xff]
      %v1091 = vld [vmem:[%s1079 + $0x80] sm:$0xff]
      %v1092 = vld [vmem:[%s1079 + $0x90] sm:$0xff]
      %v1093 = vld [vmem:[%s1079 + $0x98] sm:$0xff]
      %v1094 = vld [vmem:[%s1079 + $0xa8] sm:$0xff]
      %v1095 = vld [vmem:[%s1079 + $0xb0] sm:$0xff]
      %v1096 = vld [vmem:[%s1079 + $0xc0] sm:$0xff]
      %v1097 = vld [vmem:[%s1079 + $0xc8] sm:$0xff]
      %v1098 = vld [vmem:[%s1079 + $0xd8] sm:$0xff]
      %v1099 = vld [vmem:[%s1079 + $0xe0] sm:$0xff]
      %v1100 = vld [vmem:[%s1079 + $0xf0] sm:$0xff]
      %v1101 = vld [vmem:[%s1079 + $0xf8] sm:$0xff]
      %v1102 = vld [vmem:[%s1079 + $0x108] sm:$0xff]
      %v1103 = vld [vmem:[%s1079 + $0x110] sm:$0xff]
      %v1104 = vld [vmem:[%s1079 + $0x120] sm:$0xff]
      %v1105 = vld [vmem:[%s1079 + $0x128] sm:$0xff]
      %v1106 = vld [vmem:[%s1079 + $0x138] sm:$0xff]
      %v1107 = vld [vmem:[%s1079 + $0x140] sm:$0xff]
      %v1108 = vld [vmem:[%s1079 + $0x150] sm:$0xff]
      %v1109 = vld [vmem:[%s1079 + $0x158] sm:$0xff]
      %v1110 = vld [vmem:[%s1079 + $0x168] sm:$0xff]
      %v1111 = vld [vmem:[%s1079 + $0x170] sm:$0xff]
      %v1112 = vpack.c.bf16 %v1081, %v1080
      %v1113 = vpack.c.bf16 %v1083, %v1082
      %v1114 = vpack.c.bf16 %v1085, %v1084
      %v1115 = vpack.c.bf16 %v1087, %v1086
      %v1116 = vpack.c.bf16 %v1089, %v1088
      %v1117 = vpack.c.bf16 %v1091, %v1090
      %v1118 = vpack.c.bf16 %v1093, %v1092
      %v1119 = vpack.c.bf16 %v1095, %v1094
      %v1120 = vpack.c.bf16 %v1097, %v1096
      %v1121 = vpack.c.bf16 %v1099, %v1098
      %v1122 = vpack.c.bf16 %v1101, %v1100
      %v1123 = vpack.c.bf16 %v1103, %v1102
      %v1124 = vpack.c.bf16 %v1105, %v1104
      %v1125 = vpack.c.bf16 %v1107, %v1106
      %v1126 = vpack.c.bf16 %v1109, %v1108
      %v1127 = vpack.c.bf16 %v1111, %v1110
      %s1128 = scalar_lea.vmem %s1, 192
      %v1129 = vld [vmem:[%s1128] sm:$0xf]
      %v1130 = vld [vmem:[%s1128 + $0x4] sm:$0xf]
      %v1131 = vld [vmem:[%s1128 + $0x8] sm:$0xf]
      %v1132 = vld [vmem:[%s1128 + $0xc] sm:$0xf]
      %v1133 = vld [vmem:[%s1128 + $0x10] sm:$0xf]
      %v1134 = vld [vmem:[%s1128 + $0x14] sm:$0xf]
      %v1135 = vld [vmem:[%s1128 + $0x18] sm:$0xf]
      %v1136 = vld [vmem:[%s1128 + $0x1c] sm:$0xf]
      %v1137 = vld [vmem:[%s1128 + $0x20] sm:$0xf]
      %v1138 = vld [vmem:[%s1128 + $0x24] sm:$0xf]
      %v1139 = vld [vmem:[%s1128 + $0x28] sm:$0xf]
      %v1140 = vld [vmem:[%s1128 + $0x2c] sm:$0xf]
      %v1141 = vld [vmem:[%s1128 + $0x30] sm:$0xf]
      %v1142 = vld [vmem:[%s1128 + $0x34] sm:$0xf]
      %v1143 = vld [vmem:[%s1128 + $0x38] sm:$0xf]
      %v1144 = vld [vmem:[%s1128 + $0x3c] sm:$0xf]
      %v1161 = vunpack.c.l.b16 %v1129
      %v1162 = vunpack.c.l.b16 %v1130
      %v1163 = vunpack.c.l.b16 %v1131
      %v1164 = vunpack.c.l.b16 %v1132
      %v1165 = vunpack.c.l.b16 %v1133
      %v1166 = vunpack.c.l.b16 %v1134
      %v1167 = vunpack.c.l.b16 %v1135
      %v1168 = vunpack.c.l.b16 %v1136
      %v1169 = vunpack.c.l.b16 %v1137
      %v1170 = vunpack.c.l.b16 %v1138
      %v1171 = vunpack.c.l.b16 %v1139
      %v1172 = vunpack.c.l.b16 %v1140
      %v1173 = vunpack.c.l.b16 %v1141
      %v1174 = vunpack.c.l.b16 %v1142
      %v1175 = vunpack.c.l.b16 %v1143
      %v1176 = vunpack.c.l.b16 %v1144
      %v1177 = vpack.c.b16 %v1162, %v1161
      %v1178 = vpack.c.b16 %v1164, %v1163
      %v1179 = vpack.c.b16 %v1166, %v1165
      %v1180 = vpack.c.b16 %v1168, %v1167
      %v1181 = vpack.c.b16 %v1170, %v1169
      %v1182 = vpack.c.b16 %v1172, %v1171
      %v1183 = vpack.c.b16 %v1174, %v1173
      %v1184 = vpack.c.b16 %v1176, %v1175
      %1193 = vmatprep.subr.bf16.mxu0 0
      %1194 = vmatpush1.bf16.msra.mxu0 %v1177
      %1195 = vmatprep.subr.bf16.mxu0 0
      %1196 = vmatpush1.bf16.msra.mxu0 %v1178
      %1197 = vmatprep.subr.bf16.mxu0 0
      %1198 = vmatpush1.bf16.msra.mxu0 %v1179
      %1199 = vmatprep.subr.bf16.mxu0 0
      %1200 = vmatpush1.bf16.msra.mxu0 %v1180
      %1201 = vmatprep.subr.bf16.mxu0 0
      %1202 = vmatpush1.bf16.msra.mxu0 %v1181
      %1203 = vmatprep.subr.bf16.mxu0 0
      %1204 = vmatpush1.bf16.msra.mxu0 %v1182
      %1205 = vmatprep.subr.bf16.mxu0 0
      %1206 = vmatpush1.bf16.msra.mxu0 %v1183
      %1207 = vmatprep.subr.bf16.mxu0 0
      %1208 = vmatpush1.bf16.msra.mxu0 %v1184
      %1209 = vmatprep.subr.bf16.mxu0 0
      %1210 = vmatpush1.bf16.msra.mxu0 0
      %1211 = vmatprep.subr.bf16.mxu0 0
      %1212 = vmatpush1.bf16.msra.mxu0 0
      %1213 = vmatprep.subr.bf16.mxu0 0
      %1214 = vmatpush1.bf16.msra.mxu0 0
      %1215 = vmatprep.subr.bf16.mxu0 0
      %1216 = vmatpush1.bf16.msra.mxu0 0
      %1217 = vmatprep.subr.bf16.mxu0 0
      %1218 = vmatpush1.bf16.msra.mxu0 0
      %1219 = vmatprep.subr.bf16.mxu0 0
      %1220 = vmatpush1.bf16.msra.mxu0 0
      %1221 = vmatprep.subr.bf16.mxu0 0
      %1222 = vmatpush1.bf16.msra.mxu0 0
      %1223 = vmatprep.subr.bf16.mxu0 0
      %1224 = vmatpush1.bf16.msra.mxu0 0
      %1225 = vmatprep.mubr.bf16.mxu0 0
      %1226 = vmatmul.mubr.bf16.gmra.mrb[0].mxu0 %v1112
      %v1227 = vpop.f32.mrb[0].mxu0
      %v1228 = vadd.f32 0.0, %v1227
      %v1229 = vpop.f32.mrb[0].mxu0
      %v1230 = vpop.f32.mrb[0].mxu0
      %v1231 = vadd.f32 0.0, %v1230
      %v1232 = vpop.f32.mrb[0].mxu0
      %1233 = vmatprep.mubr.bf16.mxu0 0
      %1234 = vmatmul.mubr.bf16.gmra.mrb[0].mxu0 %v1113
      %v1235 = vpop.f32.mrb[0].mxu0
      %v1236 = vadd.f32 0.0, %v1235
      %v1237 = vpop.f32.mrb[0].mxu0
      %v1238 = vpop.f32.mrb[0].mxu0
      %v1239 = vadd.f32 0.0, %v1238
      %v1240 = vpop.f32.mrb[0].mxu0
      %1241 = vmatprep.mubr.bf16.mxu0 0
      %1242 = vmatmul.mubr.bf16.gmra.mrb[0].mxu0 %v1114
      %v1243 = vpop.f32.mrb[0].mxu0
      %v1244 = vadd.f32 0.0, %v1243
      %v1245 = vpop.f32.mrb[0].mxu0
      %v1246 = vpop.f32.mrb[0].mxu0
      %v1247 = vadd.f32 0.0, %v1246
      %v1248 = vpop.f32.mrb[0].mxu0
      %1249 = vmatprep.mubr.bf16.mxu0 0
      %1250 = vmatmul.mubr.bf16.gmra.mrb[0].mxu0 %v1115
      %v1251 = vpop.f32.mrb[0].mxu0
      %v1252 = vadd.f32 0.0, %v1251
      %v1253 = vpop.f32.mrb[0].mxu0
      %v1254 = vpop.f32.mrb[0].mxu0
      %v1255 = vadd.f32 0.0, %v1254
      %v1256 = vpop.f32.mrb[0].mxu0
      %1257 = vmatprep.mubr.bf16.mxu0 0
      %1258 = vmatmul.mubr.bf16.gmra.mrb[0].mxu0 %v1116
      %v1259 = vpop.f32.mrb[0].mxu0
      %v1260 = vadd.f32 0.0, %v1259
      %v1261 = vpop.f32.mrb[0].mxu0
      %v1262 = vpop.f32.mrb[0].mxu0
      %v1263 = vadd.f32 0.0, %v1262
      %v1264 = vpop.f32.mrb[0].mxu0
      %1265 = vmatprep.mubr.bf16.mxu0 0
      %1266 = vmatmul.mubr.bf16.gmra.mrb[0].mxu0 %v1117
      %v1267 = vpop.f32.mrb[0].mxu0
      %v1268 = vadd.f32 0.0, %v1267
      %v1269 = vpop.f32.mrb[0].mxu0
      %v1270 = vpop.f32.mrb[0].mxu0
      %v1271 = vadd.f32 0.0, %v1270
      %v1272 = vpop.f32.mrb[0].mxu0
      %1273 = vmatprep.mubr.bf16.mxu0 0
      %1274 = vmatmul.mubr.bf16.gmra.mrb[0].mxu0 %v1118
      %v1275 = vpop.f32.mrb[0].mxu0
      %v1276 = vadd.f32 0.0, %v1275
      %v1277 = vpop.f32.mrb[0].mxu0
      %v1278 = vpop.f32.mrb[0].mxu0
      %v1279 = vadd.f32 0.0, %v1278
      %v1280 = vpop.f32.mrb[0].mxu0
      %1281 = vmatprep.mubr.bf16.mxu0 0
      %1282 = vmatmul.mubr.bf16.gmra.mrb[0].mxu0 %v1119
      %v1283 = vpop.f32.mrb[0].mxu0
      %v1284 = vadd.f32 0.0, %v1283
      %v1285 = vpop.f32.mrb[0].mxu0
      %v1286 = vpop.f32.mrb[0].mxu0
      %v1287 = vadd.f32 0.0, %v1286
      %v1288 = vpop.f32.mrb[0].mxu0
      %1289 = vmatprep.mubr.bf16.mxu0 0
      %1290 = vmatmul.mubr.bf16.gmra.mrb[0].mxu0 %v1120
      %v1291 = vpop.f32.mrb[0].mxu0
      %v1292 = vadd.f32 0.0, %v1291
      %v1293 = vpop.f32.mrb[0].mxu0
      %v1294 = vpop.f32.mrb[0].mxu0
      %v1295 = vadd.f32 0.0, %v1294
      %v1296 = vpop.f32.mrb[0].mxu0
      %1297 = vmatprep.mubr.bf16.mxu0 0
      %1298 = vmatmul.mubr.bf16.gmra.mrb[0].mxu0 %v1121
      %v1299 = vpop.f32.mrb[0].mxu0
      %v1300 = vadd.f32 0.0, %v1299
      %v1301 = vpop.f32.mrb[0].mxu0
      %v1302 = vpop.f32.mrb[0].mxu0
      %v1303 = vadd.f32 0.0, %v1302
      %v1304 = vpop.f32.mrb[0].mxu0
      %1305 = vmatprep.mubr.bf16.mxu0 0
      %1306 = vmatmul.mubr.bf16.gmra.mrb[0].mxu0 %v1122
      %v1307 = vpop.f32.mrb[0].mxu0
      %v1308 = vadd.f32 0.0, %v1307
      %v1309 = vpop.f32.mrb[0].mxu0
      %v1310 = vpop.f32.mrb[0].mxu0
      %v1311 = vadd.f32 0.0, %v1310
      %v1312 = vpop.f32.mrb[0].mxu0
      %1313 = vmatprep.mubr.bf16.mxu0 0
      %1314 = vmatmul.mubr.bf16.gmra.mrb[0].mxu0 %v1123
      %v1315 = vpop.f32.mrb[0].mxu0
      %v1316 = vadd.f32 0.0, %v1315
      %v1317 = vpop.f32.mrb[0].mxu0
      %v1318 = vpop.f32.mrb[0].mxu0
      %v1319 = vadd.f32 0.0, %v1318
      %v1320 = vpop.f32.mrb[0].mxu0
      %1321 = vmatprep.mubr.bf16.mxu0 0
      %1322 = vmatmul.mubr.bf16.gmra.mrb[0].mxu0 %v1124
      %v1323 = vpop.f32.mrb[0].mxu0
      %v1324 = vadd.f32 0.0, %v1323
      %v1325 = vpop.f32.mrb[0].mxu0
      %v1326 = vpop.f32.mrb[0].mxu0
      %v1327 = vadd.f32 0.0, %v1326
      %v1328 = vpop.f32.mrb[0].mxu0
      %1329 = vmatprep.mubr.bf16.mxu0 0
      %1330 = vmatmul.mubr.bf16.gmra.mrb[0].mxu0 %v1125
      %v1331 = vpop.f32.mrb[0].mxu0
      %v1332 = vadd.f32 0.0, %v1331
      %v1333 = vpop.f32.mrb[0].mxu0
      %v1334 = vpop.f32.mrb[0].mxu0
      %v1335 = vadd.f32 0.0, %v1334
      %v1336 = vpop.f32.mrb[0].mxu0
      %1337 = vmatprep.mubr.bf16.mxu0 0
      %1338 = vmatmul.mubr.bf16.gmra.mrb[0].mxu0 %v1126
      %v1339 = vpop.f32.mrb[0].mxu0
      %v1340 = vadd.f32 0.0, %v1339
      %v1341 = vpop.f32.mrb[0].mxu0
      %v1342 = vpop.f32.mrb[0].mxu0
      %v1343 = vadd.f32 0.0, %v1342
      %v1344 = vpop.f32.mrb[0].mxu0
      %1345 = vmatprep.mubr.bf16.mxu0 0
      %1346 = vmatmul.mubr.bf16.gmra.mrb[0].mxu0 %v1127
      %v1347 = vpop.f32.mrb[0].mxu0
      %v1348 = vadd.f32 0.0, %v1347
      %v1349 = vpop.f32.mrb[0].mxu0
      %v1350 = vpop.f32.mrb[0].mxu0
      %v1351 = vadd.f32 0.0, %v1350
      %v1352 = vpop.f32.mrb[0].mxu0
      %1353 = vdwg.mxu0
      %v1354 = vadd.f32 %v1047, %v1228
      %v1355 = vadd.f32 %v1048, %v1231
      %v1356 = vadd.f32 %v1049, %v1236
      %v1357 = vadd.f32 %v1050, %v1239
      %v1358 = vadd.f32 %v1051, %v1244
      %v1359 = vadd.f32 %v1052, %v1247
      %v1360 = vadd.f32 %v1053, %v1252
      %v1361 = vadd.f32 %v1054, %v1255
      %v1362 = vadd.f32 %v1055, %v1260
      %v1363 = vadd.f32 %v1056, %v1263
      %v1364 = vadd.f32 %v1057, %v1268
      %v1365 = vadd.f32 %v1058, %v1271
      %v1366 = vadd.f32 %v1059, %v1276
      %v1367 = vadd.f32 %v1060, %v1279
      %v1368 = vadd.f32 %v1061, %v1284
      %v1369 = vadd.f32 %v1062, %v1287
      %v1370 = vadd.f32 %v1063, %v1292
      %v1371 = vadd.f32 %v1064, %v1295
      %v1372 = vadd.f32 %v1065, %v1300
      %v1373 = vadd.f32 %v1066, %v1303
      %v1374 = vadd.f32 %v1067, %v1308
      %v1375 = vadd.f32 %v1068, %v1311
      %v1376 = vadd.f32 %v1069, %v1316
      %v1377 = vadd.f32 %v1070, %v1319
      %v1378 = vadd.f32 %v1071, %v1324
      %v1379 = vadd.f32 %v1072, %v1327
      %v1380 = vadd.f32 %v1073, %v1332
      %v1381 = vadd.f32 %v1074, %v1335
      %v1382 = vadd.f32 %v1075, %v1340
      %v1383 = vadd.f32 %v1076, %v1343
      %v1384 = vadd.f32 %v1077, %v1348
      %v1385 = vadd.f32 %v1078, %v1351
      %v1386 = vld [vmem:[%s1079 + $0x1] sm:$0xff]
      %v1387 = vld [vmem:[%s1079 + $0x9] sm:$0xff]
      %v1388 = vld [vmem:[%s1079 + $0x19] sm:$0xff]
      %v1389 = vld [vmem:[%s1079 + $0x21] sm:$0xff]
      %v1390 = vld [vmem:[%s1079 + $0x31] sm:$0xff]
      %v1391 = vld [vmem:[%s1079 + $0x39] sm:$0xff]
      %v1392 = vld [vmem:[%s1079 + $0x49] sm:$0xff]
      %v1393 = vld [vmem:[%s1079 + $0x51] sm:$0xff]
      %v1394 = vld [vmem:[%s1079 + $0x61] sm:$0xff]
      %v1395 = vld [vmem:[%s1079 + $0x69] sm:$0xff]
      %v1396 = vld [vmem:[%s1079 + $0x79] sm:$0xff]
      %v1397 = vld [vmem:[%s1079 + $0x81] sm:$0xff]
      %v1398 = vld [vmem:[%s1079 + $0x91] sm:$0xff]
      %v1399 = vld [vmem:[%s1079 + $0x99] sm:$0xff]
      %v1400 = vld [vmem:[%s1079 + $0xa9] sm:$0xff]
      %v1401 = vld [vmem:[%s1079 + $0xb1] sm:$0xff]
      %v1402 = vld [vmem:[%s1079 + $0xc1] sm:$0xff]
      %v1403 = vld [vmem:[%s1079 + $0xc9] sm:$0xff]
      %v1404 = vld [vmem:[%s1079 + $0xd9] sm:$0xff]
      %v1405 = vld [vmem:[%s1079 + $0xe1] sm:$0xff]
      %v1406 = vld [vmem:[%s1079 + $0xf1] sm:$0xff]
      %v1407 = vld [vmem:[%s1079 + $0xf9] sm:$0xff]
      %v1408 = vld [vmem:[%s1079 + $0x109] sm:$0xff]
      %v1409 = vld [vmem:[%s1079 + $0x111] sm:$0xff]
      %v1410 = vld [vmem:[%s1079 + $0x121] sm:$0xff]
      %v1411 = vld [vmem:[%s1079 + $0x129] sm:$0xff]
      %v1412 = vld [vmem:[%s1079 + $0x139] sm:$0xff]
      %v1413 = vld [vmem:[%s1079 + $0x141] sm:$0xff]
      %v1414 = vld [vmem:[%s1079 + $0x151] sm:$0xff]
      %v1415 = vld [vmem:[%s1079 + $0x159] sm:$0xff]
      %v1416 = vld [vmem:[%s1079 + $0x169] sm:$0xff]
      %v1417 = vld [vmem:[%s1079 + $0x171] sm:$0xff]
      %v1418 = vpack.c.bf16 %v1387, %v1386
      %v1419 = vpack.c.bf16 %v1389, %v1388
      %v1420 = vpack.c.bf16 %v1391, %v1390
      %v1421 = vpack.c.bf16 %v1393, %v1392
      %v1422 = vpack.c.bf16 %v1395, %v1394
      %v1423 = vpack.c.bf16 %v1397, %v1396
      %v1424 = vpack.c.bf16 %v1399, %v1398
      %v1425 = vpack.c.bf16 %v1401, %v1400
      %v1426 = vpack.c.bf16 %v1403, %v1402
      %v1427 = vpack.c.bf16 %v1405, %v1404
      %v1428 = vpack.c.bf16 %v1407, %v1406
      %v1429 = vpack.c.bf16 %v1409, %v1408
      %v1430 = vpack.c.bf16 %v1411, %v1410
      %v1431 = vpack.c.bf16 %v1413, %v1412
      %v1432 = vpack.c.bf16 %v1415, %v1414
      %v1433 = vpack.c.bf16 %v1417, %v1416
      %s1434 = scalar_lea.vmem %s1, 256
      %v1435 = vld [vmem:[%s1434] sm:$0xf]
      %v1436 = vld [vmem:[%s1434 + $0x4] sm:$0xf]
      %v1437 = vld [vmem:[%s1434 + $0x8] sm:$0xf]
      %v1438 = vld [vmem:[%s1434 + $0xc] sm:$0xf]
      %v1439 = vld [vmem:[%s1434 + $0x10] sm:$0xf]
      %v1440 = vld [vmem:[%s1434 + $0x14] sm:$0xf]
      %v1441 = vld [vmem:[%s1434 + $0x18] sm:$0xf]
      %v1442 = vld [vmem:[%s1434 + $0x1c] sm:$0xf]
      %v1443 = vld [vmem:[%s1434 + $0x20] sm:$0xf]
      %v1444 = vld [vmem:[%s1434 + $0x24] sm:$0xf]
      %v1445 = vld [vmem:[%s1434 + $0x28] sm:$0xf]
      %v1446 = vld [vmem:[%s1434 + $0x2c] sm:$0xf]
      %v1447 = vld [vmem:[%s1434 + $0x30] sm:$0xf]
      %v1448 = vld [vmem:[%s1434 + $0x34] sm:$0xf]
      %v1449 = vld [vmem:[%s1434 + $0x38] sm:$0xf]
      %v1450 = vld [vmem:[%s1434 + $0x3c] sm:$0xf]
      %v1467 = vunpack.c.l.b16 %v1435
      %v1468 = vunpack.c.l.b16 %v1436
      %v1469 = vunpack.c.l.b16 %v1437
      %v1470 = vunpack.c.l.b16 %v1438
      %v1471 = vunpack.c.l.b16 %v1439
      %v1472 = vunpack.c.l.b16 %v1440
      %v1473 = vunpack.c.l.b16 %v1441
      %v1474 = vunpack.c.l.b16 %v1442
      %v1475 = vunpack.c.l.b16 %v1443
      %v1476 = vunpack.c.l.b16 %v1444
      %v1477 = vunpack.c.l.b16 %v1445
      %v1478 = vunpack.c.l.b16 %v1446
      %v1479 = vunpack.c.l.b16 %v1447
      %v1480 = vunpack.c.l.b16 %v1448
      %v1481 = vunpack.c.l.b16 %v1449
      %v1482 = vunpack.c.l.b16 %v1450
      %v1483 = vpack.c.b16 %v1468, %v1467
      %v1484 = vpack.c.b16 %v1470, %v1469
      %v1485 = vpack.c.b16 %v1472, %v1471
      %v1486 = vpack.c.b16 %v1474, %v1473
      %v1487 = vpack.c.b16 %v1476, %v1475
      %v1488 = vpack.c.b16 %v1478, %v1477
      %v1489 = vpack.c.b16 %v1480, %v1479
      %v1490 = vpack.c.b16 %v1482, %v1481
      %1499 = vmatprep.subr.bf16.mxu0 0
      %1500 = vmatpush1.bf16.msra.mxu0 %v1483
      %1501 = vmatprep.subr.bf16.mxu0 0
      %1502 = vmatpush1.bf16.msra.mxu0 %v1484
      %1503 = vmatprep.subr.bf16.mxu0 0
      %1504 = vmatpush1.bf16.msra.mxu0 %v1485
      %1505 = vmatprep.subr.bf16.mxu0 0
      %1506 = vmatpush1.bf16.msra.mxu0 %v1486
      %1507 = vmatprep.subr.bf16.mxu0 0
      %1508 = vmatpush1.bf16.msra.mxu0 %v1487
      %1509 = vmatprep.subr.bf16.mxu0 0
      %1510 = vmatpush1.bf16.msra.mxu0 %v1488
      %1511 = vmatprep.subr.bf16.mxu0 0
      %1512 = vmatpush1.bf16.msra.mxu0 %v1489
      %1513 = vmatprep.subr.bf16.mxu0 0
      %1514 = vmatpush1.bf16.msra.mxu0 %v1490
      %1515 = vmatprep.subr.bf16.mxu0 0
      %1516 = vmatpush1.bf16.msra.mxu0 0
      %1517 = vmatprep.subr.bf16.mxu0 0
      %1518 = vmatpush1.bf16.msra.mxu0 0
      %1519 = vmatprep.subr.bf16.mxu0 0
      %1520 = vmatpush1.bf16.msra.mxu0 0
      %1521 = vmatprep.subr.bf16.mxu0 0
      %1522 = vmatpush1.bf16.msra.mxu0 0
      %1523 = vmatprep.subr.bf16.mxu0 0
      %1524 = vmatpush1.bf16.msra.mxu0 0
      %1525 = vmatprep.subr.bf16.mxu0 0
      %1526 = vmatpush1.bf16.msra.mxu0 0
      %1527 = vmatprep.subr.bf16.mxu0 0
      %1528 = vmatpush1.bf16.msra.mxu0 0
      %1529 = vmatprep.subr.bf16.mxu0 0
      %1530 = vmatpush1.bf16.msra.mxu0 0
      %1531 = vmatprep.mubr.bf16.mxu0 0
      %1532 = vmatmul.mubr.bf16.gmra.mrb[0].mxu0 %v1418
      %v1533 = vpop.f32.mrb[0].mxu0
      %v1534 = vadd.f32 0.0, %v1533
      %v1535 = vpop.f32.mrb[0].mxu0
      %v1536 = vpop.f32.mrb[0].mxu0
      %v1537 = vadd.f32 0.0, %v1536
      %v1538 = vpop.f32.mrb[0].mxu0
      %1539 = vmatprep.mubr.bf16.mxu0 0
      %1540 = vmatmul.mubr.bf16.gmra.mrb[0].mxu0 %v1419
      %v1541 = vpop.f32.mrb[0].mxu0
      %v1542 = vadd.f32 0.0, %v1541
      %v1543 = vpop.f32.mrb[0].mxu0
      %v1544 = vpop.f32.mrb[0].mxu0
      %v1545 = vadd.f32 0.0, %v1544
      %v1546 = vpop.f32.mrb[0].mxu0
      %1547 = vmatprep.mubr.bf16.mxu0 0
      %1548 = vmatmul.mubr.bf16.gmra.mrb[0].mxu0 %v1420
      %v1549 = vpop.f32.mrb[0].mxu0
      %v1550 = vadd.f32 0.0, %v1549
      %v1551 = vpop.f32.mrb[0].mxu0
      %v1552 = vpop.f32.mrb[0].mxu0
      %v1553 = vadd.f32 0.0, %v1552
      %v1554 = vpop.f32.mrb[0].mxu0
      %1555 = vmatprep.mubr.bf16.mxu0 0
      %1556 = vmatmul.mubr.bf16.gmra.mrb[0].mxu0 %v1421
      %v1557 = vpop.f32.mrb[0].mxu0
      %v1558 = vadd.f32 0.0, %v1557
      %v1559 = vpop.f32.mrb[0].mxu0
      %v1560 = vpop.f32.mrb[0].mxu0
      %v1561 = vadd.f32 0.0, %v1560
      %v1562 = vpop.f32.mrb[0].mxu0
      %1563 = vmatprep.mubr.bf16.mxu0 0
      %1564 = vmatmul.mubr.bf16.gmra.mrb[0].mxu0 %v1422
      %v1565 = vpop.f32.mrb[0].mxu0
      %v1566 = vadd.f32 0.0, %v1565
      %v1567 = vpop.f32.mrb[0].mxu0
      %v1568 = vpop.f32.mrb[0].mxu0
      %v1569 = vadd.f32 0.0, %v1568
      %v1570 = vpop.f32.mrb[0].mxu0
      %1571 = vmatprep.mubr.bf16.mxu0 0
      %1572 = vmatmul.mubr.bf16.gmra.mrb[0].mxu0 %v1423
      %v1573 = vpop.f32.mrb[0].mxu0
      %v1574 = vadd.f32 0.0, %v1573
      %v1575 = vpop.f32.mrb[0].mxu0
      %v1576 = vpop.f32.mrb[0].mxu0
      %v1577 = vadd.f32 0.0, %v1576
      %v1578 = vpop.f32.mrb[0].mxu0
      %1579 = vmatprep.mubr.bf16.mxu0 0
      %1580 = vmatmul.mubr.bf16.gmra.mrb[0].mxu0 %v1424
      %v1581 = vpop.f32.mrb[0].mxu0
      %v1582 = vadd.f32 0.0, %v1581
      %v1583 = vpop.f32.mrb[0].mxu0
      %v1584 = vpop.f32.mrb[0].mxu0
      %v1585 = vadd.f32 0.0, %v1584
      %v1586 = vpop.f32.mrb[0].mxu0
      %1587 = vmatprep.mubr.bf16.mxu0 0
      %1588 = vmatmul.mubr.bf16.gmra.mrb[0].mxu0 %v1425
      %v1589 = vpop.f32.mrb[0].mxu0
      %v1590 = vadd.f32 0.0, %v1589
      %v1591 = vpop.f32.mrb[0].mxu0
      %v1592 = vpop.f32.mrb[0].mxu0
      %v1593 = vadd.f32 0.0, %v1592
      %v1594 = vpop.f32.mrb[0].mxu0
      %1595 = vmatprep.mubr.bf16.mxu0 0
      %1596 = vmatmul.mubr.bf16.gmra.mrb[0].mxu0 %v1426
      %v1597 = vpop.f32.mrb[0].mxu0
      %v1598 = vadd.f32 0.0, %v1597
      %v1599 = vpop.f32.mrb[0].mxu0
      %v1600 = vpop.f32.mrb[0].mxu0
      %v1601 = vadd.f32 0.0, %v1600
      %v1602 = vpop.f32.mrb[0].mxu0
      %1603 = vmatprep.mubr.bf16.mxu0 0
      %1604 = vmatmul.mubr.bf16.gmra.mrb[0].mxu0 %v1427
      %v1605 = vpop.f32.mrb[0].mxu0
      %v1606 = vadd.f32 0.0, %v1605
      %v1607 = vpop.f32.mrb[0].mxu0
      %v1608 = vpop.f32.mrb[0].mxu0
      %v1609 = vadd.f32 0.0, %v1608
      %v1610 = vpop.f32.mrb[0].mxu0
      %1611 = vmatprep.mubr.bf16.mxu0 0
      %1612 = vmatmul.mubr.bf16.gmra.mrb[0].mxu0 %v1428
      %v1613 = vpop.f32.mrb[0].mxu0
      %v1614 = vadd.f32 0.0, %v1613
      %v1615 = vpop.f32.mrb[0].mxu0
      %v1616 = vpop.f32.mrb[0].mxu0
      %v1617 = vadd.f32 0.0, %v1616
      %v1618 = vpop.f32.mrb[0].mxu0
      %1619 = vmatprep.mubr.bf16.mxu0 0
      %1620 = vmatmul.mubr.bf16.gmra.mrb[0].mxu0 %v1429
      %v1621 = vpop.f32.mrb[0].mxu0
      %v1622 = vadd.f32 0.0, %v1621
      %v1623 = vpop.f32.mrb[0].mxu0
      %v1624 = vpop.f32.mrb[0].mxu0
      %v1625 = vadd.f32 0.0, %v1624
      %v1626 = vpop.f32.mrb[0].mxu0
      %1627 = vmatprep.mubr.bf16.mxu0 0
      %1628 = vmatmul.mubr.bf16.gmra.mrb[0].mxu0 %v1430
      %v1629 = vpop.f32.mrb[0].mxu0
      %v1630 = vadd.f32 0.0, %v1629
      %v1631 = vpop.f32.mrb[0].mxu0
      %v1632 = vpop.f32.mrb[0].mxu0
      %v1633 = vadd.f32 0.0, %v1632
      %v1634 = vpop.f32.mrb[0].mxu0
      %1635 = vmatprep.mubr.bf16.mxu0 0
      %1636 = vmatmul.mubr.bf16.gmra.mrb[0].mxu0 %v1431
      %v1637 = vpop.f32.mrb[0].mxu0
      %v1638 = vadd.f32 0.0, %v1637
      %v1639 = vpop.f32.mrb[0].mxu0
      %v1640 = vpop.f32.mrb[0].mxu0
      %v1641 = vadd.f32 0.0, %v1640
      %v1642 = vpop.f32.mrb[0].mxu0
      %1643 = vmatprep.mubr.bf16.mxu0 0
      %1644 = vmatmul.mubr.bf16.gmra.mrb[0].mxu0 %v1432
      %v1645 = vpop.f32.mrb[0].mxu0
      %v1646 = vadd.f32 0.0, %v1645
      %v1647 = vpop.f32.mrb[0].mxu0
      %v1648 = vpop.f32.mrb[0].mxu0
      %v1649 = vadd.f32 0.0, %v1648
      %v1650 = vpop.f32.mrb[0].mxu0
      %1651 = vmatprep.mubr.bf16.mxu0 0
      %1652 = vmatmul.mubr.bf16.gmra.mrb[0].mxu0 %v1433
      %v1653 = vpop.f32.mrb[0].mxu0
      %v1654 = vadd.f32 0.0, %v1653
      %v1655 = vpop.f32.mrb[0].mxu0
      %v1656 = vpop.f32.mrb[0].mxu0
      %v1657 = vadd.f32 0.0, %v1656
      %v1658 = vpop.f32.mrb[0].mxu0
      %1659 = vdwg.mxu0
      %v1660 = vadd.f32 %v1354, %v1534
      %v1661 = vadd.f32 %v1355, %v1537
      %v1662 = vadd.f32 %v1356, %v1542
      %v1663 = vadd.f32 %v1357, %v1545
      %v1664 = vadd.f32 %v1358, %v1550
      %v1665 = vadd.f32 %v1359, %v1553
      %v1666 = vadd.f32 %v1360, %v1558
      %v1667 = vadd.f32 %v1361, %v1561
      %v1668 = vadd.f32 %v1362, %v1566
      %v1669 = vadd.f32 %v1363, %v1569
      %v1670 = vadd.f32 %v1364, %v1574
      %v1671 = vadd.f32 %v1365, %v1577
      %v1672 = vadd.f32 %v1366, %v1582
      %v1673 = vadd.f32 %v1367, %v1585
      %v1674 = vadd.f32 %v1368, %v1590
      %v1675 = vadd.f32 %v1369, %v1593
      %v1676 = vadd.f32 %v1370, %v1598
      %v1677 = vadd.f32 %v1371, %v1601
      %v1678 = vadd.f32 %v1372, %v1606
      %v1679 = vadd.f32 %v1373, %v1609
      %v1680 = vadd.f32 %v1374, %v1614
      %v1681 = vadd.f32 %v1375, %v1617
      %v1682 = vadd.f32 %v1376, %v1622
      %v1683 = vadd.f32 %v1377, %v1625
      %v1684 = vadd.f32 %v1378, %v1630
      %v1685 = vadd.f32 %v1379, %v1633
      %v1686 = vadd.f32 %v1380, %v1638
      %v1687 = vadd.f32 %v1381, %v1641
      %v1688 = vadd.f32 %v1382, %v1646
      %v1689 = vadd.f32 %v1383, %v1649
      %v1690 = vadd.f32 %v1384, %v1654
      %v1691 = vadd.f32 %v1385, %v1657
      %v1692 = vld [vmem:[%s1079 + $0x2] sm:$0xff]
      %v1693 = vld [vmem:[%s1079 + $0xa] sm:$0xff]
      %v1694 = vld [vmem:[%s1079 + $0x1a] sm:$0xff]
      %v1695 = vld [vmem:[%s1079 + $0x22] sm:$0xff]
      %v1696 = vld [vmem:[%s1079 + $0x32] sm:$0xff]
      %v1697 = vld [vmem:[%s1079 + $0x3a] sm:$0xff]
      %v1698 = vld [vmem:[%s1079 + $0x4a] sm:$0xff]
      %v1699 = vld [vmem:[%s1079 + $0x52] sm:$0xff]
      %v1700 = vld [vmem:[%s1079 + $0x62] sm:$0xff]
      %v1701 = vld [vmem:[%s1079 + $0x6a] sm:$0xff]
      %v1702 = vld [vmem:[%s1079 + $0x7a] sm:$0xff]
      %v1703 = vld [vmem:[%s1079 + $0x82] sm:$0xff]
      %v1704 = vld [vmem:[%s1079 + $0x92] sm:$0xff]
      %v1705 = vld [vmem:[%s1079 + $0x9a] sm:$0xff]
      %v1706 = vld [vmem:[%s1079 + $0xaa] sm:$0xff]
      %v1707 = vld [vmem:[%s1079 + $0xb2] sm:$0xff]
      %v1708 = vld [vmem:[%s1079 + $0xc2] sm:$0xff]
      %v1709 = vld [vmem:[%s1079 + $0xca] sm:$0xff]
      %v1710 = vld [vmem:[%s1079 + $0xda] sm:$0xff]
      %v1711 = vld [vmem:[%s1079 + $0xe2] sm:$0xff]
      %v1712 = vld [vmem:[%s1079 + $0xf2] sm:$0xff]
      %v1713 = vld [vmem:[%s1079 + $0xfa] sm:$0xff]
      %v1714 = vld [vmem:[%s1079 + $0x10a] sm:$0xff]
      %v1715 = vld [vmem:[%s1079 + $0x112] sm:$0xff]
      %v1716 = vld [vmem:[%s1079 + $0x122] sm:$0xff]
      %v1717 = vld [vmem:[%s1079 + $0x12a] sm:$0xff]
      %v1718 = vld [vmem:[%s1079 + $0x13a] sm:$0xff]
      %v1719 = vld [vmem:[%s1079 + $0x142] sm:$0xff]
      %v1720 = vld [vmem:[%s1079 + $0x152] sm:$0xff]
      %v1721 = vld [vmem:[%s1079 + $0x15a] sm:$0xff]
      %v1722 = vld [vmem:[%s1079 + $0x16a] sm:$0xff]
      %v1723 = vld [vmem:[%s1079 + $0x172] sm:$0xff]
      %v1724 = vpack.c.bf16 %v1693, %v1692
      %v1725 = vpack.c.bf16 %v1695, %v1694
      %v1726 = vpack.c.bf16 %v1697, %v1696
      %v1727 = vpack.c.bf16 %v1699, %v1698
      %v1728 = vpack.c.bf16 %v1701, %v1700
      %v1729 = vpack.c.bf16 %v1703, %v1702
      %v1730 = vpack.c.bf16 %v1705, %v1704
      %v1731 = vpack.c.bf16 %v1707, %v1706
      %v1732 = vpack.c.bf16 %v1709, %v1708
      %v1733 = vpack.c.bf16 %v1711, %v1710
      %v1734 = vpack.c.bf16 %v1713, %v1712
      %v1735 = vpack.c.bf16 %v1715, %v1714
      %v1736 = vpack.c.bf16 %v1717, %v1716
      %v1737 = vpack.c.bf16 %v1719, %v1718
      %v1738 = vpack.c.bf16 %v1721, %v1720
      %v1739 = vpack.c.bf16 %v1723, %v1722
      %s1740 = scalar_lea.vmem %s1, 320
      %v1741 = vld [vmem:[%s1740] sm:$0xf]
      %v1742 = vld [vmem:[%s1740 + $0x4] sm:$0xf]
      %v1743 = vld [vmem:[%s1740 + $0x8] sm:$0xf]
      %v1744 = vld [vmem:[%s1740 + $0xc] sm:$0xf]
      %v1745 = vld [vmem:[%s1740 + $0x10] sm:$0xf]
      %v1746 = vld [vmem:[%s1740 + $0x14] sm:$0xf]
      %v1747 = vld [vmem:[%s1740 + $0x18] sm:$0xf]
      %v1748 = vld [vmem:[%s1740 + $0x1c] sm:$0xf]
      %v1749 = vld [vmem:[%s1740 + $0x20] sm:$0xf]
      %v1750 = vld [vmem:[%s1740 + $0x24] sm:$0xf]
      %v1751 = vld [vmem:[%s1740 + $0x28] sm:$0xf]
      %v1752 = vld [vmem:[%s1740 + $0x2c] sm:$0xf]
      %v1753 = vld [vmem:[%s1740 + $0x30] sm:$0xf]
      %v1754 = vld [vmem:[%s1740 + $0x34] sm:$0xf]
      %v1755 = vld [vmem:[%s1740 + $0x38] sm:$0xf]
      %v1756 = vld [vmem:[%s1740 + $0x3c] sm:$0xf]
      %v1773 = vunpack.c.l.b16 %v1741
      %v1774 = vunpack.c.l.b16 %v1742
      %v1775 = vunpack.c.l.b16 %v1743
      %v1776 = vunpack.c.l.b16 %v1744
      %v1777 = vunpack.c.l.b16 %v1745
      %v1778 = vunpack.c.l.b16 %v1746
      %v1779 = vunpack.c.l.b16 %v1747
      %v1780 = vunpack.c.l.b16 %v1748
      %v1781 = vunpack.c.l.b16 %v1749
      %v1782 = vunpack.c.l.b16 %v1750
      %v1783 = vunpack.c.l.b16 %v1751
      %v1784 = vunpack.c.l.b16 %v1752
      %v1785 = vunpack.c.l.b16 %v1753
      %v1786 = vunpack.c.l.b16 %v1754
      %v1787 = vunpack.c.l.b16 %v1755
      %v1788 = vunpack.c.l.b16 %v1756
      %v1789 = vpack.c.b16 %v1774, %v1773
      %v1790 = vpack.c.b16 %v1776, %v1775
      %v1791 = vpack.c.b16 %v1778, %v1777
      %v1792 = vpack.c.b16 %v1780, %v1779
      %v1793 = vpack.c.b16 %v1782, %v1781
      %v1794 = vpack.c.b16 %v1784, %v1783
      %v1795 = vpack.c.b16 %v1786, %v1785
      %v1796 = vpack.c.b16 %v1788, %v1787
      %1805 = vmatprep.subr.bf16.mxu0 0
      %1806 = vmatpush1.bf16.msra.mxu0 %v1789
      %1807 = vmatprep.subr.bf16.mxu0 0
      %1808 = vmatpush1.bf16.msra.mxu0 %v1790
      %1809 = vmatprep.subr.bf16.mxu0 0
      %1810 = vmatpush1.bf16.msra.mxu0 %v1791
      %1811 = vmatprep.subr.bf16.mxu0 0
      %1812 = vmatpush1.bf16.msra.mxu0 %v1792
      %1813 = vmatprep.subr.bf16.mxu0 0
      %1814 = vmatpush1.bf16.msra.mxu0 %v1793
      %1815 = vmatprep.subr.bf16.mxu0 0
      %1816 = vmatpush1.bf16.msra.mxu0 %v1794
      %1817 = vmatprep.subr.bf16.mxu0 0
      %1818 = vmatpush1.bf16.msra.mxu0 %v1795
      %1819 = vmatprep.subr.bf16.mxu0 0
      %1820 = vmatpush1.bf16.msra.mxu0 %v1796
      %1821 = vmatprep.subr.bf16.mxu0 0
      %1822 = vmatpush1.bf16.msra.mxu0 0
      %1823 = vmatprep.subr.bf16.mxu0 0
      %1824 = vmatpush1.bf16.msra.mxu0 0
      %1825 = vmatprep.subr.bf16.mxu0 0
      %1826 = vmatpush1.bf16.msra.mxu0 0
      %1827 = vmatprep.subr.bf16.mxu0 0
      %1828 = vmatpush1.bf16.msra.mxu0 0
      %1829 = vmatprep.subr.bf16.mxu0 0
      %1830 = vmatpush1.bf16.msra.mxu0 0
      %1831 = vmatprep.subr.bf16.mxu0 0
      %1832 = vmatpush1.bf16.msra.mxu0 0
      %1833 = vmatprep.subr.bf16.mxu0 0
      %1834 = vmatpush1.bf16.msra.mxu0 0
      %1835 = vmatprep.subr.bf16.mxu0 0
      %1836 = vmatpush1.bf16.msra.mxu0 0
      %1837 = vmatprep.mubr.bf16.mxu0 0
      %1838 = vmatmul.mubr.bf16.gmra.mrb[0].mxu0 %v1724
      %v1839 = vpop.f32.mrb[0].mxu0
      %v1840 = vadd.f32 0.0, %v1839
      %v1841 = vpop.f32.mrb[0].mxu0
      %v1842 = vpop.f32.mrb[0].mxu0
      %v1843 = vadd.f32 0.0, %v1842
      %v1844 = vpop.f32.mrb[0].mxu0
      %1845 = vmatprep.mubr.bf16.mxu0 0
      %1846 = vmatmul.mubr.bf16.gmra.mrb[0].mxu0 %v1725
      %v1847 = vpop.f32.mrb[0].mxu0
      %v1848 = vadd.f32 0.0, %v1847
      %v1849 = vpop.f32.mrb[0].mxu0
      %v1850 = vpop.f32.mrb[0].mxu0
      %v1851 = vadd.f32 0.0, %v1850
      %v1852 = vpop.f32.mrb[0].mxu0
      %1853 = vmatprep.mubr.bf16.mxu0 0
      %1854 = vmatmul.mubr.bf16.gmra.mrb[0].mxu0 %v1726
      %v1855 = vpop.f32.mrb[0].mxu0
      %v1856 = vadd.f32 0.0, %v1855
      %v1857 = vpop.f32.mrb[0].mxu0
      %v1858 = vpop.f32.mrb[0].mxu0
      %v1859 = vadd.f32 0.0, %v1858
      %v1860 = vpop.f32.mrb[0].mxu0
      %1861 = vmatprep.mubr.bf16.mxu0 0
      %1862 = vmatmul.mubr.bf16.gmra.mrb[0].mxu0 %v1727
      %v1863 = vpop.f32.mrb[0].mxu0
      %v1864 = vadd.f32 0.0, %v1863
      %v1865 = vpop.f32.mrb[0].mxu0
      %v1866 = vpop.f32.mrb[0].mxu0
      %v1867 = vadd.f32 0.0, %v1866
      %v1868 = vpop.f32.mrb[0].mxu0
      %1869 = vmatprep.mubr.bf16.mxu0 0
      %1870 = vmatmul.mubr.bf16.gmra.mrb[0].mxu0 %v1728
      %v1871 = vpop.f32.mrb[0].mxu0
      %v1872 = vadd.f32 0.0, %v1871
      %v1873 = vpop.f32.mrb[0].mxu0
      %v1874 = vpop.f32.mrb[0].mxu0
      %v1875 = vadd.f32 0.0, %v1874
      %v1876 = vpop.f32.mrb[0].mxu0
      %1877 = vmatprep.mubr.bf16.mxu0 0
      %1878 = vmatmul.mubr.bf16.gmra.mrb[0].mxu0 %v1729
      %v1879 = vpop.f32.mrb[0].mxu0
      %v1880 = vadd.f32 0.0, %v1879
      %v1881 = vpop.f32.mrb[0].mxu0
      %v1882 = vpop.f32.mrb[0].mxu0
      %v1883 = vadd.f32 0.0, %v1882
      %v1884 = vpop.f32.mrb[0].mxu0
      %1885 = vmatprep.mubr.bf16.mxu0 0
      %1886 = vmatmul.mubr.bf16.gmra.mrb[0].mxu0 %v1730
      %v1887 = vpop.f32.mrb[0].mxu0
      %v1888 = vadd.f32 0.0, %v1887
      %v1889 = vpop.f32.mrb[0].mxu0
      %v1890 = vpop.f32.mrb[0].mxu0
      %v1891 = vadd.f32 0.0, %v1890
      %v1892 = vpop.f32.mrb[0].mxu0
      %1893 = vmatprep.mubr.bf16.mxu0 0
      %1894 = vmatmul.mubr.bf16.gmra.mrb[0].mxu0 %v1731
      %v1895 = vpop.f32.mrb[0].mxu0
      %v1896 = vadd.f32 0.0, %v1895
      %v1897 = vpop.f32.mrb[0].mxu0
      %v1898 = vpop.f32.mrb[0].mxu0
      %v1899 = vadd.f32 0.0, %v1898
      %v1900 = vpop.f32.mrb[0].mxu0
      %1901 = vmatprep.mubr.bf16.mxu0 0
      %1902 = vmatmul.mubr.bf16.gmra.mrb[0].mxu0 %v1732
      %v1903 = vpop.f32.mrb[0].mxu0
      %v1904 = vadd.f32 0.0, %v1903
      %v1905 = vpop.f32.mrb[0].mxu0
      %v1906 = vpop.f32.mrb[0].mxu0
      %v1907 = vadd.f32 0.0, %v1906
      %v1908 = vpop.f32.mrb[0].mxu0
      %1909 = vmatprep.mubr.bf16.mxu0 0
      %1910 = vmatmul.mubr.bf16.gmra.mrb[0].mxu0 %v1733
      %v1911 = vpop.f32.mrb[0].mxu0
      %v1912 = vadd.f32 0.0, %v1911
      %v1913 = vpop.f32.mrb[0].mxu0
      %v1914 = vpop.f32.mrb[0].mxu0
      %v1915 = vadd.f32 0.0, %v1914
      %v1916 = vpop.f32.mrb[0].mxu0
      %1917 = vmatprep.mubr.bf16.mxu0 0
      %1918 = vmatmul.mubr.bf16.gmra.mrb[0].mxu0 %v1734
      %v1919 = vpop.f32.mrb[0].mxu0
      %v1920 = vadd.f32 0.0, %v1919
      %v1921 = vpop.f32.mrb[0].mxu0
      %v1922 = vpop.f32.mrb[0].mxu0
      %v1923 = vadd.f32 0.0, %v1922
      %v1924 = vpop.f32.mrb[0].mxu0
      %1925 = vmatprep.mubr.bf16.mxu0 0
      %1926 = vmatmul.mubr.bf16.gmra.mrb[0].mxu0 %v1735
      %v1927 = vpop.f32.mrb[0].mxu0
      %v1928 = vadd.f32 0.0, %v1927
      %v1929 = vpop.f32.mrb[0].mxu0
      %v1930 = vpop.f32.mrb[0].mxu0
      %v1931 = vadd.f32 0.0, %v1930
      %v1932 = vpop.f32.mrb[0].mxu0
      %1933 = vmatprep.mubr.bf16.mxu0 0
      %1934 = vmatmul.mubr.bf16.gmra.mrb[0].mxu0 %v1736
      %v1935 = vpop.f32.mrb[0].mxu0
      %v1936 = vadd.f32 0.0, %v1935
      %v1937 = vpop.f32.mrb[0].mxu0
      %v1938 = vpop.f32.mrb[0].mxu0
      %v1939 = vadd.f32 0.0, %v1938
      %v1940 = vpop.f32.mrb[0].mxu0
      %1941 = vmatprep.mubr.bf16.mxu0 0
      %1942 = vmatmul.mubr.bf16.gmra.mrb[0].mxu0 %v1737
      %v1943 = vpop.f32.mrb[0].mxu0
      %v1944 = vadd.f32 0.0, %v1943
      %v1945 = vpop.f32.mrb[0].mxu0
      %v1946 = vpop.f32.mrb[0].mxu0
      %v1947 = vadd.f32 0.0, %v1946
      %v1948 = vpop.f32.mrb[0].mxu0
      %1949 = vmatprep.mubr.bf16.mxu0 0
      %1950 = vmatmul.mubr.bf16.gmra.mrb[0].mxu0 %v1738
      %v1951 = vpop.f32.mrb[0].mxu0
      %v1952 = vadd.f32 0.0, %v1951
      %v1953 = vpop.f32.mrb[0].mxu0
      %v1954 = vpop.f32.mrb[0].mxu0
      %v1955 = vadd.f32 0.0, %v1954
      %v1956 = vpop.f32.mrb[0].mxu0
      %1957 = vmatprep.mubr.bf16.mxu0 0
      %1958 = vmatmul.mubr.bf16.gmra.mrb[0].mxu0 %v1739
      %v1959 = vpop.f32.mrb[0].mxu0
      %v1960 = vadd.f32 0.0, %v1959
      %v1961 = vpop.f32.mrb[0].mxu0
      %v1962 = vpop.f32.mrb[0].mxu0
      %v1963 = vadd.f32 0.0, %v1962
      %v1964 = vpop.f32.mrb[0].mxu0
      %1965 = vdwg.mxu0
      %v1966 = vadd.f32 %v1660, %v1840
      %v1967 = vadd.f32 %v1661, %v1843
      %v1968 = vadd.f32 %v1662, %v1848
      %v1969 = vadd.f32 %v1663, %v1851
      %v1970 = vadd.f32 %v1664, %v1856
      %v1971 = vadd.f32 %v1665, %v1859
      %v1972 = vadd.f32 %v1666, %v1864
      %v1973 = vadd.f32 %v1667, %v1867
      %v1974 = vadd.f32 %v1668, %v1872
      %v1975 = vadd.f32 %v1669, %v1875
      %v1976 = vadd.f32 %v1670, %v1880
      %v1977 = vadd.f32 %v1671, %v1883
      %v1978 = vadd.f32 %v1672, %v1888
      %v1979 = vadd.f32 %v1673, %v1891
      %v1980 = vadd.f32 %v1674, %v1896
      %v1981 = vadd.f32 %v1675, %v1899
      %v1982 = vadd.f32 %v1676, %v1904
      %v1983 = vadd.f32 %v1677, %v1907
      %v1984 = vadd.f32 %v1678, %v1912
      %v1985 = vadd.f32 %v1679, %v1915
      %v1986 = vadd.f32 %v1680, %v1920
      %v1987 = vadd.f32 %v1681, %v1923
      %v1988 = vadd.f32 %v1682, %v1928
      %v1989 = vadd.f32 %v1683, %v1931
      %v1990 = vadd.f32 %v1684, %v1936
      %v1991 = vadd.f32 %v1685, %v1939
      %v1992 = vadd.f32 %v1686, %v1944
      %v1993 = vadd.f32 %v1687, %v1947
      %v1994 = vadd.f32 %v1688, %v1952
      %v1995 = vadd.f32 %v1689, %v1955
      %v1996 = vadd.f32 %v1690, %v1960
      %v1997 = vadd.f32 %v1691, %v1963
      %s1998 = scalar_lea.vmem %s219, 48
      %v1999 = vld [vmem:[%s1998] sm:$0xff]
      %v2000 = vld [vmem:[%s1998 + $0x8] sm:$0xff]
      %v2001 = vld [vmem:[%s1998 + $0x18] sm:$0xff]
      %v2002 = vld [vmem:[%s1998 + $0x20] sm:$0xff]
      %v2003 = vld [vmem:[%s1998 + $0x30] sm:$0xff]
      %v2004 = vld [vmem:[%s1998 + $0x38] sm:$0xff]
      %v2005 = vld [vmem:[%s1998 + $0x48] sm:$0xff]
      %v2006 = vld [vmem:[%s1998 + $0x50] sm:$0xff]
      %v2007 = vld [vmem:[%s1998 + $0x60] sm:$0xff]
      %v2008 = vld [vmem:[%s1998 + $0x68] sm:$0xff]
      %v2009 = vld [vmem:[%s1998 + $0x78] sm:$0xff]
      %v2010 = vld [vmem:[%s1998 + $0x80] sm:$0xff]
      %v2011 = vld [vmem:[%s1998 + $0x90] sm:$0xff]
      %v2012 = vld [vmem:[%s1998 + $0x98] sm:$0xff]
      %v2013 = vld [vmem:[%s1998 + $0xa8] sm:$0xff]
      %v2014 = vld [vmem:[%s1998 + $0xb0] sm:$0xff]
      %v2015 = vld [vmem:[%s1998 + $0xc0] sm:$0xff]
      %v2016 = vld [vmem:[%s1998 + $0xc8] sm:$0xff]
      %v2017 = vld [vmem:[%s1998 + $0xd8] sm:$0xff]
      %v2018 = vld [vmem:[%s1998 + $0xe0] sm:$0xff]
      %v2019 = vld [vmem:[%s1998 + $0xf0] sm:$0xff]
      %v2020 = vld [vmem:[%s1998 + $0xf8] sm:$0xff]
      %v2021 = vld [vmem:[%s1998 + $0x108] sm:$0xff]
      %v2022 = vld [vmem:[%s1998 + $0x110] sm:$0xff]
      %v2023 = vld [vmem:[%s1998 + $0x120] sm:$0xff]
      %v2024 = vld [vmem:[%s1998 + $0x128] sm:$0xff]
      %v2025 = vld [vmem:[%s1998 + $0x138] sm:$0xff]
      %v2026 = vld [vmem:[%s1998 + $0x140] sm:$0xff]
      %v2027 = vld [vmem:[%s1998 + $0x150] sm:$0xff]
      %v2028 = vld [vmem:[%s1998 + $0x158] sm:$0xff]
      %v2029 = vld [vmem:[%s1998 + $0x168] sm:$0xff]
      %v2030 = vld [vmem:[%s1998 + $0x170] sm:$0xff]
      %v2031 = vpack.c.bf16 %v2000, %v1999
      %v2032 = vpack.c.bf16 %v2002, %v2001
      %v2033 = vpack.c.bf16 %v2004, %v2003
      %v2034 = vpack.c.bf16 %v2006, %v2005
      %v2035 = vpack.c.bf16 %v2008, %v2007
      %v2036 = vpack.c.bf16 %v2010, %v2009
      %v2037 = vpack.c.bf16 %v2012, %v2011
      %v2038 = vpack.c.bf16 %v2014, %v2013
      %v2039 = vpack.c.bf16 %v2016, %v2015
      %v2040 = vpack.c.bf16 %v2018, %v2017
      %v2041 = vpack.c.bf16 %v2020, %v2019
      %v2042 = vpack.c.bf16 %v2022, %v2021
      %v2043 = vpack.c.bf16 %v2024, %v2023
      %v2044 = vpack.c.bf16 %v2026, %v2025
      %v2045 = vpack.c.bf16 %v2028, %v2027
      %v2046 = vpack.c.bf16 %v2030, %v2029
      %s2047 = scalar_lea.vmem %s1, 384
      %v2048 = vld [vmem:[%s2047] sm:$0xf]
      %v2049 = vld [vmem:[%s2047 + $0x4] sm:$0xf]
      %v2050 = vld [vmem:[%s2047 + $0x8] sm:$0xf]
      %v2051 = vld [vmem:[%s2047 + $0xc] sm:$0xf]
      %v2052 = vld [vmem:[%s2047 + $0x10] sm:$0xf]
      %v2053 = vld [vmem:[%s2047 + $0x14] sm:$0xf]
      %v2054 = vld [vmem:[%s2047 + $0x18] sm:$0xf]
      %v2055 = vld [vmem:[%s2047 + $0x1c] sm:$0xf]
      %v2056 = vld [vmem:[%s2047 + $0x20] sm:$0xf]
      %v2057 = vld [vmem:[%s2047 + $0x24] sm:$0xf]
      %v2058 = vld [vmem:[%s2047 + $0x28] sm:$0xf]
      %v2059 = vld [vmem:[%s2047 + $0x2c] sm:$0xf]
      %v2060 = vld [vmem:[%s2047 + $0x30] sm:$0xf]
      %v2061 = vld [vmem:[%s2047 + $0x34] sm:$0xf]
      %v2062 = vld [vmem:[%s2047 + $0x38] sm:$0xf]
      %v2063 = vld [vmem:[%s2047 + $0x3c] sm:$0xf]
      %v2080 = vunpack.c.l.b16 %v2048
      %v2081 = vunpack.c.l.b16 %v2049
      %v2082 = vunpack.c.l.b16 %v2050
      %v2083 = vunpack.c.l.b16 %v2051
      %v2084 = vunpack.c.l.b16 %v2052
      %v2085 = vunpack.c.l.b16 %v2053
      %v2086 = vunpack.c.l.b16 %v2054
      %v2087 = vunpack.c.l.b16 %v2055
      %v2088 = vunpack.c.l.b16 %v2056
      %v2089 = vunpack.c.l.b16 %v2057
      %v2090 = vunpack.c.l.b16 %v2058
      %v2091 = vunpack.c.l.b16 %v2059
      %v2092 = vunpack.c.l.b16 %v2060
      %v2093 = vunpack.c.l.b16 %v2061
      %v2094 = vunpack.c.l.b16 %v2062
      %v2095 = vunpack.c.l.b16 %v2063
      %v2096 = vpack.c.b16 %v2081, %v2080
      %v2097 = vpack.c.b16 %v2083, %v2082
      %v2098 = vpack.c.b16 %v2085, %v2084
      %v2099 = vpack.c.b16 %v2087, %v2086
      %v2100 = vpack.c.b16 %v2089, %v2088
      %v2101 = vpack.c.b16 %v2091, %v2090
      %v2102 = vpack.c.b16 %v2093, %v2092
      %v2103 = vpack.c.b16 %v2095, %v2094
      %2112 = vmatprep.subr.bf16.mxu0 0
      %2113 = vmatpush1.bf16.msra.mxu0 %v2096
      %2114 = vmatprep.subr.bf16.mxu0 0
      %2115 = vmatpush1.bf16.msra.mxu0 %v2097
      %2116 = vmatprep.subr.bf16.mxu0 0
      %2117 = vmatpush1.bf16.msra.mxu0 %v2098
      %2118 = vmatprep.subr.bf16.mxu0 0
      %2119 = vmatpush1.bf16.msra.mxu0 %v2099
      %2120 = vmatprep.subr.bf16.mxu0 0
      %2121 = vmatpush1.bf16.msra.mxu0 %v2100
      %2122 = vmatprep.subr.bf16.mxu0 0
      %2123 = vmatpush1.bf16.msra.mxu0 %v2101
      %2124 = vmatprep.subr.bf16.mxu0 0
      %2125 = vmatpush1.bf16.msra.mxu0 %v2102
      %2126 = vmatprep.subr.bf16.mxu0 0
      %2127 = vmatpush1.bf16.msra.mxu0 %v2103
      %2128 = vmatprep.subr.bf16.mxu0 0
      %2129 = vmatpush1.bf16.msra.mxu0 0
      %2130 = vmatprep.subr.bf16.mxu0 0
      %2131 = vmatpush1.bf16.msra.mxu0 0
      %2132 = vmatprep.subr.bf16.mxu0 0
      %2133 = vmatpush1.bf16.msra.mxu0 0
      %2134 = vmatprep.subr.bf16.mxu0 0
      %2135 = vmatpush1.bf16.msra.mxu0 0
      %2136 = vmatprep.subr.bf16.mxu0 0
      %2137 = vmatpush1.bf16.msra.mxu0 0
      %2138 = vmatprep.subr.bf16.mxu0 0
      %2139 = vmatpush1.bf16.msra.mxu0 0
      %2140 = vmatprep.subr.bf16.mxu0 0
      %2141 = vmatpush1.bf16.msra.mxu0 0
      %2142 = vmatprep.subr.bf16.mxu0 0
      %2143 = vmatpush1.bf16.msra.mxu0 0
      %2144 = vmatprep.mubr.bf16.mxu0 0
      %2145 = vmatmul.mubr.bf16.gmra.mrb[0].mxu0 %v2031
      %v2146 = vpop.f32.mrb[0].mxu0
      %v2147 = vadd.f32 0.0, %v2146
      %v2148 = vpop.f32.mrb[0].mxu0
      %v2149 = vpop.f32.mrb[0].mxu0
      %v2150 = vadd.f32 0.0, %v2149
      %v2151 = vpop.f32.mrb[0].mxu0
      %2152 = vmatprep.mubr.bf16.mxu0 0
      %2153 = vmatmul.mubr.bf16.gmra.mrb[0].mxu0 %v2032
      %v2154 = vpop.f32.mrb[0].mxu0
      %v2155 = vadd.f32 0.0, %v2154
      %v2156 = vpop.f32.mrb[0].mxu0
      %v2157 = vpop.f32.mrb[0].mxu0
      %v2158 = vadd.f32 0.0, %v2157
      %v2159 = vpop.f32.mrb[0].mxu0
      %2160 = vmatprep.mubr.bf16.mxu0 0
      %2161 = vmatmul.mubr.bf16.gmra.mrb[0].mxu0 %v2033
      %v2162 = vpop.f32.mrb[0].mxu0
      %v2163 = vadd.f32 0.0, %v2162
      %v2164 = vpop.f32.mrb[0].mxu0
      %v2165 = vpop.f32.mrb[0].mxu0
      %v2166 = vadd.f32 0.0, %v2165
      %v2167 = vpop.f32.mrb[0].mxu0
      %2168 = vmatprep.mubr.bf16.mxu0 0
      %2169 = vmatmul.mubr.bf16.gmra.mrb[0].mxu0 %v2034
      %v2170 = vpop.f32.mrb[0].mxu0
      %v2171 = vadd.f32 0.0, %v2170
      %v2172 = vpop.f32.mrb[0].mxu0
      %v2173 = vpop.f32.mrb[0].mxu0
      %v2174 = vadd.f32 0.0, %v2173
      %v2175 = vpop.f32.mrb[0].mxu0
      %2176 = vmatprep.mubr.bf16.mxu0 0
      %2177 = vmatmul.mubr.bf16.gmra.mrb[0].mxu0 %v2035
      %v2178 = vpop.f32.mrb[0].mxu0
      %v2179 = vadd.f32 0.0, %v2178
      %v2180 = vpop.f32.mrb[0].mxu0
      %v2181 = vpop.f32.mrb[0].mxu0
      %v2182 = vadd.f32 0.0, %v2181
      %v2183 = vpop.f32.mrb[0].mxu0
      %2184 = vmatprep.mubr.bf16.mxu0 0
      %2185 = vmatmul.mubr.bf16.gmra.mrb[0].mxu0 %v2036
      %v2186 = vpop.f32.mrb[0].mxu0
      %v2187 = vadd.f32 0.0, %v2186
      %v2188 = vpop.f32.mrb[0].mxu0
      %v2189 = vpop.f32.mrb[0].mxu0
      %v2190 = vadd.f32 0.0, %v2189
      %v2191 = vpop.f32.mrb[0].mxu0
      %2192 = vmatprep.mubr.bf16.mxu0 0
      %2193 = vmatmul.mubr.bf16.gmra.mrb[0].mxu0 %v2037
      %v2194 = vpop.f32.mrb[0].mxu0
      %v2195 = vadd.f32 0.0, %v2194
      %v2196 = vpop.f32.mrb[0].mxu0
      %v2197 = vpop.f32.mrb[0].mxu0
      %v2198 = vadd.f32 0.0, %v2197
      %v2199 = vpop.f32.mrb[0].mxu0
      %2200 = vmatprep.mubr.bf16.mxu0 0
      %2201 = vmatmul.mubr.bf16.gmra.mrb[0].mxu0 %v2038
      %v2202 = vpop.f32.mrb[0].mxu0
      %v2203 = vadd.f32 0.0, %v2202
      %v2204 = vpop.f32.mrb[0].mxu0
      %v2205 = vpop.f32.mrb[0].mxu0
      %v2206 = vadd.f32 0.0, %v2205
      %v2207 = vpop.f32.mrb[0].mxu0
      %2208 = vmatprep.mubr.bf16.mxu0 0
      %2209 = vmatmul.mubr.bf16.gmra.mrb[0].mxu0 %v2039
      %v2210 = vpop.f32.mrb[0].mxu0
      %v2211 = vadd.f32 0.0, %v2210
      %v2212 = vpop.f32.mrb[0].mxu0
      %v2213 = vpop.f32.mrb[0].mxu0
      %v2214 = vadd.f32 0.0, %v2213
      %v2215 = vpop.f32.mrb[0].mxu0
      %2216 = vmatprep.mubr.bf16.mxu0 0
      %2217 = vmatmul.mubr.bf16.gmra.mrb[0].mxu0 %v2040
      %v2218 = vpop.f32.mrb[0].mxu0
      %v2219 = vadd.f32 0.0, %v2218
      %v2220 = vpop.f32.mrb[0].mxu0
      %v2221 = vpop.f32.mrb[0].mxu0
      %v2222 = vadd.f32 0.0, %v2221
      %v2223 = vpop.f32.mrb[0].mxu0
      %2224 = vmatprep.mubr.bf16.mxu0 0
      %2225 = vmatmul.mubr.bf16.gmra.mrb[0].mxu0 %v2041
      %v2226 = vpop.f32.mrb[0].mxu0
      %v2227 = vadd.f32 0.0, %v2226
      %v2228 = vpop.f32.mrb[0].mxu0
      %v2229 = vpop.f32.mrb[0].mxu0
      %v2230 = vadd.f32 0.0, %v2229
      %v2231 = vpop.f32.mrb[0].mxu0
      %2232 = vmatprep.mubr.bf16.mxu0 0
      %2233 = vmatmul.mubr.bf16.gmra.mrb[0].mxu0 %v2042
      %v2234 = vpop.f32.mrb[0].mxu0
      %v2235 = vadd.f32 0.0, %v2234
      %v2236 = vpop.f32.mrb[0].mxu0
      %v2237 = vpop.f32.mrb[0].mxu0
      %v2238 = vadd.f32 0.0, %v2237
      %v2239 = vpop.f32.mrb[0].mxu0
      %2240 = vmatprep.mubr.bf16.mxu0 0
      %2241 = vmatmul.mubr.bf16.gmra.mrb[0].mxu0 %v2043
      %v2242 = vpop.f32.mrb[0].mxu0
      %v2243 = vadd.f32 0.0, %v2242
      %v2244 = vpop.f32.mrb[0].mxu0
      %v2245 = vpop.f32.mrb[0].mxu0
      %v2246 = vadd.f32 0.0, %v2245
      %v2247 = vpop.f32.mrb[0].mxu0
      %2248 = vmatprep.mubr.bf16.mxu0 0
      %2249 = vmatmul.mubr.bf16.gmra.mrb[0].mxu0 %v2044
      %v2250 = vpop.f32.mrb[0].mxu0
      %v2251 = vadd.f32 0.0, %v2250
      %v2252 = vpop.f32.mrb[0].mxu0
      %v2253 = vpop.f32.mrb[0].mxu0
      %v2254 = vadd.f32 0.0, %v2253
      %v2255 = vpop.f32.mrb[0].mxu0
      %2256 = vmatprep.mubr.bf16.mxu0 0
      %2257 = vmatmul.mubr.bf16.gmra.mrb[0].mxu0 %v2045
      %v2258 = vpop.f32.mrb[0].mxu0
      %v2259 = vadd.f32 0.0, %v2258
      %v2260 = vpop.f32.mrb[0].mxu0
      %v2261 = vpop.f32.mrb[0].mxu0
      %v2262 = vadd.f32 0.0, %v2261
      %v2263 = vpop.f32.mrb[0].mxu0
      %2264 = vmatprep.mubr.bf16.mxu0 0
      %2265 = vmatmul.mubr.bf16.gmra.mrb[0].mxu0 %v2046
      %v2266 = vpop.f32.mrb[0].mxu0
      %v2267 = vadd.f32 0.0, %v2266
      %v2268 = vpop.f32.mrb[0].mxu0
      %v2269 = vpop.f32.mrb[0].mxu0
      %v2270 = vadd.f32 0.0, %v2269
      %v2271 = vpop.f32.mrb[0].mxu0
      %2272 = vdwg.mxu0
      %v2273 = vadd.f32 %v1966, %v2147
      %v2274 = vadd.f32 %v1967, %v2150
      %v2275 = vadd.f32 %v1968, %v2155
      %v2276 = vadd.f32 %v1969, %v2158
      %v2277 = vadd.f32 %v1970, %v2163
      %v2278 = vadd.f32 %v1971, %v2166
      %v2279 = vadd.f32 %v1972, %v2171
      %v2280 = vadd.f32 %v1973, %v2174
      %v2281 = vadd.f32 %v1974, %v2179
      %v2282 = vadd.f32 %v1975, %v2182
      %v2283 = vadd.f32 %v1976, %v2187
      %v2284 = vadd.f32 %v1977, %v2190
      %v2285 = vadd.f32 %v1978, %v2195
      %v2286 = vadd.f32 %v1979, %v2198
      %v2287 = vadd.f32 %v1980, %v2203
      %v2288 = vadd.f32 %v1981, %v2206
      %v2289 = vadd.f32 %v1982, %v2211
      %v2290 = vadd.f32 %v1983, %v2214
      %v2291 = vadd.f32 %v1984, %v2219
      %v2292 = vadd.f32 %v1985, %v2222
      %v2293 = vadd.f32 %v1986, %v2227
      %v2294 = vadd.f32 %v1987, %v2230
      %v2295 = vadd.f32 %v1988, %v2235
      %v2296 = vadd.f32 %v1989, %v2238
      %v2297 = vadd.f32 %v1990, %v2243
      %v2298 = vadd.f32 %v1991, %v2246
      %v2299 = vadd.f32 %v1992, %v2251
      %v2300 = vadd.f32 %v1993, %v2254
      %v2301 = vadd.f32 %v1994, %v2259
      %v2302 = vadd.f32 %v1995, %v2262
      %v2303 = vadd.f32 %v1996, %v2267
      %v2304 = vadd.f32 %v1997, %v2270
      %v2305 = vld [vmem:[%s1998 + $0x1] sm:$0xff]
      %v2306 = vld [vmem:[%s1998 + $0x9] sm:$0xff]
      %v2307 = vld [vmem:[%s1998 + $0x19] sm:$0xff]
      %v2308 = vld [vmem:[%s1998 + $0x21] sm:$0xff]
      %v2309 = vld [vmem:[%s1998 + $0x31] sm:$0xff]
      %v2310 = vld [vmem:[%s1998 + $0x39] sm:$0xff]
      %v2311 = vld [vmem:[%s1998 + $0x49] sm:$0xff]
      %v2312 = vld [vmem:[%s1998 + $0x51] sm:$0xff]
      %v2313 = vld [vmem:[%s1998 + $0x61] sm:$0xff]
      %v2314 = vld [vmem:[%s1998 + $0x69] sm:$0xff]
      %v2315 = vld [vmem:[%s1998 + $0x79] sm:$0xff]
      %v2316 = vld [vmem:[%s1998 + $0x81] sm:$0xff]
      %v2317 = vld [vmem:[%s1998 + $0x91] sm:$0xff]
      %v2318 = vld [vmem:[%s1998 + $0x99] sm:$0xff]
      %v2319 = vld [vmem:[%s1998 + $0xa9] sm:$0xff]
      %v2320 = vld [vmem:[%s1998 + $0xb1] sm:$0xff]
      %v2321 = vld [vmem:[%s1998 + $0xc1] sm:$0xff]
      %v2322 = vld [vmem:[%s1998 + $0xc9] sm:$0xff]
      %v2323 = vld [vmem:[%s1998 + $0xd9] sm:$0xff]
      %v2324 = vld [vmem:[%s1998 + $0xe1] sm:$0xff]
      %v2325 = vld [vmem:[%s1998 + $0xf1] sm:$0xff]
      %v2326 = vld [vmem:[%s1998 + $0xf9] sm:$0xff]
      %v2327 = vld [vmem:[%s1998 + $0x109] sm:$0xff]
      %v2328 = vld [vmem:[%s1998 + $0x111] sm:$0xff]
      %v2329 = vld [vmem:[%s1998 + $0x121] sm:$0xff]
      %v2330 = vld [vmem:[%s1998 + $0x129] sm:$0xff]
      %v2331 = vld [vmem:[%s1998 + $0x139] sm:$0xff]
      %v2332 = vld [vmem:[%s1998 + $0x141] sm:$0xff]
      %v2333 = vld [vmem:[%s1998 + $0x151] sm:$0xff]
      %v2334 = vld [vmem:[%s1998 + $0x159] sm:$0xff]
      %v2335 = vld [vmem:[%s1998 + $0x169] sm:$0xff]
      %v2336 = vld [vmem:[%s1998 + $0x171] sm:$0xff]
      %v2337 = vpack.c.bf16 %v2306, %v2305
      %v2338 = vpack.c.bf16 %v2308, %v2307
      %v2339 = vpack.c.bf16 %v2310, %v2309
      %v2340 = vpack.c.bf16 %v2312, %v2311
      %v2341 = vpack.c.bf16 %v2314, %v2313
      %v2342 = vpack.c.bf16 %v2316, %v2315
      %v2343 = vpack.c.bf16 %v2318, %v2317
      %v2344 = vpack.c.bf16 %v2320, %v2319
      %v2345 = vpack.c.bf16 %v2322, %v2321
      %v2346 = vpack.c.bf16 %v2324, %v2323
      %v2347 = vpack.c.bf16 %v2326, %v2325
      %v2348 = vpack.c.bf16 %v2328, %v2327
      %v2349 = vpack.c.bf16 %v2330, %v2329
      %v2350 = vpack.c.bf16 %v2332, %v2331
      %v2351 = vpack.c.bf16 %v2334, %v2333
      %v2352 = vpack.c.bf16 %v2336, %v2335
      %s2353 = scalar_lea.vmem %s1, 448
      %v2354 = vld [vmem:[%s2353] sm:$0xf]
      %v2355 = vld [vmem:[%s2353 + $0x4] sm:$0xf]
      %v2356 = vld [vmem:[%s2353 + $0x8] sm:$0xf]
      %v2357 = vld [vmem:[%s2353 + $0xc] sm:$0xf]
      %v2358 = vld [vmem:[%s2353 + $0x10] sm:$0xf]
      %v2359 = vld [vmem:[%s2353 + $0x14] sm:$0xf]
      %v2360 = vld [vmem:[%s2353 + $0x18] sm:$0xf]
      %v2361 = vld [vmem:[%s2353 + $0x1c] sm:$0xf]
      %v2362 = vld [vmem:[%s2353 + $0x20] sm:$0xf]
      %v2363 = vld [vmem:[%s2353 + $0x24] sm:$0xf]
      %v2364 = vld [vmem:[%s2353 + $0x28] sm:$0xf]
      %v2365 = vld [vmem:[%s2353 + $0x2c] sm:$0xf]
      %v2366 = vld [vmem:[%s2353 + $0x30] sm:$0xf]
      %v2367 = vld [vmem:[%s2353 + $0x34] sm:$0xf]
      %v2368 = vld [vmem:[%s2353 + $0x38] sm:$0xf]
      %v2369 = vld [vmem:[%s2353 + $0x3c] sm:$0xf]
      %v2386 = vunpack.c.l.b16 %v2354
      %v2387 = vunpack.c.l.b16 %v2355
      %v2388 = vunpack.c.l.b16 %v2356
      %v2389 = vunpack.c.l.b16 %v2357
      %v2390 = vunpack.c.l.b16 %v2358
      %v2391 = vunpack.c.l.b16 %v2359
      %v2392 = vunpack.c.l.b16 %v2360
      %v2393 = vunpack.c.l.b16 %v2361
      %v2394 = vunpack.c.l.b16 %v2362
      %v2395 = vunpack.c.l.b16 %v2363
      %v2396 = vunpack.c.l.b16 %v2364
      %v2397 = vunpack.c.l.b16 %v2365
      %v2398 = vunpack.c.l.b16 %v2366
      %v2399 = vunpack.c.l.b16 %v2367
      %v2400 = vunpack.c.l.b16 %v2368
      %v2401 = vunpack.c.l.b16 %v2369
      %v2402 = vpack.c.b16 %v2387, %v2386
      %v2403 = vpack.c.b16 %v2389, %v2388
      %v2404 = vpack.c.b16 %v2391, %v2390
      %v2405 = vpack.c.b16 %v2393, %v2392
      %v2406 = vpack.c.b16 %v2395, %v2394
      %v2407 = vpack.c.b16 %v2397, %v2396
      %v2408 = vpack.c.b16 %v2399, %v2398
      %v2409 = vpack.c.b16 %v2401, %v2400
      %2418 = vmatprep.subr.bf16.mxu0 0
      %2419 = vmatpush1.bf16.msra.mxu0 %v2402
      %2420 = vmatprep.subr.bf16.mxu0 0
      %2421 = vmatpush1.bf16.msra.mxu0 %v2403
      %2422 = vmatprep.subr.bf16.mxu0 0
      %2423 = vmatpush1.bf16.msra.mxu0 %v2404
      %2424 = vmatprep.subr.bf16.mxu0 0
      %2425 = vmatpush1.bf16.msra.mxu0 %v2405
      %2426 = vmatprep.subr.bf16.mxu0 0
      %2427 = vmatpush1.bf16.msra.mxu0 %v2406
      %2428 = vmatprep.subr.bf16.mxu0 0
      %2429 = vmatpush1.bf16.msra.mxu0 %v2407
      %2430 = vmatprep.subr.bf16.mxu0 0
      %2431 = vmatpush1.bf16.msra.mxu0 %v2408
      %2432 = vmatprep.subr.bf16.mxu0 0
      %2433 = vmatpush1.bf16.msra.mxu0 %v2409
      %2434 = vmatprep.subr.bf16.mxu0 0
      %2435 = vmatpush1.bf16.msra.mxu0 0
      %2436 = vmatprep.subr.bf16.mxu0 0
      %2437 = vmatpush1.bf16.msra.mxu0 0
      %2438 = vmatprep.subr.bf16.mxu0 0
      %2439 = vmatpush1.bf16.msra.mxu0 0
      %2440 = vmatprep.subr.bf16.mxu0 0
      %2441 = vmatpush1.bf16.msra.mxu0 0
      %2442 = vmatprep.subr.bf16.mxu0 0
      %2443 = vmatpush1.bf16.msra.mxu0 0
      %2444 = vmatprep.subr.bf16.mxu0 0
      %2445 = vmatpush1.bf16.msra.mxu0 0
      %2446 = vmatprep.subr.bf16.mxu0 0
      %2447 = vmatpush1.bf16.msra.mxu0 0
      %2448 = vmatprep.subr.bf16.mxu0 0
      %2449 = vmatpush1.bf16.msra.mxu0 0
      %2450 = vmatprep.mubr.bf16.mxu0 0
      %2451 = vmatmul.mubr.bf16.gmra.mrb[0].mxu0 %v2337
      %v2452 = vpop.f32.mrb[0].mxu0
      %v2453 = vadd.f32 0.0, %v2452
      %v2454 = vpop.f32.mrb[0].mxu0
      %v2455 = vpop.f32.mrb[0].mxu0
      %v2456 = vadd.f32 0.0, %v2455
      %v2457 = vpop.f32.mrb[0].mxu0
      %2458 = vmatprep.mubr.bf16.mxu0 0
      %2459 = vmatmul.mubr.bf16.gmra.mrb[0].mxu0 %v2338
      %v2460 = vpop.f32.mrb[0].mxu0
      %v2461 = vadd.f32 0.0, %v2460
      %v2462 = vpop.f32.mrb[0].mxu0
      %v2463 = vpop.f32.mrb[0].mxu0
      %v2464 = vadd.f32 0.0, %v2463
      %v2465 = vpop.f32.mrb[0].mxu0
      %2466 = vmatprep.mubr.bf16.mxu0 0
      %2467 = vmatmul.mubr.bf16.gmra.mrb[0].mxu0 %v2339
      %v2468 = vpop.f32.mrb[0].mxu0
      %v2469 = vadd.f32 0.0, %v2468
      %v2470 = vpop.f32.mrb[0].mxu0
      %v2471 = vpop.f32.mrb[0].mxu0
      %v2472 = vadd.f32 0.0, %v2471
      %v2473 = vpop.f32.mrb[0].mxu0
      %2474 = vmatprep.mubr.bf16.mxu0 0
      %2475 = vmatmul.mubr.bf16.gmra.mrb[0].mxu0 %v2340
      %v2476 = vpop.f32.mrb[0].mxu0
      %v2477 = vadd.f32 0.0, %v2476
      %v2478 = vpop.f32.mrb[0].mxu0
      %v2479 = vpop.f32.mrb[0].mxu0
      %v2480 = vadd.f32 0.0, %v2479
      %v2481 = vpop.f32.mrb[0].mxu0
      %2482 = vmatprep.mubr.bf16.mxu0 0
      %2483 = vmatmul.mubr.bf16.gmra.mrb[0].mxu0 %v2341
      %v2484 = vpop.f32.mrb[0].mxu0
      %v2485 = vadd.f32 0.0, %v2484
      %v2486 = vpop.f32.mrb[0].mxu0
      %v2487 = vpop.f32.mrb[0].mxu0
      %v2488 = vadd.f32 0.0, %v2487
      %v2489 = vpop.f32.mrb[0].mxu0
      %2490 = vmatprep.mubr.bf16.mxu0 0
      %2491 = vmatmul.mubr.bf16.gmra.mrb[0].mxu0 %v2342
      %v2492 = vpop.f32.mrb[0].mxu0
      %v2493 = vadd.f32 0.0, %v2492
      %v2494 = vpop.f32.mrb[0].mxu0
      %v2495 = vpop.f32.mrb[0].mxu0
      %v2496 = vadd.f32 0.0, %v2495
      %v2497 = vpop.f32.mrb[0].mxu0
      %2498 = vmatprep.mubr.bf16.mxu0 0
      %2499 = vmatmul.mubr.bf16.gmra.mrb[0].mxu0 %v2343
      %v2500 = vpop.f32.mrb[0].mxu0
      %v2501 = vadd.f32 0.0, %v2500
      %v2502 = vpop.f32.mrb[0].mxu0
      %v2503 = vpop.f32.mrb[0].mxu0
      %v2504 = vadd.f32 0.0, %v2503
      %v2505 = vpop.f32.mrb[0].mxu0
      %2506 = vmatprep.mubr.bf16.mxu0 0
      %2507 = vmatmul.mubr.bf16.gmra.mrb[0].mxu0 %v2344
      %v2508 = vpop.f32.mrb[0].mxu0
      %v2509 = vadd.f32 0.0, %v2508
      %v2510 = vpop.f32.mrb[0].mxu0
      %v2511 = vpop.f32.mrb[0].mxu0
      %v2512 = vadd.f32 0.0, %v2511
      %v2513 = vpop.f32.mrb[0].mxu0
      %2514 = vmatprep.mubr.bf16.mxu0 0
      %2515 = vmatmul.mubr.bf16.gmra.mrb[0].mxu0 %v2345
      %v2516 = vpop.f32.mrb[0].mxu0
      %v2517 = vadd.f32 0.0, %v2516
      %v2518 = vpop.f32.mrb[0].mxu0
      %v2519 = vpop.f32.mrb[0].mxu0
      %v2520 = vadd.f32 0.0, %v2519
      %v2521 = vpop.f32.mrb[0].mxu0
      %2522 = vmatprep.mubr.bf16.mxu0 0
      %2523 = vmatmul.mubr.bf16.gmra.mrb[0].mxu0 %v2346
      %v2524 = vpop.f32.mrb[0].mxu0
      %v2525 = vadd.f32 0.0, %v2524
      %v2526 = vpop.f32.mrb[0].mxu0
      %v2527 = vpop.f32.mrb[0].mxu0
      %v2528 = vadd.f32 0.0, %v2527
      %v2529 = vpop.f32.mrb[0].mxu0
      %2530 = vmatprep.mubr.bf16.mxu0 0
      %2531 = vmatmul.mubr.bf16.gmra.mrb[0].mxu0 %v2347
      %v2532 = vpop.f32.mrb[0].mxu0
      %v2533 = vadd.f32 0.0, %v2532
      %v2534 = vpop.f32.mrb[0].mxu0
      %v2535 = vpop.f32.mrb[0].mxu0
      %v2536 = vadd.f32 0.0, %v2535
      %v2537 = vpop.f32.mrb[0].mxu0
      %2538 = vmatprep.mubr.bf16.mxu0 0
      %2539 = vmatmul.mubr.bf16.gmra.mrb[0].mxu0 %v2348
      %v2540 = vpop.f32.mrb[0].mxu0
      %v2541 = vadd.f32 0.0, %v2540
      %v2542 = vpop.f32.mrb[0].mxu0
      %v2543 = vpop.f32.mrb[0].mxu0
      %v2544 = vadd.f32 0.0, %v2543
      %v2545 = vpop.f32.mrb[0].mxu0
      %2546 = vmatprep.mubr.bf16.mxu0 0
      %2547 = vmatmul.mubr.bf16.gmra.mrb[0].mxu0 %v2349
      %v2548 = vpop.f32.mrb[0].mxu0
      %v2549 = vadd.f32 0.0, %v2548
      %v2550 = vpop.f32.mrb[0].mxu0
      %v2551 = vpop.f32.mrb[0].mxu0
      %v2552 = vadd.f32 0.0, %v2551
      %v2553 = vpop.f32.mrb[0].mxu0
      %2554 = vmatprep.mubr.bf16.mxu0 0
      %2555 = vmatmul.mubr.bf16.gmra.mrb[0].mxu0 %v2350
      %v2556 = vpop.f32.mrb[0].mxu0
      %v2557 = vadd.f32 0.0, %v2556
      %v2558 = vpop.f32.mrb[0].mxu0
      %v2559 = vpop.f32.mrb[0].mxu0
      %v2560 = vadd.f32 0.0, %v2559
      %v2561 = vpop.f32.mrb[0].mxu0
      %2562 = vmatprep.mubr.bf16.mxu0 0
      %2563 = vmatmul.mubr.bf16.gmra.mrb[0].mxu0 %v2351
      %v2564 = vpop.f32.mrb[0].mxu0
      %v2565 = vadd.f32 0.0, %v2564
      %v2566 = vpop.f32.mrb[0].mxu0
      %v2567 = vpop.f32.mrb[0].mxu0
      %v2568 = vadd.f32 0.0, %v2567
      %v2569 = vpop.f32.mrb[0].mxu0
      %2570 = vmatprep.mubr.bf16.mxu0 0
      %2571 = vmatmul.mubr.bf16.gmra.mrb[0].mxu0 %v2352
      %v2572 = vpop.f32.mrb[0].mxu0
      %v2573 = vadd.f32 0.0, %v2572
      %v2574 = vpop.f32.mrb[0].mxu0
      %v2575 = vpop.f32.mrb[0].mxu0
      %v2576 = vadd.f32 0.0, %v2575
      %v2577 = vpop.f32.mrb[0].mxu0
      %2578 = vdwg.mxu0
      %v2579 = vadd.f32 %v2273, %v2453
      %v2580 = vadd.f32 %v2274, %v2456
      %v2581 = vadd.f32 %v2275, %v2461
      %v2582 = vadd.f32 %v2276, %v2464
      %v2583 = vadd.f32 %v2277, %v2469
      %v2584 = vadd.f32 %v2278, %v2472
      %v2585 = vadd.f32 %v2279, %v2477
      %v2586 = vadd.f32 %v2280, %v2480
      %v2587 = vadd.f32 %v2281, %v2485
      %v2588 = vadd.f32 %v2282, %v2488
      %v2589 = vadd.f32 %v2283, %v2493
      %v2590 = vadd.f32 %v2284, %v2496
      %v2591 = vadd.f32 %v2285, %v2501
      %v2592 = vadd.f32 %v2286, %v2504
      %v2593 = vadd.f32 %v2287, %v2509
      %v2594 = vadd.f32 %v2288, %v2512
      %v2595 = vadd.f32 %v2289, %v2517
      %v2596 = vadd.f32 %v2290, %v2520
      %v2597 = vadd.f32 %v2291, %v2525
      %v2598 = vadd.f32 %v2292, %v2528
      %v2599 = vadd.f32 %v2293, %v2533
      %v2600 = vadd.f32 %v2294, %v2536
      %v2601 = vadd.f32 %v2295, %v2541
      %v2602 = vadd.f32 %v2296, %v2544
      %v2603 = vadd.f32 %v2297, %v2549
      %v2604 = vadd.f32 %v2298, %v2552
      %v2605 = vadd.f32 %v2299, %v2557
      %v2606 = vadd.f32 %v2300, %v2560
      %v2607 = vadd.f32 %v2301, %v2565
      %v2608 = vadd.f32 %v2302, %v2568
      %v2609 = vadd.f32 %v2303, %v2573
      %v2610 = vadd.f32 %v2304, %v2576
      %v2611 = vld [vmem:[%s1998 + $0x2] sm:$0xff]
      %v2612 = vld [vmem:[%s1998 + $0xa] sm:$0xff]
      %v2613 = vld [vmem:[%s1998 + $0x1a] sm:$0xff]
      %v2614 = vld [vmem:[%s1998 + $0x22] sm:$0xff]
      %v2615 = vld [vmem:[%s1998 + $0x32] sm:$0xff]
      %v2616 = vld [vmem:[%s1998 + $0x3a] sm:$0xff]
      %v2617 = vld [vmem:[%s1998 + $0x4a] sm:$0xff]
      %v2618 = vld [vmem:[%s1998 + $0x52] sm:$0xff]
      %v2619 = vld [vmem:[%s1998 + $0x62] sm:$0xff]
      %v2620 = vld [vmem:[%s1998 + $0x6a] sm:$0xff]
      %v2621 = vld [vmem:[%s1998 + $0x7a] sm:$0xff]
      %v2622 = vld [vmem:[%s1998 + $0x82] sm:$0xff]
      %v2623 = vld [vmem:[%s1998 + $0x92] sm:$0xff]
      %v2624 = vld [vmem:[%s1998 + $0x9a] sm:$0xff]
      %v2625 = vld [vmem:[%s1998 + $0xaa] sm:$0xff]
      %v2626 = vld [vmem:[%s1998 + $0xb2] sm:$0xff]
      %v2627 = vld [vmem:[%s1998 + $0xc2] sm:$0xff]
      %v2628 = vld [vmem:[%s1998 + $0xca] sm:$0xff]
      %v2629 = vld [vmem:[%s1998 + $0xda] sm:$0xff]
      %v2630 = vld [vmem:[%s1998 + $0xe2] sm:$0xff]
      %v2631 = vld [vmem:[%s1998 + $0xf2] sm:$0xff]
      %v2632 = vld [vmem:[%s1998 + $0xfa] sm:$0xff]
      %v2633 = vld [vmem:[%s1998 + $0x10a] sm:$0xff]
      %v2634 = vld [vmem:[%s1998 + $0x112] sm:$0xff]
      %v2635 = vld [vmem:[%s1998 + $0x122] sm:$0xff]
      %v2636 = vld [vmem:[%s1998 + $0x12a] sm:$0xff]
      %v2637 = vld [vmem:[%s1998 + $0x13a] sm:$0xff]
      %v2638 = vld [vmem:[%s1998 + $0x142] sm:$0xff]
      %v2639 = vld [vmem:[%s1998 + $0x152] sm:$0xff]
      %v2640 = vld [vmem:[%s1998 + $0x15a] sm:$0xff]
      %v2641 = vld [vmem:[%s1998 + $0x16a] sm:$0xff]
      %v2642 = vld [vmem:[%s1998 + $0x172] sm:$0xff]
      %v2643 = vpack.c.bf16 %v2612, %v2611
      %v2644 = vpack.c.bf16 %v2614, %v2613
      %v2645 = vpack.c.bf16 %v2616, %v2615
      %v2646 = vpack.c.bf16 %v2618, %v2617
      %v2647 = vpack.c.bf16 %v2620, %v2619
      %v2648 = vpack.c.bf16 %v2622, %v2621
      %v2649 = vpack.c.bf16 %v2624, %v2623
      %v2650 = vpack.c.bf16 %v2626, %v2625
      %v2651 = vpack.c.bf16 %v2628, %v2627
      %v2652 = vpack.c.bf16 %v2630, %v2629
      %v2653 = vpack.c.bf16 %v2632, %v2631
      %v2654 = vpack.c.bf16 %v2634, %v2633
      %v2655 = vpack.c.bf16 %v2636, %v2635
      %v2656 = vpack.c.bf16 %v2638, %v2637
      %v2657 = vpack.c.bf16 %v2640, %v2639
      %v2658 = vpack.c.bf16 %v2642, %v2641
      %s2659 = scalar_lea.vmem %s1, 512
      %v2660 = vld [vmem:[%s2659] sm:$0xf]
      %v2661 = vld [vmem:[%s2659 + $0x4] sm:$0xf]
      %v2662 = vld [vmem:[%s2659 + $0x8] sm:$0xf]
      %v2663 = vld [vmem:[%s2659 + $0xc] sm:$0xf]
      %v2664 = vld [vmem:[%s2659 + $0x10] sm:$0xf]
      %v2665 = vld [vmem:[%s2659 + $0x14] sm:$0xf]
      %v2666 = vld [vmem:[%s2659 + $0x18] sm:$0xf]
      %v2667 = vld [vmem:[%s2659 + $0x1c] sm:$0xf]
      %v2668 = vld [vmem:[%s2659 + $0x20] sm:$0xf]
      %v2669 = vld [vmem:[%s2659 + $0x24] sm:$0xf]
      %v2670 = vld [vmem:[%s2659 + $0x28] sm:$0xf]
      %v2671 = vld [vmem:[%s2659 + $0x2c] sm:$0xf]
      %v2672 = vld [vmem:[%s2659 + $0x30] sm:$0xf]
      %v2673 = vld [vmem:[%s2659 + $0x34] sm:$0xf]
      %v2674 = vld [vmem:[%s2659 + $0x38] sm:$0xf]
      %v2675 = vld [vmem:[%s2659 + $0x3c] sm:$0xf]
      %v2692 = vunpack.c.l.b16 %v2660
      %v2693 = vunpack.c.l.b16 %v2661
      %v2694 = vunpack.c.l.b16 %v2662
      %v2695 = vunpack.c.l.b16 %v2663
      %v2696 = vunpack.c.l.b16 %v2664
      %v2697 = vunpack.c.l.b16 %v2665
      %v2698 = vunpack.c.l.b16 %v2666
      %v2699 = vunpack.c.l.b16 %v2667
      %v2700 = vunpack.c.l.b16 %v2668
      %v2701 = vunpack.c.l.b16 %v2669
      %v2702 = vunpack.c.l.b16 %v2670
      %v2703 = vunpack.c.l.b16 %v2671
      %v2704 = vunpack.c.l.b16 %v2672
      %v2705 = vunpack.c.l.b16 %v2673
      %v2706 = vunpack.c.l.b16 %v2674
      %v2707 = vunpack.c.l.b16 %v2675
      %v2708 = vpack.c.b16 %v2693, %v2692
      %v2709 = vpack.c.b16 %v2695, %v2694
      %v2710 = vpack.c.b16 %v2697, %v2696
      %v2711 = vpack.c.b16 %v2699, %v2698
      %v2712 = vpack.c.b16 %v2701, %v2700
      %v2713 = vpack.c.b16 %v2703, %v2702
      %v2714 = vpack.c.b16 %v2705, %v2704
      %v2715 = vpack.c.b16 %v2707, %v2706
      %2724 = vmatprep.subr.bf16.mxu0 0
      %2725 = vmatpush1.bf16.msra.mxu0 %v2708
      %2726 = vmatprep.subr.bf16.mxu0 0
      %2727 = vmatpush1.bf16.msra.mxu0 %v2709
      %2728 = vmatprep.subr.bf16.mxu0 0
      %2729 = vmatpush1.bf16.msra.mxu0 %v2710
      %2730 = vmatprep.subr.bf16.mxu0 0
      %2731 = vmatpush1.bf16.msra.mxu0 %v2711
      %2732 = vmatprep.subr.bf16.mxu0 0
      %2733 = vmatpush1.bf16.msra.mxu0 %v2712
      %2734 = vmatprep.subr.bf16.mxu0 0
      %2735 = vmatpush1.bf16.msra.mxu0 %v2713
      %2736 = vmatprep.subr.bf16.mxu0 0
      %2737 = vmatpush1.bf16.msra.mxu0 %v2714
      %2738 = vmatprep.subr.bf16.mxu0 0
      %2739 = vmatpush1.bf16.msra.mxu0 %v2715
      %2740 = vmatprep.subr.bf16.mxu0 0
      %2741 = vmatpush1.bf16.msra.mxu0 0
      %2742 = vmatprep.subr.bf16.mxu0 0
      %2743 = vmatpush1.bf16.msra.mxu0 0
      %2744 = vmatprep.subr.bf16.mxu0 0
      %2745 = vmatpush1.bf16.msra.mxu0 0
      %2746 = vmatprep.subr.bf16.mxu0 0
      %2747 = vmatpush1.bf16.msra.mxu0 0
      %2748 = vmatprep.subr.bf16.mxu0 0
      %2749 = vmatpush1.bf16.msra.mxu0 0
      %2750 = vmatprep.subr.bf16.mxu0 0
      %2751 = vmatpush1.bf16.msra.mxu0 0
      %2752 = vmatprep.subr.bf16.mxu0 0
      %2753 = vmatpush1.bf16.msra.mxu0 0
      %2754 = vmatprep.subr.bf16.mxu0 0
      %2755 = vmatpush1.bf16.msra.mxu0 0
      %2756 = vmatprep.mubr.bf16.mxu0 0
      %2757 = vmatmul.mubr.bf16.gmra.mrb[0].mxu0 %v2643
      %v2758 = vpop.f32.mrb[0].mxu0
      %v2759 = vadd.f32 0.0, %v2758
      %v2760 = vpop.f32.mrb[0].mxu0
      %v2761 = vpop.f32.mrb[0].mxu0
      %v2762 = vadd.f32 0.0, %v2761
      %v2763 = vpop.f32.mrb[0].mxu0
      %2764 = vmatprep.mubr.bf16.mxu0 0
      %2765 = vmatmul.mubr.bf16.gmra.mrb[0].mxu0 %v2644
      %v2766 = vpop.f32.mrb[0].mxu0
      %v2767 = vadd.f32 0.0, %v2766
      %v2768 = vpop.f32.mrb[0].mxu0
      %v2769 = vpop.f32.mrb[0].mxu0
      %v2770 = vadd.f32 0.0, %v2769
      %v2771 = vpop.f32.mrb[0].mxu0
      %2772 = vmatprep.mubr.bf16.mxu0 0
      %2773 = vmatmul.mubr.bf16.gmra.mrb[0].mxu0 %v2645
      %v2774 = vpop.f32.mrb[0].mxu0
      %v2775 = vadd.f32 0.0, %v2774
      %v2776 = vpop.f32.mrb[0].mxu0
      %v2777 = vpop.f32.mrb[0].mxu0
      %v2778 = vadd.f32 0.0, %v2777
      %v2779 = vpop.f32.mrb[0].mxu0
      %2780 = vmatprep.mubr.bf16.mxu0 0
      %2781 = vmatmul.mubr.bf16.gmra.mrb[0].mxu0 %v2646
      %v2782 = vpop.f32.mrb[0].mxu0
      %v2783 = vadd.f32 0.0, %v2782
      %v2784 = vpop.f32.mrb[0].mxu0
      %v2785 = vpop.f32.mrb[0].mxu0
      %v2786 = vadd.f32 0.0, %v2785
      %v2787 = vpop.f32.mrb[0].mxu0
      %2788 = vmatprep.mubr.bf16.mxu0 0
      %2789 = vmatmul.mubr.bf16.gmra.mrb[0].mxu0 %v2647
      %v2790 = vpop.f32.mrb[0].mxu0
      %v2791 = vadd.f32 0.0, %v2790
      %v2792 = vpop.f32.mrb[0].mxu0
      %v2793 = vpop.f32.mrb[0].mxu0
      %v2794 = vadd.f32 0.0, %v2793
      %v2795 = vpop.f32.mrb[0].mxu0
      %2796 = vmatprep.mubr.bf16.mxu0 0
      %2797 = vmatmul.mubr.bf16.gmra.mrb[0].mxu0 %v2648
      %v2798 = vpop.f32.mrb[0].mxu0
      %v2799 = vadd.f32 0.0, %v2798
      %v2800 = vpop.f32.mrb[0].mxu0
      %v2801 = vpop.f32.mrb[0].mxu0
      %v2802 = vadd.f32 0.0, %v2801
      %v2803 = vpop.f32.mrb[0].mxu0
      %2804 = vmatprep.mubr.bf16.mxu0 0
      %2805 = vmatmul.mubr.bf16.gmra.mrb[0].mxu0 %v2649
      %v2806 = vpop.f32.mrb[0].mxu0
      %v2807 = vadd.f32 0.0, %v2806
      %v2808 = vpop.f32.mrb[0].mxu0
      %v2809 = vpop.f32.mrb[0].mxu0
      %v2810 = vadd.f32 0.0, %v2809
      %v2811 = vpop.f32.mrb[0].mxu0
      %2812 = vmatprep.mubr.bf16.mxu0 0
      %2813 = vmatmul.mubr.bf16.gmra.mrb[0].mxu0 %v2650
      %v2814 = vpop.f32.mrb[0].mxu0
      %v2815 = vadd.f32 0.0, %v2814
      %v2816 = vpop.f32.mrb[0].mxu0
      %v2817 = vpop.f32.mrb[0].mxu0
      %v2818 = vadd.f32 0.0, %v2817
      %v2819 = vpop.f32.mrb[0].mxu0
      %2820 = vmatprep.mubr.bf16.mxu0 0
      %2821 = vmatmul.mubr.bf16.gmra.mrb[0].mxu0 %v2651
      %v2822 = vpop.f32.mrb[0].mxu0
      %v2823 = vadd.f32 0.0, %v2822
      %v2824 = vpop.f32.mrb[0].mxu0
      %v2825 = vpop.f32.mrb[0].mxu0
      %v2826 = vadd.f32 0.0, %v2825
      %v2827 = vpop.f32.mrb[0].mxu0
      %2828 = vmatprep.mubr.bf16.mxu0 0
      %2829 = vmatmul.mubr.bf16.gmra.mrb[0].mxu0 %v2652
      %v2830 = vpop.f32.mrb[0].mxu0
      %v2831 = vadd.f32 0.0, %v2830
      %v2832 = vpop.f32.mrb[0].mxu0
      %v2833 = vpop.f32.mrb[0].mxu0
      %v2834 = vadd.f32 0.0, %v2833
      %v2835 = vpop.f32.mrb[0].mxu0
      %2836 = vmatprep.mubr.bf16.mxu0 0
      %2837 = vmatmul.mubr.bf16.gmra.mrb[0].mxu0 %v2653
      %v2838 = vpop.f32.mrb[0].mxu0
      %v2839 = vadd.f32 0.0, %v2838
      %v2840 = vpop.f32.mrb[0].mxu0
      %v2841 = vpop.f32.mrb[0].mxu0
      %v2842 = vadd.f32 0.0, %v2841
      %v2843 = vpop.f32.mrb[0].mxu0
      %2844 = vmatprep.mubr.bf16.mxu0 0
      %2845 = vmatmul.mubr.bf16.gmra.mrb[0].mxu0 %v2654
      %v2846 = vpop.f32.mrb[0].mxu0
      %v2847 = vadd.f32 0.0, %v2846
      %v2848 = vpop.f32.mrb[0].mxu0
      %v2849 = vpop.f32.mrb[0].mxu0
      %v2850 = vadd.f32 0.0, %v2849
      %v2851 = vpop.f32.mrb[0].mxu0
      %2852 = vmatprep.mubr.bf16.mxu0 0
      %2853 = vmatmul.mubr.bf16.gmra.mrb[0].mxu0 %v2655
      %v2854 = vpop.f32.mrb[0].mxu0
      %v2855 = vadd.f32 0.0, %v2854
      %v2856 = vpop.f32.mrb[0].mxu0
      %v2857 = vpop.f32.mrb[0].mxu0
      %v2858 = vadd.f32 0.0, %v2857
      %v2859 = vpop.f32.mrb[0].mxu0
      %2860 = vmatprep.mubr.bf16.mxu0 0
      %2861 = vmatmul.mubr.bf16.gmra.mrb[0].mxu0 %v2656
      %v2862 = vpop.f32.mrb[0].mxu0
      %v2863 = vadd.f32 0.0, %v2862
      %v2864 = vpop.f32.mrb[0].mxu0
      %v2865 = vpop.f32.mrb[0].mxu0
      %v2866 = vadd.f32 0.0, %v2865
      %v2867 = vpop.f32.mrb[0].mxu0
      %2868 = vmatprep.mubr.bf16.mxu0 0
      %2869 = vmatmul.mubr.bf16.gmra.mrb[0].mxu0 %v2657
      %v2870 = vpop.f32.mrb[0].mxu0
      %v2871 = vadd.f32 0.0, %v2870
      %v2872 = vpop.f32.mrb[0].mxu0
      %v2873 = vpop.f32.mrb[0].mxu0
      %v2874 = vadd.f32 0.0, %v2873
      %v2875 = vpop.f32.mrb[0].mxu0
      %2876 = vmatprep.mubr.bf16.mxu0 0
      %2877 = vmatmul.mubr.bf16.gmra.mrb[0].mxu0 %v2658
      %v2878 = vpop.f32.mrb[0].mxu0
      %v2879 = vadd.f32 0.0, %v2878
      %v2880 = vpop.f32.mrb[0].mxu0
      %v2881 = vpop.f32.mrb[0].mxu0
      %v2882 = vadd.f32 0.0, %v2881
      %v2883 = vpop.f32.mrb[0].mxu0
      %2884 = vdwg.mxu0
      %v2885 = vadd.f32 %v2579, %v2759
      %v2886 = vadd.f32 %v2580, %v2762
      %v2887 = vadd.f32 %v2581, %v2767
      %v2888 = vadd.f32 %v2582, %v2770
      %v2889 = vadd.f32 %v2583, %v2775
      %v2890 = vadd.f32 %v2584, %v2778
      %v2891 = vadd.f32 %v2585, %v2783
      %v2892 = vadd.f32 %v2586, %v2786
      %v2893 = vadd.f32 %v2587, %v2791
      %v2894 = vadd.f32 %v2588, %v2794
      %v2895 = vadd.f32 %v2589, %v2799
      %v2896 = vadd.f32 %v2590, %v2802
      %v2897 = vadd.f32 %v2591, %v2807
      %v2898 = vadd.f32 %v2592, %v2810
      %v2899 = vadd.f32 %v2593, %v2815
      %v2900 = vadd.f32 %v2594, %v2818
      %v2901 = vadd.f32 %v2595, %v2823
      %v2902 = vadd.f32 %v2596, %v2826
      %v2903 = vadd.f32 %v2597, %v2831
      %v2904 = vadd.f32 %v2598, %v2834
      %v2905 = vadd.f32 %v2599, %v2839
      %v2906 = vadd.f32 %v2600, %v2842
      %v2907 = vadd.f32 %v2601, %v2847
      %v2908 = vadd.f32 %v2602, %v2850
      %v2909 = vadd.f32 %v2603, %v2855
      %v2910 = vadd.f32 %v2604, %v2858
      %v2911 = vadd.f32 %v2605, %v2863
      %v2912 = vadd.f32 %v2606, %v2866
      %v2913 = vadd.f32 %v2607, %v2871
      %v2914 = vadd.f32 %v2608, %v2874
      %v2915 = vadd.f32 %v2609, %v2879
      %v2916 = vadd.f32 %v2610, %v2882
      %v2917 = vld [vmem:[%s2] sm:$0x1]
      %v2919 = vlaneseq
      %v2920 = vshrl.u32 %v2919, 7
      %v2921 = vsub.s32 0, %v2920
      %v2922 = vrot.slane %v2917, %v2921
      %v2924 = vadd.f32 %v2885, %v2922
      %v2925 = vadd.f32 %v2886, %v2922
      %v2926 = vadd.f32 %v2887, %v2922
      %v2927 = vadd.f32 %v2888, %v2922
      %v2928 = vadd.f32 %v2889, %v2922
      %v2929 = vadd.f32 %v2890, %v2922
      %v2930 = vadd.f32 %v2891, %v2922
      %v2931 = vadd.f32 %v2892, %v2922
      %v2932 = vadd.f32 %v2893, %v2922
      %v2933 = vadd.f32 %v2894, %v2922
      %v2934 = vadd.f32 %v2895, %v2922
      %v2935 = vadd.f32 %v2896, %v2922
      %v2936 = vadd.f32 %v2897, %v2922
      %v2937 = vadd.f32 %v2898, %v2922
      %v2938 = vadd.f32 %v2899, %v2922
      %v2939 = vadd.f32 %v2900, %v2922
      %v2940 = vadd.f32 %v2901, %v2922
      %v2941 = vadd.f32 %v2902, %v2922
      %v2942 = vadd.f32 %v2903, %v2922
      %v2943 = vadd.f32 %v2904, %v2922
      %v2944 = vadd.f32 %v2905, %v2922
      %v2945 = vadd.f32 %v2906, %v2922
      %v2946 = vadd.f32 %v2907, %v2922
      %v2947 = vadd.f32 %v2908, %v2922
      %v2948 = vadd.f32 %v2909, %v2922
      %v2949 = vadd.f32 %v2910, %v2922
      %v2950 = vadd.f32 %v2911, %v2922
      %v2951 = vadd.f32 %v2912, %v2922
      %v2952 = vadd.f32 %v2913, %v2922
      %v2953 = vadd.f32 %v2914, %v2922
      %v2954 = vadd.f32 %v2915, %v2922
      %v2955 = vadd.f32 %v2916, %v2922
      %v2956 = vmax.f32 %v2924, %v2926
      %v2957 = vmax.f32 %v2925, %v2927
      %v2958 = vmax.f32 %v2928, %v2930
      %v2959 = vmax.f32 %v2929, %v2931
      %v2960 = vmax.f32 %v2932, %v2934
      %v2961 = vmax.f32 %v2933, %v2935
      %v2962 = vmax.f32 %v2936, %v2938
      %v2963 = vmax.f32 %v2937, %v2939
      %v2964 = vmax.f32 %v2940, %v2942
      %v2965 = vmax.f32 %v2941, %v2943
      %v2966 = vmax.f32 %v2944, %v2946
      %v2967 = vmax.f32 %v2945, %v2947
      %v2968 = vmax.f32 %v2948, %v2950
      %v2969 = vmax.f32 %v2949, %v2951
      %v2970 = vmax.f32 %v2952, %v2954
      %v2971 = vmax.f32 %v2953, %v2955
      %2972 = vst [vmem:[#allocation2] sm:$0xff] %v2956
      %2973 = vst [vmem:[#allocation2 + $0x8] sm:$0xff] %v2957
      %2974 = vst [vmem:[#allocation2 + $0x10] sm:$0xff] %v2958
      %2975 = vst [vmem:[#allocation2 + $0x18] sm:$0xff] %v2959
      %2976 = vst [vmem:[#allocation2 + $0x20] sm:$0xff] %v2960
      %2977 = vst [vmem:[#allocation2 + $0x28] sm:$0xff] %v2961
      %2978 = vst [vmem:[#allocation2 + $0x30] sm:$0xff] %v2962
      %2979 = vst [vmem:[#allocation2 + $0x38] sm:$0xff] %v2963
      %2980 = vst [vmem:[#allocation2 + $0x40] sm:$0xff] %v2964
      %2981 = vst [vmem:[#allocation2 + $0x48] sm:$0xff] %v2965
      %2982 = vst [vmem:[#allocation2 + $0x50] sm:$0xff] %v2966
      %2983 = vst [vmem:[#allocation2 + $0x58] sm:$0xff] %v2967
      %2984 = vst [vmem:[#allocation2 + $0x60] sm:$0xff] %v2968
      %2985 = vst [vmem:[#allocation2 + $0x68] sm:$0xff] %v2969
      %2986 = vst [vmem:[#allocation2 + $0x70] sm:$0xff] %v2970
      %2987 = vst [vmem:[#allocation2 + $0x78] sm:$0xff] %v2971
      %v2988 = vld [vmem:[#allocation2] ss:$2 sm:$0xff]
      %s2989 = scalar_lea.vmem [#allocation2], 16
      %v2990 = vld [vmem:[%s2989] ss:$2 sm:$0xff]
      %s2991 = scalar_lea.vmem [#allocation2], 32
      %v2992 = vld [vmem:[%s2991] ss:$2 sm:$0xff]
      %s2993 = scalar_lea.vmem [#allocation2], 48
      %v2994 = vld [vmem:[%s2993] ss:$2 sm:$0xff]
      %s2995 = scalar_lea.vmem [#allocation2], 64
      %v2996 = vld [vmem:[%s2995] ss:$2 sm:$0xff]
      %s2997 = scalar_lea.vmem [#allocation2], 80
      %v2998 = vld [vmem:[%s2997] ss:$2 sm:$0xff]
      %s2999 = scalar_lea.vmem [#allocation2], 96
      %v3000 = vld [vmem:[%s2999] ss:$2 sm:$0xff]
      %s3001 = scalar_lea.vmem [#allocation2], 112
      %v3002 = vld [vmem:[%s3001] ss:$2 sm:$0xff]
      %s3003 = scalar_lea.vmem [#allocation2], 1
      %v3004 = vld [vmem:[%s3003] ss:$2 sm:$0xff]
      %s3005 = scalar_lea.vmem [#allocation2], 17
      %v3006 = vld [vmem:[%s3005] ss:$2 sm:$0xff]
      %s3007 = scalar_lea.vmem [#allocation2], 33
      %v3008 = vld [vmem:[%s3007] ss:$2 sm:$0xff]
      %s3009 = scalar_lea.vmem [#allocation2], 49
      %v3010 = vld [vmem:[%s3009] ss:$2 sm:$0xff]
      %s3011 = scalar_lea.vmem [#allocation2], 65
      %v3012 = vld [vmem:[%s3011] ss:$2 sm:$0xff]
      %s3013 = scalar_lea.vmem [#allocation2], 81
      %v3014 = vld [vmem:[%s3013] ss:$2 sm:$0xff]
      %s3015 = scalar_lea.vmem [#allocation2], 97
      %v3016 = vld [vmem:[%s3015] ss:$2 sm:$0xff]
      %s3017 = scalar_lea.vmem [#allocation2], 113
      %v3018 = vld [vmem:[%s3017] ss:$2 sm:$0xff]
      %v3019 = vmax.f32 %v2988, %v3004
      %v3020 = vmax.f32 %v2990, %v3006
      %v3021 = vmax.f32 %v2992, %v3008
      %v3022 = vmax.f32 %v2994, %v3010
      %v3023 = vmax.f32 %v2996, %v3012
      %v3024 = vmax.f32 %v2998, %v3014
      %v3025 = vmax.f32 %v3000, %v3016
      %v3026 = vmax.f32 %v3002, %v3018
      %v3027 = vadd.f32 %v3019, %v3020
      %v3028 = vadd.f32 %v3027, %v3021
      %v3029 = vadd.f32 %v3028, %v3022
      %v3030 = vadd.f32 %v3029, %v3023
      %v3031 = vadd.f32 %v3030, %v3024
      %v3032 = vadd.f32 %v3031, %v3025
      %v3033 = vadd.f32 %v3032, %v3026
      %v3034 = vrot.slane %v3033, 4
      %v3035 = vadd.f32 %v3033, %v3034
      %v3036 = vrot.slane %v3035, 2
      %v3037 = vadd.f32 %v3035, %v3036
      %v3038 = vrot.slane %v3037, 1
      %v3039 = vadd.f32 %v3037, %v3038
      %v3040 = vrcp.pop 64.0
      %v3041 = vmul.f32 %v3039, %v3040
      %v3042 = vld [vmem:[%s3] sm:$0xff]
      %v3043 = vld [vmem:[%s3 + $0x8] sm:$0xff]
      %v3044 = vld [vmem:[%s3 + $0x10] sm:$0xff]
      %v3045 = vld [vmem:[%s3 + $0x18] sm:$0xff]
      %v3046 = vld [vmem:[%s3 + $0x20] sm:$0xff]
      %v3047 = vld [vmem:[%s3 + $0x28] sm:$0xff]
      %v3048 = vld [vmem:[%s3 + $0x30] sm:$0xff]
      %v3049 = vld [vmem:[%s3 + $0x38] sm:$0xff]
      %v3050 = vld [vmem:[%s3 + $0x40] sm:$0xff]
      %v3051 = vld [vmem:[%s3 + $0x48] sm:$0xff]
      %v3052 = vld [vmem:[%s3 + $0x50] sm:$0xff]
      %v3053 = vld [vmem:[%s3 + $0x58] sm:$0xff]
      %v3054 = vld [vmem:[%s3 + $0x60] sm:$0xff]
      %v3055 = vld [vmem:[%s3 + $0x68] sm:$0xff]
      %v3056 = vld [vmem:[%s3 + $0x70] sm:$0xff]
      %v3057 = vld [vmem:[%s3 + $0x78] sm:$0xff]
      %3058 = vmatprep.subr.mxu0 0.0
      %3059 = vmatpush1.msra.mxu0 %v3042
      %3060 = vmatprep.subr.mxu0 0.0
      %3061 = vmatpush1.msra.mxu0 %v3043
      %3062 = vmatprep.subr.mxu0 0.0
      %3063 = vmatpush1.msra.mxu0 %v3044
      %3064 = vmatprep.subr.mxu0 0.0
      %3065 = vmatpush1.msra.mxu0 %v3045
      %3066 = vmatprep.subr.mxu0 0.0
      %3067 = vmatpush1.msra.mxu0 %v3046
      %3068 = vmatprep.subr.mxu0 0.0
      %3069 = vmatpush1.msra.mxu0 %v3047
      %3070 = vmatprep.subr.mxu0 0.0
      %3071 = vmatpush1.msra.mxu0 %v3048
      %3072 = vmatprep.subr.mxu0 0.0
      %3073 = vmatpush1.msra.mxu0 %v3049
      %3074 = vmatprep.subr.mxu0 0.0
      %3075 = vmatpush1.msra.mxu0 %v3050
      %3076 = vmatprep.subr.mxu0 0.0
      %3077 = vmatpush1.msra.mxu0 %v3051
      %3078 = vmatprep.subr.mxu0 0.0
      %3079 = vmatpush1.msra.mxu0 %v3052
      %3080 = vmatprep.subr.mxu0 0.0
      %3081 = vmatpush1.msra.mxu0 %v3053
      %3082 = vmatprep.subr.mxu0 0.0
      %3083 = vmatpush1.msra.mxu0 %v3054
      %3084 = vmatprep.subr.mxu0 0.0
      %3085 = vmatpush1.msra.mxu0 %v3055
      %3086 = vmatprep.subr.mxu0 0.0
      %3087 = vmatpush1.msra.mxu0 %v3056
      %3088 = vmatprep.subr.mxu0 0.0
      %3089 = vmatpush1.msra.mxu0 %v3057
      %3090 = vmatprep.subr.mxu0 0.0
      %3091 = vmatpush1.msra.mxu0 0.0
      %3092 = vmatprep.subr.mxu0 0.0
      %3093 = vmatpush1.msra.mxu0 0.0
      %3094 = vmatprep.subr.mxu0 0.0
      %3095 = vmatpush1.msra.mxu0 0.0
      %3096 = vmatprep.subr.mxu0 0.0
      %3097 = vmatpush1.msra.mxu0 0.0
      %3098 = vmatprep.subr.mxu0 0.0
      %3099 = vmatpush1.msra.mxu0 0.0
      %3100 = vmatprep.subr.mxu0 0.0
      %3101 = vmatpush1.msra.mxu0 0.0
      %3102 = vmatprep.subr.mxu0 0.0
      %3103 = vmatpush1.msra.mxu0 0.0
      %3104 = vmatprep.subr.mxu0 0.0
      %3105 = vmatpush1.msra.mxu0 0.0
      %3106 = vmatprep.subr.mxu0 0.0
      %3107 = vmatpush1.msra.mxu0 0.0
      %3108 = vmatprep.subr.mxu0 0.0
      %3109 = vmatpush1.msra.mxu0 0.0
      %3110 = vmatprep.subr.mxu0 0.0
      %3111 = vmatpush1.msra.mxu0 0.0
      %3112 = vmatprep.subr.mxu0 0.0
      %3113 = vmatpush1.msra.mxu0 0.0
      %3114 = vmatprep.subr.mxu0 0.0
      %3115 = vmatpush1.msra.mxu0 0.0
      %3116 = vmatprep.subr.mxu0 0.0
      %3117 = vmatpush1.msra.mxu0 0.0
      %3118 = vmatprep.subr.mxu0 0.0
      %3119 = vmatpush1.msra.mxu0 0.0
      %3120 = vmatprep.subr.mxu0 0.0
      %3121 = vmatpush1.msra.mxu0 0.0
      %3122 = vmatprep.mubr.f32.mxu0 0.0
      %3123 = vmatmul.mubr.f32.gmra.mrb[0].mxu0 %v3041
      %v3124 = vpop.f32.mrb[0].mxu0
      %v3125 = vadd.f32 0.0, %v3124
      %v3126 = vpop.f32.mrb[0].mxu0
      %3127 = vdwg.mxu0
      %v3128 = vmax.f32 %v3125, 0.0
      %v3129 = vld [vmem:[%s4] sm:$0xff]
      %v3130 = vld [vmem:[%s4 + $0x8] sm:$0xff]
      %v3131 = vld [vmem:[%s4 + $0x10] sm:$0xff]
      %v3132 = vld [vmem:[%s4 + $0x18] sm:$0xff]
      %v3133 = vld [vmem:[%s4 + $0x20] sm:$0xff]
      %v3134 = vld [vmem:[%s4 + $0x28] sm:$0xff]
      %v3135 = vld [vmem:[%s4 + $0x30] sm:$0xff]
      %v3136 = vld [vmem:[%s4 + $0x38] sm:$0xff]
      %v3137 = vld [vmem:[%s4 + $0x40] sm:$0xff]
      %v3138 = vld [vmem:[%s4 + $0x48] sm:$0xff]
      %v3139 = vld [vmem:[%s4 + $0x50] sm:$0xff]
      %v3140 = vld [vmem:[%s4 + $0x58] sm:$0xff]
      %v3141 = vld [vmem:[%s4 + $0x60] sm:$0xff]
      %v3142 = vld [vmem:[%s4 + $0x68] sm:$0xff]
      %v3143 = vld [vmem:[%s4 + $0x70] sm:$0xff]
      %v3144 = vld [vmem:[%s4 + $0x78] sm:$0xff]
      %3145 = vmatprep.subr.mxu0 0.0
      %3146 = vmatpush1.msra.mxu0 %v3129
      %3147 = vmatprep.subr.mxu0 0.0
      %3148 = vmatpush1.msra.mxu0 %v3130
      %3149 = vmatprep.subr.mxu0 0.0
      %3150 = vmatpush1.msra.mxu0 %v3131
      %3151 = vmatprep.subr.mxu0 0.0
      %3152 = vmatpush1.msra.mxu0 %v3132
      %3153 = vmatprep.subr.mxu0 0.0
      %3154 = vmatpush1.msra.mxu0 %v3133
      %3155 = vmatprep.subr.mxu0 0.0
      %3156 = vmatpush1.msra.mxu0 %v3134
      %3157 = vmatprep.subr.mxu0 0.0
      %3158 = vmatpush1.msra.mxu0 %v3135
      %3159 = vmatprep.subr.mxu0 0.0
      %3160 = vmatpush1.msra.mxu0 %v3136
      %3161 = vmatprep.subr.mxu0 0.0
      %3162 = vmatpush1.msra.mxu0 %v3137
      %3163 = vmatprep.subr.mxu0 0.0
      %3164 = vmatpush1.msra.mxu0 %v3138
      %3165 = vmatprep.subr.mxu0 0.0
      %3166 = vmatpush1.msra.mxu0 %v3139
      %3167 = vmatprep.subr.mxu0 0.0
      %3168 = vmatpush1.msra.mxu0 %v3140
      %3169 = vmatprep.subr.mxu0 0.0
      %3170 = vmatpush1.msra.mxu0 %v3141
      %3171 = vmatprep.subr.mxu0 0.0
      %3172 = vmatpush1.msra.mxu0 %v3142
      %3173 = vmatprep.subr.mxu0 0.0
      %3174 = vmatpush1.msra.mxu0 %v3143
      %3175 = vmatprep.subr.mxu0 0.0
      %3176 = vmatpush1.msra.mxu0 %v3144
      %3177 = vmatprep.subr.mxu0 0.0
      %3178 = vmatpush1.msra.mxu0 0.0
      %3179 = vmatprep.subr.mxu0 0.0
      %3180 = vmatpush1.msra.mxu0 0.0
      %3181 = vmatprep.subr.mxu0 0.0
      %3182 = vmatpush1.msra.mxu0 0.0
      %3183 = vmatprep.subr.mxu0 0.0
      %3184 = vmatpush1.msra.mxu0 0.0
      %3185 = vmatprep.subr.mxu0 0.0
      %3186 = vmatpush1.msra.mxu0 0.0
      %3187 = vmatprep.subr.mxu0 0.0
      %3188 = vmatpush1.msra.mxu0 0.0
      %3189 = vmatprep.subr.mxu0 0.0
      %3190 = vmatpush1.msra.mxu0 0.0
      %3191 = vmatprep.subr.mxu0 0.0
      %3192 = vmatpush1.msra.mxu0 0.0
      %3193 = vmatprep.subr.mxu0 0.0
      %3194 = vmatpush1.msra.mxu0 0.0
      %3195 = vmatprep.subr.mxu0 0.0
      %3196 = vmatpush1.msra.mxu0 0.0
      %3197 = vmatprep.subr.mxu0 0.0
      %3198 = vmatpush1.msra.mxu0 0.0
      %3199 = vmatprep.subr.mxu0 0.0
      %3200 = vmatpush1.msra.mxu0 0.0
      %3201 = vmatprep.subr.mxu0 0.0
      %3202 = vmatpush1.msra.mxu0 0.0
      %3203 = vmatprep.subr.mxu0 0.0
      %3204 = vmatpush1.msra.mxu0 0.0
      %3205 = vmatprep.subr.mxu0 0.0
      %3206 = vmatpush1.msra.mxu0 0.0
      %3207 = vmatprep.subr.mxu0 0.0
      %3208 = vmatpush1.msra.mxu0 0.0
      %3209 = vmatprep.mubr.f32.mxu0 0.0
      %3210 = vmatmul.mubr.f32.gmra.mrb[0].mxu0 %v3128
      %v3211 = vpop.f32.mrb[0].mxu0
      %v3212 = vadd.f32 0.0, %v3211
      %v3213 = vpop.f32.mrb[0].mxu0
      %3214 = vdwg.mxu0
      %v3215 = vxor.u32 %v3212, 2147483648
      %v3216 = vmul.f32 %v3215, 1.442695
      %v3217 = vpow.pop %v3216
      %v3218 = vadd.f32 %v3217, 1.0
      %v3219 = vrcp.pop %v3218
      %v3220 = vmul.f32 1.0, %v3219
      %v3221 = vlaneseq
      %v3222 = vshrl.u32 %v3221, 7
      %v3223 = vsub.s32 0, %v3222
      %v3224 = vrot.slane %v3220, %v3223
      %v3225 = vmul.f32 %v3019, %v3224
      %v3226 = vmul.f32 %v3020, %v3224
      %v3227 = vmul.f32 %v3021, %v3224
      %v3228 = vmul.f32 %v3022, %v3224
      %v3229 = vmul.f32 %v3023, %v3224
      %v3230 = vmul.f32 %v3024, %v3224
      %v3231 = vmul.f32 %v3025, %v3224
      %v3232 = vmul.f32 %v3026, %v3224
      %v3233 = vmax.f32 %v3225, 0.0
      %v3234 = vmax.f32 %v3226, 0.0
      %v3235 = vmax.f32 %v3227, 0.0
      %v3236 = vmax.f32 %v3228, 0.0
      %v3237 = vmax.f32 %v3229, 0.0
      %v3238 = vmax.f32 %v3230, 0.0
      %v3239 = vmax.f32 %v3231, 0.0
      %v3240 = vmax.f32 %v3232, 0.0
      %3241 = vst [vmem:[%s224] sm:$0xff] %v3233
      %3242 = vst [vmem:[%s224 + $0x8] sm:$0xff] %v3234
      %3243 = vst [vmem:[%s224 + $0x10] sm:$0xff] %v3235
      %3244 = vst [vmem:[%s224 + $0x18] sm:$0xff] %v3236
      %3245 = vst [vmem:[%s224 + $0x20] sm:$0xff] %v3237
      %3246 = vst [vmem:[%s224 + $0x28] sm:$0xff] %v3238
      %3247 = vst [vmem:[%s224 + $0x30] sm:$0xff] %v3239
      %3248 = vst [vmem:[%s224 + $0x38] sm:$0xff] %v3240
      %p3249 = scmp.lt.s32.totalorder %s16, 1
      %s3250 = scalar_select %p3249, %s16, 1
      %s3251 = smul.addr %s3250, 8
      %s3252 = smul.addr %s3251, 8
      %s3253 = scalar_lea.vmem %s5, %s3252
      // Predicated region
      $region41: #{cnn_forward.3} parent=39 // pred_check
        %p3254 = pneg %p144
      $region42: #{cnn_forward.3} parent=39 // pred_check_branch
        %3256 = sbr.rel (%p3254) target = $region44
      $region43: #{cnn_forward.3} parent=39 // pred_region
        _
      $region44: #{cnn_forward.3} parent=39 // pred_fallthru
        _
    $region40: #{cnn_forward.3} parent=5 // pred_fallthru
      _
    %p3257 = scmp.le.s32.totalorder 2, %s11
    // Predicated region
    $region45: #{cnn_forward.3} parent=5 // pred_check
      %p3258 = pneg %p3257
    $region46: #{cnn_forward.3} parent=5 // pred_check_branch
      %3260 = sbr.rel (%p3258) target = $region48
    $region47: #{cnn_forward.3} parent=5 // pred_region
      %s3261 = ssub.s32 %s11, 2
      // Predicated region
      $region49: #{cnn_forward.3} parent=47 // pred_check
        %p3262 = pneg %p150
      $region50: #{cnn_forward.3} parent=47 // pred_check_branch
        %3264 = sbr.rel (%p3262) target = $region52
      $region51: #{cnn_forward.3} parent=47 // pred_region
        %p3265 = scmp.lt.s32.totalorder %s17, 1
        %s3266 = scalar_select %p3265, %s17, 1
        %s3267 = smul.addr %s3266, 8
        %s3268 = smul.addr %s3267, 8
        %s3269 = scalar_lea.vmem %s5, %s3268
      $region52: #{cnn_forward.3} parent=47 // pred_fallthru
        _
    $region48: #{cnn_forward.3} parent=5 // pred_fallthru
      _
  $region6: #{cnn_forward.3} parent=0 // loop_footer
    %s15 = sadd.s32 1, %s11
  $region7: #{cnn_forward.3} parent=0 // loop_footer_branch
    %10 = sbr.rel target = $region3
  $region8: #{cnn_forward.3} parent=0 // loop_exit
    _

</llo_original>
